<compile_context>
chip_gen: v5e
topology: v5e:2x2
jax: 0.10.0
libtpu: 0.0.40
codegen_flags: <defaults>
</compile_context>

<pallas_src>
import functools

import jax
import jax.numpy as jnp
from jax.experimental import pallas as pl
from jax.experimental.pallas import tpu as pltpu


# ----------------------------------------------------------------------------
# Fused conv3x3(stride=1, pad=1) + ReLU + maxpool2x2(stride=2) kernel.
#
# Grid = (batch, row_block).  The wrapper builds a full im2col of the padded
# input with the 2x2 pool column-parity split onto a leading dim:
#   xcol[b, 2*h + p, wo, (dy*3+dx)*Cin + c] = x_pad[b, h+dy, 2*wo+p+dx, c]
# Each grid step loads 2*R such rows (R = 2*RB conv rows * 2 column parities),
# does ONE bf16 matmul with K = 9*Cin, adds bias, applies ReLU (f32), and
# max-reduces the row/column pool pairs with leading-dim slices only.
# ----------------------------------------------------------------------------
def _conv_relu_pool_kernel(x_ref, w_ref, b_ref, o_ref, *, RB, Wo, K, Cout):
    x = x_ref[0]                                           # (4*RB, Wo, K) bf16
    acc = jnp.dot(x.reshape(4 * RB * Wo, K), w_ref[...],
                  preferred_element_type=jnp.float32)      # (4*RB*Wo, Cout) f32
    acc = jnp.maximum(acc + b_ref[...], 0.0)               # bias + ReLU

    # Flat row index is ((2*rb + q)*2 + p)*Wo + wo  (q = row parity, p = col
    # parity), so both pool pairs are leading dims after this reshape (Wo is a
    # multiple of 8 -> layout-preserving).
    acc = acc.reshape(RB, 2, 2, Wo, Cout)
    m = jnp.maximum(jnp.maximum(acc[:, 0, 0], acc[:, 0, 1]),
                    jnp.maximum(acc[:, 1, 0], acc[:, 1, 1]))   # (RB, Wo, Cout)
    o_ref[0] = m.reshape(RB * Wo, Cout).astype(o_ref.dtype)


def conv3x3_relu_pool2(x_nhwc, w, b):
    """x_nhwc: (B,H,W,Cin) f32/bf16; w: (3,3,Cin,Cout) bf16; b: (1,Cout) f32.

    Returns (B, H//2, W//2, Cout) in bf16.
    """
    B, H, W, Cin = x_nhwc.shape
    Cout = w.shape[-1]
    Ho, Wo = H // 2, W // 2
    RB = min(8, Ho)                   # pooled output rows per grid step
    assert Ho % RB == 0
    NB = Ho // RB
    K = 9 * Cin

    xb = x_nhwc.astype(jnp.bfloat16)
    xp = jnp.pad(xb, ((0, 0), (1, 1), (1, 1), (0, 0)))     # 'same' padding
    # Full im2col: fold all 9 taps onto the channel (lane) axis.
    xcat = jnp.concatenate(
        [xp[:, dy:dy + H, dx:dx + W, :] for dy in range(3) for dx in range(3)],
        axis=-1)                                           # (B, H, W, 9*Cin)
    # Split output columns into even/odd (pool pairs) on a leading dim:
    #   xcol[b, 2*h + p, wo, :] = xcat[b, h, 2*wo + p, :]
    xcol = jnp.stack([xcat[:, :, 0::2, :], xcat[:, :, 1::2, :]], axis=2)
    xcol = xcol.reshape(B, 2 * H, Wo, K)

    wk = w.reshape(K, Cout)           # (dy*3+dx)*Cin + c row order, bf16

    kernel = functools.partial(_conv_relu_pool_kernel,
                               RB=RB, Wo=Wo, K=K, Cout=Cout)

    out = pl.pallas_call(
        kernel,
        out_shape=jax.ShapeDtypeStruct((B, Ho * Wo, Cout), jnp.bfloat16),
        grid_spec=pltpu.PrefetchScalarGridSpec(
            num_scalar_prefetch=0,
            grid=(B, NB),
            in_specs=[
                pl.BlockSpec((1, 4 * RB, Wo, K), lambda bb, jj: (bb, jj, 0, 0)),
                pl.BlockSpec((K, Cout), lambda bb, jj: (0, 0)),
                pl.BlockSpec((1, Cout), lambda bb, jj: (0, 0)),
            ],
            out_specs=pl.BlockSpec((1, RB * Wo, Cout), lambda bb, jj: (bb, jj, 0)),
        ),
        compiler_params=pltpu.CompilerParams(
            dimension_semantics=("parallel", "parallel")),
    )(xcol, wk, b)
    return out.reshape(B, Ho, Wo, Cout)


# ----------------------------------------------------------------------------
# Fused MLP head:  out = relu(x @ w1 + b1) @ w2 + b2
# Grid = (Hd splits, K tiles).  fc1 is K-tiled so the bf16 w1 streams through
# double-buffered VMEM tiles into an f32 accumulator; fc2 is fused into the
# last K step.  On v7x the Hd axis is split across the two TensorCores and
# the partial (B, N) logits are summed (with b2) in the wrapper.
# ----------------------------------------------------------------------------
def _mlp_kernel(x_ref, w1_ref, b1_ref, w2_ref, o_ref, acc_ref):
    k = pl.program_id(1)

    @pl.when(k == 0)
    def _():
        acc_ref[...] = jnp.zeros_like(acc_ref)

    acc_ref[...] += jnp.dot(x_ref[...], w1_ref[...],
                            preferred_element_type=jnp.float32)

    @pl.when(k == pl.num_programs(1) - 1)
    def _():
        h = jnp.maximum(acc_ref[...] + b1_ref[...], 0.0).astype(jnp.bfloat16)
        o_ref[0] = jnp.dot(h, w2_ref[...], preferred_element_type=jnp.float32)


def _is_v7x():
    try:
        kind = jax.devices()[0].device_kind.lower()
    except Exception:
        return False
    return ("v7" in kind) or ("7x" in kind)


def mlp_head(x, w1, b1, w2, b2):
    x = x.astype(jnp.bfloat16)        # no-op when activations are already bf16
    B, K = x.shape
    Hd = w1.shape[-1]
    N = w2.shape[-1]

    # v7x: bigger K tiles (3.2 TB/s HBM makes the fixed per-step cost visible)
    # and split Hd over the two TensorCores.  v5e/v6e: single core, 2 MiB tiles.
    v7 = _is_v7x()
    tk = 4096 if v7 else 2048
    nh = 2 if v7 else 1
    assert K % tk == 0 and Hd % nh == 0
    nk = K // tk
    hb = Hd // nh

    partial = pl.pallas_call(
        _mlp_kernel,
        out_shape=jax.ShapeDtypeStruct((nh, B, N), jnp.float32),
        grid_spec=pltpu.PrefetchScalarGridSpec(
            num_scalar_prefetch=0,
            grid=(nh, nk),
            in_specs=[
                pl.BlockSpec((B, tk), lambda h, k: (0, k)),
                pl.BlockSpec((tk, hb), lambda h, k: (k, h)),
                pl.BlockSpec((1, hb), lambda h, k: (0, h)),
                pl.BlockSpec((hb, N), lambda h, k: (h, 0)),
            ],
            out_specs=pl.BlockSpec((1, B, N), lambda h, k: (h, 0, 0)),
            scratch_shapes=[pltpu.VMEM((B, hb), jnp.float32)],
        ),
        compiler_params=pltpu.CompilerParams(
            dimension_semantics=("parallel", "arbitrary")),
    )(x, w1, b1, w2)
    # Fold the Hd-split partial logits and the fc2 bias (tiny (nh, B, 2) op).
    return partial.sum(axis=0) + b2


# ----------------------------------------------------------------------------
# Full forward pass (mirrors Net.forward).
# ----------------------------------------------------------------------------
def net_forward(x_nchw, params):
    # NCHW (PyTorch convention) -> NHWC for the kernels.
    x = jnp.transpose(x_nchw, (0, 2, 3, 1))
    x = conv3x3_relu_pool2(x, params["w1c"], params["b1c"])   # (B, 32, 32, 32)
    x = conv3x3_relu_pool2(x, params["w2c"], params["b2c"])   # (B, 16, 16, 64)
    x = conv3x3_relu_pool2(x, params["w3c"], params["b3c"])   # (B,  8,  8, 128)
    # fc1's weight rows are pre-permuted to NHWC-flatten order (init_params),
    # so the NHWC activation flattens directly -- no runtime transpose.
    B = x.shape[0]
    x = x.reshape(B, -1)                                      # (B, 8*8*128) bf16
    return mlp_head(x, params["wf1"], params["bf1"], params["wf2"], params["bf2"])


def init_params(key, in_channel):
    ks = jax.random.split(key, 10)

    def rnd(k, shape, scale, dtype=jnp.float32):
        return (scale * jax.random.normal(k, shape, jnp.float32)).astype(dtype)

    # fc1 weight generated in PyTorch (NCHW-flatten) row order, then permuted
    # ONCE here into NHWC-flatten row order so the forward pass needs no
    # transpose.  (Same recipe applies when importing real PyTorch weights.)
    wf1_nchw = rnd(ks[6], (128 * 8 * 8, 512), 0.01, jnp.float32)
    wf1_nhwc = (wf1_nchw.reshape(128, 8, 8, 512)
                        .transpose(1, 2, 0, 3)
                        .reshape(128 * 8 * 8, 512)
                        .astype(jnp.bfloat16))

    return {
        # matmul weights stored in bf16 (MXU-native); biases / elementwise f32.
        "w1c": rnd(ks[0], (3, 3, in_channel, 32), 0.1, jnp.bfloat16),
        "b1c": rnd(ks[1], (1, 32), 0.1),
        "w2c": rnd(ks[2], (3, 3, 32, 64), 0.05, jnp.bfloat16),
        "b2c": rnd(ks[3], (1, 64), 0.05),
        "w3c": rnd(ks[4], (3, 3, 64, 128), 0.05, jnp.bfloat16),
        "b3c": rnd(ks[5], (1, 128), 0.05),
        "wf1": wf1_nhwc,
        "bf1": rnd(ks[7], (1, 512), 0.01),
        "wf2": rnd(ks[8], (512, 2), 0.05, jnp.bfloat16),
        "bf2": rnd(ks[9], (1, 2), 0.05),
    }


if __name__ == "__main__":
    key = jax.random.PRNGKey(0)
    k_in, k_par = jax.random.split(key)

    # fc1 expects 128 * 8 * 8 features, which pins the input spatial size to
    # 64x64 (three /2 maxpools).  Keep batch/channels small.
    B, C_in, H, W = 2, 4, 64, 64
    x = jax.random.normal(k_in, (B, C_in, H, W), jnp.float32)
    params = init_params(k_par, C_in)

    out = jax.jit(net_forward)(x, params)
    jax.block_until_ready(out)
    assert out.shape == (B, 2), out.shape
    print("KERNEL_OK")
</pallas_src>

<mosaic_0001>
module attributes {stable_mosaic.version = 11 : i64} {
  func.func @_conv_relu_pool_kernel(%arg0: i32, %arg1: i32, %arg2: memref<1x32x32x36xbf16, #tpu.memory_space<vmem>>, %arg3: memref<36x32xbf16, #tpu.memory_space<vmem>>, %arg4: memref<1x32xf32, #tpu.memory_space<vmem>>, %arg5: memref<1x256x32xbf16, #tpu.memory_space<vmem>>) attributes {dimension_semantics = [#tpu.dimension_semantics<parallel>, #tpu.dimension_semantics<parallel>], iteration_bounds = array<i64: 2, 4>, scalar_prefetch = 0 : i64, scratch_operands = 0 : i64, tpu.core_type = #tpu.core_type<tc>, window_params = [{transform_indices = @transform_0, window_bounds = array<i64: 1, 32, 32, 36>}, {pipeline_mode = #tpu.pipeline_mode<synchronous>, transform_indices = @transform_1, window_bounds = array<i64: 36, 32>}, {pipeline_mode = #tpu.pipeline_mode<synchronous>, transform_indices = @transform_2, window_bounds = array<i64: 1, 32>}, {transform_indices = @transform_3, window_bounds = array<i64: 1, 256, 32>}]} {
    %c0 = arith.constant 0 : index
    %c0_0 = arith.constant 0 : index
    %c0_1 = arith.constant 0 : index
    %c0_2 = arith.constant 0 : index
    %0 = vector.load %arg2[%c0, %c0_0, %c0_1, %c0_2] : memref<1x32x32x36xbf16, #tpu.memory_space<vmem>>, vector<1x32x32x36xbf16>
    %1 = vector.shape_cast %0 : vector<1x32x32x36xbf16> to vector<32x32x36xbf16>
    %2 = vector.shape_cast %1 : vector<32x32x36xbf16> to vector<1024x36xbf16>
    %c0_3 = arith.constant 0 : index
    %c0_4 = arith.constant 0 : index
    %3 = vector.load %arg3[%c0_3, %c0_4] : memref<36x32xbf16, #tpu.memory_space<vmem>>, vector<36x32xbf16>
    %cst = arith.constant dense<0.000000e+00> : vector<1024x32xf32>
    %4 = tpu.matmul %2, %3, %cst {dimension_numbers = #tpu.dot_dimension_numbers<[1], [0], [0], [1], [0, 0, 1, 1], [], []>} : vector<1024x36xbf16>, vector<36x32xbf16>, vector<1024x32xf32> -> vector<1024x32xf32>
    %c0_5 = arith.constant 0 : index
    %c0_6 = arith.constant 0 : index
    %5 = vector.load %arg4[%c0_5, %c0_6] : memref<1x32xf32, #tpu.memory_space<vmem>>, vector<1x32xf32>
    %6 = vector.broadcast %5 : vector<1x32xf32> to vector<1024x32xf32>
    %7 = arith.addf %4, %6 : vector<1024x32xf32>
    %cst_7 = arith.constant 0.000000e+00 : f32
    %8 = vector.broadcast %cst_7 : f32 to vector<1024x32xf32>
    %9 = arith.maximumf %7, %8 : vector<1024x32xf32>
    %10 = vector.shape_cast %9 : vector<1024x32xf32> to vector<8x2x2x32x32xf32>
    %11 = vector.extract_strided_slice %10 {offsets = [0, 0, 0, 0, 0], sizes = [8, 1, 1, 32, 32], strides = [1, 1, 1, 1, 1]} : vector<8x2x2x32x32xf32> to vector<8x1x1x32x32xf32>
    %12 = vector.shape_cast %11 : vector<8x1x1x32x32xf32> to vector<8x32x32xf32>
    %13 = vector.extract_strided_slice %10 {offsets = [0, 0, 1, 0, 0], sizes = [8, 1, 1, 32, 32], strides = [1, 1, 1, 1, 1]} : vector<8x2x2x32x32xf32> to vector<8x1x1x32x32xf32>
    %14 = vector.shape_cast %13 : vector<8x1x1x32x32xf32> to vector<8x32x32xf32>
    %15 = arith.maximumf %12, %14 : vector<8x32x32xf32>
    %16 = vector.extract_strided_slice %10 {offsets = [0, 1, 0, 0, 0], sizes = [8, 1, 1, 32, 32], strides = [1, 1, 1, 1, 1]} : vector<8x2x2x32x32xf32> to vector<8x1x1x32x32xf32>
    %17 = vector.shape_cast %16 : vector<8x1x1x32x32xf32> to vector<8x32x32xf32>
    %18 = vector.extract_strided_slice %10 {offsets = [0, 1, 1, 0, 0], sizes = [8, 1, 1, 32, 32], strides = [1, 1, 1, 1, 1]} : vector<8x2x2x32x32xf32> to vector<8x1x1x32x32xf32>
    %19 = vector.shape_cast %18 : vector<8x1x1x32x32xf32> to vector<8x32x32xf32>
    %20 = arith.maximumf %17, %19 : vector<8x32x32xf32>
    %21 = arith.maximumf %15, %20 : vector<8x32x32xf32>
    %22 = vector.shape_cast %21 : vector<8x32x32xf32> to vector<256x32xf32>
    %23 = arith.truncf %22 : vector<256x32xf32> to vector<256x32xbf16>
    %c0_8 = arith.constant 0 : index
    %c0_9 = arith.constant 0 : index
    %c0_10 = arith.constant 0 : index
    %24 = vector.load %arg5[%c0_8, %c0_9, %c0_10] : memref<1x256x32xbf16, #tpu.memory_space<vmem>>, vector<1x256x32xbf16>
    %25 = vector.shape_cast %24 : vector<1x256x32xbf16> to vector<256x32xbf16>
    %26 = vector.shape_cast %23 : vector<256x32xbf16> to vector<1x256x32xbf16>
    tpu.vector_store %arg5[%c0_8, %c0_9, %c0_10], %26 {strides = array<i32>} : memref<1x256x32xbf16, #tpu.memory_space<vmem>>, vector<1x256x32xbf16>,
    return
  }
  func.func @transform_0(%arg0: i32, %arg1: i32) -> (i32, i32, i32, i32) {
    %c0_i32 = arith.constant 0 : i32
    %c0_i32_0 = arith.constant 0 : i32
    %c0_i32_1 = arith.constant 0 : i32
    return %arg0, %arg1, %c0_i32, %c0_i32_0 : i32, i32, i32, i32
  }
  func.func @transform_1(%arg0: i32, %arg1: i32) -> (i32, i32) {
    %c0_i32 = arith.constant 0 : i32
    %c0_i32_0 = arith.constant 0 : i32
    %c0_i32_1 = arith.constant 0 : i32
    return %c0_i32, %c0_i32_0 : i32, i32
  }
  func.func @transform_2(%arg0: i32, %arg1: i32) -> (i32, i32) {
    %c0_i32 = arith.constant 0 : i32
    %c0_i32_0 = arith.constant 0 : i32
    %c0_i32_1 = arith.constant 0 : i32
    return %c0_i32, %c0_i32_0 : i32, i32
  }
  func.func @transform_3(%arg0: i32, %arg1: i32) -> (i32, i32, i32) {
    %c0_i32 = arith.constant 0 : i32
    %c0_i32_0 = arith.constant 0 : i32
    return %arg0, %arg1, %c0_i32 : i32, i32, i32
  }
}

module attributes {stable_mosaic.version = 11 : i64} {
  func.func @_conv_relu_pool_kernel(%arg0: i32, %arg1: i32, %arg2: memref<1x32x16x288xbf16, #tpu.memory_space<vmem>>, %arg3: memref<288x64xbf16, #tpu.memory_space<vmem>>, %arg4: memref<1x64xf32, #tpu.memory_space<vmem>>, %arg5: memref<1x128x64xbf16, #tpu.memory_space<vmem>>) attributes {dimension_semantics = [#tpu.dimension_semantics<parallel>, #tpu.dimension_semantics<parallel>], iteration_bounds = array<i64: 2, 2>, scalar_prefetch = 0 : i64, scratch_operands = 0 : i64, tpu.core_type = #tpu.core_type<tc>, window_params = [{transform_indices = @transform_0, window_bounds = array<i64: 1, 32, 16, 288>}, {pipeline_mode = #tpu.pipeline_mode<synchronous>, transform_indices = @transform_1, window_bounds = array<i64: 288, 64>}, {pipeline_mode = #tpu.pipeline_mode<synchronous>, transform_indices = @transform_2, window_bounds = array<i64: 1, 64>}, {transform_indices = @transform_3, window_bounds = array<i64: 1, 128, 64>}]} {
    %c0 = arith.constant 0 : index
    %c0_0 = arith.constant 0 : index
    %c0_1 = arith.constant 0 : index
    %c0_2 = arith.constant 0 : index
    %0 = vector.load %arg2[%c0, %c0_0, %c0_1, %c0_2] : memref<1x32x16x288xbf16, #tpu.memory_space<vmem>>, vector<1x32x16x288xbf16>
    %1 = vector.shape_cast %0 : vector<1x32x16x288xbf16> to vector<32x16x288xbf16>
    %2 = vector.shape_cast %1 : vector<32x16x288xbf16> to vector<512x288xbf16>
    %c0_3 = arith.constant 0 : index
    %c0_4 = arith.constant 0 : index
    %3 = vector.load %arg3[%c0_3, %c0_4] : memref<288x64xbf16, #tpu.memory_space<vmem>>, vector<288x64xbf16>
    %cst = arith.constant dense<0.000000e+00> : vector<512x64xf32>
    %4 = tpu.matmul %2, %3, %cst {dimension_numbers = #tpu.dot_dimension_numbers<[1], [0], [0], [1], [0, 0, 1, 1], [], []>} : vector<512x288xbf16>, vector<288x64xbf16>, vector<512x64xf32> -> vector<512x64xf32>
    %c0_5 = arith.constant 0 : index
    %c0_6 = arith.constant 0 : index
    %5 = vector.load %arg4[%c0_5, %c0_6] : memref<1x64xf32, #tpu.memory_space<vmem>>, vector<1x64xf32>
    %6 = vector.broadcast %5 : vector<1x64xf32> to vector<512x64xf32>
    %7 = arith.addf %4, %6 : vector<512x64xf32>
    %cst_7 = arith.constant 0.000000e+00 : f32
    %8 = vector.broadcast %cst_7 : f32 to vector<512x64xf32>
    %9 = arith.maximumf %7, %8 : vector<512x64xf32>
    %10 = vector.shape_cast %9 : vector<512x64xf32> to vector<8x2x2x16x64xf32>
    %11 = vector.extract_strided_slice %10 {offsets = [0, 0, 0, 0, 0], sizes = [8, 1, 1, 16, 64], strides = [1, 1, 1, 1, 1]} : vector<8x2x2x16x64xf32> to vector<8x1x1x16x64xf32>
    %12 = vector.shape_cast %11 : vector<8x1x1x16x64xf32> to vector<8x16x64xf32>
    %13 = vector.extract_strided_slice %10 {offsets = [0, 0, 1, 0, 0], sizes = [8, 1, 1, 16, 64], strides = [1, 1, 1, 1, 1]} : vector<8x2x2x16x64xf32> to vector<8x1x1x16x64xf32>
    %14 = vector.shape_cast %13 : vector<8x1x1x16x64xf32> to vector<8x16x64xf32>
    %15 = arith.maximumf %12, %14 : vector<8x16x64xf32>
    %16 = vector.extract_strided_slice %10 {offsets = [0, 1, 0, 0, 0], sizes = [8, 1, 1, 16, 64], strides = [1, 1, 1, 1, 1]} : vector<8x2x2x16x64xf32> to vector<8x1x1x16x64xf32>
    %17 = vector.shape_cast %16 : vector<8x1x1x16x64xf32> to vector<8x16x64xf32>
    %18 = vector.extract_strided_slice %10 {offsets = [0, 1, 1, 0, 0], sizes = [8, 1, 1, 16, 64], strides = [1, 1, 1, 1, 1]} : vector<8x2x2x16x64xf32> to vector<8x1x1x16x64xf32>
    %19 = vector.shape_cast %18 : vector<8x1x1x16x64xf32> to vector<8x16x64xf32>
    %20 = arith.maximumf %17, %19 : vector<8x16x64xf32>
    %21 = arith.maximumf %15, %20 : vector<8x16x64xf32>
    %22 = vector.shape_cast %21 : vector<8x16x64xf32> to vector<128x64xf32>
    %23 = arith.truncf %22 : vector<128x64xf32> to vector<128x64xbf16>
    %c0_8 = arith.constant 0 : index
    %c0_9 = arith.constant 0 : index
    %c0_10 = arith.constant 0 : index
    %24 = vector.load %arg5[%c0_8, %c0_9, %c0_10] : memref<1x128x64xbf16, #tpu.memory_space<vmem>>, vector<1x128x64xbf16>
    %25 = vector.shape_cast %24 : vector<1x128x64xbf16> to vector<128x64xbf16>
    %26 = vector.shape_cast %23 : vector<128x64xbf16> to vector<1x128x64xbf16>
    tpu.vector_store %arg5[%c0_8, %c0_9, %c0_10], %26 {strides = array<i32>} : memref<1x128x64xbf16, #tpu.memory_space<vmem>>, vector<1x128x64xbf16>,
    return
  }
  func.func @transform_0(%arg0: i32, %arg1: i32) -> (i32, i32, i32, i32) {
    %c0_i32 = arith.constant 0 : i32
    %c0_i32_0 = arith.constant 0 : i32
    %c0_i32_1 = arith.constant 0 : i32
    return %arg0, %arg1, %c0_i32, %c0_i32_0 : i32, i32, i32, i32
  }
  func.func @transform_1(%arg0: i32, %arg1: i32) -> (i32, i32) {
    %c0_i32 = arith.constant 0 : i32
    %c0_i32_0 = arith.constant 0 : i32
    %c0_i32_1 = arith.constant 0 : i32
    return %c0_i32, %c0_i32_0 : i32, i32
  }
  func.func @transform_2(%arg0: i32, %arg1: i32) -> (i32, i32) {
    %c0_i32 = arith.constant 0 : i32
    %c0_i32_0 = arith.constant 0 : i32
    %c0_i32_1 = arith.constant 0 : i32
    return %c0_i32, %c0_i32_0 : i32, i32
  }
  func.func @transform_3(%arg0: i32, %arg1: i32) -> (i32, i32, i32) {
    %c0_i32 = arith.constant 0 : i32
    %c0_i32_0 = arith.constant 0 : i32
    return %arg0, %arg1, %c0_i32 : i32, i32, i32
  }
}

module attributes {stable_mosaic.version = 11 : i64} {
  func.func @_conv_relu_pool_kernel(%arg0: i32, %arg1: i32, %arg2: memref<1x32x8x576xbf16, #tpu.memory_space<vmem>>, %arg3: memref<576x128xbf16, #tpu.memory_space<vmem>>, %arg4: memref<1x128xf32, #tpu.memory_space<vmem>>, %arg5: memref<1x64x128xbf16, #tpu.memory_space<vmem>>) attributes {dimension_semantics = [#tpu.dimension_semantics<parallel>, #tpu.dimension_semantics<parallel>], iteration_bounds = array<i64: 2, 1>, scalar_prefetch = 0 : i64, scratch_operands = 0 : i64, tpu.core_type = #tpu.core_type<tc>, window_params = [{transform_indices = @transform_0, window_bounds = array<i64: 1, 32, 8, 576>}, {pipeline_mode = #tpu.pipeline_mode<synchronous>, transform_indices = @transform_1, window_bounds = array<i64: 576, 128>}, {pipeline_mode = #tpu.pipeline_mode<synchronous>, transform_indices = @transform_2, window_bounds = array<i64: 1, 128>}, {transform_indices = @transform_3, window_bounds = array<i64: 1, 64, 128>}]} {
    %c0 = arith.constant 0 : index
    %c0_0 = arith.constant 0 : index
    %c0_1 = arith.constant 0 : index
    %c0_2 = arith.constant 0 : index
    %0 = vector.load %arg2[%c0, %c0_0, %c0_1, %c0_2] : memref<1x32x8x576xbf16, #tpu.memory_space<vmem>>, vector<1x32x8x576xbf16>
    %1 = vector.shape_cast %0 : vector<1x32x8x576xbf16> to vector<32x8x576xbf16>
    %2 = vector.shape_cast %1 : vector<32x8x576xbf16> to vector<256x576xbf16>
    %c0_3 = arith.constant 0 : index
    %c0_4 = arith.constant 0 : index
    %3 = vector.load %arg3[%c0_3, %c0_4] : memref<576x128xbf16, #tpu.memory_space<vmem>>, vector<576x128xbf16>
    %cst = arith.constant dense<0.000000e+00> : vector<256x128xf32>
    %4 = tpu.matmul %2, %3, %cst {dimension_numbers = #tpu.dot_dimension_numbers<[1], [0], [0], [1], [0, 0, 1, 1], [], []>} : vector<256x576xbf16>, vector<576x128xbf16>, vector<256x128xf32> -> vector<256x128xf32>
    %c0_5 = arith.constant 0 : index
    %c0_6 = arith.constant 0 : index
    %5 = vector.load %arg4[%c0_5, %c0_6] : memref<1x128xf32, #tpu.memory_space<vmem>>, vector<1x128xf32>
    %6 = vector.broadcast %5 : vector<1x128xf32> to vector<256x128xf32>
    %7 = arith.addf %4, %6 : vector<256x128xf32>
    %cst_7 = arith.constant 0.000000e+00 : f32
    %8 = vector.broadcast %cst_7 : f32 to vector<256x128xf32>
    %9 = arith.maximumf %7, %8 : vector<256x128xf32>
    %10 = vector.shape_cast %9 : vector<256x128xf32> to vector<8x2x2x8x128xf32>
    %11 = vector.extract_strided_slice %10 {offsets = [0, 0, 0, 0, 0], sizes = [8, 1, 1, 8, 128], strides = [1, 1, 1, 1, 1]} : vector<8x2x2x8x128xf32> to vector<8x1x1x8x128xf32>
    %12 = vector.shape_cast %11 : vector<8x1x1x8x128xf32> to vector<8x8x128xf32>
    %13 = vector.extract_strided_slice %10 {offsets = [0, 0, 1, 0, 0], sizes = [8, 1, 1, 8, 128], strides = [1, 1, 1, 1, 1]} : vector<8x2x2x8x128xf32> to vector<8x1x1x8x128xf32>
    %14 = vector.shape_cast %13 : vector<8x1x1x8x128xf32> to vector<8x8x128xf32>
    %15 = arith.maximumf %12, %14 : vector<8x8x128xf32>
    %16 = vector.extract_strided_slice %10 {offsets = [0, 1, 0, 0, 0], sizes = [8, 1, 1, 8, 128], strides = [1, 1, 1, 1, 1]} : vector<8x2x2x8x128xf32> to vector<8x1x1x8x128xf32>
    %17 = vector.shape_cast %16 : vector<8x1x1x8x128xf32> to vector<8x8x128xf32>
    %18 = vector.extract_strided_slice %10 {offsets = [0, 1, 1, 0, 0], sizes = [8, 1, 1, 8, 128], strides = [1, 1, 1, 1, 1]} : vector<8x2x2x8x128xf32> to vector<8x1x1x8x128xf32>
    %19 = vector.shape_cast %18 : vector<8x1x1x8x128xf32> to vector<8x8x128xf32>
    %20 = arith.maximumf %17, %19 : vector<8x8x128xf32>
    %21 = arith.maximumf %15, %20 : vector<8x8x128xf32>
    %22 = vector.shape_cast %21 : vector<8x8x128xf32> to vector<64x128xf32>
    %23 = arith.truncf %22 : vector<64x128xf32> to vector<64x128xbf16>
    %c0_8 = arith.constant 0 : index
    %c0_9 = arith.constant 0 : index
    %c0_10 = arith.constant 0 : index
    %24 = vector.load %arg5[%c0_8, %c0_9, %c0_10] : memref<1x64x128xbf16, #tpu.memory_space<vmem>>, vector<1x64x128xbf16>
    %25 = vector.shape_cast %24 : vector<1x64x128xbf16> to vector<64x128xbf16>
    %26 = vector.shape_cast %23 : vector<64x128xbf16> to vector<1x64x128xbf16>
    tpu.vector_store %arg5[%c0_8, %c0_9, %c0_10], %26 {strides = array<i32>} : memref<1x64x128xbf16, #tpu.memory_space<vmem>>, vector<1x64x128xbf16>,
    return
  }
  func.func @transform_0(%arg0: i32, %arg1: i32) -> (i32, i32, i32, i32) {
    %c0_i32 = arith.constant 0 : i32
    %c0_i32_0 = arith.constant 0 : i32
    %c0_i32_1 = arith.constant 0 : i32
    return %arg0, %arg1, %c0_i32, %c0_i32_0 : i32, i32, i32, i32
  }
  func.func @transform_1(%arg0: i32, %arg1: i32) -> (i32, i32) {
    %c0_i32 = arith.constant 0 : i32
    %c0_i32_0 = arith.constant 0 : i32
    %c0_i32_1 = arith.constant 0 : i32
    return %c0_i32, %c0_i32_0 : i32, i32
  }
  func.func @transform_2(%arg0: i32, %arg1: i32) -> (i32, i32) {
    %c0_i32 = arith.constant 0 : i32
    %c0_i32_0 = arith.constant 0 : i32
    %c0_i32_1 = arith.constant 0 : i32
    return %c0_i32, %c0_i32_0 : i32, i32
  }
  func.func @transform_3(%arg0: i32, %arg1: i32) -> (i32, i32, i32) {
    %c0_i32 = arith.constant 0 : i32
    %c0_i32_0 = arith.constant 0 : i32
    return %arg0, %arg1, %c0_i32 : i32, i32, i32
  }
}

module attributes {stable_mosaic.version = 11 : i64} {
  func.func @_mlp_kernel(%arg0: i32, %arg1: i32, %arg2: memref<2x2048xbf16, #tpu.memory_space<vmem>>, %arg3: memref<2048x512xbf16, #tpu.memory_space<vmem>>, %arg4: memref<1x512xf32, #tpu.memory_space<vmem>>, %arg5: memref<512x2xbf16, #tpu.memory_space<vmem>>, %arg6: memref<1x2x2xf32, #tpu.memory_space<vmem>>, %arg7: memref<2x512xf32, #tpu.memory_space<vmem>>) attributes {dimension_semantics = [#tpu.dimension_semantics<parallel>, #tpu.dimension_semantics<arbitrary>], iteration_bounds = array<i64: 1, 4>, scalar_prefetch = 0 : i64, scratch_operands = 1 : i64, tpu.core_type = #tpu.core_type<tc>, window_params = [{transform_indices = @transform_0, window_bounds = array<i64: 2, 2048>}, {transform_indices = @transform_1, window_bounds = array<i64: 2048, 512>}, {transform_indices = @transform_2, window_bounds = array<i64: 1, 512>}, {transform_indices = @transform_3, window_bounds = array<i64: 512, 2>}, {transform_indices = @transform_4, window_bounds = array<i64: 1, 2, 2>}]} {
    %c0_i32 = arith.constant 0 : i32
    %0 = arith.cmpi eq, %arg1, %c0_i32 : i32
    %1 = arith.extui %0 : i1 to i32
    %c0_i32_0 = arith.constant 0 : i32
    %2 = arith.cmpi ne, %1, %c0_i32_0 : i32
    scf.if %2 {
      %cst_9 = arith.constant 0.000000e+00 : f32
      %12 = vector.broadcast %cst_9 : f32 to vector<2x512xf32>
      %c0_10 = arith.constant 0 : index
      %c0_11 = arith.constant 0 : index
      %13 = vector.load %arg7[%c0_10, %c0_11] : memref<2x512xf32, #tpu.memory_space<vmem>>, vector<2x512xf32>
      tpu.vector_store %arg7[%c0_10, %c0_11], %12 {strides = array<i32>} : memref<2x512xf32, #tpu.memory_space<vmem>>, vector<2x512xf32>,
    } else {
    }
    %c0 = arith.constant 0 : index
    %c0_1 = arith.constant 0 : index
    %3 = vector.load %arg7[%c0, %c0_1] : memref<2x512xf32, #tpu.memory_space<vmem>>, vector<2x512xf32>
    %c0_2 = arith.constant 0 : index
    %c0_3 = arith.constant 0 : index
    %4 = vector.load %arg2[%c0_2, %c0_3] : memref<2x2048xbf16, #tpu.memory_space<vmem>>, vector<2x2048xbf16>
    %c0_4 = arith.constant 0 : index
    %c0_5 = arith.constant 0 : index
    %5 = vector.load %arg3[%c0_4, %c0_5] : memref<2048x512xbf16, #tpu.memory_space<vmem>>, vector<2048x512xbf16>
    %cst = arith.constant dense<0.000000e+00> : vector<2x512xf32>
    %6 = tpu.matmul %4, %5, %cst {dimension_numbers = #tpu.dot_dimension_numbers<[1], [0], [0], [1], [0, 0, 1, 1], [], []>} : vector<2x2048xbf16>, vector<2048x512xbf16>, vector<2x512xf32> -> vector<2x512xf32>
    %7 = arith.addf %3, %6 : vector<2x512xf32>
    %c0_6 = arith.constant 0 : index
    %c0_7 = arith.constant 0 : index
    %8 = vector.load %arg7[%c0_6, %c0_7] : memref<2x512xf32, #tpu.memory_space<vmem>>, vector<2x512xf32>
    tpu.vector_store %arg7[%c0_6, %c0_7], %7 {strides = array<i32>} : memref<2x512xf32, #tpu.memory_space<vmem>>, vector<2x512xf32>,
    %c3_i32 = arith.constant 3 : i32
    %9 = arith.cmpi eq, %arg1, %c3_i32 : i32
    %10 = arith.extui %9 : i1 to i32
    %c0_i32_8 = arith.constant 0 : i32
    %11 = arith.cmpi ne, %10, %c0_i32_8 : i32
    scf.if %11 {
      %c0_9 = arith.constant 0 : index
      %c0_10 = arith.constant 0 : index
      %12 = vector.load %arg7[%c0_9, %c0_10] : memref<2x512xf32, #tpu.memory_space<vmem>>, vector<2x512xf32>
      %c0_11 = arith.constant 0 : index
      %c0_12 = arith.constant 0 : index
      %13 = vector.load %arg4[%c0_11, %c0_12] : memref<1x512xf32, #tpu.memory_space<vmem>>, vector<1x512xf32>
      %14 = vector.broadcast %13 : vector<1x512xf32> to vector<2x512xf32>
      %15 = arith.addf %12, %14 : vector<2x512xf32>
      %cst_13 = arith.constant 0.000000e+00 : f32
      %16 = vector.broadcast %cst_13 : f32 to vector<2x512xf32>
      %17 = arith.maximumf %15, %16 : vector<2x512xf32>
      %18 = arith.truncf %17 : vector<2x512xf32> to vector<2x512xbf16>
      %c0_14 = arith.constant 0 : index
      %c0_15 = arith.constant 0 : index
      %19 = vector.load %arg5[%c0_14, %c0_15] : memref<512x2xbf16, #tpu.memory_space<vmem>>, vector<512x2xbf16>
      %cst_16 = arith.constant dense<0.000000e+00> : vector<2x2xf32>
      %20 = tpu.matmul %18, %19, %cst_16 {dimension_numbers = #tpu.dot_dimension_numbers<[1], [0], [0], [1], [0, 0, 1, 1], [], []>} : vector<2x512xbf16>, vector<512x2xbf16>, vector<2x2xf32> -> vector<2x2xf32>
      %c0_17 = arith.constant 0 : index
      %c0_18 = arith.constant 0 : index
      %c0_19 = arith.constant 0 : index
      %21 = vector.load %arg6[%c0_17, %c0_18, %c0_19] : memref<1x2x2xf32, #tpu.memory_space<vmem>>, vector<1x2x2xf32>
      %22 = vector.shape_cast %21 : vector<1x2x2xf32> to vector<2x2xf32>
      %23 = vector.shape_cast %20 : vector<2x2xf32> to vector<1x2x2xf32>
      tpu.vector_store %arg6[%c0_17, %c0_18, %c0_19], %23 {strides = array<i32>} : memref<1x2x2xf32, #tpu.memory_space<vmem>>, vector<1x2x2xf32>,
    } else {
    }
    return
  }
  func.func @transform_0(%arg0: i32, %arg1: i32) -> (i32, i32) {
    %c0_i32 = arith.constant 0 : i32
    %c0_i32_0 = arith.constant 0 : i32
    return %c0_i32, %arg1 : i32, i32
  }
  func.func @transform_1(%arg0: i32, %arg1: i32) -> (i32, i32) {
    %c0_i32 = arith.constant 0 : i32
    return %arg1, %arg0 : i32, i32
  }
  func.func @transform_2(%arg0: i32, %arg1: i32) -> (i32, i32) {
    %c0_i32 = arith.constant 0 : i32
    %c0_i32_0 = arith.constant 0 : i32
    return %c0_i32, %arg0 : i32, i32
  }
  func.func @transform_3(%arg0: i32, %arg1: i32) -> (i32, i32) {
    %c0_i32 = arith.constant 0 : i32
    %c0_i32_0 = arith.constant 0 : i32
    return %arg0, %c0_i32 : i32, i32
  }
  func.func @transform_4(%arg0: i32, %arg1: i32) -> (i32, i32, i32) {
    %c0_i32 = arith.constant 0 : i32
    %c0_i32_0 = arith.constant 0 : i32
    %c0_i32_1 = arith.constant 0 : i32
    return %arg0, %c0_i32, %c0_i32_0 : i32, i32, i32
  }
}

</mosaic_0001>

<llo_original>
// kernel: net_forward.4
$region0: #{net_forward.4}
  #allocation0 [shape = 'u32[]', space=smem, size = 0x4, offset = 0x4, fixed_abs, tag = 'smem constant byte address 0x4 - core index']
  #allocation1 [shape = 'u32[72,128]{1,0:T(1,128)}', space=vmem, size = 0x9000, scoped, tag = 'internal scratch']
  %s0 = inlined_call_operand.vmem [shape: bf16[2,128,32,36], index: 0, kind: input, shape index: {}]
  %s1 = inlined_call_operand.vmem [shape: bf16[36,32], index: 1, kind: input, shape index: {}]
  %s2 = inlined_call_operand.vmem [shape: f32[1,32], index: 2, kind: input, shape index: {}]
  %s3 = inlined_call_operand.vmem [shape: bf16[2,1024,32], index: 3, kind: output, shape index: {}]
  %s4 = sld [smem:[#allocation0]]
  $region45: #{net_forward.4} parent=0
    _
  %s6 = ssub.s32 1, %s4
  %s7 = scalar_select 0, %s6, %s4
  loop: start=0, step=1, limit=10
  $region2: #{net_forward.4} parent=0 // loop_pre_header
    _
  $region3: #{net_forward.4} parent=0 // loop_header
    %s9 = sphi 0, %s13
    %p10 = scmp.ge.s32.totalorder %s9, 10
    %s16 = sphi 0, %s28
    %s17 = sphi 0, %s24
    %s18 = sphi 0, %s16
    %s19 = sphi 0, %s17
    %s20 = sphi 0, %s18
    %s21 = sphi 0, %s19
    %s33 = sphi 0, %s35
    %s36 = sphi 0, %s33
    %s37 = sphi 0, %s36
    %s53 = sphi 0, %s37
    %s57 = sphi 0, %s57
    %s59 = sphi 0, %s57
    %s60 = sphi 0, %s59
    %s74 = sphi 0, %s60
    %s78 = sphi 0, %s78
    %s80 = sphi 0, %s78
    %s81 = sphi 0, %s80
    %s95 = sphi 0, %s81
    %s103 = sphi 0, %s105
    %s106 = sphi 0, %s103
    %s107 = sphi 0, %s106
    %s123 = sphi 0, %s107
  $region4: #{net_forward.4} parent=0 // loop_header_branch
    %12 = sbr.rel (%p10) target = $region8
  $region5: #{net_forward.4} parent=0 // loop_body
    %s14 = ssub.s32 %s9, 1
    %s15 = ssub.s32 %s9, 2
    %s22 = sadd.s32 1, %s17
    %p23 = scmp.ge.s32.totalorder %s22, 4
    %s24 = scalar_select %p23, 0, %s22
    %s25 = sadd.s32 1, %s16
    %s26 = scalar_select %p23, %s25, %s16
    %p27 = scmp.ge.s32.totalorder %s26, 2
    %s28 = scalar_select %p27, 0, %s26
    %s29 = ssub.s32 %s16, %s28
    %s30 = ssub.s32 %s17, %s24
    %s31 = sor.u32 %s29, %s30
    %p32 = scmp.eq.s32.totalorder %s31, 0
    %s34 = sadd.s32 %s33, 1
    %s35 = scalar_select %p32, %s33, %s34
    %p38 = pneg %p32
    %p39 = scmp.eq.s32.totalorder %s9, 7
    %p40 = por %p38, %p39
    %p41 = scmp.ne.s32.totalorder %s33, %s36
    %p42 = scmp.eq.s32.totalorder %s9, 0
    %p43 = por %p41, %p42
    %p44 = scmp.ne.s32.totalorder %s33, %s36
    %p45 = scmp.eq.s32.totalorder %s14, 7
    %p46 = por %p44, %p45
    %p47 = scmp.ne.s32.totalorder %s36, %s37
    %p48 = scmp.eq.s32.totalorder %s14, 0
    %p49 = por %p47, %p48
    %p50 = scmp.ne.s32.totalorder %s36, %s37
    %p51 = scmp.eq.s32.totalorder %s15, 7
    %p52 = por %p50, %p51
    %p54 = scmp.ne.s32.totalorder %s37, %s53
    %p55 = scmp.eq.s32.totalorder %s15, 0
    %p56 = por %p54, %p55
    %s58 = sadd.s32 %s57, 1
    %p61 = scmp.eq.s32.totalorder %s9, 7
    %p62 = scmp.ne.s32.totalorder %s57, %s59
    %p63 = scmp.eq.s32.totalorder %s9, 0
    %p64 = por %p62, %p63
    %p65 = scmp.ne.s32.totalorder %s57, %s59
    %p66 = scmp.eq.s32.totalorder %s14, 7
    %p67 = por %p65, %p66
    %p68 = scmp.ne.s32.totalorder %s59, %s60
    %p69 = scmp.eq.s32.totalorder %s14, 0
    %p70 = por %p68, %p69
    %p71 = scmp.ne.s32.totalorder %s59, %s60
    %p72 = scmp.eq.s32.totalorder %s15, 7
    %p73 = por %p71, %p72
    %p75 = scmp.ne.s32.totalorder %s60, %s74
    %p76 = scmp.eq.s32.totalorder %s15, 0
    %p77 = por %p75, %p76
    %s79 = sadd.s32 %s78, 1
    %p82 = scmp.eq.s32.totalorder %s9, 7
    %p83 = scmp.ne.s32.totalorder %s78, %s80
    %p84 = scmp.eq.s32.totalorder %s9, 0
    %p85 = por %p83, %p84
    %p86 = scmp.ne.s32.totalorder %s78, %s80
    %p87 = scmp.eq.s32.totalorder %s14, 7
    %p88 = por %p86, %p87
    %p89 = scmp.ne.s32.totalorder %s80, %s81
    %p90 = scmp.eq.s32.totalorder %s14, 0
    %p91 = por %p89, %p90
    %p92 = scmp.ne.s32.totalorder %s80, %s81
    %p93 = scmp.eq.s32.totalorder %s15, 7
    %p94 = por %p92, %p93
    %p96 = scmp.ne.s32.totalorder %s81, %s95
    %p97 = scmp.eq.s32.totalorder %s15, 0
    %p98 = por %p96, %p97
    %s99 = ssub.s32 %s16, %s28
    %s100 = ssub.s32 %s17, %s24
    %s101 = sor.u32 %s99, %s100
    %p102 = scmp.eq.s32.totalorder %s101, 0
    %s104 = sadd.s32 %s103, 1
    %s105 = scalar_select %p102, %s103, %s104
    %p108 = pneg %p102
    %p109 = scmp.eq.s32.totalorder %s9, 7
    %p110 = por %p108, %p109
    %p111 = scmp.ne.s32.totalorder %s103, %s106
    %p112 = scmp.eq.s32.totalorder %s9, 0
    %p113 = por %p111, %p112
    %p114 = scmp.ne.s32.totalorder %s103, %s106
    %p115 = scmp.eq.s32.totalorder %s14, 7
    %p116 = por %p114, %p115
    %p117 = scmp.ne.s32.totalorder %s106, %s107
    %p118 = scmp.eq.s32.totalorder %s14, 0
    %p119 = por %p117, %p118
    %p120 = scmp.ne.s32.totalorder %s106, %s107
    %p121 = scmp.eq.s32.totalorder %s15, 7
    %p122 = por %p120, %p121
    %p124 = scmp.ne.s32.totalorder %s107, %s123
    %p125 = scmp.eq.s32.totalorder %s15, 0
    %p126 = por %p124, %p125
    %p127 = scmp.le.s32.totalorder 1, %s9
    %p128 = scmp.lt.s32.totalorder %s9, 9
    %p129 = pnand %p127, %p128
    %p130 = pneg %p129
    // Predicated region
    $region9: #{net_forward.4} parent=5 // pred_check
      _
    $region10: #{net_forward.4} parent=5 // pred_check_branch
      %132 = sbr.rel (%p129) target = $region12
    $region11: #{net_forward.4} parent=5 // pred_region
      %s133 = ssub.s32 %s9, 1
      // Predicated region
      $region13: #{net_forward.4} parent=11 // pred_check
        %p134 = pneg %p70
      $region14: #{net_forward.4} parent=11 // pred_check_branch
        %136 = sbr.rel (%p134) target = $region16
      $region15: #{net_forward.4} parent=11 // pred_region
        _
      $region16: #{net_forward.4} parent=11 // pred_fallthru
        _
      // Predicated region
      $region17: #{net_forward.4} parent=11 // pred_check
        %p137 = pneg %p91
      $region18: #{net_forward.4} parent=11 // pred_check_branch
        %139 = sbr.rel (%p137) target = $region20
      $region19: #{net_forward.4} parent=11 // pred_region
        _
      $region20: #{net_forward.4} parent=11 // pred_fallthru
        _
    $region12: #{net_forward.4} parent=5 // pred_fallthru
      _
    %p140 = scmp.lt.s32.totalorder %s9, 8
    // Predicated region
    $region21: #{net_forward.4} parent=5 // pred_check
      %p141 = pneg %p140
    $region22: #{net_forward.4} parent=5 // pred_check_branch
      %143 = sbr.rel (%p141) target = $region24
    $region23: #{net_forward.4} parent=5 // pred_region
      // Predicated region
      $region25: #{net_forward.4} parent=23 // pred_check
        %p144 = pneg %p43
      $region26: #{net_forward.4} parent=23 // pred_check_branch
        %146 = sbr.rel (%p144) target = $region28
      $region27: #{net_forward.4} parent=23 // pred_region
        %s147 = smul.u32 32, %s17
        %p148 = scmp.lt.s32.totalorder %s16, 1
        %s149 = scalar_select %p148, %s16, 1
        %p150 = scmp.lt.s32.totalorder %s147, 127
        %s151 = scalar_select %p150, %s147, 127
        %s152 = smul.addr %s151, 4
        %s153 = smul.addr %s149, 512
        %s154 = sadd.s32 %s152, %s153
        %s155 = smul.addr %s154, 4
        %s156 = scalar_lea.vmem %s0, %s155
        %s157 = smul.u32 32, %s17
      $region28: #{net_forward.4} parent=23 // pred_fallthru
        _
    $region24: #{net_forward.4} parent=5 // pred_fallthru
      _
    %p158 = scmp.le.s32.totalorder 1, %s9
    %p159 = scmp.lt.s32.totalorder %s9, 9
    %p160 = pnand %p158, %p159
    %p161 = pneg %p160
    // Predicated region
    $region29: #{net_forward.4} parent=5 // pred_check
      _
    $region30: #{net_forward.4} parent=5 // pred_check_branch
      %163 = sbr.rel (%p160) target = $region32
    $region31: #{net_forward.4} parent=5 // pred_region
      %s164 = ssub.s32 %s9, 1
      %s165 = smul.u32 32, %s19
      %p166 = scmp.lt.s32.totalorder %s18, 1
      %s167 = scalar_select %p166, %s18, 1
      %p168 = scmp.lt.s32.totalorder %s165, 127
      %s169 = scalar_select %p168, %s165, 127
      %s170 = smul.addr %s169, 4
      %s171 = smul.addr %s167, 512
      %s172 = sadd.s32 %s170, %s171
      %s173 = smul.addr %s172, 4
      %s174 = scalar_lea.vmem %s0, %s173
      %p175 = pneg %p49
      %p176 = pneg %p46
      %p177 = pneg %p70
      %p178 = pneg %p67
      %p179 = pneg %p91
      %p180 = pneg %p88
      %p181 = pneg %p119
      %p182 = pneg %p116
      %s183 = smul.u32 32, %s19
      %p184 = scmp.lt.s32.totalorder %s18, 1
      %s185 = scalar_select %p184, %s18, 1
      %p186 = scmp.lt.s32.totalorder %s183, 127
      %s187 = scalar_select %p186, %s183, 127
      %s188 = smul.addr %s185, 128
      %s189 = sadd.s32 %s187, %s188
      %s190 = smul.addr %s189, 4
      %s191 = scalar_lea.vmem %s3, %s190
      %s192 = smul.u32 32, %s19
      %p193 = scmp.lt.s32.totalorder %s18, 1
      %s194 = scalar_select %p193, %s18, 1
      %p195 = scmp.lt.s32.totalorder %s192, 127
      %s196 = scalar_select %p195, %s192, 127
      %s197 = smul.addr %s196, 4
      %s198 = smul.addr %s194, 512
      %s199 = sadd.s32 %s197, %s198
      %s200 = smul.addr %s199, 4
      %s201 = scalar_lea.vmem %s0, %s200
      %s202 = smul.u32 32, %s19
      %s203 = smul.u32 32, %s19
      %p204 = scmp.lt.s32.totalorder %s18, 1
      %s205 = scalar_select %p204, %s18, 1
      %p206 = scmp.lt.s32.totalorder %s203, 127
      %s207 = scalar_select %p206, %s203, 127
      %s208 = smul.addr %s205, 128
      %s209 = sadd.s32 %s207, %s208
      %s210 = smul.addr %s209, 4
      %s211 = scalar_lea.vmem %s3, %s210
      %s212 = smul.u32 32, %s19
      %v214 = vld [vmem:[%s201] sm:$0xf]
      %v215 = vld [vmem:[%s201 + $0x4] sm:$0xf]
      %v216 = vld [vmem:[%s201 + $0x8] sm:$0xf]
      %v217 = vld [vmem:[%s201 + $0xc] sm:$0xf]
      %v218 = vld [vmem:[%s201 + $0x10] sm:$0xf]
      %v219 = vld [vmem:[%s201 + $0x14] sm:$0xf]
      %v220 = vld [vmem:[%s201 + $0x18] sm:$0xf]
      %v221 = vld [vmem:[%s201 + $0x1c] sm:$0xf]
      %v222 = vld [vmem:[%s201 + $0x20] sm:$0xf]
      %v223 = vld [vmem:[%s201 + $0x24] sm:$0xf]
      %v224 = vld [vmem:[%s201 + $0x28] sm:$0xf]
      %v225 = vld [vmem:[%s201 + $0x2c] sm:$0xf]
      %v226 = vld [vmem:[%s201 + $0x30] sm:$0xf]
      %v227 = vld [vmem:[%s201 + $0x34] sm:$0xf]
      %v228 = vld [vmem:[%s201 + $0x38] sm:$0xf]
      %v229 = vld [vmem:[%s201 + $0x3c] sm:$0xf]
      %v230 = vld [vmem:[%s201 + $0x40] sm:$0xf]
      %v231 = vld [vmem:[%s201 + $0x44] sm:$0xf]
      %v232 = vld [vmem:[%s201 + $0x48] sm:$0xf]
      %v233 = vld [vmem:[%s201 + $0x4c] sm:$0xf]
      %v234 = vld [vmem:[%s201 + $0x50] sm:$0xf]
      %v235 = vld [vmem:[%s201 + $0x54] sm:$0xf]
      %v236 = vld [vmem:[%s201 + $0x58] sm:$0xf]
      %v237 = vld [vmem:[%s201 + $0x5c] sm:$0xf]
      %v238 = vld [vmem:[%s201 + $0x60] sm:$0xf]
      %v239 = vld [vmem:[%s201 + $0x64] sm:$0xf]
      %v240 = vld [vmem:[%s201 + $0x68] sm:$0xf]
      %v241 = vld [vmem:[%s201 + $0x6c] sm:$0xf]
      %v242 = vld [vmem:[%s201 + $0x70] sm:$0xf]
      %v243 = vld [vmem:[%s201 + $0x74] sm:$0xf]
      %v244 = vld [vmem:[%s201 + $0x78] sm:$0xf]
      %v245 = vld [vmem:[%s201 + $0x7c] sm:$0xf]
      %v246 = vld [vmem:[%s201 + $0x80] sm:$0xf]
      %v247 = vld [vmem:[%s201 + $0x84] sm:$0xf]
      %v248 = vld [vmem:[%s201 + $0x88] sm:$0xf]
      %v249 = vld [vmem:[%s201 + $0x8c] sm:$0xf]
      %v250 = vld [vmem:[%s201 + $0x90] sm:$0xf]
      %v251 = vld [vmem:[%s201 + $0x94] sm:$0xf]
      %v252 = vld [vmem:[%s201 + $0x98] sm:$0xf]
      %v253 = vld [vmem:[%s201 + $0x9c] sm:$0xf]
      %v254 = vld [vmem:[%s201 + $0xa0] sm:$0xf]
      %v255 = vld [vmem:[%s201 + $0xa4] sm:$0xf]
      %v256 = vld [vmem:[%s201 + $0xa8] sm:$0xf]
      %v257 = vld [vmem:[%s201 + $0xac] sm:$0xf]
      %v258 = vld [vmem:[%s201 + $0xb0] sm:$0xf]
      %v259 = vld [vmem:[%s201 + $0xb4] sm:$0xf]
      %v260 = vld [vmem:[%s201 + $0xb8] sm:$0xf]
      %v261 = vld [vmem:[%s201 + $0xbc] sm:$0xf]
      %v262 = vld [vmem:[%s201 + $0xc0] sm:$0xf]
      %v263 = vld [vmem:[%s201 + $0xc4] sm:$0xf]
      %v264 = vld [vmem:[%s201 + $0xc8] sm:$0xf]
      %v265 = vld [vmem:[%s201 + $0xcc] sm:$0xf]
      %v266 = vld [vmem:[%s201 + $0xd0] sm:$0xf]
      %v267 = vld [vmem:[%s201 + $0xd4] sm:$0xf]
      %v268 = vld [vmem:[%s201 + $0xd8] sm:$0xf]
      %v269 = vld [vmem:[%s201 + $0xdc] sm:$0xf]
      %v270 = vld [vmem:[%s201 + $0xe0] sm:$0xf]
      %v271 = vld [vmem:[%s201 + $0xe4] sm:$0xf]
      %v272 = vld [vmem:[%s201 + $0xe8] sm:$0xf]
      %v273 = vld [vmem:[%s201 + $0xec] sm:$0xf]
      %v274 = vld [vmem:[%s201 + $0xf0] sm:$0xf]
      %v275 = vld [vmem:[%s201 + $0xf4] sm:$0xf]
      %v276 = vld [vmem:[%s201 + $0xf8] sm:$0xf]
      %v277 = vld [vmem:[%s201 + $0xfc] sm:$0xf]
      %v278 = vld [vmem:[%s201 + $0x100] sm:$0xf]
      %v279 = vld [vmem:[%s201 + $0x104] sm:$0xf]
      %v280 = vld [vmem:[%s201 + $0x108] sm:$0xf]
      %v281 = vld [vmem:[%s201 + $0x10c] sm:$0xf]
      %v282 = vld [vmem:[%s201 + $0x110] sm:$0xf]
      %v283 = vld [vmem:[%s201 + $0x114] sm:$0xf]
      %v284 = vld [vmem:[%s201 + $0x118] sm:$0xf]
      %v285 = vld [vmem:[%s201 + $0x11c] sm:$0xf]
      %v286 = vld [vmem:[%s201 + $0x120] sm:$0xf]
      %v287 = vld [vmem:[%s201 + $0x124] sm:$0xf]
      %v288 = vld [vmem:[%s201 + $0x128] sm:$0xf]
      %v289 = vld [vmem:[%s201 + $0x12c] sm:$0xf]
      %v290 = vld [vmem:[%s201 + $0x130] sm:$0xf]
      %v291 = vld [vmem:[%s201 + $0x134] sm:$0xf]
      %v292 = vld [vmem:[%s201 + $0x138] sm:$0xf]
      %v293 = vld [vmem:[%s201 + $0x13c] sm:$0xf]
      %v294 = vld [vmem:[%s201 + $0x140] sm:$0xf]
      %v295 = vld [vmem:[%s201 + $0x144] sm:$0xf]
      %v296 = vld [vmem:[%s201 + $0x148] sm:$0xf]
      %v297 = vld [vmem:[%s201 + $0x14c] sm:$0xf]
      %v298 = vld [vmem:[%s201 + $0x150] sm:$0xf]
      %v299 = vld [vmem:[%s201 + $0x154] sm:$0xf]
      %v300 = vld [vmem:[%s201 + $0x158] sm:$0xf]
      %v301 = vld [vmem:[%s201 + $0x15c] sm:$0xf]
      %v302 = vld [vmem:[%s201 + $0x160] sm:$0xf]
      %v303 = vld [vmem:[%s201 + $0x164] sm:$0xf]
      %v304 = vld [vmem:[%s201 + $0x168] sm:$0xf]
      %v305 = vld [vmem:[%s201 + $0x16c] sm:$0xf]
      %v306 = vld [vmem:[%s201 + $0x170] sm:$0xf]
      %v307 = vld [vmem:[%s201 + $0x174] sm:$0xf]
      %v308 = vld [vmem:[%s201 + $0x178] sm:$0xf]
      %v309 = vld [vmem:[%s201 + $0x17c] sm:$0xf]
      %v310 = vld [vmem:[%s201 + $0x180] sm:$0xf]
      %v311 = vld [vmem:[%s201 + $0x184] sm:$0xf]
      %v312 = vld [vmem:[%s201 + $0x188] sm:$0xf]
      %v313 = vld [vmem:[%s201 + $0x18c] sm:$0xf]
      %v314 = vld [vmem:[%s201 + $0x190] sm:$0xf]
      %v315 = vld [vmem:[%s201 + $0x194] sm:$0xf]
      %v316 = vld [vmem:[%s201 + $0x198] sm:$0xf]
      %v317 = vld [vmem:[%s201 + $0x19c] sm:$0xf]
      %v318 = vld [vmem:[%s201 + $0x1a0] sm:$0xf]
      %v319 = vld [vmem:[%s201 + $0x1a4] sm:$0xf]
      %v320 = vld [vmem:[%s201 + $0x1a8] sm:$0xf]
      %v321 = vld [vmem:[%s201 + $0x1ac] sm:$0xf]
      %v322 = vld [vmem:[%s201 + $0x1b0] sm:$0xf]
      %v323 = vld [vmem:[%s201 + $0x1b4] sm:$0xf]
      %v324 = vld [vmem:[%s201 + $0x1b8] sm:$0xf]
      %v325 = vld [vmem:[%s201 + $0x1bc] sm:$0xf]
      %v326 = vld [vmem:[%s201 + $0x1c0] sm:$0xf]
      %v327 = vld [vmem:[%s201 + $0x1c4] sm:$0xf]
      %v328 = vld [vmem:[%s201 + $0x1c8] sm:$0xf]
      %v329 = vld [vmem:[%s201 + $0x1cc] sm:$0xf]
      %v330 = vld [vmem:[%s201 + $0x1d0] sm:$0xf]
      %v331 = vld [vmem:[%s201 + $0x1d4] sm:$0xf]
      %v332 = vld [vmem:[%s201 + $0x1d8] sm:$0xf]
      %v333 = vld [vmem:[%s201 + $0x1dc] sm:$0xf]
      %v334 = vld [vmem:[%s201 + $0x1e0] sm:$0xf]
      %v335 = vld [vmem:[%s201 + $0x1e4] sm:$0xf]
      %v336 = vld [vmem:[%s201 + $0x1e8] sm:$0xf]
      %v337 = vld [vmem:[%s201 + $0x1ec] sm:$0xf]
      %v338 = vld [vmem:[%s201 + $0x1f0] sm:$0xf]
      %v339 = vld [vmem:[%s201 + $0x1f4] sm:$0xf]
      %v340 = vld [vmem:[%s201 + $0x1f8] sm:$0xf]
      %v341 = vld [vmem:[%s201 + $0x1fc] sm:$0xf]
      %v342 = vld [vmem:[%s1] sm:$0xf]
      %v343 = vld [vmem:[%s1 + $0x4] sm:$0xf]
      %v344 = vld [vmem:[%s1 + $0x8] sm:$0xf]
      %v345 = vld [vmem:[%s1 + $0xc] sm:$0xf]
      %v346 = vld [vmem:[%s1 + $0x10] sm:$0x3]
      %v347 = vld [vmem:[%s2] sm:$0x1]
      %v349 = vperm.slane %v347, 0
      %v479 = vunpack.c.l.b16 %v214
      %v480 = vunpack.c.l.b16 %v215
      %v481 = vunpack.c.l.b16 %v216
      %v482 = vunpack.c.l.b16 %v217
      %v483 = vunpack.c.l.b16 %v218
      %v484 = vunpack.c.l.b16 %v219
      %v485 = vunpack.c.l.b16 %v220
      %v486 = vunpack.c.l.b16 %v221
      %v487 = vunpack.c.l.b16 %v222
      %v488 = vunpack.c.l.b16 %v223
      %v489 = vunpack.c.l.b16 %v224
      %v490 = vunpack.c.l.b16 %v225
      %v491 = vunpack.c.l.b16 %v226
      %v492 = vunpack.c.l.b16 %v227
      %v493 = vunpack.c.l.b16 %v228
      %v494 = vunpack.c.l.b16 %v229
      %v495 = vunpack.c.l.b16 %v230
      %v496 = vunpack.c.l.b16 %v231
      %v497 = vunpack.c.l.b16 %v232
      %v498 = vunpack.c.l.b16 %v233
      %v499 = vunpack.c.l.b16 %v234
      %v500 = vunpack.c.l.b16 %v235
      %v501 = vunpack.c.l.b16 %v236
      %v502 = vunpack.c.l.b16 %v237
      %v503 = vunpack.c.l.b16 %v238
      %v504 = vunpack.c.l.b16 %v239
      %v505 = vunpack.c.l.b16 %v240
      %v506 = vunpack.c.l.b16 %v241
      %v507 = vunpack.c.l.b16 %v242
      %v508 = vunpack.c.l.b16 %v243
      %v509 = vunpack.c.l.b16 %v244
      %v510 = vunpack.c.l.b16 %v245
      %v511 = vunpack.c.l.b16 %v246
      %v512 = vunpack.c.l.b16 %v247
      %v513 = vunpack.c.l.b16 %v248
      %v514 = vunpack.c.l.b16 %v249
      %v515 = vunpack.c.l.b16 %v250
      %v516 = vunpack.c.l.b16 %v251
      %v517 = vunpack.c.l.b16 %v252
      %v518 = vunpack.c.l.b16 %v253
      %v519 = vunpack.c.l.b16 %v254
      %v520 = vunpack.c.l.b16 %v255
      %v521 = vunpack.c.l.b16 %v256
      %v522 = vunpack.c.l.b16 %v257
      %v523 = vunpack.c.l.b16 %v258
      %v524 = vunpack.c.l.b16 %v259
      %v525 = vunpack.c.l.b16 %v260
      %v526 = vunpack.c.l.b16 %v261
      %v527 = vunpack.c.l.b16 %v262
      %v528 = vunpack.c.l.b16 %v263
      %v529 = vunpack.c.l.b16 %v264
      %v530 = vunpack.c.l.b16 %v265
      %v531 = vunpack.c.l.b16 %v266
      %v532 = vunpack.c.l.b16 %v267
      %v533 = vunpack.c.l.b16 %v268
      %v534 = vunpack.c.l.b16 %v269
      %v535 = vunpack.c.l.b16 %v270
      %v536 = vunpack.c.l.b16 %v271
      %v537 = vunpack.c.l.b16 %v272
      %v538 = vunpack.c.l.b16 %v273
      %v539 = vunpack.c.l.b16 %v274
      %v540 = vunpack.c.l.b16 %v275
      %v541 = vunpack.c.l.b16 %v276
      %v542 = vunpack.c.l.b16 %v277
      %v543 = vunpack.c.l.b16 %v278
      %v544 = vunpack.c.l.b16 %v279
      %v545 = vunpack.c.l.b16 %v280
      %v546 = vunpack.c.l.b16 %v281
      %v547 = vunpack.c.l.b16 %v282
      %v548 = vunpack.c.l.b16 %v283
      %v549 = vunpack.c.l.b16 %v284
      %v550 = vunpack.c.l.b16 %v285
      %v551 = vunpack.c.l.b16 %v286
      %v552 = vunpack.c.l.b16 %v287
      %v553 = vunpack.c.l.b16 %v288
      %v554 = vunpack.c.l.b16 %v289
      %v555 = vunpack.c.l.b16 %v290
      %v556 = vunpack.c.l.b16 %v291
      %v557 = vunpack.c.l.b16 %v292
      %v558 = vunpack.c.l.b16 %v293
      %v559 = vunpack.c.l.b16 %v294
      %v560 = vunpack.c.l.b16 %v295
      %v561 = vunpack.c.l.b16 %v296
      %v562 = vunpack.c.l.b16 %v297
      %v563 = vunpack.c.l.b16 %v298
      %v564 = vunpack.c.l.b16 %v299
      %v565 = vunpack.c.l.b16 %v300
      %v566 = vunpack.c.l.b16 %v301
      %v567 = vunpack.c.l.b16 %v302
      %v568 = vunpack.c.l.b16 %v303
      %v569 = vunpack.c.l.b16 %v304
      %v570 = vunpack.c.l.b16 %v305
      %v571 = vunpack.c.l.b16 %v306
      %v572 = vunpack.c.l.b16 %v307
      %v573 = vunpack.c.l.b16 %v308
      %v574 = vunpack.c.l.b16 %v309
      %v575 = vunpack.c.l.b16 %v310
      %v576 = vunpack.c.l.b16 %v311
      %v577 = vunpack.c.l.b16 %v312
      %v578 = vunpack.c.l.b16 %v313
      %v579 = vunpack.c.l.b16 %v314
      %v580 = vunpack.c.l.b16 %v315
      %v581 = vunpack.c.l.b16 %v316
      %v582 = vunpack.c.l.b16 %v317
      %v583 = vunpack.c.l.b16 %v318
      %v584 = vunpack.c.l.b16 %v319
      %v585 = vunpack.c.l.b16 %v320
      %v586 = vunpack.c.l.b16 %v321
      %v587 = vunpack.c.l.b16 %v322
      %v588 = vunpack.c.l.b16 %v323
      %v589 = vunpack.c.l.b16 %v324
      %v590 = vunpack.c.l.b16 %v325
      %v591 = vunpack.c.l.b16 %v326
      %v592 = vunpack.c.l.b16 %v327
      %v593 = vunpack.c.l.b16 %v328
      %v594 = vunpack.c.l.b16 %v329
      %v595 = vunpack.c.l.b16 %v330
      %v596 = vunpack.c.l.b16 %v331
      %v597 = vunpack.c.l.b16 %v332
      %v598 = vunpack.c.l.b16 %v333
      %v599 = vunpack.c.l.b16 %v334
      %v600 = vunpack.c.l.b16 %v335
      %v601 = vunpack.c.l.b16 %v336
      %v602 = vunpack.c.l.b16 %v337
      %v603 = vunpack.c.l.b16 %v338
      %v604 = vunpack.c.l.b16 %v339
      %v605 = vunpack.c.l.b16 %v340
      %v606 = vunpack.c.l.b16 %v341
      %v607 = vpack.c.b16 %v480, %v479
      %v608 = vpack.c.b16 %v482, %v481
      %v609 = vpack.c.b16 %v484, %v483
      %v610 = vpack.c.b16 %v486, %v485
      %v611 = vpack.c.b16 %v488, %v487
      %v612 = vpack.c.b16 %v490, %v489
      %v613 = vpack.c.b16 %v492, %v491
      %v614 = vpack.c.b16 %v494, %v493
      %v615 = vpack.c.b16 %v496, %v495
      %v616 = vpack.c.b16 %v498, %v497
      %v617 = vpack.c.b16 %v500, %v499
      %v618 = vpack.c.b16 %v502, %v501
      %v619 = vpack.c.b16 %v504, %v503
      %v620 = vpack.c.b16 %v506, %v505
      %v621 = vpack.c.b16 %v508, %v507
      %v622 = vpack.c.b16 %v510, %v509
      %v623 = vpack.c.b16 %v512, %v511
      %v624 = vpack.c.b16 %v514, %v513
      %v625 = vpack.c.b16 %v516, %v515
      %v626 = vpack.c.b16 %v518, %v517
      %v627 = vpack.c.b16 %v520, %v519
      %v628 = vpack.c.b16 %v522, %v521
      %v629 = vpack.c.b16 %v524, %v523
      %v630 = vpack.c.b16 %v526, %v525
      %v631 = vpack.c.b16 %v528, %v527
      %v632 = vpack.c.b16 %v530, %v529
      %v633 = vpack.c.b16 %v532, %v531
      %v634 = vpack.c.b16 %v534, %v533
      %v635 = vpack.c.b16 %v536, %v535
      %v636 = vpack.c.b16 %v538, %v537
      %v637 = vpack.c.b16 %v540, %v539
      %v638 = vpack.c.b16 %v542, %v541
      %v639 = vpack.c.b16 %v544, %v543
      %v640 = vpack.c.b16 %v546, %v545
      %v641 = vpack.c.b16 %v548, %v547
      %v642 = vpack.c.b16 %v550, %v549
      %v643 = vpack.c.b16 %v552, %v551
      %v644 = vpack.c.b16 %v554, %v553
      %v645 = vpack.c.b16 %v556, %v555
      %v646 = vpack.c.b16 %v558, %v557
      %v647 = vpack.c.b16 %v560, %v559
      %v648 = vpack.c.b16 %v562, %v561
      %v649 = vpack.c.b16 %v564, %v563
      %v650 = vpack.c.b16 %v566, %v565
      %v651 = vpack.c.b16 %v568, %v567
      %v652 = vpack.c.b16 %v570, %v569
      %v653 = vpack.c.b16 %v572, %v571
      %v654 = vpack.c.b16 %v574, %v573
      %v655 = vpack.c.b16 %v576, %v575
      %v656 = vpack.c.b16 %v578, %v577
      %v657 = vpack.c.b16 %v580, %v579
      %v658 = vpack.c.b16 %v582, %v581
      %v659 = vpack.c.b16 %v584, %v583
      %v660 = vpack.c.b16 %v586, %v585
      %v661 = vpack.c.b16 %v588, %v587
      %v662 = vpack.c.b16 %v590, %v589
      %v663 = vpack.c.b16 %v592, %v591
      %v664 = vpack.c.b16 %v594, %v593
      %v665 = vpack.c.b16 %v596, %v595
      %v666 = vpack.c.b16 %v598, %v597
      %v667 = vpack.c.b16 %v600, %v599
      %v668 = vpack.c.b16 %v602, %v601
      %v669 = vpack.c.b16 %v604, %v603
      %v670 = vpack.c.b16 %v606, %v605
      %v676 = vunpack.c.l.b16 %v342
      %v677 = vunpack.c.l.b16 %v343
      %v678 = vunpack.c.l.b16 %v344
      %v679 = vunpack.c.l.b16 %v345
      %v680 = vunpack.c.l.b16 %v346
      %v681 = vpack.c.b16 %v677, %v676
      %v682 = vpack.c.b16 %v679, %v678
      %v683 = vpack.c.b16 %v680, %v680
      %vm686 = vcmask 293888
      %v688 = vsel %vm686, %v607, 0
      %v691 = vsel %vm686, %v608, 0
      %v694 = vsel %vm686, %v609, 0
      %v697 = vsel %vm686, %v610, 0
      %v700 = vsel %vm686, %v611, 0
      %v703 = vsel %vm686, %v612, 0
      %v706 = vsel %vm686, %v613, 0
      %v709 = vsel %vm686, %v614, 0
      %v712 = vsel %vm686, %v615, 0
      %v715 = vsel %vm686, %v616, 0
      %v718 = vsel %vm686, %v617, 0
      %v721 = vsel %vm686, %v618, 0
      %v724 = vsel %vm686, %v619, 0
      %v727 = vsel %vm686, %v620, 0
      %v730 = vsel %vm686, %v621, 0
      %v733 = vsel %vm686, %v622, 0
      %v736 = vsel %vm686, %v623, 0
      %v739 = vsel %vm686, %v624, 0
      %v742 = vsel %vm686, %v625, 0
      %v745 = vsel %vm686, %v626, 0
      %v748 = vsel %vm686, %v627, 0
      %v751 = vsel %vm686, %v628, 0
      %v754 = vsel %vm686, %v629, 0
      %v757 = vsel %vm686, %v630, 0
      %v760 = vsel %vm686, %v631, 0
      %v763 = vsel %vm686, %v632, 0
      %v766 = vsel %vm686, %v633, 0
      %v769 = vsel %vm686, %v634, 0
      %v772 = vsel %vm686, %v635, 0
      %v775 = vsel %vm686, %v636, 0
      %v778 = vsel %vm686, %v637, 0
      %v781 = vsel %vm686, %v638, 0
      %v784 = vsel %vm686, %v639, 0
      %v787 = vsel %vm686, %v640, 0
      %v790 = vsel %vm686, %v641, 0
      %v793 = vsel %vm686, %v642, 0
      %v796 = vsel %vm686, %v643, 0
      %v799 = vsel %vm686, %v644, 0
      %v802 = vsel %vm686, %v645, 0
      %v805 = vsel %vm686, %v646, 0
      %v808 = vsel %vm686, %v647, 0
      %v811 = vsel %vm686, %v648, 0
      %v814 = vsel %vm686, %v649, 0
      %v817 = vsel %vm686, %v650, 0
      %v820 = vsel %vm686, %v651, 0
      %v823 = vsel %vm686, %v652, 0
      %v826 = vsel %vm686, %v653, 0
      %v829 = vsel %vm686, %v654, 0
      %v832 = vsel %vm686, %v655, 0
      %v835 = vsel %vm686, %v656, 0
      %v838 = vsel %vm686, %v657, 0
      %v841 = vsel %vm686, %v658, 0
      %v844 = vsel %vm686, %v659, 0
      %v847 = vsel %vm686, %v660, 0
      %v850 = vsel %vm686, %v661, 0
      %v853 = vsel %vm686, %v662, 0
      %v856 = vsel %vm686, %v663, 0
      %v859 = vsel %vm686, %v664, 0
      %v862 = vsel %vm686, %v665, 0
      %v865 = vsel %vm686, %v666, 0
      %v868 = vsel %vm686, %v667, 0
      %v871 = vsel %vm686, %v668, 0
      %v874 = vsel %vm686, %v669, 0
      %v877 = vsel %vm686, %v670, 0
      %vm879 = vcmask 1041408
      %v881 = vsel %vm879, %v683, 0
      %883 = vmatpush.bf16.msra.mxu0 0
      %884 = vmatpush.bf16.msra.mxu0 0
      %885 = vmatpush.bf16.msra.mxu0 0
      %886 = vmatpush.bf16.msra.mxu0 0
      %887 = vmatpush.bf16.msra.mxu0 0
      %888 = vmatpush.bf16.msra.mxu0 %v881
      %889 = vmatpush.bf16.msra.mxu0 %v682
      %890 = vmatpush.bf16.msra.mxu0 %v681
      %891 = vmatmul.bf16.gmra.mxu0 %v688
      %v892 = vpop.f32.mrf.mxu0
      %v893 = vadd.f32 %v349, %v892
      %v894 = vpop.f32.mrf.mxu0
      %v895 = vadd.f32 %v349, %v894
      %896 = vmatmul.bf16.gmra.mxu0 %v691
      %v897 = vpop.f32.mrf.mxu0
      %v898 = vadd.f32 %v349, %v897
      %v899 = vpop.f32.mrf.mxu0
      %v900 = vadd.f32 %v349, %v899
      %901 = vmatmul.bf16.gmra.mxu0 %v694
      %v902 = vpop.f32.mrf.mxu0
      %v903 = vadd.f32 %v349, %v902
      %v904 = vpop.f32.mrf.mxu0
      %v905 = vadd.f32 %v349, %v904
      %906 = vmatmul.bf16.gmra.mxu0 %v697
      %v907 = vpop.f32.mrf.mxu0
      %v908 = vadd.f32 %v349, %v907
      %v909 = vpop.f32.mrf.mxu0
      %v910 = vadd.f32 %v349, %v909
      %911 = vmatmul.bf16.gmra.mxu0 %v700
      %v912 = vpop.f32.mrf.mxu0
      %v913 = vadd.f32 %v349, %v912
      %v914 = vpop.f32.mrf.mxu0
      %v915 = vadd.f32 %v349, %v914
      %916 = vmatmul.bf16.gmra.mxu0 %v703
      %v917 = vpop.f32.mrf.mxu0
      %v918 = vadd.f32 %v349, %v917
      %v919 = vpop.f32.mrf.mxu0
      %v920 = vadd.f32 %v349, %v919
      %921 = vmatmul.bf16.gmra.mxu0 %v706
      %v922 = vpop.f32.mrf.mxu0
      %v923 = vadd.f32 %v349, %v922
      %v924 = vpop.f32.mrf.mxu0
      %v925 = vadd.f32 %v349, %v924
      %926 = vmatmul.bf16.gmra.mxu0 %v709
      %v927 = vpop.f32.mrf.mxu0
      %v928 = vadd.f32 %v349, %v927
      %v929 = vpop.f32.mrf.mxu0
      %v930 = vadd.f32 %v349, %v929
      %931 = vmatmul.bf16.gmra.mxu0 %v712
      %v932 = vpop.f32.mrf.mxu0
      %v933 = vadd.f32 %v349, %v932
      %v934 = vpop.f32.mrf.mxu0
      %v935 = vadd.f32 %v349, %v934
      %936 = vmatmul.bf16.gmra.mxu0 %v715
      %v937 = vpop.f32.mrf.mxu0
      %v938 = vadd.f32 %v349, %v937
      %v939 = vpop.f32.mrf.mxu0
      %v940 = vadd.f32 %v349, %v939
      %941 = vmatmul.bf16.gmra.mxu0 %v718
      %v942 = vpop.f32.mrf.mxu0
      %v943 = vadd.f32 %v349, %v942
      %v944 = vpop.f32.mrf.mxu0
      %v945 = vadd.f32 %v349, %v944
      %946 = vmatmul.bf16.gmra.mxu0 %v721
      %v947 = vpop.f32.mrf.mxu0
      %v948 = vadd.f32 %v349, %v947
      %v949 = vpop.f32.mrf.mxu0
      %v950 = vadd.f32 %v349, %v949
      %951 = vmatmul.bf16.gmra.mxu0 %v724
      %v952 = vpop.f32.mrf.mxu0
      %v953 = vadd.f32 %v349, %v952
      %v954 = vpop.f32.mrf.mxu0
      %v955 = vadd.f32 %v349, %v954
      %956 = vmatmul.bf16.gmra.mxu0 %v727
      %v957 = vpop.f32.mrf.mxu0
      %v958 = vadd.f32 %v349, %v957
      %v959 = vpop.f32.mrf.mxu0
      %v960 = vadd.f32 %v349, %v959
      %961 = vmatmul.bf16.gmra.mxu0 %v730
      %v962 = vpop.f32.mrf.mxu0
      %v963 = vadd.f32 %v349, %v962
      %v964 = vpop.f32.mrf.mxu0
      %v965 = vadd.f32 %v349, %v964
      %966 = vmatmul.bf16.gmra.mxu0 %v733
      %v967 = vpop.f32.mrf.mxu0
      %v968 = vadd.f32 %v349, %v967
      %v969 = vpop.f32.mrf.mxu0
      %v970 = vadd.f32 %v349, %v969
      %971 = vmatmul.bf16.gmra.mxu0 %v736
      %v972 = vpop.f32.mrf.mxu0
      %v973 = vadd.f32 %v349, %v972
      %v974 = vpop.f32.mrf.mxu0
      %v975 = vadd.f32 %v349, %v974
      %976 = vmatmul.bf16.gmra.mxu0 %v739
      %v977 = vpop.f32.mrf.mxu0
      %v978 = vadd.f32 %v349, %v977
      %v979 = vpop.f32.mrf.mxu0
      %v980 = vadd.f32 %v349, %v979
      %981 = vmatmul.bf16.gmra.mxu0 %v742
      %v982 = vpop.f32.mrf.mxu0
      %v983 = vadd.f32 %v349, %v982
      %v984 = vpop.f32.mrf.mxu0
      %v985 = vadd.f32 %v349, %v984
      %986 = vmatmul.bf16.gmra.mxu0 %v745
      %v987 = vpop.f32.mrf.mxu0
      %v988 = vadd.f32 %v349, %v987
      %v989 = vpop.f32.mrf.mxu0
      %v990 = vadd.f32 %v349, %v989
      %991 = vmatmul.bf16.gmra.mxu0 %v748
      %v992 = vpop.f32.mrf.mxu0
      %v993 = vadd.f32 %v349, %v992
      %v994 = vpop.f32.mrf.mxu0
      %v995 = vadd.f32 %v349, %v994
      %996 = vmatmul.bf16.gmra.mxu0 %v751
      %v997 = vpop.f32.mrf.mxu0
      %v998 = vadd.f32 %v349, %v997
      %v999 = vpop.f32.mrf.mxu0
      %v1000 = vadd.f32 %v349, %v999
      %1001 = vmatmul.bf16.gmra.mxu0 %v754
      %v1002 = vpop.f32.mrf.mxu0
      %v1003 = vadd.f32 %v349, %v1002
      %v1004 = vpop.f32.mrf.mxu0
      %v1005 = vadd.f32 %v349, %v1004
      %1006 = vmatmul.bf16.gmra.mxu0 %v757
      %v1007 = vpop.f32.mrf.mxu0
      %v1008 = vadd.f32 %v349, %v1007
      %v1009 = vpop.f32.mrf.mxu0
      %v1010 = vadd.f32 %v349, %v1009
      %1011 = vmatmul.bf16.gmra.mxu0 %v760
      %v1012 = vpop.f32.mrf.mxu0
      %v1013 = vadd.f32 %v349, %v1012
      %v1014 = vpop.f32.mrf.mxu0
      %v1015 = vadd.f32 %v349, %v1014
      %1016 = vmatmul.bf16.gmra.mxu0 %v763
      %v1017 = vpop.f32.mrf.mxu0
      %v1018 = vadd.f32 %v349, %v1017
      %v1019 = vpop.f32.mrf.mxu0
      %v1020 = vadd.f32 %v349, %v1019
      %1021 = vmatmul.bf16.gmra.mxu0 %v766
      %v1022 = vpop.f32.mrf.mxu0
      %v1023 = vadd.f32 %v349, %v1022
      %v1024 = vpop.f32.mrf.mxu0
      %v1025 = vadd.f32 %v349, %v1024
      %1026 = vmatmul.bf16.gmra.mxu0 %v769
      %v1027 = vpop.f32.mrf.mxu0
      %v1028 = vadd.f32 %v349, %v1027
      %v1029 = vpop.f32.mrf.mxu0
      %v1030 = vadd.f32 %v349, %v1029
      %1031 = vmatmul.bf16.gmra.mxu0 %v772
      %v1032 = vpop.f32.mrf.mxu0
      %v1033 = vadd.f32 %v349, %v1032
      %v1034 = vpop.f32.mrf.mxu0
      %v1035 = vadd.f32 %v349, %v1034
      %1036 = vmatmul.bf16.gmra.mxu0 %v775
      %v1037 = vpop.f32.mrf.mxu0
      %v1038 = vadd.f32 %v349, %v1037
      %v1039 = vpop.f32.mrf.mxu0
      %v1040 = vadd.f32 %v349, %v1039
      %1041 = vmatmul.bf16.gmra.mxu0 %v778
      %v1042 = vpop.f32.mrf.mxu0
      %v1043 = vadd.f32 %v349, %v1042
      %v1044 = vpop.f32.mrf.mxu0
      %v1045 = vadd.f32 %v349, %v1044
      %1046 = vmatmul.bf16.gmra.mxu0 %v781
      %v1047 = vpop.f32.mrf.mxu0
      %v1048 = vadd.f32 %v349, %v1047
      %v1049 = vpop.f32.mrf.mxu0
      %v1050 = vadd.f32 %v349, %v1049
      %1051 = vmatmul.bf16.gmra.mxu0 %v784
      %v1052 = vpop.f32.mrf.mxu0
      %v1053 = vadd.f32 %v349, %v1052
      %v1054 = vpop.f32.mrf.mxu0
      %v1055 = vadd.f32 %v349, %v1054
      %1056 = vmatmul.bf16.gmra.mxu0 %v787
      %v1057 = vpop.f32.mrf.mxu0
      %v1058 = vadd.f32 %v349, %v1057
      %v1059 = vpop.f32.mrf.mxu0
      %v1060 = vadd.f32 %v349, %v1059
      %1061 = vmatmul.bf16.gmra.mxu0 %v790
      %v1062 = vpop.f32.mrf.mxu0
      %v1063 = vadd.f32 %v349, %v1062
      %v1064 = vpop.f32.mrf.mxu0
      %v1065 = vadd.f32 %v349, %v1064
      %1066 = vmatmul.bf16.gmra.mxu0 %v793
      %v1067 = vpop.f32.mrf.mxu0
      %v1068 = vadd.f32 %v349, %v1067
      %v1069 = vpop.f32.mrf.mxu0
      %v1070 = vadd.f32 %v349, %v1069
      %1071 = vmatmul.bf16.gmra.mxu0 %v796
      %v1072 = vpop.f32.mrf.mxu0
      %v1073 = vadd.f32 %v349, %v1072
      %v1074 = vpop.f32.mrf.mxu0
      %v1075 = vadd.f32 %v349, %v1074
      %1076 = vmatmul.bf16.gmra.mxu0 %v799
      %v1077 = vpop.f32.mrf.mxu0
      %v1078 = vadd.f32 %v349, %v1077
      %v1079 = vpop.f32.mrf.mxu0
      %v1080 = vadd.f32 %v349, %v1079
      %1081 = vmatmul.bf16.gmra.mxu0 %v802
      %v1082 = vpop.f32.mrf.mxu0
      %v1083 = vadd.f32 %v349, %v1082
      %v1084 = vpop.f32.mrf.mxu0
      %v1085 = vadd.f32 %v349, %v1084
      %1086 = vmatmul.bf16.gmra.mxu0 %v805
      %v1087 = vpop.f32.mrf.mxu0
      %v1088 = vadd.f32 %v349, %v1087
      %v1089 = vpop.f32.mrf.mxu0
      %v1090 = vadd.f32 %v349, %v1089
      %1091 = vmatmul.bf16.gmra.mxu0 %v808
      %v1092 = vpop.f32.mrf.mxu0
      %v1093 = vadd.f32 %v349, %v1092
      %v1094 = vpop.f32.mrf.mxu0
      %v1095 = vadd.f32 %v349, %v1094
      %1096 = vmatmul.bf16.gmra.mxu0 %v811
      %v1097 = vpop.f32.mrf.mxu0
      %v1098 = vadd.f32 %v349, %v1097
      %v1099 = vpop.f32.mrf.mxu0
      %v1100 = vadd.f32 %v349, %v1099
      %1101 = vmatmul.bf16.gmra.mxu0 %v814
      %v1102 = vpop.f32.mrf.mxu0
      %v1103 = vadd.f32 %v349, %v1102
      %v1104 = vpop.f32.mrf.mxu0
      %v1105 = vadd.f32 %v349, %v1104
      %1106 = vmatmul.bf16.gmra.mxu0 %v817
      %v1107 = vpop.f32.mrf.mxu0
      %v1108 = vadd.f32 %v349, %v1107
      %v1109 = vpop.f32.mrf.mxu0
      %v1110 = vadd.f32 %v349, %v1109
      %1111 = vmatmul.bf16.gmra.mxu0 %v820
      %v1112 = vpop.f32.mrf.mxu0
      %v1113 = vadd.f32 %v349, %v1112
      %v1114 = vpop.f32.mrf.mxu0
      %v1115 = vadd.f32 %v349, %v1114
      %1116 = vmatmul.bf16.gmra.mxu0 %v823
      %v1117 = vpop.f32.mrf.mxu0
      %v1118 = vadd.f32 %v349, %v1117
      %v1119 = vpop.f32.mrf.mxu0
      %v1120 = vadd.f32 %v349, %v1119
      %1121 = vmatmul.bf16.gmra.mxu0 %v826
      %v1122 = vpop.f32.mrf.mxu0
      %v1123 = vadd.f32 %v349, %v1122
      %v1124 = vpop.f32.mrf.mxu0
      %v1125 = vadd.f32 %v349, %v1124
      %1126 = vmatmul.bf16.gmra.mxu0 %v829
      %v1127 = vpop.f32.mrf.mxu0
      %v1128 = vadd.f32 %v349, %v1127
      %v1129 = vpop.f32.mrf.mxu0
      %v1130 = vadd.f32 %v349, %v1129
      %1131 = vmatmul.bf16.gmra.mxu0 %v832
      %v1132 = vpop.f32.mrf.mxu0
      %v1133 = vadd.f32 %v349, %v1132
      %v1134 = vpop.f32.mrf.mxu0
      %v1135 = vadd.f32 %v349, %v1134
      %1136 = vmatmul.bf16.gmra.mxu0 %v835
      %v1137 = vpop.f32.mrf.mxu0
      %v1138 = vadd.f32 %v349, %v1137
      %v1139 = vpop.f32.mrf.mxu0
      %v1140 = vadd.f32 %v349, %v1139
      %1141 = vmatmul.bf16.gmra.mxu0 %v838
      %v1142 = vpop.f32.mrf.mxu0
      %v1143 = vadd.f32 %v349, %v1142
      %v1144 = vpop.f32.mrf.mxu0
      %v1145 = vadd.f32 %v349, %v1144
      %1146 = vmatmul.bf16.gmra.mxu0 %v841
      %v1147 = vpop.f32.mrf.mxu0
      %v1148 = vadd.f32 %v349, %v1147
      %v1149 = vpop.f32.mrf.mxu0
      %v1150 = vadd.f32 %v349, %v1149
      %1151 = vmatmul.bf16.gmra.mxu0 %v844
      %v1152 = vpop.f32.mrf.mxu0
      %v1153 = vadd.f32 %v349, %v1152
      %v1154 = vpop.f32.mrf.mxu0
      %v1155 = vadd.f32 %v349, %v1154
      %1156 = vmatmul.bf16.gmra.mxu0 %v847
      %v1157 = vpop.f32.mrf.mxu0
      %v1158 = vadd.f32 %v349, %v1157
      %v1159 = vpop.f32.mrf.mxu0
      %v1160 = vadd.f32 %v349, %v1159
      %1161 = vmatmul.bf16.gmra.mxu0 %v850
      %v1162 = vpop.f32.mrf.mxu0
      %v1163 = vadd.f32 %v349, %v1162
      %v1164 = vpop.f32.mrf.mxu0
      %v1165 = vadd.f32 %v349, %v1164
      %1166 = vmatmul.bf16.gmra.mxu0 %v853
      %v1167 = vpop.f32.mrf.mxu0
      %v1168 = vadd.f32 %v349, %v1167
      %v1169 = vpop.f32.mrf.mxu0
      %v1170 = vadd.f32 %v349, %v1169
      %1171 = vmatmul.bf16.gmra.mxu0 %v856
      %v1172 = vpop.f32.mrf.mxu0
      %v1173 = vadd.f32 %v349, %v1172
      %v1174 = vpop.f32.mrf.mxu0
      %v1175 = vadd.f32 %v349, %v1174
      %1176 = vmatmul.bf16.gmra.mxu0 %v859
      %v1177 = vpop.f32.mrf.mxu0
      %v1178 = vadd.f32 %v349, %v1177
      %v1179 = vpop.f32.mrf.mxu0
      %v1180 = vadd.f32 %v349, %v1179
      %1181 = vmatmul.bf16.gmra.mxu0 %v862
      %v1182 = vpop.f32.mrf.mxu0
      %v1183 = vadd.f32 %v349, %v1182
      %v1184 = vpop.f32.mrf.mxu0
      %v1185 = vadd.f32 %v349, %v1184
      %1186 = vmatmul.bf16.gmra.mxu0 %v865
      %v1187 = vpop.f32.mrf.mxu0
      %v1188 = vadd.f32 %v349, %v1187
      %v1189 = vpop.f32.mrf.mxu0
      %v1190 = vadd.f32 %v349, %v1189
      %1191 = vmatmul.bf16.gmra.mxu0 %v868
      %v1192 = vpop.f32.mrf.mxu0
      %v1193 = vadd.f32 %v349, %v1192
      %v1194 = vpop.f32.mrf.mxu0
      %v1195 = vadd.f32 %v349, %v1194
      %1196 = vmatmul.bf16.gmra.mxu0 %v871
      %v1197 = vpop.f32.mrf.mxu0
      %v1198 = vadd.f32 %v349, %v1197
      %v1199 = vpop.f32.mrf.mxu0
      %v1200 = vadd.f32 %v349, %v1199
      %1201 = vmatmul.bf16.gmra.mxu0 %v874
      %v1202 = vpop.f32.mrf.mxu0
      %v1203 = vadd.f32 %v349, %v1202
      %v1204 = vpop.f32.mrf.mxu0
      %v1205 = vadd.f32 %v349, %v1204
      %1206 = vmatmul.bf16.gmra.mxu0 %v877
      %v1207 = vpop.f32.mrf.mxu0
      %v1208 = vadd.f32 %v349, %v1207
      %v1209 = vpop.f32.mrf.mxu0
      %v1210 = vadd.f32 %v349, %v1209
      %1211 = vdwg.mxu0
      %v1212 = vmax.f32 %v893, 0.0
      %v1213 = vmax.f32 %v895, 0.0
      %v1214 = vmax.f32 %v898, 0.0
      %v1215 = vmax.f32 %v900, 0.0
      %v1216 = vmax.f32 %v903, 0.0
      %v1217 = vmax.f32 %v905, 0.0
      %v1218 = vmax.f32 %v908, 0.0
      %v1219 = vmax.f32 %v910, 0.0
      %v1220 = vmax.f32 %v913, 0.0
      %v1221 = vmax.f32 %v915, 0.0
      %v1222 = vmax.f32 %v918, 0.0
      %v1223 = vmax.f32 %v920, 0.0
      %v1224 = vmax.f32 %v923, 0.0
      %v1225 = vmax.f32 %v925, 0.0
      %v1226 = vmax.f32 %v928, 0.0
      %v1227 = vmax.f32 %v930, 0.0
      %v1228 = vmax.f32 %v933, 0.0
      %v1229 = vmax.f32 %v935, 0.0
      %v1230 = vmax.f32 %v938, 0.0
      %v1231 = vmax.f32 %v940, 0.0
      %v1232 = vmax.f32 %v943, 0.0
      %v1233 = vmax.f32 %v945, 0.0
      %v1234 = vmax.f32 %v948, 0.0
      %v1235 = vmax.f32 %v950, 0.0
      %v1236 = vmax.f32 %v953, 0.0
      %v1237 = vmax.f32 %v955, 0.0
      %v1238 = vmax.f32 %v958, 0.0
      %v1239 = vmax.f32 %v960, 0.0
      %v1240 = vmax.f32 %v963, 0.0
      %v1241 = vmax.f32 %v965, 0.0
      %v1242 = vmax.f32 %v968, 0.0
      %v1243 = vmax.f32 %v970, 0.0
      %v1244 = vmax.f32 %v973, 0.0
      %v1245 = vmax.f32 %v975, 0.0
      %v1246 = vmax.f32 %v978, 0.0
      %v1247 = vmax.f32 %v980, 0.0
      %v1248 = vmax.f32 %v983, 0.0
      %v1249 = vmax.f32 %v985, 0.0
      %v1250 = vmax.f32 %v988, 0.0
      %v1251 = vmax.f32 %v990, 0.0
      %v1252 = vmax.f32 %v993, 0.0
      %v1253 = vmax.f32 %v995, 0.0
      %v1254 = vmax.f32 %v998, 0.0
      %v1255 = vmax.f32 %v1000, 0.0
      %v1256 = vmax.f32 %v1003, 0.0
      %v1257 = vmax.f32 %v1005, 0.0
      %v1258 = vmax.f32 %v1008, 0.0
      %v1259 = vmax.f32 %v1010, 0.0
      %v1260 = vmax.f32 %v1013, 0.0
      %v1261 = vmax.f32 %v1015, 0.0
      %v1262 = vmax.f32 %v1018, 0.0
      %v1263 = vmax.f32 %v1020, 0.0
      %v1264 = vmax.f32 %v1023, 0.0
      %v1265 = vmax.f32 %v1025, 0.0
      %v1266 = vmax.f32 %v1028, 0.0
      %v1267 = vmax.f32 %v1030, 0.0
      %v1268 = vmax.f32 %v1033, 0.0
      %v1269 = vmax.f32 %v1035, 0.0
      %v1270 = vmax.f32 %v1038, 0.0
      %v1271 = vmax.f32 %v1040, 0.0
      %v1272 = vmax.f32 %v1043, 0.0
      %v1273 = vmax.f32 %v1045, 0.0
      %v1274 = vmax.f32 %v1048, 0.0
      %v1275 = vmax.f32 %v1050, 0.0
      %v1276 = vmax.f32 %v1053, 0.0
      %v1277 = vmax.f32 %v1055, 0.0
      %v1278 = vmax.f32 %v1058, 0.0
      %v1279 = vmax.f32 %v1060, 0.0
      %v1280 = vmax.f32 %v1063, 0.0
      %v1281 = vmax.f32 %v1065, 0.0
      %v1282 = vmax.f32 %v1068, 0.0
      %v1283 = vmax.f32 %v1070, 0.0
      %v1284 = vmax.f32 %v1073, 0.0
      %v1285 = vmax.f32 %v1075, 0.0
      %v1286 = vmax.f32 %v1078, 0.0
      %v1287 = vmax.f32 %v1080, 0.0
      %v1288 = vmax.f32 %v1083, 0.0
      %v1289 = vmax.f32 %v1085, 0.0
      %v1290 = vmax.f32 %v1088, 0.0
      %v1291 = vmax.f32 %v1090, 0.0
      %v1292 = vmax.f32 %v1093, 0.0
      %v1293 = vmax.f32 %v1095, 0.0
      %v1294 = vmax.f32 %v1098, 0.0
      %v1295 = vmax.f32 %v1100, 0.0
      %v1296 = vmax.f32 %v1103, 0.0
      %v1297 = vmax.f32 %v1105, 0.0
      %v1298 = vmax.f32 %v1108, 0.0
      %v1299 = vmax.f32 %v1110, 0.0
      %v1300 = vmax.f32 %v1113, 0.0
      %v1301 = vmax.f32 %v1115, 0.0
      %v1302 = vmax.f32 %v1118, 0.0
      %v1303 = vmax.f32 %v1120, 0.0
      %v1304 = vmax.f32 %v1123, 0.0
      %v1305 = vmax.f32 %v1125, 0.0
      %v1306 = vmax.f32 %v1128, 0.0
      %v1307 = vmax.f32 %v1130, 0.0
      %v1308 = vmax.f32 %v1133, 0.0
      %v1309 = vmax.f32 %v1135, 0.0
      %v1310 = vmax.f32 %v1138, 0.0
      %v1311 = vmax.f32 %v1140, 0.0
      %v1312 = vmax.f32 %v1143, 0.0
      %v1313 = vmax.f32 %v1145, 0.0
      %v1314 = vmax.f32 %v1148, 0.0
      %v1315 = vmax.f32 %v1150, 0.0
      %v1316 = vmax.f32 %v1153, 0.0
      %v1317 = vmax.f32 %v1155, 0.0
      %v1318 = vmax.f32 %v1158, 0.0
      %v1319 = vmax.f32 %v1160, 0.0
      %v1320 = vmax.f32 %v1163, 0.0
      %v1321 = vmax.f32 %v1165, 0.0
      %v1322 = vmax.f32 %v1168, 0.0
      %v1323 = vmax.f32 %v1170, 0.0
      %v1324 = vmax.f32 %v1173, 0.0
      %v1325 = vmax.f32 %v1175, 0.0
      %v1326 = vmax.f32 %v1178, 0.0
      %v1327 = vmax.f32 %v1180, 0.0
      %v1328 = vmax.f32 %v1183, 0.0
      %v1329 = vmax.f32 %v1185, 0.0
      %v1330 = vmax.f32 %v1188, 0.0
      %v1331 = vmax.f32 %v1190, 0.0
      %v1332 = vmax.f32 %v1193, 0.0
      %v1333 = vmax.f32 %v1195, 0.0
      %v1334 = vmax.f32 %v1198, 0.0
      %v1335 = vmax.f32 %v1200, 0.0
      %v1336 = vmax.f32 %v1203, 0.0
      %v1337 = vmax.f32 %v1205, 0.0
      %v1338 = vmax.f32 %v1208, 0.0
      %v1339 = vmax.f32 %v1210, 0.0
      %v1340 = vmax.f32 %v1212, %v1216
      %v1341 = vmax.f32 %v1213, %v1217
      %v1342 = vmax.f32 %v1214, %v1218
      %v1343 = vmax.f32 %v1215, %v1219
      %v1344 = vmax.f32 %v1228, %v1232
      %v1345 = vmax.f32 %v1229, %v1233
      %v1346 = vmax.f32 %v1230, %v1234
      %v1347 = vmax.f32 %v1231, %v1235
      %v1348 = vmax.f32 %v1244, %v1248
      %v1349 = vmax.f32 %v1245, %v1249
      %v1350 = vmax.f32 %v1246, %v1250
      %v1351 = vmax.f32 %v1247, %v1251
      %v1352 = vmax.f32 %v1260, %v1264
      %v1353 = vmax.f32 %v1261, %v1265
      %v1354 = vmax.f32 %v1262, %v1266
      %v1355 = vmax.f32 %v1263, %v1267
      %v1356 = vmax.f32 %v1276, %v1280
      %v1357 = vmax.f32 %v1277, %v1281
      %v1358 = vmax.f32 %v1278, %v1282
      %v1359 = vmax.f32 %v1279, %v1283
      %v1360 = vmax.f32 %v1292, %v1296
      %v1361 = vmax.f32 %v1293, %v1297
      %v1362 = vmax.f32 %v1294, %v1298
      %v1363 = vmax.f32 %v1295, %v1299
      %v1364 = vmax.f32 %v1308, %v1312
      %v1365 = vmax.f32 %v1309, %v1313
      %v1366 = vmax.f32 %v1310, %v1314
      %v1367 = vmax.f32 %v1311, %v1315
      %v1368 = vmax.f32 %v1324, %v1328
      %v1369 = vmax.f32 %v1325, %v1329
      %v1370 = vmax.f32 %v1326, %v1330
      %v1371 = vmax.f32 %v1327, %v1331
      %v1372 = vmax.f32 %v1220, %v1224
      %v1373 = vmax.f32 %v1221, %v1225
      %v1374 = vmax.f32 %v1222, %v1226
      %v1375 = vmax.f32 %v1223, %v1227
      %v1376 = vmax.f32 %v1236, %v1240
      %v1377 = vmax.f32 %v1237, %v1241
      %v1378 = vmax.f32 %v1238, %v1242
      %v1379 = vmax.f32 %v1239, %v1243
      %v1380 = vmax.f32 %v1252, %v1256
      %v1381 = vmax.f32 %v1253, %v1257
      %v1382 = vmax.f32 %v1254, %v1258
      %v1383 = vmax.f32 %v1255, %v1259
      %v1384 = vmax.f32 %v1268, %v1272
      %v1385 = vmax.f32 %v1269, %v1273
      %v1386 = vmax.f32 %v1270, %v1274
      %v1387 = vmax.f32 %v1271, %v1275
      %v1388 = vmax.f32 %v1284, %v1288
      %v1389 = vmax.f32 %v1285, %v1289
      %v1390 = vmax.f32 %v1286, %v1290
      %v1391 = vmax.f32 %v1287, %v1291
      %v1392 = vmax.f32 %v1300, %v1304
      %v1393 = vmax.f32 %v1301, %v1305
      %v1394 = vmax.f32 %v1302, %v1306
      %v1395 = vmax.f32 %v1303, %v1307
      %v1396 = vmax.f32 %v1316, %v1320
      %v1397 = vmax.f32 %v1317, %v1321
      %v1398 = vmax.f32 %v1318, %v1322
      %v1399 = vmax.f32 %v1319, %v1323
      %v1400 = vmax.f32 %v1332, %v1336
      %v1401 = vmax.f32 %v1333, %v1337
      %v1402 = vmax.f32 %v1334, %v1338
      %v1403 = vmax.f32 %v1335, %v1339
      %v1404 = vmax.f32 %v1340, %v1372
      %v1405 = vmax.f32 %v1341, %v1373
      %v1406 = vmax.f32 %v1342, %v1374
      %v1407 = vmax.f32 %v1343, %v1375
      %v1408 = vmax.f32 %v1344, %v1376
      %v1409 = vmax.f32 %v1345, %v1377
      %v1410 = vmax.f32 %v1346, %v1378
      %v1411 = vmax.f32 %v1347, %v1379
      %v1412 = vmax.f32 %v1348, %v1380
      %v1413 = vmax.f32 %v1349, %v1381
      %v1414 = vmax.f32 %v1350, %v1382
      %v1415 = vmax.f32 %v1351, %v1383
      %v1416 = vmax.f32 %v1352, %v1384
      %v1417 = vmax.f32 %v1353, %v1385
      %v1418 = vmax.f32 %v1354, %v1386
      %v1419 = vmax.f32 %v1355, %v1387
      %v1420 = vmax.f32 %v1356, %v1388
      %v1421 = vmax.f32 %v1357, %v1389
      %v1422 = vmax.f32 %v1358, %v1390
      %v1423 = vmax.f32 %v1359, %v1391
      %v1424 = vmax.f32 %v1360, %v1392
      %v1425 = vmax.f32 %v1361, %v1393
      %v1426 = vmax.f32 %v1362, %v1394
      %v1427 = vmax.f32 %v1363, %v1395
      %v1428 = vmax.f32 %v1364, %v1396
      %v1429 = vmax.f32 %v1365, %v1397
      %v1430 = vmax.f32 %v1366, %v1398
      %v1431 = vmax.f32 %v1367, %v1399
      %v1432 = vmax.f32 %v1368, %v1400
      %v1433 = vmax.f32 %v1369, %v1401
      %v1434 = vmax.f32 %v1370, %v1402
      %v1435 = vmax.f32 %v1371, %v1403
      %v1436 = vpack.c.bf16 %v1404, %v1404
      %v1437 = vpack.c.bf16 %v1405, %v1405
      %v1438 = vpack.c.bf16 %v1406, %v1406
      %v1439 = vpack.c.bf16 %v1407, %v1407
      %v1440 = vpack.c.bf16 %v1408, %v1408
      %v1441 = vpack.c.bf16 %v1409, %v1409
      %v1442 = vpack.c.bf16 %v1410, %v1410
      %v1443 = vpack.c.bf16 %v1411, %v1411
      %v1444 = vpack.c.bf16 %v1412, %v1412
      %v1445 = vpack.c.bf16 %v1413, %v1413
      %v1446 = vpack.c.bf16 %v1414, %v1414
      %v1447 = vpack.c.bf16 %v1415, %v1415
      %v1448 = vpack.c.bf16 %v1416, %v1416
      %v1449 = vpack.c.bf16 %v1417, %v1417
      %v1450 = vpack.c.bf16 %v1418, %v1418
      %v1451 = vpack.c.bf16 %v1419, %v1419
      %v1452 = vpack.c.bf16 %v1420, %v1420
      %v1453 = vpack.c.bf16 %v1421, %v1421
      %v1454 = vpack.c.bf16 %v1422, %v1422
      %v1455 = vpack.c.bf16 %v1423, %v1423
      %v1456 = vpack.c.bf16 %v1424, %v1424
      %v1457 = vpack.c.bf16 %v1425, %v1425
      %v1458 = vpack.c.bf16 %v1426, %v1426
      %v1459 = vpack.c.bf16 %v1427, %v1427
      %v1460 = vpack.c.bf16 %v1428, %v1428
      %v1461 = vpack.c.bf16 %v1429, %v1429
      %v1462 = vpack.c.bf16 %v1430, %v1430
      %v1463 = vpack.c.bf16 %v1431, %v1431
      %v1464 = vpack.c.bf16 %v1432, %v1432
      %v1465 = vpack.c.bf16 %v1433, %v1433
      %v1466 = vpack.c.bf16 %v1434, %v1434
      %v1467 = vpack.c.bf16 %v1435, %v1435
      %vm1468 = vcmask 257024
      %1469 = vst.msk [vmem:[%s211] sm:$0xf] %vm1468, %v1436
      %1470 = vst.msk [vmem:[%s211 + $0x4] sm:$0xf] %vm1468, %v1437
      %1471 = vst.msk [vmem:[%s211 + $0x8] sm:$0xf] %vm1468, %v1438
      %1472 = vst.msk [vmem:[%s211 + $0xc] sm:$0xf] %vm1468, %v1439
      %1473 = vst.msk [vmem:[%s211 + $0x10] sm:$0xf] %vm1468, %v1440
      %1474 = vst.msk [vmem:[%s211 + $0x14] sm:$0xf] %vm1468, %v1441
      %1475 = vst.msk [vmem:[%s211 + $0x18] sm:$0xf] %vm1468, %v1442
      %1476 = vst.msk [vmem:[%s211 + $0x1c] sm:$0xf] %vm1468, %v1443
      %1477 = vst.msk [vmem:[%s211 + $0x20] sm:$0xf] %vm1468, %v1444
      %1478 = vst.msk [vmem:[%s211 + $0x24] sm:$0xf] %vm1468, %v1445
      %1479 = vst.msk [vmem:[%s211 + $0x28] sm:$0xf] %vm1468, %v1446
      %1480 = vst.msk [vmem:[%s211 + $0x2c] sm:$0xf] %vm1468, %v1447
      %1481 = vst.msk [vmem:[%s211 + $0x30] sm:$0xf] %vm1468, %v1448
      %1482 = vst.msk [vmem:[%s211 + $0x34] sm:$0xf] %vm1468, %v1449
      %1483 = vst.msk [vmem:[%s211 + $0x38] sm:$0xf] %vm1468, %v1450
      %1484 = vst.msk [vmem:[%s211 + $0x3c] sm:$0xf] %vm1468, %v1451
      %1485 = vst.msk [vmem:[%s211 + $0x40] sm:$0xf] %vm1468, %v1452
      %1486 = vst.msk [vmem:[%s211 + $0x44] sm:$0xf] %vm1468, %v1453
      %1487 = vst.msk [vmem:[%s211 + $0x48] sm:$0xf] %vm1468, %v1454
      %1488 = vst.msk [vmem:[%s211 + $0x4c] sm:$0xf] %vm1468, %v1455
      %1489 = vst.msk [vmem:[%s211 + $0x50] sm:$0xf] %vm1468, %v1456
      %1490 = vst.msk [vmem:[%s211 + $0x54] sm:$0xf] %vm1468, %v1457
      %1491 = vst.msk [vmem:[%s211 + $0x58] sm:$0xf] %vm1468, %v1458
      %1492 = vst.msk [vmem:[%s211 + $0x5c] sm:$0xf] %vm1468, %v1459
      %1493 = vst.msk [vmem:[%s211 + $0x60] sm:$0xf] %vm1468, %v1460
      %1494 = vst.msk [vmem:[%s211 + $0x64] sm:$0xf] %vm1468, %v1461
      %1495 = vst.msk [vmem:[%s211 + $0x68] sm:$0xf] %vm1468, %v1462
      %1496 = vst.msk [vmem:[%s211 + $0x6c] sm:$0xf] %vm1468, %v1463
      %1497 = vst.msk [vmem:[%s211 + $0x70] sm:$0xf] %vm1468, %v1464
      %1498 = vst.msk [vmem:[%s211 + $0x74] sm:$0xf] %vm1468, %v1465
      %1499 = vst.msk [vmem:[%s211 + $0x78] sm:$0xf] %vm1468, %v1466
      %1500 = vst.msk [vmem:[%s211 + $0x7c] sm:$0xf] %vm1468, %v1467
      %s1501 = smul.u32 32, %s19
      %p1502 = scmp.lt.s32.totalorder %s18, 1
      %s1503 = scalar_select %p1502, %s18, 1
      %p1504 = scmp.lt.s32.totalorder %s1501, 127
      %s1505 = scalar_select %p1504, %s1501, 127
      %s1506 = smul.addr %s1503, 128
      %s1507 = sadd.s32 %s1505, %s1506
      %s1508 = smul.addr %s1507, 4
      %s1509 = scalar_lea.vmem %s3, %s1508
      // Predicated region
      $region33: #{net_forward.4} parent=31 // pred_check
        %p1510 = pneg %p116
      $region34: #{net_forward.4} parent=31 // pred_check_branch
        %1512 = sbr.rel (%p1510) target = $region36
      $region35: #{net_forward.4} parent=31 // pred_region
        %s1513 = smul.u32 32, %s19
      $region36: #{net_forward.4} parent=31 // pred_fallthru
        _
    $region32: #{net_forward.4} parent=5 // pred_fallthru
      _
    %p1514 = scmp.le.s32.totalorder 2, %s9
    // Predicated region
    $region37: #{net_forward.4} parent=5 // pred_check
      %p1515 = pneg %p1514
    $region38: #{net_forward.4} parent=5 // pred_check_branch
      %1517 = sbr.rel (%p1515) target = $region40
    $region39: #{net_forward.4} parent=5 // pred_region
      %s1518 = ssub.s32 %s9, 2
      // Predicated region
      $region41: #{net_forward.4} parent=39 // pred_check
        %p1519 = pneg %p122
      $region42: #{net_forward.4} parent=39 // pred_check_branch
        %1521 = sbr.rel (%p1519) target = $region44
      $region43: #{net_forward.4} parent=39 // pred_region
        %s1522 = smul.u32 32, %s21
        %p1523 = scmp.lt.s32.totalorder %s20, 1
        %s1524 = scalar_select %p1523, %s20, 1
        %p1525 = scmp.lt.s32.totalorder %s1522, 127
        %s1526 = scalar_select %p1525, %s1522, 127
        %s1527 = smul.addr %s1524, 128
        %s1528 = sadd.s32 %s1526, %s1527
        %s1529 = smul.addr %s1528, 4
        %s1530 = scalar_lea.vmem %s3, %s1529
      $region44: #{net_forward.4} parent=39 // pred_fallthru
        _
    $region40: #{net_forward.4} parent=5 // pred_fallthru
      _
  $region6: #{net_forward.4} parent=0 // loop_footer
    %s13 = sadd.s32 1, %s9
  $region7: #{net_forward.4} parent=0 // loop_footer_branch
    %8 = sbr.rel target = $region3
  $region8: #{net_forward.4} parent=0 // loop_exit
    _

// kernel: net_forward.5
$region0: #{net_forward.5}
  #allocation0 [shape = 'u32[]', space=smem, size = 0x4, offset = 0x4, fixed_abs, tag = 'smem constant byte address 0x4 - core index']
  #allocation1 [shape = 'u32[72,128]{1,0:T(1,128)}', space=vmem, size = 0x9000, scoped, tag = 'internal scratch']
  %s0 = inlined_call_operand.vmem [shape: bf16[2,64,16,288], index: 0, kind: input, shape index: {}]
  %s1 = inlined_call_operand.vmem [shape: bf16[288,64], index: 1, kind: input, shape index: {}]
  %s2 = inlined_call_operand.vmem [shape: f32[1,64], index: 2, kind: input, shape index: {}]
  %s3 = inlined_call_operand.vmem [shape: bf16[2,256,64], index: 3, kind: output, shape index: {}]
  %s4 = sld [smem:[#allocation0]]
  $region45: #{net_forward.5} parent=0
    _
  %s6 = ssub.s32 1, %s4
  %s7 = scalar_select 0, %s6, %s4
  loop: start=0, step=1, limit=6
  $region2: #{net_forward.5} parent=0 // loop_pre_header
    _
  $region3: #{net_forward.5} parent=0 // loop_header
    %s9 = sphi 0, %s13
    %p10 = scmp.ge.s32.totalorder %s9, 6
    %s16 = sphi 0, %s28
    %s17 = sphi 0, %s24
    %s18 = sphi 0, %s16
    %s19 = sphi 0, %s17
    %s20 = sphi 0, %s18
    %s21 = sphi 0, %s19
    %s33 = sphi 0, %s35
    %s36 = sphi 0, %s33
    %s37 = sphi 0, %s36
    %s53 = sphi 0, %s37
    %s57 = sphi 0, %s57
    %s59 = sphi 0, %s57
    %s60 = sphi 0, %s59
    %s74 = sphi 0, %s60
    %s78 = sphi 0, %s78
    %s80 = sphi 0, %s78
    %s81 = sphi 0, %s80
    %s95 = sphi 0, %s81
    %s103 = sphi 0, %s105
    %s106 = sphi 0, %s103
    %s107 = sphi 0, %s106
    %s123 = sphi 0, %s107
  $region4: #{net_forward.5} parent=0 // loop_header_branch
    %12 = sbr.rel (%p10) target = $region8
  $region5: #{net_forward.5} parent=0 // loop_body
    %s14 = ssub.s32 %s9, 1
    %s15 = ssub.s32 %s9, 2
    %s22 = sadd.s32 1, %s17
    %p23 = scmp.ge.s32.totalorder %s22, 2
    %s24 = scalar_select %p23, 0, %s22
    %s25 = sadd.s32 1, %s16
    %s26 = scalar_select %p23, %s25, %s16
    %p27 = scmp.ge.s32.totalorder %s26, 2
    %s28 = scalar_select %p27, 0, %s26
    %s29 = ssub.s32 %s16, %s28
    %s30 = ssub.s32 %s17, %s24
    %s31 = sor.u32 %s29, %s30
    %p32 = scmp.eq.s32.totalorder %s31, 0
    %s34 = sadd.s32 %s33, 1
    %s35 = scalar_select %p32, %s33, %s34
    %p38 = pneg %p32
    %p39 = scmp.eq.s32.totalorder %s9, 3
    %p40 = por %p38, %p39
    %p41 = scmp.ne.s32.totalorder %s33, %s36
    %p42 = scmp.eq.s32.totalorder %s9, 0
    %p43 = por %p41, %p42
    %p44 = scmp.ne.s32.totalorder %s33, %s36
    %p45 = scmp.eq.s32.totalorder %s14, 3
    %p46 = por %p44, %p45
    %p47 = scmp.ne.s32.totalorder %s36, %s37
    %p48 = scmp.eq.s32.totalorder %s14, 0
    %p49 = por %p47, %p48
    %p50 = scmp.ne.s32.totalorder %s36, %s37
    %p51 = scmp.eq.s32.totalorder %s15, 3
    %p52 = por %p50, %p51
    %p54 = scmp.ne.s32.totalorder %s37, %s53
    %p55 = scmp.eq.s32.totalorder %s15, 0
    %p56 = por %p54, %p55
    %s58 = sadd.s32 %s57, 1
    %p61 = scmp.eq.s32.totalorder %s9, 3
    %p62 = scmp.ne.s32.totalorder %s57, %s59
    %p63 = scmp.eq.s32.totalorder %s9, 0
    %p64 = por %p62, %p63
    %p65 = scmp.ne.s32.totalorder %s57, %s59
    %p66 = scmp.eq.s32.totalorder %s14, 3
    %p67 = por %p65, %p66
    %p68 = scmp.ne.s32.totalorder %s59, %s60
    %p69 = scmp.eq.s32.totalorder %s14, 0
    %p70 = por %p68, %p69
    %p71 = scmp.ne.s32.totalorder %s59, %s60
    %p72 = scmp.eq.s32.totalorder %s15, 3
    %p73 = por %p71, %p72
    %p75 = scmp.ne.s32.totalorder %s60, %s74
    %p76 = scmp.eq.s32.totalorder %s15, 0
    %p77 = por %p75, %p76
    %s79 = sadd.s32 %s78, 1
    %p82 = scmp.eq.s32.totalorder %s9, 3
    %p83 = scmp.ne.s32.totalorder %s78, %s80
    %p84 = scmp.eq.s32.totalorder %s9, 0
    %p85 = por %p83, %p84
    %p86 = scmp.ne.s32.totalorder %s78, %s80
    %p87 = scmp.eq.s32.totalorder %s14, 3
    %p88 = por %p86, %p87
    %p89 = scmp.ne.s32.totalorder %s80, %s81
    %p90 = scmp.eq.s32.totalorder %s14, 0
    %p91 = por %p89, %p90
    %p92 = scmp.ne.s32.totalorder %s80, %s81
    %p93 = scmp.eq.s32.totalorder %s15, 3
    %p94 = por %p92, %p93
    %p96 = scmp.ne.s32.totalorder %s81, %s95
    %p97 = scmp.eq.s32.totalorder %s15, 0
    %p98 = por %p96, %p97
    %s99 = ssub.s32 %s16, %s28
    %s100 = ssub.s32 %s17, %s24
    %s101 = sor.u32 %s99, %s100
    %p102 = scmp.eq.s32.totalorder %s101, 0
    %s104 = sadd.s32 %s103, 1
    %s105 = scalar_select %p102, %s103, %s104
    %p108 = pneg %p102
    %p109 = scmp.eq.s32.totalorder %s9, 3
    %p110 = por %p108, %p109
    %p111 = scmp.ne.s32.totalorder %s103, %s106
    %p112 = scmp.eq.s32.totalorder %s9, 0
    %p113 = por %p111, %p112
    %p114 = scmp.ne.s32.totalorder %s103, %s106
    %p115 = scmp.eq.s32.totalorder %s14, 3
    %p116 = por %p114, %p115
    %p117 = scmp.ne.s32.totalorder %s106, %s107
    %p118 = scmp.eq.s32.totalorder %s14, 0
    %p119 = por %p117, %p118
    %p120 = scmp.ne.s32.totalorder %s106, %s107
    %p121 = scmp.eq.s32.totalorder %s15, 3
    %p122 = por %p120, %p121
    %p124 = scmp.ne.s32.totalorder %s107, %s123
    %p125 = scmp.eq.s32.totalorder %s15, 0
    %p126 = por %p124, %p125
    %p127 = scmp.le.s32.totalorder 1, %s9
    %p128 = scmp.lt.s32.totalorder %s9, 5
    %p129 = pnand %p127, %p128
    %p130 = pneg %p129
    // Predicated region
    $region9: #{net_forward.5} parent=5 // pred_check
      _
    $region10: #{net_forward.5} parent=5 // pred_check_branch
      %132 = sbr.rel (%p129) target = $region12
    $region11: #{net_forward.5} parent=5 // pred_region
      %s133 = ssub.s32 %s9, 1
      // Predicated region
      $region13: #{net_forward.5} parent=11 // pred_check
        %p134 = pneg %p70
      $region14: #{net_forward.5} parent=11 // pred_check_branch
        %136 = sbr.rel (%p134) target = $region16
      $region15: #{net_forward.5} parent=11 // pred_region
        _
      $region16: #{net_forward.5} parent=11 // pred_fallthru
        _
      // Predicated region
      $region17: #{net_forward.5} parent=11 // pred_check
        %p137 = pneg %p91
      $region18: #{net_forward.5} parent=11 // pred_check_branch
        %139 = sbr.rel (%p137) target = $region20
      $region19: #{net_forward.5} parent=11 // pred_region
        _
      $region20: #{net_forward.5} parent=11 // pred_fallthru
        _
    $region12: #{net_forward.5} parent=5 // pred_fallthru
      _
    %p140 = scmp.lt.s32.totalorder %s9, 4
    // Predicated region
    $region21: #{net_forward.5} parent=5 // pred_check
      %p141 = pneg %p140
    $region22: #{net_forward.5} parent=5 // pred_check_branch
      %143 = sbr.rel (%p141) target = $region24
    $region23: #{net_forward.5} parent=5 // pred_region
      // Predicated region
      $region25: #{net_forward.5} parent=23 // pred_check
        %p144 = pneg %p43
      $region26: #{net_forward.5} parent=23 // pred_check_branch
        %146 = sbr.rel (%p144) target = $region28
      $region27: #{net_forward.5} parent=23 // pred_region
        %s147 = smul.u32 32, %s17
        %p148 = scmp.lt.s32.totalorder %s16, 1
        %s149 = scalar_select %p148, %s16, 1
        %p150 = scmp.lt.s32.totalorder %s147, 63
        %s151 = scalar_select %p150, %s147, 63
        %s152 = smul.addr %s151, 6
        %s153 = smul.addr %s149, 384
        %s154 = sadd.s32 %s152, %s153
        %s155 = smul.addr %s154, 4
        %s156 = scalar_lea.vmem %s0, %s155
        %s157 = smul.u32 32, %s17
      $region28: #{net_forward.5} parent=23 // pred_fallthru
        _
    $region24: #{net_forward.5} parent=5 // pred_fallthru
      _
    %p158 = scmp.le.s32.totalorder 1, %s9
    %p159 = scmp.lt.s32.totalorder %s9, 5
    %p160 = pnand %p158, %p159
    %p161 = pneg %p160
    // Predicated region
    $region29: #{net_forward.5} parent=5 // pred_check
      _
    $region30: #{net_forward.5} parent=5 // pred_check_branch
      %163 = sbr.rel (%p160) target = $region32
    $region31: #{net_forward.5} parent=5 // pred_region
      %s164 = ssub.s32 %s9, 1
      %s165 = smul.u32 32, %s19
      %p166 = scmp.lt.s32.totalorder %s18, 1
      %s167 = scalar_select %p166, %s18, 1
      %p168 = scmp.lt.s32.totalorder %s165, 63
      %s169 = scalar_select %p168, %s165, 63
      %s170 = smul.addr %s169, 6
      %s171 = smul.addr %s167, 384
      %s172 = sadd.s32 %s170, %s171
      %s173 = smul.addr %s172, 4
      %s174 = scalar_lea.vmem %s0, %s173
      %p175 = pneg %p49
      %p176 = pneg %p46
      %p177 = pneg %p70
      %p178 = pneg %p67
      %p179 = pneg %p91
      %p180 = pneg %p88
      %p181 = pneg %p119
      %p182 = pneg %p116
      %s183 = smul.u32 16, %s19
      %p184 = scmp.lt.s32.totalorder %s18, 1
      %s185 = scalar_select %p184, %s18, 1
      %p186 = scmp.lt.s32.totalorder %s183, 31
      %s187 = scalar_select %p186, %s183, 31
      %s188 = smul.addr %s185, 32
      %s189 = sadd.s32 %s187, %s188
      %s190 = smul.addr %s189, 4
      %s191 = scalar_lea.vmem %s3, %s190
      %s192 = smul.u32 32, %s19
      %p193 = scmp.lt.s32.totalorder %s18, 1
      %s194 = scalar_select %p193, %s18, 1
      %p195 = scmp.lt.s32.totalorder %s192, 63
      %s196 = scalar_select %p195, %s192, 63
      %s197 = smul.addr %s196, 6
      %s198 = smul.addr %s194, 384
      %s199 = sadd.s32 %s197, %s198
      %s200 = smul.addr %s199, 4
      %s201 = scalar_lea.vmem %s0, %s200
      %s202 = smul.u32 32, %s19
      %s203 = smul.u32 16, %s19
      %p204 = scmp.lt.s32.totalorder %s18, 1
      %s205 = scalar_select %p204, %s18, 1
      %p206 = scmp.lt.s32.totalorder %s203, 31
      %s207 = scalar_select %p206, %s203, 31
      %s208 = smul.addr %s205, 32
      %s209 = sadd.s32 %s207, %s208
      %s210 = smul.addr %s209, 4
      %s211 = scalar_lea.vmem %s3, %s210
      %s212 = smul.u32 16, %s19
      %v214 = vld [vmem:[%s201] sm:$0xff]
      %v215 = vld [vmem:[%s201 + $0x8] sm:$0xf]
      %v216 = vld [vmem:[%s201 + $0xc] sm:$0xff]
      %v217 = vld [vmem:[%s201 + $0x14] sm:$0xf]
      %v218 = vld [vmem:[%s201 + $0x18] sm:$0xff]
      %v219 = vld [vmem:[%s201 + $0x20] sm:$0xf]
      %v220 = vld [vmem:[%s201 + $0x24] sm:$0xff]
      %v221 = vld [vmem:[%s201 + $0x2c] sm:$0xf]
      %v222 = vld [vmem:[%s201 + $0x30] sm:$0xff]
      %v223 = vld [vmem:[%s201 + $0x38] sm:$0xf]
      %v224 = vld [vmem:[%s201 + $0x3c] sm:$0xff]
      %v225 = vld [vmem:[%s201 + $0x44] sm:$0xf]
      %v226 = vld [vmem:[%s201 + $0x48] sm:$0xff]
      %v227 = vld [vmem:[%s201 + $0x50] sm:$0xf]
      %v228 = vld [vmem:[%s201 + $0x54] sm:$0xff]
      %v229 = vld [vmem:[%s201 + $0x5c] sm:$0xf]
      %v230 = vld [vmem:[%s201 + $0x60] sm:$0xff]
      %v231 = vld [vmem:[%s201 + $0x68] sm:$0xf]
      %v232 = vld [vmem:[%s201 + $0x6c] sm:$0xff]
      %v233 = vld [vmem:[%s201 + $0x74] sm:$0xf]
      %v234 = vld [vmem:[%s201 + $0x78] sm:$0xff]
      %v235 = vld [vmem:[%s201 + $0x80] sm:$0xf]
      %v236 = vld [vmem:[%s201 + $0x84] sm:$0xff]
      %v237 = vld [vmem:[%s201 + $0x8c] sm:$0xf]
      %v238 = vld [vmem:[%s201 + $0x90] sm:$0xff]
      %v239 = vld [vmem:[%s201 + $0x98] sm:$0xf]
      %v240 = vld [vmem:[%s201 + $0x9c] sm:$0xff]
      %v241 = vld [vmem:[%s201 + $0xa4] sm:$0xf]
      %v242 = vld [vmem:[%s201 + $0xa8] sm:$0xff]
      %v243 = vld [vmem:[%s201 + $0xb0] sm:$0xf]
      %v244 = vld [vmem:[%s201 + $0xb4] sm:$0xff]
      %v245 = vld [vmem:[%s201 + $0xbc] sm:$0xf]
      %v246 = vld [vmem:[%s201 + $0xc0] sm:$0xff]
      %v247 = vld [vmem:[%s201 + $0xc8] sm:$0xf]
      %v248 = vld [vmem:[%s201 + $0xcc] sm:$0xff]
      %v249 = vld [vmem:[%s201 + $0xd4] sm:$0xf]
      %v250 = vld [vmem:[%s201 + $0xd8] sm:$0xff]
      %v251 = vld [vmem:[%s201 + $0xe0] sm:$0xf]
      %v252 = vld [vmem:[%s201 + $0xe4] sm:$0xff]
      %v253 = vld [vmem:[%s201 + $0xec] sm:$0xf]
      %v254 = vld [vmem:[%s201 + $0xf0] sm:$0xff]
      %v255 = vld [vmem:[%s201 + $0xf8] sm:$0xf]
      %v256 = vld [vmem:[%s201 + $0xfc] sm:$0xff]
      %v257 = vld [vmem:[%s201 + $0x104] sm:$0xf]
      %v258 = vld [vmem:[%s201 + $0x108] sm:$0xff]
      %v259 = vld [vmem:[%s201 + $0x110] sm:$0xf]
      %v260 = vld [vmem:[%s201 + $0x114] sm:$0xff]
      %v261 = vld [vmem:[%s201 + $0x11c] sm:$0xf]
      %v262 = vld [vmem:[%s201 + $0x120] sm:$0xff]
      %v263 = vld [vmem:[%s201 + $0x128] sm:$0xf]
      %v264 = vld [vmem:[%s201 + $0x12c] sm:$0xff]
      %v265 = vld [vmem:[%s201 + $0x134] sm:$0xf]
      %v266 = vld [vmem:[%s201 + $0x138] sm:$0xff]
      %v267 = vld [vmem:[%s201 + $0x140] sm:$0xf]
      %v268 = vld [vmem:[%s201 + $0x144] sm:$0xff]
      %v269 = vld [vmem:[%s201 + $0x14c] sm:$0xf]
      %v270 = vld [vmem:[%s201 + $0x150] sm:$0xff]
      %v271 = vld [vmem:[%s201 + $0x158] sm:$0xf]
      %v272 = vld [vmem:[%s201 + $0x15c] sm:$0xff]
      %v273 = vld [vmem:[%s201 + $0x164] sm:$0xf]
      %v274 = vld [vmem:[%s201 + $0x168] sm:$0xff]
      %v275 = vld [vmem:[%s201 + $0x170] sm:$0xf]
      %v276 = vld [vmem:[%s201 + $0x174] sm:$0xff]
      %v277 = vld [vmem:[%s201 + $0x17c] sm:$0xf]
      %v278 = vld [vmem:[%s201 + $0x180] sm:$0xff]
      %v279 = vld [vmem:[%s201 + $0x188] sm:$0xf]
      %v280 = vld [vmem:[%s201 + $0x18c] sm:$0xff]
      %v281 = vld [vmem:[%s201 + $0x194] sm:$0xf]
      %v282 = vld [vmem:[%s201 + $0x198] sm:$0xff]
      %v283 = vld [vmem:[%s201 + $0x1a0] sm:$0xf]
      %v284 = vld [vmem:[%s201 + $0x1a4] sm:$0xff]
      %v285 = vld [vmem:[%s201 + $0x1ac] sm:$0xf]
      %v286 = vld [vmem:[%s201 + $0x1b0] sm:$0xff]
      %v287 = vld [vmem:[%s201 + $0x1b8] sm:$0xf]
      %v288 = vld [vmem:[%s201 + $0x1bc] sm:$0xff]
      %v289 = vld [vmem:[%s201 + $0x1c4] sm:$0xf]
      %v290 = vld [vmem:[%s201 + $0x1c8] sm:$0xff]
      %v291 = vld [vmem:[%s201 + $0x1d0] sm:$0xf]
      %v292 = vld [vmem:[%s201 + $0x1d4] sm:$0xff]
      %v293 = vld [vmem:[%s201 + $0x1dc] sm:$0xf]
      %v294 = vld [vmem:[%s201 + $0x1e0] sm:$0xff]
      %v295 = vld [vmem:[%s201 + $0x1e8] sm:$0xf]
      %v296 = vld [vmem:[%s201 + $0x1ec] sm:$0xff]
      %v297 = vld [vmem:[%s201 + $0x1f4] sm:$0xf]
      %v298 = vld [vmem:[%s201 + $0x1f8] sm:$0xff]
      %v299 = vld [vmem:[%s201 + $0x200] sm:$0xf]
      %v300 = vld [vmem:[%s201 + $0x204] sm:$0xff]
      %v301 = vld [vmem:[%s201 + $0x20c] sm:$0xf]
      %v302 = vld [vmem:[%s201 + $0x210] sm:$0xff]
      %v303 = vld [vmem:[%s201 + $0x218] sm:$0xf]
      %v304 = vld [vmem:[%s201 + $0x21c] sm:$0xff]
      %v305 = vld [vmem:[%s201 + $0x224] sm:$0xf]
      %v306 = vld [vmem:[%s201 + $0x228] sm:$0xff]
      %v307 = vld [vmem:[%s201 + $0x230] sm:$0xf]
      %v308 = vld [vmem:[%s201 + $0x234] sm:$0xff]
      %v309 = vld [vmem:[%s201 + $0x23c] sm:$0xf]
      %v310 = vld [vmem:[%s201 + $0x240] sm:$0xff]
      %v311 = vld [vmem:[%s201 + $0x248] sm:$0xf]
      %v312 = vld [vmem:[%s201 + $0x24c] sm:$0xff]
      %v313 = vld [vmem:[%s201 + $0x254] sm:$0xf]
      %v314 = vld [vmem:[%s201 + $0x258] sm:$0xff]
      %v315 = vld [vmem:[%s201 + $0x260] sm:$0xf]
      %v316 = vld [vmem:[%s201 + $0x264] sm:$0xff]
      %v317 = vld [vmem:[%s201 + $0x26c] sm:$0xf]
      %v318 = vld [vmem:[%s201 + $0x270] sm:$0xff]
      %v319 = vld [vmem:[%s201 + $0x278] sm:$0xf]
      %v320 = vld [vmem:[%s201 + $0x27c] sm:$0xff]
      %v321 = vld [vmem:[%s201 + $0x284] sm:$0xf]
      %v322 = vld [vmem:[%s201 + $0x288] sm:$0xff]
      %v323 = vld [vmem:[%s201 + $0x290] sm:$0xf]
      %v324 = vld [vmem:[%s201 + $0x294] sm:$0xff]
      %v325 = vld [vmem:[%s201 + $0x29c] sm:$0xf]
      %v326 = vld [vmem:[%s201 + $0x2a0] sm:$0xff]
      %v327 = vld [vmem:[%s201 + $0x2a8] sm:$0xf]
      %v328 = vld [vmem:[%s201 + $0x2ac] sm:$0xff]
      %v329 = vld [vmem:[%s201 + $0x2b4] sm:$0xf]
      %v330 = vld [vmem:[%s201 + $0x2b8] sm:$0xff]
      %v331 = vld [vmem:[%s201 + $0x2c0] sm:$0xf]
      %v332 = vld [vmem:[%s201 + $0x2c4] sm:$0xff]
      %v333 = vld [vmem:[%s201 + $0x2cc] sm:$0xf]
      %v334 = vld [vmem:[%s201 + $0x2d0] sm:$0xff]
      %v335 = vld [vmem:[%s201 + $0x2d8] sm:$0xf]
      %v336 = vld [vmem:[%s201 + $0x2dc] sm:$0xff]
      %v337 = vld [vmem:[%s201 + $0x2e4] sm:$0xf]
      %v338 = vld [vmem:[%s201 + $0x2e8] sm:$0xff]
      %v339 = vld [vmem:[%s201 + $0x2f0] sm:$0xf]
      %v340 = vld [vmem:[%s201 + $0x2f4] sm:$0xff]
      %v341 = vld [vmem:[%s201 + $0x2fc] sm:$0xf]
      %v342 = vld [vmem:[%s1] sm:$0xf]
      %v343 = vld [vmem:[%s1 + $0x4] sm:$0xf]
      %v344 = vld [vmem:[%s1 + $0x8] sm:$0xf]
      %v345 = vld [vmem:[%s1 + $0xc] sm:$0xf]
      %v346 = vld [vmem:[%s1 + $0x10] sm:$0xf]
      %v347 = vld [vmem:[%s1 + $0x14] sm:$0xf]
      %v348 = vld [vmem:[%s1 + $0x18] sm:$0xf]
      %v349 = vld [vmem:[%s1 + $0x1c] sm:$0xf]
      %v350 = vld [vmem:[%s1 + $0x20] sm:$0xf]
      %v351 = vld [vmem:[%s1 + $0x24] sm:$0xf]
      %v352 = vld [vmem:[%s1 + $0x28] sm:$0xf]
      %v353 = vld [vmem:[%s1 + $0x2c] sm:$0xf]
      %v354 = vld [vmem:[%s1 + $0x30] sm:$0xf]
      %v355 = vld [vmem:[%s1 + $0x34] sm:$0xf]
      %v356 = vld [vmem:[%s1 + $0x38] sm:$0xf]
      %v357 = vld [vmem:[%s1 + $0x3c] sm:$0xf]
      %v358 = vld [vmem:[%s1 + $0x40] sm:$0xf]
      %v359 = vld [vmem:[%s1 + $0x44] sm:$0xf]
      %v360 = vld [vmem:[%s1 + $0x48] sm:$0xf]
      %v361 = vld [vmem:[%s1 + $0x4c] sm:$0xf]
      %v362 = vld [vmem:[%s1 + $0x50] sm:$0xf]
      %v363 = vld [vmem:[%s1 + $0x54] sm:$0xf]
      %v364 = vld [vmem:[%s1 + $0x58] sm:$0xf]
      %v365 = vld [vmem:[%s1 + $0x5c] sm:$0xf]
      %v366 = vld [vmem:[%s1 + $0x60] sm:$0xf]
      %v367 = vld [vmem:[%s1 + $0x64] sm:$0xf]
      %v368 = vld [vmem:[%s1 + $0x68] sm:$0xf]
      %v369 = vld [vmem:[%s1 + $0x6c] sm:$0xf]
      %v370 = vld [vmem:[%s1 + $0x70] sm:$0xf]
      %v371 = vld [vmem:[%s1 + $0x74] sm:$0xf]
      %v372 = vld [vmem:[%s1 + $0x78] sm:$0xf]
      %v373 = vld [vmem:[%s1 + $0x7c] sm:$0xf]
      %v374 = vld [vmem:[%s1 + $0x80] sm:$0xf]
      %v375 = vld [vmem:[%s1 + $0x84] sm:$0xf]
      %v376 = vld [vmem:[%s1 + $0x88] sm:$0xf]
      %v377 = vld [vmem:[%s1 + $0x8c] sm:$0xf]
      %v378 = vld [vmem:[%s2] sm:$0x1]
      %v380 = vperm.slane %v378, 0
      %v510 = vunpack.c.l.b16 %v214
      %v511 = vunpack.c.h.b16 %v214
      %v512 = vunpack.c.l.b16 %v215
      %v513 = vunpack.c.l.b16 %v216
      %v514 = vunpack.c.h.b16 %v216
      %v515 = vunpack.c.l.b16 %v217
      %v516 = vunpack.c.l.b16 %v218
      %v517 = vunpack.c.h.b16 %v218
      %v518 = vunpack.c.l.b16 %v219
      %v519 = vunpack.c.l.b16 %v220
      %v520 = vunpack.c.h.b16 %v220
      %v521 = vunpack.c.l.b16 %v221
      %v522 = vunpack.c.l.b16 %v222
      %v523 = vunpack.c.h.b16 %v222
      %v524 = vunpack.c.l.b16 %v223
      %v525 = vunpack.c.l.b16 %v224
      %v526 = vunpack.c.h.b16 %v224
      %v527 = vunpack.c.l.b16 %v225
      %v528 = vunpack.c.l.b16 %v226
      %v529 = vunpack.c.h.b16 %v226
      %v530 = vunpack.c.l.b16 %v227
      %v531 = vunpack.c.l.b16 %v228
      %v532 = vunpack.c.h.b16 %v228
      %v533 = vunpack.c.l.b16 %v229
      %v534 = vunpack.c.l.b16 %v230
      %v535 = vunpack.c.h.b16 %v230
      %v536 = vunpack.c.l.b16 %v231
      %v537 = vunpack.c.l.b16 %v232
      %v538 = vunpack.c.h.b16 %v232
      %v539 = vunpack.c.l.b16 %v233
      %v540 = vunpack.c.l.b16 %v234
      %v541 = vunpack.c.h.b16 %v234
      %v542 = vunpack.c.l.b16 %v235
      %v543 = vunpack.c.l.b16 %v236
      %v544 = vunpack.c.h.b16 %v236
      %v545 = vunpack.c.l.b16 %v237
      %v546 = vunpack.c.l.b16 %v238
      %v547 = vunpack.c.h.b16 %v238
      %v548 = vunpack.c.l.b16 %v239
      %v549 = vunpack.c.l.b16 %v240
      %v550 = vunpack.c.h.b16 %v240
      %v551 = vunpack.c.l.b16 %v241
      %v552 = vunpack.c.l.b16 %v242
      %v553 = vunpack.c.h.b16 %v242
      %v554 = vunpack.c.l.b16 %v243
      %v555 = vunpack.c.l.b16 %v244
      %v556 = vunpack.c.h.b16 %v244
      %v557 = vunpack.c.l.b16 %v245
      %v558 = vunpack.c.l.b16 %v246
      %v559 = vunpack.c.h.b16 %v246
      %v560 = vunpack.c.l.b16 %v247
      %v561 = vunpack.c.l.b16 %v248
      %v562 = vunpack.c.h.b16 %v248
      %v563 = vunpack.c.l.b16 %v249
      %v564 = vunpack.c.l.b16 %v250
      %v565 = vunpack.c.h.b16 %v250
      %v566 = vunpack.c.l.b16 %v251
      %v567 = vunpack.c.l.b16 %v252
      %v568 = vunpack.c.h.b16 %v252
      %v569 = vunpack.c.l.b16 %v253
      %v570 = vunpack.c.l.b16 %v254
      %v571 = vunpack.c.h.b16 %v254
      %v572 = vunpack.c.l.b16 %v255
      %v573 = vunpack.c.l.b16 %v256
      %v574 = vunpack.c.h.b16 %v256
      %v575 = vunpack.c.l.b16 %v257
      %v576 = vunpack.c.l.b16 %v258
      %v577 = vunpack.c.h.b16 %v258
      %v578 = vunpack.c.l.b16 %v259
      %v579 = vunpack.c.l.b16 %v260
      %v580 = vunpack.c.h.b16 %v260
      %v581 = vunpack.c.l.b16 %v261
      %v582 = vunpack.c.l.b16 %v262
      %v583 = vunpack.c.h.b16 %v262
      %v584 = vunpack.c.l.b16 %v263
      %v585 = vunpack.c.l.b16 %v264
      %v586 = vunpack.c.h.b16 %v264
      %v587 = vunpack.c.l.b16 %v265
      %v588 = vunpack.c.l.b16 %v266
      %v589 = vunpack.c.h.b16 %v266
      %v590 = vunpack.c.l.b16 %v267
      %v591 = vunpack.c.l.b16 %v268
      %v592 = vunpack.c.h.b16 %v268
      %v593 = vunpack.c.l.b16 %v269
      %v594 = vunpack.c.l.b16 %v270
      %v595 = vunpack.c.h.b16 %v270
      %v596 = vunpack.c.l.b16 %v271
      %v597 = vunpack.c.l.b16 %v272
      %v598 = vunpack.c.h.b16 %v272
      %v599 = vunpack.c.l.b16 %v273
      %v600 = vunpack.c.l.b16 %v274
      %v601 = vunpack.c.h.b16 %v274
      %v602 = vunpack.c.l.b16 %v275
      %v603 = vunpack.c.l.b16 %v276
      %v604 = vunpack.c.h.b16 %v276
      %v605 = vunpack.c.l.b16 %v277
      %v606 = vunpack.c.l.b16 %v278
      %v607 = vunpack.c.h.b16 %v278
      %v608 = vunpack.c.l.b16 %v279
      %v609 = vunpack.c.l.b16 %v280
      %v610 = vunpack.c.h.b16 %v280
      %v611 = vunpack.c.l.b16 %v281
      %v612 = vunpack.c.l.b16 %v282
      %v613 = vunpack.c.h.b16 %v282
      %v614 = vunpack.c.l.b16 %v283
      %v615 = vunpack.c.l.b16 %v284
      %v616 = vunpack.c.h.b16 %v284
      %v617 = vunpack.c.l.b16 %v285
      %v618 = vunpack.c.l.b16 %v286
      %v619 = vunpack.c.h.b16 %v286
      %v620 = vunpack.c.l.b16 %v287
      %v621 = vunpack.c.l.b16 %v288
      %v622 = vunpack.c.h.b16 %v288
      %v623 = vunpack.c.l.b16 %v289
      %v624 = vunpack.c.l.b16 %v290
      %v625 = vunpack.c.h.b16 %v290
      %v626 = vunpack.c.l.b16 %v291
      %v627 = vunpack.c.l.b16 %v292
      %v628 = vunpack.c.h.b16 %v292
      %v629 = vunpack.c.l.b16 %v293
      %v630 = vunpack.c.l.b16 %v294
      %v631 = vunpack.c.h.b16 %v294
      %v632 = vunpack.c.l.b16 %v295
      %v633 = vunpack.c.l.b16 %v296
      %v634 = vunpack.c.h.b16 %v296
      %v635 = vunpack.c.l.b16 %v297
      %v636 = vunpack.c.l.b16 %v298
      %v637 = vunpack.c.h.b16 %v298
      %v638 = vunpack.c.l.b16 %v299
      %v639 = vunpack.c.l.b16 %v300
      %v640 = vunpack.c.h.b16 %v300
      %v641 = vunpack.c.l.b16 %v301
      %v642 = vunpack.c.l.b16 %v302
      %v643 = vunpack.c.h.b16 %v302
      %v644 = vunpack.c.l.b16 %v303
      %v645 = vunpack.c.l.b16 %v304
      %v646 = vunpack.c.h.b16 %v304
      %v647 = vunpack.c.l.b16 %v305
      %v648 = vunpack.c.l.b16 %v306
      %v649 = vunpack.c.h.b16 %v306
      %v650 = vunpack.c.l.b16 %v307
      %v651 = vunpack.c.l.b16 %v308
      %v652 = vunpack.c.h.b16 %v308
      %v653 = vunpack.c.l.b16 %v309
      %v654 = vunpack.c.l.b16 %v310
      %v655 = vunpack.c.h.b16 %v310
      %v656 = vunpack.c.l.b16 %v311
      %v657 = vunpack.c.l.b16 %v312
      %v658 = vunpack.c.h.b16 %v312
      %v659 = vunpack.c.l.b16 %v313
      %v660 = vunpack.c.l.b16 %v314
      %v661 = vunpack.c.h.b16 %v314
      %v662 = vunpack.c.l.b16 %v315
      %v663 = vunpack.c.l.b16 %v316
      %v664 = vunpack.c.h.b16 %v316
      %v665 = vunpack.c.l.b16 %v317
      %v666 = vunpack.c.l.b16 %v318
      %v667 = vunpack.c.h.b16 %v318
      %v668 = vunpack.c.l.b16 %v319
      %v669 = vunpack.c.l.b16 %v320
      %v670 = vunpack.c.h.b16 %v320
      %v671 = vunpack.c.l.b16 %v321
      %v672 = vunpack.c.l.b16 %v322
      %v673 = vunpack.c.h.b16 %v322
      %v674 = vunpack.c.l.b16 %v323
      %v675 = vunpack.c.l.b16 %v324
      %v676 = vunpack.c.h.b16 %v324
      %v677 = vunpack.c.l.b16 %v325
      %v678 = vunpack.c.l.b16 %v326
      %v679 = vunpack.c.h.b16 %v326
      %v680 = vunpack.c.l.b16 %v327
      %v681 = vunpack.c.l.b16 %v328
      %v682 = vunpack.c.h.b16 %v328
      %v683 = vunpack.c.l.b16 %v329
      %v684 = vunpack.c.l.b16 %v330
      %v685 = vunpack.c.h.b16 %v330
      %v686 = vunpack.c.l.b16 %v331
      %v687 = vunpack.c.l.b16 %v332
      %v688 = vunpack.c.h.b16 %v332
      %v689 = vunpack.c.l.b16 %v333
      %v690 = vunpack.c.l.b16 %v334
      %v691 = vunpack.c.h.b16 %v334
      %v692 = vunpack.c.l.b16 %v335
      %v693 = vunpack.c.l.b16 %v336
      %v694 = vunpack.c.h.b16 %v336
      %v695 = vunpack.c.l.b16 %v337
      %v696 = vunpack.c.l.b16 %v338
      %v697 = vunpack.c.h.b16 %v338
      %v698 = vunpack.c.l.b16 %v339
      %v699 = vunpack.c.l.b16 %v340
      %v700 = vunpack.c.h.b16 %v340
      %v701 = vunpack.c.l.b16 %v341
      %v702 = vpack.c.b16 %v513, %v510
      %v703 = vpack.c.b16 %v514, %v511
      %v704 = vpack.c.b16 %v515, %v512
      %v705 = vpack.c.b16 %v519, %v516
      %v706 = vpack.c.b16 %v520, %v517
      %v707 = vpack.c.b16 %v521, %v518
      %v708 = vpack.c.b16 %v525, %v522
      %v709 = vpack.c.b16 %v526, %v523
      %v710 = vpack.c.b16 %v527, %v524
      %v711 = vpack.c.b16 %v531, %v528
      %v712 = vpack.c.b16 %v532, %v529
      %v713 = vpack.c.b16 %v533, %v530
      %v714 = vpack.c.b16 %v537, %v534
      %v715 = vpack.c.b16 %v538, %v535
      %v716 = vpack.c.b16 %v539, %v536
      %v717 = vpack.c.b16 %v543, %v540
      %v718 = vpack.c.b16 %v544, %v541
      %v719 = vpack.c.b16 %v545, %v542
      %v720 = vpack.c.b16 %v549, %v546
      %v721 = vpack.c.b16 %v550, %v547
      %v722 = vpack.c.b16 %v551, %v548
      %v723 = vpack.c.b16 %v555, %v552
      %v724 = vpack.c.b16 %v556, %v553
      %v725 = vpack.c.b16 %v557, %v554
      %v726 = vpack.c.b16 %v561, %v558
      %v727 = vpack.c.b16 %v562, %v559
      %v728 = vpack.c.b16 %v563, %v560
      %v729 = vpack.c.b16 %v567, %v564
      %v730 = vpack.c.b16 %v568, %v565
      %v731 = vpack.c.b16 %v569, %v566
      %v732 = vpack.c.b16 %v573, %v570
      %v733 = vpack.c.b16 %v574, %v571
      %v734 = vpack.c.b16 %v575, %v572
      %v735 = vpack.c.b16 %v579, %v576
      %v736 = vpack.c.b16 %v580, %v577
      %v737 = vpack.c.b16 %v581, %v578
      %v738 = vpack.c.b16 %v585, %v582
      %v739 = vpack.c.b16 %v586, %v583
      %v740 = vpack.c.b16 %v587, %v584
      %v741 = vpack.c.b16 %v591, %v588
      %v742 = vpack.c.b16 %v592, %v589
      %v743 = vpack.c.b16 %v593, %v590
      %v744 = vpack.c.b16 %v597, %v594
      %v745 = vpack.c.b16 %v598, %v595
      %v746 = vpack.c.b16 %v599, %v596
      %v747 = vpack.c.b16 %v603, %v600
      %v748 = vpack.c.b16 %v604, %v601
      %v749 = vpack.c.b16 %v605, %v602
      %v750 = vpack.c.b16 %v609, %v606
      %v751 = vpack.c.b16 %v610, %v607
      %v752 = vpack.c.b16 %v611, %v608
      %v753 = vpack.c.b16 %v615, %v612
      %v754 = vpack.c.b16 %v616, %v613
      %v755 = vpack.c.b16 %v617, %v614
      %v756 = vpack.c.b16 %v621, %v618
      %v757 = vpack.c.b16 %v622, %v619
      %v758 = vpack.c.b16 %v623, %v620
      %v759 = vpack.c.b16 %v627, %v624
      %v760 = vpack.c.b16 %v628, %v625
      %v761 = vpack.c.b16 %v629, %v626
      %v762 = vpack.c.b16 %v633, %v630
      %v763 = vpack.c.b16 %v634, %v631
      %v764 = vpack.c.b16 %v635, %v632
      %v765 = vpack.c.b16 %v639, %v636
      %v766 = vpack.c.b16 %v640, %v637
      %v767 = vpack.c.b16 %v641, %v638
      %v768 = vpack.c.b16 %v645, %v642
      %v769 = vpack.c.b16 %v646, %v643
      %v770 = vpack.c.b16 %v647, %v644
      %v771 = vpack.c.b16 %v651, %v648
      %v772 = vpack.c.b16 %v652, %v649
      %v773 = vpack.c.b16 %v653, %v650
      %v774 = vpack.c.b16 %v657, %v654
      %v775 = vpack.c.b16 %v658, %v655
      %v776 = vpack.c.b16 %v659, %v656
      %v777 = vpack.c.b16 %v663, %v660
      %v778 = vpack.c.b16 %v664, %v661
      %v779 = vpack.c.b16 %v665, %v662
      %v780 = vpack.c.b16 %v669, %v666
      %v781 = vpack.c.b16 %v670, %v667
      %v782 = vpack.c.b16 %v671, %v668
      %v783 = vpack.c.b16 %v675, %v672
      %v784 = vpack.c.b16 %v676, %v673
      %v785 = vpack.c.b16 %v677, %v674
      %v786 = vpack.c.b16 %v681, %v678
      %v787 = vpack.c.b16 %v682, %v679
      %v788 = vpack.c.b16 %v683, %v680
      %v789 = vpack.c.b16 %v687, %v684
      %v790 = vpack.c.b16 %v688, %v685
      %v791 = vpack.c.b16 %v689, %v686
      %v792 = vpack.c.b16 %v693, %v690
      %v793 = vpack.c.b16 %v694, %v691
      %v794 = vpack.c.b16 %v695, %v692
      %v795 = vpack.c.b16 %v699, %v696
      %v796 = vpack.c.b16 %v700, %v697
      %v797 = vpack.c.b16 %v701, %v698
      %v898 = vunpack.c.l.b16 %v342
      %v899 = vunpack.c.l.b16 %v343
      %v900 = vunpack.c.l.b16 %v344
      %v901 = vunpack.c.l.b16 %v345
      %v902 = vunpack.c.l.b16 %v346
      %v903 = vunpack.c.l.b16 %v347
      %v904 = vunpack.c.l.b16 %v348
      %v905 = vunpack.c.l.b16 %v349
      %v906 = vunpack.c.l.b16 %v350
      %v907 = vunpack.c.l.b16 %v351
      %v908 = vunpack.c.l.b16 %v352
      %v909 = vunpack.c.l.b16 %v353
      %v910 = vunpack.c.l.b16 %v354
      %v911 = vunpack.c.l.b16 %v355
      %v912 = vunpack.c.l.b16 %v356
      %v913 = vunpack.c.l.b16 %v357
      %v914 = vunpack.c.l.b16 %v358
      %v915 = vunpack.c.l.b16 %v359
      %v916 = vunpack.c.l.b16 %v360
      %v917 = vunpack.c.l.b16 %v361
      %v918 = vunpack.c.l.b16 %v362
      %v919 = vunpack.c.l.b16 %v363
      %v920 = vunpack.c.l.b16 %v364
      %v921 = vunpack.c.l.b16 %v365
      %v922 = vunpack.c.l.b16 %v366
      %v923 = vunpack.c.l.b16 %v367
      %v924 = vunpack.c.l.b16 %v368
      %v925 = vunpack.c.l.b16 %v369
      %v926 = vunpack.c.l.b16 %v370
      %v927 = vunpack.c.l.b16 %v371
      %v928 = vunpack.c.l.b16 %v372
      %v929 = vunpack.c.l.b16 %v373
      %v930 = vunpack.c.l.b16 %v374
      %v931 = vunpack.c.l.b16 %v375
      %v932 = vunpack.c.l.b16 %v376
      %v933 = vunpack.c.l.b16 %v377
      %v934 = vpack.c.b16 %v899, %v898
      %v935 = vpack.c.b16 %v901, %v900
      %v936 = vpack.c.b16 %v903, %v902
      %v937 = vpack.c.b16 %v905, %v904
      %v938 = vpack.c.b16 %v907, %v906
      %v939 = vpack.c.b16 %v909, %v908
      %v940 = vpack.c.b16 %v911, %v910
      %v941 = vpack.c.b16 %v913, %v912
      %v942 = vpack.c.b16 %v915, %v914
      %v943 = vpack.c.b16 %v917, %v916
      %v944 = vpack.c.b16 %v919, %v918
      %v945 = vpack.c.b16 %v921, %v920
      %v946 = vpack.c.b16 %v923, %v922
      %v947 = vpack.c.b16 %v925, %v924
      %v948 = vpack.c.b16 %v927, %v926
      %v949 = vpack.c.b16 %v929, %v928
      %v950 = vpack.c.b16 %v931, %v930
      %v951 = vpack.c.b16 %v933, %v932
      %vm970 = vcmask 261120
      %v972 = vsel %vm970, %v704, 0
      %v975 = vsel %vm970, %v707, 0
      %v978 = vsel %vm970, %v710, 0
      %v981 = vsel %vm970, %v713, 0
      %v984 = vsel %vm970, %v716, 0
      %v987 = vsel %vm970, %v719, 0
      %v990 = vsel %vm970, %v722, 0
      %v993 = vsel %vm970, %v725, 0
      %v996 = vsel %vm970, %v728, 0
      %v999 = vsel %vm970, %v731, 0
      %v1002 = vsel %vm970, %v734, 0
      %v1005 = vsel %vm970, %v737, 0
      %v1008 = vsel %vm970, %v740, 0
      %v1011 = vsel %vm970, %v743, 0
      %v1014 = vsel %vm970, %v746, 0
      %v1017 = vsel %vm970, %v749, 0
      %v1020 = vsel %vm970, %v752, 0
      %v1023 = vsel %vm970, %v755, 0
      %v1026 = vsel %vm970, %v758, 0
      %v1029 = vsel %vm970, %v761, 0
      %v1032 = vsel %vm970, %v764, 0
      %v1035 = vsel %vm970, %v767, 0
      %v1038 = vsel %vm970, %v770, 0
      %v1041 = vsel %vm970, %v773, 0
      %v1044 = vsel %vm970, %v776, 0
      %v1047 = vsel %vm970, %v779, 0
      %v1050 = vsel %vm970, %v782, 0
      %v1053 = vsel %vm970, %v785, 0
      %v1056 = vsel %vm970, %v788, 0
      %v1059 = vsel %vm970, %v791, 0
      %v1062 = vsel %vm970, %v794, 0
      %v1065 = vsel %vm970, %v797, 0
      %1067 = vmatpush.bf16.msra.mxu0 %v941
      %1068 = vmatpush.bf16.msra.mxu0 %v940
      %1069 = vmatpush.bf16.msra.mxu0 %v939
      %1070 = vmatpush.bf16.msra.mxu0 %v938
      %1071 = vmatpush.bf16.msra.mxu0 %v937
      %1072 = vmatpush.bf16.msra.mxu0 %v936
      %1073 = vmatpush.bf16.msra.mxu0 %v935
      %1074 = vmatpush.bf16.msra.mxu0 %v934
      %1075 = vmatmul.bf16.gmra.mxu0 %v702
      %v1076 = vpop.f32.mrf.mxu0
      %v1077 = vadd.f32 %v380, %v1076
      %v1078 = vpop.f32.mrf.mxu0
      %v1079 = vadd.f32 %v380, %v1078
      %1080 = vmatmul.bf16.gmra.mxu0 %v705
      %v1081 = vpop.f32.mrf.mxu0
      %v1082 = vadd.f32 %v380, %v1081
      %v1083 = vpop.f32.mrf.mxu0
      %v1084 = vadd.f32 %v380, %v1083
      %1085 = vmatmul.bf16.gmra.mxu0 %v708
      %v1086 = vpop.f32.mrf.mxu0
      %v1087 = vadd.f32 %v380, %v1086
      %v1088 = vpop.f32.mrf.mxu0
      %v1089 = vadd.f32 %v380, %v1088
      %1090 = vmatmul.bf16.gmra.mxu0 %v711
      %v1091 = vpop.f32.mrf.mxu0
      %v1092 = vadd.f32 %v380, %v1091
      %v1093 = vpop.f32.mrf.mxu0
      %v1094 = vadd.f32 %v380, %v1093
      %1095 = vmatmul.bf16.gmra.mxu0 %v714
      %v1096 = vpop.f32.mrf.mxu0
      %v1097 = vadd.f32 %v380, %v1096
      %v1098 = vpop.f32.mrf.mxu0
      %v1099 = vadd.f32 %v380, %v1098
      %1100 = vmatmul.bf16.gmra.mxu0 %v717
      %v1101 = vpop.f32.mrf.mxu0
      %v1102 = vadd.f32 %v380, %v1101
      %v1103 = vpop.f32.mrf.mxu0
      %v1104 = vadd.f32 %v380, %v1103
      %1105 = vmatmul.bf16.gmra.mxu0 %v720
      %v1106 = vpop.f32.mrf.mxu0
      %v1107 = vadd.f32 %v380, %v1106
      %v1108 = vpop.f32.mrf.mxu0
      %v1109 = vadd.f32 %v380, %v1108
      %1110 = vmatmul.bf16.gmra.mxu0 %v723
      %v1111 = vpop.f32.mrf.mxu0
      %v1112 = vadd.f32 %v380, %v1111
      %v1113 = vpop.f32.mrf.mxu0
      %v1114 = vadd.f32 %v380, %v1113
      %1115 = vmatmul.bf16.gmra.mxu0 %v726
      %v1116 = vpop.f32.mrf.mxu0
      %v1117 = vadd.f32 %v380, %v1116
      %v1118 = vpop.f32.mrf.mxu0
      %v1119 = vadd.f32 %v380, %v1118
      %1120 = vmatmul.bf16.gmra.mxu0 %v729
      %v1121 = vpop.f32.mrf.mxu0
      %v1122 = vadd.f32 %v380, %v1121
      %v1123 = vpop.f32.mrf.mxu0
      %v1124 = vadd.f32 %v380, %v1123
      %1125 = vmatmul.bf16.gmra.mxu0 %v732
      %v1126 = vpop.f32.mrf.mxu0
      %v1127 = vadd.f32 %v380, %v1126
      %v1128 = vpop.f32.mrf.mxu0
      %v1129 = vadd.f32 %v380, %v1128
      %1130 = vmatmul.bf16.gmra.mxu0 %v735
      %v1131 = vpop.f32.mrf.mxu0
      %v1132 = vadd.f32 %v380, %v1131
      %v1133 = vpop.f32.mrf.mxu0
      %v1134 = vadd.f32 %v380, %v1133
      %1135 = vmatmul.bf16.gmra.mxu0 %v738
      %v1136 = vpop.f32.mrf.mxu0
      %v1137 = vadd.f32 %v380, %v1136
      %v1138 = vpop.f32.mrf.mxu0
      %v1139 = vadd.f32 %v380, %v1138
      %1140 = vmatmul.bf16.gmra.mxu0 %v741
      %v1141 = vpop.f32.mrf.mxu0
      %v1142 = vadd.f32 %v380, %v1141
      %v1143 = vpop.f32.mrf.mxu0
      %v1144 = vadd.f32 %v380, %v1143
      %1145 = vmatmul.bf16.gmra.mxu0 %v744
      %v1146 = vpop.f32.mrf.mxu0
      %v1147 = vadd.f32 %v380, %v1146
      %v1148 = vpop.f32.mrf.mxu0
      %v1149 = vadd.f32 %v380, %v1148
      %1150 = vmatmul.bf16.gmra.mxu0 %v747
      %v1151 = vpop.f32.mrf.mxu0
      %v1152 = vadd.f32 %v380, %v1151
      %v1153 = vpop.f32.mrf.mxu0
      %v1154 = vadd.f32 %v380, %v1153
      %1155 = vmatmul.bf16.gmra.mxu0 %v750
      %v1156 = vpop.f32.mrf.mxu0
      %v1157 = vadd.f32 %v380, %v1156
      %v1158 = vpop.f32.mrf.mxu0
      %v1159 = vadd.f32 %v380, %v1158
      %1160 = vmatmul.bf16.gmra.mxu0 %v753
      %v1161 = vpop.f32.mrf.mxu0
      %v1162 = vadd.f32 %v380, %v1161
      %v1163 = vpop.f32.mrf.mxu0
      %v1164 = vadd.f32 %v380, %v1163
      %1165 = vmatmul.bf16.gmra.mxu0 %v756
      %v1166 = vpop.f32.mrf.mxu0
      %v1167 = vadd.f32 %v380, %v1166
      %v1168 = vpop.f32.mrf.mxu0
      %v1169 = vadd.f32 %v380, %v1168
      %1170 = vmatmul.bf16.gmra.mxu0 %v759
      %v1171 = vpop.f32.mrf.mxu0
      %v1172 = vadd.f32 %v380, %v1171
      %v1173 = vpop.f32.mrf.mxu0
      %v1174 = vadd.f32 %v380, %v1173
      %1175 = vmatmul.bf16.gmra.mxu0 %v762
      %v1176 = vpop.f32.mrf.mxu0
      %v1177 = vadd.f32 %v380, %v1176
      %v1178 = vpop.f32.mrf.mxu0
      %v1179 = vadd.f32 %v380, %v1178
      %1180 = vmatmul.bf16.gmra.mxu0 %v765
      %v1181 = vpop.f32.mrf.mxu0
      %v1182 = vadd.f32 %v380, %v1181
      %v1183 = vpop.f32.mrf.mxu0
      %v1184 = vadd.f32 %v380, %v1183
      %1185 = vmatmul.bf16.gmra.mxu0 %v768
      %v1186 = vpop.f32.mrf.mxu0
      %v1187 = vadd.f32 %v380, %v1186
      %v1188 = vpop.f32.mrf.mxu0
      %v1189 = vadd.f32 %v380, %v1188
      %1190 = vmatmul.bf16.gmra.mxu0 %v771
      %v1191 = vpop.f32.mrf.mxu0
      %v1192 = vadd.f32 %v380, %v1191
      %v1193 = vpop.f32.mrf.mxu0
      %v1194 = vadd.f32 %v380, %v1193
      %1195 = vmatmul.bf16.gmra.mxu0 %v774
      %v1196 = vpop.f32.mrf.mxu0
      %v1197 = vadd.f32 %v380, %v1196
      %v1198 = vpop.f32.mrf.mxu0
      %v1199 = vadd.f32 %v380, %v1198
      %1200 = vmatmul.bf16.gmra.mxu0 %v777
      %v1201 = vpop.f32.mrf.mxu0
      %v1202 = vadd.f32 %v380, %v1201
      %v1203 = vpop.f32.mrf.mxu0
      %v1204 = vadd.f32 %v380, %v1203
      %1205 = vmatmul.bf16.gmra.mxu0 %v780
      %v1206 = vpop.f32.mrf.mxu0
      %v1207 = vadd.f32 %v380, %v1206
      %v1208 = vpop.f32.mrf.mxu0
      %v1209 = vadd.f32 %v380, %v1208
      %1210 = vmatmul.bf16.gmra.mxu0 %v783
      %v1211 = vpop.f32.mrf.mxu0
      %v1212 = vadd.f32 %v380, %v1211
      %v1213 = vpop.f32.mrf.mxu0
      %v1214 = vadd.f32 %v380, %v1213
      %1215 = vmatmul.bf16.gmra.mxu0 %v786
      %v1216 = vpop.f32.mrf.mxu0
      %v1217 = vadd.f32 %v380, %v1216
      %v1218 = vpop.f32.mrf.mxu0
      %v1219 = vadd.f32 %v380, %v1218
      %1220 = vmatmul.bf16.gmra.mxu0 %v789
      %v1221 = vpop.f32.mrf.mxu0
      %v1222 = vadd.f32 %v380, %v1221
      %v1223 = vpop.f32.mrf.mxu0
      %v1224 = vadd.f32 %v380, %v1223
      %1225 = vmatmul.bf16.gmra.mxu0 %v792
      %v1226 = vpop.f32.mrf.mxu0
      %v1227 = vadd.f32 %v380, %v1226
      %v1228 = vpop.f32.mrf.mxu0
      %v1229 = vadd.f32 %v380, %v1228
      %1230 = vmatmul.bf16.gmra.mxu0 %v795
      %v1231 = vpop.f32.mrf.mxu0
      %v1232 = vadd.f32 %v380, %v1231
      %v1233 = vpop.f32.mrf.mxu0
      %v1234 = vadd.f32 %v380, %v1233
      %1235 = vdwg.mxu0
      %1236 = vmatpush.bf16.msra.mxu0 %v949
      %1237 = vmatpush.bf16.msra.mxu0 %v948
      %1238 = vmatpush.bf16.msra.mxu0 %v947
      %1239 = vmatpush.bf16.msra.mxu0 %v946
      %1240 = vmatpush.bf16.msra.mxu0 %v945
      %1241 = vmatpush.bf16.msra.mxu0 %v944
      %1242 = vmatpush.bf16.msra.mxu0 %v943
      %1243 = vmatpush.bf16.msra.mxu0 %v942
      %1244 = vmatmul.bf16.gmra.mxu0 %v703
      %v1245 = vpop.f32.mrf.mxu0
      %v1246 = vadd.f32 %v1077, %v1245
      %v1247 = vpop.f32.mrf.mxu0
      %v1248 = vadd.f32 %v1079, %v1247
      %1249 = vmatmul.bf16.gmra.mxu0 %v706
      %v1250 = vpop.f32.mrf.mxu0
      %v1251 = vadd.f32 %v1082, %v1250
      %v1252 = vpop.f32.mrf.mxu0
      %v1253 = vadd.f32 %v1084, %v1252
      %1254 = vmatmul.bf16.gmra.mxu0 %v709
      %v1255 = vpop.f32.mrf.mxu0
      %v1256 = vadd.f32 %v1087, %v1255
      %v1257 = vpop.f32.mrf.mxu0
      %v1258 = vadd.f32 %v1089, %v1257
      %1259 = vmatmul.bf16.gmra.mxu0 %v712
      %v1260 = vpop.f32.mrf.mxu0
      %v1261 = vadd.f32 %v1092, %v1260
      %v1262 = vpop.f32.mrf.mxu0
      %v1263 = vadd.f32 %v1094, %v1262
      %1264 = vmatmul.bf16.gmra.mxu0 %v715
      %v1265 = vpop.f32.mrf.mxu0
      %v1266 = vadd.f32 %v1097, %v1265
      %v1267 = vpop.f32.mrf.mxu0
      %v1268 = vadd.f32 %v1099, %v1267
      %1269 = vmatmul.bf16.gmra.mxu0 %v718
      %v1270 = vpop.f32.mrf.mxu0
      %v1271 = vadd.f32 %v1102, %v1270
      %v1272 = vpop.f32.mrf.mxu0
      %v1273 = vadd.f32 %v1104, %v1272
      %1274 = vmatmul.bf16.gmra.mxu0 %v721
      %v1275 = vpop.f32.mrf.mxu0
      %v1276 = vadd.f32 %v1107, %v1275
      %v1277 = vpop.f32.mrf.mxu0
      %v1278 = vadd.f32 %v1109, %v1277
      %1279 = vmatmul.bf16.gmra.mxu0 %v724
      %v1280 = vpop.f32.mrf.mxu0
      %v1281 = vadd.f32 %v1112, %v1280
      %v1282 = vpop.f32.mrf.mxu0
      %v1283 = vadd.f32 %v1114, %v1282
      %1284 = vmatmul.bf16.gmra.mxu0 %v727
      %v1285 = vpop.f32.mrf.mxu0
      %v1286 = vadd.f32 %v1117, %v1285
      %v1287 = vpop.f32.mrf.mxu0
      %v1288 = vadd.f32 %v1119, %v1287
      %1289 = vmatmul.bf16.gmra.mxu0 %v730
      %v1290 = vpop.f32.mrf.mxu0
      %v1291 = vadd.f32 %v1122, %v1290
      %v1292 = vpop.f32.mrf.mxu0
      %v1293 = vadd.f32 %v1124, %v1292
      %1294 = vmatmul.bf16.gmra.mxu0 %v733
      %v1295 = vpop.f32.mrf.mxu0
      %v1296 = vadd.f32 %v1127, %v1295
      %v1297 = vpop.f32.mrf.mxu0
      %v1298 = vadd.f32 %v1129, %v1297
      %1299 = vmatmul.bf16.gmra.mxu0 %v736
      %v1300 = vpop.f32.mrf.mxu0
      %v1301 = vadd.f32 %v1132, %v1300
      %v1302 = vpop.f32.mrf.mxu0
      %v1303 = vadd.f32 %v1134, %v1302
      %1304 = vmatmul.bf16.gmra.mxu0 %v739
      %v1305 = vpop.f32.mrf.mxu0
      %v1306 = vadd.f32 %v1137, %v1305
      %v1307 = vpop.f32.mrf.mxu0
      %v1308 = vadd.f32 %v1139, %v1307
      %1309 = vmatmul.bf16.gmra.mxu0 %v742
      %v1310 = vpop.f32.mrf.mxu0
      %v1311 = vadd.f32 %v1142, %v1310
      %v1312 = vpop.f32.mrf.mxu0
      %v1313 = vadd.f32 %v1144, %v1312
      %1314 = vmatmul.bf16.gmra.mxu0 %v745
      %v1315 = vpop.f32.mrf.mxu0
      %v1316 = vadd.f32 %v1147, %v1315
      %v1317 = vpop.f32.mrf.mxu0
      %v1318 = vadd.f32 %v1149, %v1317
      %1319 = vmatmul.bf16.gmra.mxu0 %v748
      %v1320 = vpop.f32.mrf.mxu0
      %v1321 = vadd.f32 %v1152, %v1320
      %v1322 = vpop.f32.mrf.mxu0
      %v1323 = vadd.f32 %v1154, %v1322
      %1324 = vmatmul.bf16.gmra.mxu0 %v751
      %v1325 = vpop.f32.mrf.mxu0
      %v1326 = vadd.f32 %v1157, %v1325
      %v1327 = vpop.f32.mrf.mxu0
      %v1328 = vadd.f32 %v1159, %v1327
      %1329 = vmatmul.bf16.gmra.mxu0 %v754
      %v1330 = vpop.f32.mrf.mxu0
      %v1331 = vadd.f32 %v1162, %v1330
      %v1332 = vpop.f32.mrf.mxu0
      %v1333 = vadd.f32 %v1164, %v1332
      %1334 = vmatmul.bf16.gmra.mxu0 %v757
      %v1335 = vpop.f32.mrf.mxu0
      %v1336 = vadd.f32 %v1167, %v1335
      %v1337 = vpop.f32.mrf.mxu0
      %v1338 = vadd.f32 %v1169, %v1337
      %1339 = vmatmul.bf16.gmra.mxu0 %v760
      %v1340 = vpop.f32.mrf.mxu0
      %v1341 = vadd.f32 %v1172, %v1340
      %v1342 = vpop.f32.mrf.mxu0
      %v1343 = vadd.f32 %v1174, %v1342
      %1344 = vmatmul.bf16.gmra.mxu0 %v763
      %v1345 = vpop.f32.mrf.mxu0
      %v1346 = vadd.f32 %v1177, %v1345
      %v1347 = vpop.f32.mrf.mxu0
      %v1348 = vadd.f32 %v1179, %v1347
      %1349 = vmatmul.bf16.gmra.mxu0 %v766
      %v1350 = vpop.f32.mrf.mxu0
      %v1351 = vadd.f32 %v1182, %v1350
      %v1352 = vpop.f32.mrf.mxu0
      %v1353 = vadd.f32 %v1184, %v1352
      %1354 = vmatmul.bf16.gmra.mxu0 %v769
      %v1355 = vpop.f32.mrf.mxu0
      %v1356 = vadd.f32 %v1187, %v1355
      %v1357 = vpop.f32.mrf.mxu0
      %v1358 = vadd.f32 %v1189, %v1357
      %1359 = vmatmul.bf16.gmra.mxu0 %v772
      %v1360 = vpop.f32.mrf.mxu0
      %v1361 = vadd.f32 %v1192, %v1360
      %v1362 = vpop.f32.mrf.mxu0
      %v1363 = vadd.f32 %v1194, %v1362
      %1364 = vmatmul.bf16.gmra.mxu0 %v775
      %v1365 = vpop.f32.mrf.mxu0
      %v1366 = vadd.f32 %v1197, %v1365
      %v1367 = vpop.f32.mrf.mxu0
      %v1368 = vadd.f32 %v1199, %v1367
      %1369 = vmatmul.bf16.gmra.mxu0 %v778
      %v1370 = vpop.f32.mrf.mxu0
      %v1371 = vadd.f32 %v1202, %v1370
      %v1372 = vpop.f32.mrf.mxu0
      %v1373 = vadd.f32 %v1204, %v1372
      %1374 = vmatmul.bf16.gmra.mxu0 %v781
      %v1375 = vpop.f32.mrf.mxu0
      %v1376 = vadd.f32 %v1207, %v1375
      %v1377 = vpop.f32.mrf.mxu0
      %v1378 = vadd.f32 %v1209, %v1377
      %1379 = vmatmul.bf16.gmra.mxu0 %v784
      %v1380 = vpop.f32.mrf.mxu0
      %v1381 = vadd.f32 %v1212, %v1380
      %v1382 = vpop.f32.mrf.mxu0
      %v1383 = vadd.f32 %v1214, %v1382
      %1384 = vmatmul.bf16.gmra.mxu0 %v787
      %v1385 = vpop.f32.mrf.mxu0
      %v1386 = vadd.f32 %v1217, %v1385
      %v1387 = vpop.f32.mrf.mxu0
      %v1388 = vadd.f32 %v1219, %v1387
      %1389 = vmatmul.bf16.gmra.mxu0 %v790
      %v1390 = vpop.f32.mrf.mxu0
      %v1391 = vadd.f32 %v1222, %v1390
      %v1392 = vpop.f32.mrf.mxu0
      %v1393 = vadd.f32 %v1224, %v1392
      %1394 = vmatmul.bf16.gmra.mxu0 %v793
      %v1395 = vpop.f32.mrf.mxu0
      %v1396 = vadd.f32 %v1227, %v1395
      %v1397 = vpop.f32.mrf.mxu0
      %v1398 = vadd.f32 %v1229, %v1397
      %1399 = vmatmul.bf16.gmra.mxu0 %v796
      %v1400 = vpop.f32.mrf.mxu0
      %v1401 = vadd.f32 %v1232, %v1400
      %v1402 = vpop.f32.mrf.mxu0
      %v1403 = vadd.f32 %v1234, %v1402
      %1404 = vdwg.mxu0
      %1405 = vmatpush.bf16.msra.mxu0 0
      %1406 = vmatpush.bf16.msra.mxu0 0
      %1407 = vmatpush.bf16.msra.mxu0 0
      %1408 = vmatpush.bf16.msra.mxu0 0
      %1409 = vmatpush.bf16.msra.mxu0 0
      %1410 = vmatpush.bf16.msra.mxu0 0
      %1411 = vmatpush.bf16.msra.mxu0 %v951
      %1412 = vmatpush.bf16.msra.mxu0 %v950
      %1413 = vmatmul.bf16.gmra.mxu0 %v972
      %v1414 = vpop.f32.mrf.mxu0
      %v1415 = vadd.f32 %v1246, %v1414
      %v1416 = vpop.f32.mrf.mxu0
      %v1417 = vadd.f32 %v1248, %v1416
      %1418 = vmatmul.bf16.gmra.mxu0 %v975
      %v1419 = vpop.f32.mrf.mxu0
      %v1420 = vadd.f32 %v1251, %v1419
      %v1421 = vpop.f32.mrf.mxu0
      %v1422 = vadd.f32 %v1253, %v1421
      %1423 = vmatmul.bf16.gmra.mxu0 %v978
      %v1424 = vpop.f32.mrf.mxu0
      %v1425 = vadd.f32 %v1256, %v1424
      %v1426 = vpop.f32.mrf.mxu0
      %v1427 = vadd.f32 %v1258, %v1426
      %1428 = vmatmul.bf16.gmra.mxu0 %v981
      %v1429 = vpop.f32.mrf.mxu0
      %v1430 = vadd.f32 %v1261, %v1429
      %v1431 = vpop.f32.mrf.mxu0
      %v1432 = vadd.f32 %v1263, %v1431
      %1433 = vmatmul.bf16.gmra.mxu0 %v984
      %v1434 = vpop.f32.mrf.mxu0
      %v1435 = vadd.f32 %v1266, %v1434
      %v1436 = vpop.f32.mrf.mxu0
      %v1437 = vadd.f32 %v1268, %v1436
      %1438 = vmatmul.bf16.gmra.mxu0 %v987
      %v1439 = vpop.f32.mrf.mxu0
      %v1440 = vadd.f32 %v1271, %v1439
      %v1441 = vpop.f32.mrf.mxu0
      %v1442 = vadd.f32 %v1273, %v1441
      %1443 = vmatmul.bf16.gmra.mxu0 %v990
      %v1444 = vpop.f32.mrf.mxu0
      %v1445 = vadd.f32 %v1276, %v1444
      %v1446 = vpop.f32.mrf.mxu0
      %v1447 = vadd.f32 %v1278, %v1446
      %1448 = vmatmul.bf16.gmra.mxu0 %v993
      %v1449 = vpop.f32.mrf.mxu0
      %v1450 = vadd.f32 %v1281, %v1449
      %v1451 = vpop.f32.mrf.mxu0
      %v1452 = vadd.f32 %v1283, %v1451
      %1453 = vmatmul.bf16.gmra.mxu0 %v996
      %v1454 = vpop.f32.mrf.mxu0
      %v1455 = vadd.f32 %v1286, %v1454
      %v1456 = vpop.f32.mrf.mxu0
      %v1457 = vadd.f32 %v1288, %v1456
      %1458 = vmatmul.bf16.gmra.mxu0 %v999
      %v1459 = vpop.f32.mrf.mxu0
      %v1460 = vadd.f32 %v1291, %v1459
      %v1461 = vpop.f32.mrf.mxu0
      %v1462 = vadd.f32 %v1293, %v1461
      %1463 = vmatmul.bf16.gmra.mxu0 %v1002
      %v1464 = vpop.f32.mrf.mxu0
      %v1465 = vadd.f32 %v1296, %v1464
      %v1466 = vpop.f32.mrf.mxu0
      %v1467 = vadd.f32 %v1298, %v1466
      %1468 = vmatmul.bf16.gmra.mxu0 %v1005
      %v1469 = vpop.f32.mrf.mxu0
      %v1470 = vadd.f32 %v1301, %v1469
      %v1471 = vpop.f32.mrf.mxu0
      %v1472 = vadd.f32 %v1303, %v1471
      %1473 = vmatmul.bf16.gmra.mxu0 %v1008
      %v1474 = vpop.f32.mrf.mxu0
      %v1475 = vadd.f32 %v1306, %v1474
      %v1476 = vpop.f32.mrf.mxu0
      %v1477 = vadd.f32 %v1308, %v1476
      %1478 = vmatmul.bf16.gmra.mxu0 %v1011
      %v1479 = vpop.f32.mrf.mxu0
      %v1480 = vadd.f32 %v1311, %v1479
      %v1481 = vpop.f32.mrf.mxu0
      %v1482 = vadd.f32 %v1313, %v1481
      %1483 = vmatmul.bf16.gmra.mxu0 %v1014
      %v1484 = vpop.f32.mrf.mxu0
      %v1485 = vadd.f32 %v1316, %v1484
      %v1486 = vpop.f32.mrf.mxu0
      %v1487 = vadd.f32 %v1318, %v1486
      %1488 = vmatmul.bf16.gmra.mxu0 %v1017
      %v1489 = vpop.f32.mrf.mxu0
      %v1490 = vadd.f32 %v1321, %v1489
      %v1491 = vpop.f32.mrf.mxu0
      %v1492 = vadd.f32 %v1323, %v1491
      %1493 = vmatmul.bf16.gmra.mxu0 %v1020
      %v1494 = vpop.f32.mrf.mxu0
      %v1495 = vadd.f32 %v1326, %v1494
      %v1496 = vpop.f32.mrf.mxu0
      %v1497 = vadd.f32 %v1328, %v1496
      %1498 = vmatmul.bf16.gmra.mxu0 %v1023
      %v1499 = vpop.f32.mrf.mxu0
      %v1500 = vadd.f32 %v1331, %v1499
      %v1501 = vpop.f32.mrf.mxu0
      %v1502 = vadd.f32 %v1333, %v1501
      %1503 = vmatmul.bf16.gmra.mxu0 %v1026
      %v1504 = vpop.f32.mrf.mxu0
      %v1505 = vadd.f32 %v1336, %v1504
      %v1506 = vpop.f32.mrf.mxu0
      %v1507 = vadd.f32 %v1338, %v1506
      %1508 = vmatmul.bf16.gmra.mxu0 %v1029
      %v1509 = vpop.f32.mrf.mxu0
      %v1510 = vadd.f32 %v1341, %v1509
      %v1511 = vpop.f32.mrf.mxu0
      %v1512 = vadd.f32 %v1343, %v1511
      %1513 = vmatmul.bf16.gmra.mxu0 %v1032
      %v1514 = vpop.f32.mrf.mxu0
      %v1515 = vadd.f32 %v1346, %v1514
      %v1516 = vpop.f32.mrf.mxu0
      %v1517 = vadd.f32 %v1348, %v1516
      %1518 = vmatmul.bf16.gmra.mxu0 %v1035
      %v1519 = vpop.f32.mrf.mxu0
      %v1520 = vadd.f32 %v1351, %v1519
      %v1521 = vpop.f32.mrf.mxu0
      %v1522 = vadd.f32 %v1353, %v1521
      %1523 = vmatmul.bf16.gmra.mxu0 %v1038
      %v1524 = vpop.f32.mrf.mxu0
      %v1525 = vadd.f32 %v1356, %v1524
      %v1526 = vpop.f32.mrf.mxu0
      %v1527 = vadd.f32 %v1358, %v1526
      %1528 = vmatmul.bf16.gmra.mxu0 %v1041
      %v1529 = vpop.f32.mrf.mxu0
      %v1530 = vadd.f32 %v1361, %v1529
      %v1531 = vpop.f32.mrf.mxu0
      %v1532 = vadd.f32 %v1363, %v1531
      %1533 = vmatmul.bf16.gmra.mxu0 %v1044
      %v1534 = vpop.f32.mrf.mxu0
      %v1535 = vadd.f32 %v1366, %v1534
      %v1536 = vpop.f32.mrf.mxu0
      %v1537 = vadd.f32 %v1368, %v1536
      %1538 = vmatmul.bf16.gmra.mxu0 %v1047
      %v1539 = vpop.f32.mrf.mxu0
      %v1540 = vadd.f32 %v1371, %v1539
      %v1541 = vpop.f32.mrf.mxu0
      %v1542 = vadd.f32 %v1373, %v1541
      %1543 = vmatmul.bf16.gmra.mxu0 %v1050
      %v1544 = vpop.f32.mrf.mxu0
      %v1545 = vadd.f32 %v1376, %v1544
      %v1546 = vpop.f32.mrf.mxu0
      %v1547 = vadd.f32 %v1378, %v1546
      %1548 = vmatmul.bf16.gmra.mxu0 %v1053
      %v1549 = vpop.f32.mrf.mxu0
      %v1550 = vadd.f32 %v1381, %v1549
      %v1551 = vpop.f32.mrf.mxu0
      %v1552 = vadd.f32 %v1383, %v1551
      %1553 = vmatmul.bf16.gmra.mxu0 %v1056
      %v1554 = vpop.f32.mrf.mxu0
      %v1555 = vadd.f32 %v1386, %v1554
      %v1556 = vpop.f32.mrf.mxu0
      %v1557 = vadd.f32 %v1388, %v1556
      %1558 = vmatmul.bf16.gmra.mxu0 %v1059
      %v1559 = vpop.f32.mrf.mxu0
      %v1560 = vadd.f32 %v1391, %v1559
      %v1561 = vpop.f32.mrf.mxu0
      %v1562 = vadd.f32 %v1393, %v1561
      %1563 = vmatmul.bf16.gmra.mxu0 %v1062
      %v1564 = vpop.f32.mrf.mxu0
      %v1565 = vadd.f32 %v1396, %v1564
      %v1566 = vpop.f32.mrf.mxu0
      %v1567 = vadd.f32 %v1398, %v1566
      %1568 = vmatmul.bf16.gmra.mxu0 %v1065
      %v1569 = vpop.f32.mrf.mxu0
      %v1570 = vadd.f32 %v1401, %v1569
      %v1571 = vpop.f32.mrf.mxu0
      %v1572 = vadd.f32 %v1403, %v1571
      %1573 = vdwg.mxu0
      %v1574 = vmax.f32 %v1415, 0.0
      %v1575 = vmax.f32 %v1417, 0.0
      %v1576 = vmax.f32 %v1420, 0.0
      %v1577 = vmax.f32 %v1422, 0.0
      %v1578 = vmax.f32 %v1425, 0.0
      %v1579 = vmax.f32 %v1427, 0.0
      %v1580 = vmax.f32 %v1430, 0.0
      %v1581 = vmax.f32 %v1432, 0.0
      %v1582 = vmax.f32 %v1435, 0.0
      %v1583 = vmax.f32 %v1437, 0.0
      %v1584 = vmax.f32 %v1440, 0.0
      %v1585 = vmax.f32 %v1442, 0.0
      %v1586 = vmax.f32 %v1445, 0.0
      %v1587 = vmax.f32 %v1447, 0.0
      %v1588 = vmax.f32 %v1450, 0.0
      %v1589 = vmax.f32 %v1452, 0.0
      %v1590 = vmax.f32 %v1455, 0.0
      %v1591 = vmax.f32 %v1457, 0.0
      %v1592 = vmax.f32 %v1460, 0.0
      %v1593 = vmax.f32 %v1462, 0.0
      %v1594 = vmax.f32 %v1465, 0.0
      %v1595 = vmax.f32 %v1467, 0.0
      %v1596 = vmax.f32 %v1470, 0.0
      %v1597 = vmax.f32 %v1472, 0.0
      %v1598 = vmax.f32 %v1475, 0.0
      %v1599 = vmax.f32 %v1477, 0.0
      %v1600 = vmax.f32 %v1480, 0.0
      %v1601 = vmax.f32 %v1482, 0.0
      %v1602 = vmax.f32 %v1485, 0.0
      %v1603 = vmax.f32 %v1487, 0.0
      %v1604 = vmax.f32 %v1490, 0.0
      %v1605 = vmax.f32 %v1492, 0.0
      %v1606 = vmax.f32 %v1495, 0.0
      %v1607 = vmax.f32 %v1497, 0.0
      %v1608 = vmax.f32 %v1500, 0.0
      %v1609 = vmax.f32 %v1502, 0.0
      %v1610 = vmax.f32 %v1505, 0.0
      %v1611 = vmax.f32 %v1507, 0.0
      %v1612 = vmax.f32 %v1510, 0.0
      %v1613 = vmax.f32 %v1512, 0.0
      %v1614 = vmax.f32 %v1515, 0.0
      %v1615 = vmax.f32 %v1517, 0.0
      %v1616 = vmax.f32 %v1520, 0.0
      %v1617 = vmax.f32 %v1522, 0.0
      %v1618 = vmax.f32 %v1525, 0.0
      %v1619 = vmax.f32 %v1527, 0.0
      %v1620 = vmax.f32 %v1530, 0.0
      %v1621 = vmax.f32 %v1532, 0.0
      %v1622 = vmax.f32 %v1535, 0.0
      %v1623 = vmax.f32 %v1537, 0.0
      %v1624 = vmax.f32 %v1540, 0.0
      %v1625 = vmax.f32 %v1542, 0.0
      %v1626 = vmax.f32 %v1545, 0.0
      %v1627 = vmax.f32 %v1547, 0.0
      %v1628 = vmax.f32 %v1550, 0.0
      %v1629 = vmax.f32 %v1552, 0.0
      %v1630 = vmax.f32 %v1555, 0.0
      %v1631 = vmax.f32 %v1557, 0.0
      %v1632 = vmax.f32 %v1560, 0.0
      %v1633 = vmax.f32 %v1562, 0.0
      %v1634 = vmax.f32 %v1565, 0.0
      %v1635 = vmax.f32 %v1567, 0.0
      %v1636 = vmax.f32 %v1570, 0.0
      %v1637 = vmax.f32 %v1572, 0.0
      %v1638 = vmax.f32 %v1574, %v1576
      %v1639 = vmax.f32 %v1575, %v1577
      %v1640 = vmax.f32 %v1582, %v1584
      %v1641 = vmax.f32 %v1583, %v1585
      %v1642 = vmax.f32 %v1590, %v1592
      %v1643 = vmax.f32 %v1591, %v1593
      %v1644 = vmax.f32 %v1598, %v1600
      %v1645 = vmax.f32 %v1599, %v1601
      %v1646 = vmax.f32 %v1606, %v1608
      %v1647 = vmax.f32 %v1607, %v1609
      %v1648 = vmax.f32 %v1614, %v1616
      %v1649 = vmax.f32 %v1615, %v1617
      %v1650 = vmax.f32 %v1622, %v1624
      %v1651 = vmax.f32 %v1623, %v1625
      %v1652 = vmax.f32 %v1630, %v1632
      %v1653 = vmax.f32 %v1631, %v1633
      %v1654 = vmax.f32 %v1578, %v1580
      %v1655 = vmax.f32 %v1579, %v1581
      %v1656 = vmax.f32 %v1586, %v1588
      %v1657 = vmax.f32 %v1587, %v1589
      %v1658 = vmax.f32 %v1594, %v1596
      %v1659 = vmax.f32 %v1595, %v1597
      %v1660 = vmax.f32 %v1602, %v1604
      %v1661 = vmax.f32 %v1603, %v1605
      %v1662 = vmax.f32 %v1610, %v1612
      %v1663 = vmax.f32 %v1611, %v1613
      %v1664 = vmax.f32 %v1618, %v1620
      %v1665 = vmax.f32 %v1619, %v1621
      %v1666 = vmax.f32 %v1626, %v1628
      %v1667 = vmax.f32 %v1627, %v1629
      %v1668 = vmax.f32 %v1634, %v1636
      %v1669 = vmax.f32 %v1635, %v1637
      %v1670 = vmax.f32 %v1638, %v1654
      %v1671 = vmax.f32 %v1639, %v1655
      %v1672 = vmax.f32 %v1640, %v1656
      %v1673 = vmax.f32 %v1641, %v1657
      %v1674 = vmax.f32 %v1642, %v1658
      %v1675 = vmax.f32 %v1643, %v1659
      %v1676 = vmax.f32 %v1644, %v1660
      %v1677 = vmax.f32 %v1645, %v1661
      %v1678 = vmax.f32 %v1646, %v1662
      %v1679 = vmax.f32 %v1647, %v1663
      %v1680 = vmax.f32 %v1648, %v1664
      %v1681 = vmax.f32 %v1649, %v1665
      %v1682 = vmax.f32 %v1650, %v1666
      %v1683 = vmax.f32 %v1651, %v1667
      %v1684 = vmax.f32 %v1652, %v1668
      %v1685 = vmax.f32 %v1653, %v1669
      %v1686 = vpack.c.bf16 %v1670, %v1670
      %v1687 = vpack.c.bf16 %v1671, %v1671
      %v1688 = vpack.c.bf16 %v1672, %v1672
      %v1689 = vpack.c.bf16 %v1673, %v1673
      %v1690 = vpack.c.bf16 %v1674, %v1674
      %v1691 = vpack.c.bf16 %v1675, %v1675
      %v1692 = vpack.c.bf16 %v1676, %v1676
      %v1693 = vpack.c.bf16 %v1677, %v1677
      %v1694 = vpack.c.bf16 %v1678, %v1678
      %v1695 = vpack.c.bf16 %v1679, %v1679
      %v1696 = vpack.c.bf16 %v1680, %v1680
      %v1697 = vpack.c.bf16 %v1681, %v1681
      %v1698 = vpack.c.bf16 %v1682, %v1682
      %v1699 = vpack.c.bf16 %v1683, %v1683
      %v1700 = vpack.c.bf16 %v1684, %v1684
      %v1701 = vpack.c.bf16 %v1685, %v1685
      %vm1702 = vcmask 519168
      %1703 = vst.msk [vmem:[%s211] sm:$0xf] %vm1702, %v1686
      %1704 = vst.msk [vmem:[%s211 + $0x4] sm:$0xf] %vm1702, %v1687
      %1705 = vst.msk [vmem:[%s211 + $0x8] sm:$0xf] %vm1702, %v1688
      %1706 = vst.msk [vmem:[%s211 + $0xc] sm:$0xf] %vm1702, %v1689
      %1707 = vst.msk [vmem:[%s211 + $0x10] sm:$0xf] %vm1702, %v1690
      %1708 = vst.msk [vmem:[%s211 + $0x14] sm:$0xf] %vm1702, %v1691
      %1709 = vst.msk [vmem:[%s211 + $0x18] sm:$0xf] %vm1702, %v1692
      %1710 = vst.msk [vmem:[%s211 + $0x1c] sm:$0xf] %vm1702, %v1693
      %1711 = vst.msk [vmem:[%s211 + $0x20] sm:$0xf] %vm1702, %v1694
      %1712 = vst.msk [vmem:[%s211 + $0x24] sm:$0xf] %vm1702, %v1695
      %1713 = vst.msk [vmem:[%s211 + $0x28] sm:$0xf] %vm1702, %v1696
      %1714 = vst.msk [vmem:[%s211 + $0x2c] sm:$0xf] %vm1702, %v1697
      %1715 = vst.msk [vmem:[%s211 + $0x30] sm:$0xf] %vm1702, %v1698
      %1716 = vst.msk [vmem:[%s211 + $0x34] sm:$0xf] %vm1702, %v1699
      %1717 = vst.msk [vmem:[%s211 + $0x38] sm:$0xf] %vm1702, %v1700
      %1718 = vst.msk [vmem:[%s211 + $0x3c] sm:$0xf] %vm1702, %v1701
      %s1719 = smul.u32 16, %s19
      %p1720 = scmp.lt.s32.totalorder %s18, 1
      %s1721 = scalar_select %p1720, %s18, 1
      %p1722 = scmp.lt.s32.totalorder %s1719, 31
      %s1723 = scalar_select %p1722, %s1719, 31
      %s1724 = smul.addr %s1721, 32
      %s1725 = sadd.s32 %s1723, %s1724
      %s1726 = smul.addr %s1725, 4
      %s1727 = scalar_lea.vmem %s3, %s1726
      // Predicated region
      $region33: #{net_forward.5} parent=31 // pred_check
        %p1728 = pneg %p116
      $region34: #{net_forward.5} parent=31 // pred_check_branch
        %1730 = sbr.rel (%p1728) target = $region36
      $region35: #{net_forward.5} parent=31 // pred_region
        %s1731 = smul.u32 16, %s19
      $region36: #{net_forward.5} parent=31 // pred_fallthru
        _
    $region32: #{net_forward.5} parent=5 // pred_fallthru
      _
    %p1732 = scmp.le.s32.totalorder 2, %s9
    // Predicated region
    $region37: #{net_forward.5} parent=5 // pred_check
      %p1733 = pneg %p1732
    $region38: #{net_forward.5} parent=5 // pred_check_branch
      %1735 = sbr.rel (%p1733) target = $region40
    $region39: #{net_forward.5} parent=5 // pred_region
      %s1736 = ssub.s32 %s9, 2
      // Predicated region
      $region41: #{net_forward.5} parent=39 // pred_check
        %p1737 = pneg %p122
      $region42: #{net_forward.5} parent=39 // pred_check_branch
        %1739 = sbr.rel (%p1737) target = $region44
      $region43: #{net_forward.5} parent=39 // pred_region
        %s1740 = smul.u32 16, %s21
        %p1741 = scmp.lt.s32.totalorder %s20, 1
        %s1742 = scalar_select %p1741, %s20, 1
        %p1743 = scmp.lt.s32.totalorder %s1740, 31
        %s1744 = scalar_select %p1743, %s1740, 31
        %s1745 = smul.addr %s1742, 32
        %s1746 = sadd.s32 %s1744, %s1745
        %s1747 = smul.addr %s1746, 4
        %s1748 = scalar_lea.vmem %s3, %s1747
      $region44: #{net_forward.5} parent=39 // pred_fallthru
        _
    $region40: #{net_forward.5} parent=5 // pred_fallthru
      _
  $region6: #{net_forward.5} parent=0 // loop_footer
    %s13 = sadd.s32 1, %s9
  $region7: #{net_forward.5} parent=0 // loop_footer_branch
    %8 = sbr.rel target = $region3
  $region8: #{net_forward.5} parent=0 // loop_exit
    _

// kernel: net_forward.6
$region0: #{net_forward.6}
  #allocation0 [shape = 'u32[]', space=smem, size = 0x4, offset = 0x4, fixed_abs, tag = 'smem constant byte address 0x4 - core index']
  #allocation1 [shape = 'u32[72,128]{1,0:T(1,128)}', space=vmem, size = 0x9000, scoped, tag = 'internal scratch']
  %s0 = inlined_call_operand.vmem [shape: bf16[2,32,8,576], index: 0, kind: input, shape index: {}]
  %s1 = inlined_call_operand.vmem [shape: bf16[576,128], index: 1, kind: input, shape index: {}]
  %s2 = inlined_call_operand.vmem [shape: f32[1,128], index: 2, kind: input, shape index: {}]
  %s3 = inlined_call_operand.vmem [shape: bf16[2,64,128], index: 3, kind: output, shape index: {}]
  %s4 = sld [smem:[#allocation0]]
  $region45: #{net_forward.6} parent=0
    _
  %s6 = ssub.s32 1, %s4
  %s7 = scalar_select 0, %s6, %s4
  loop: start=0, step=1, limit=4
  $region2: #{net_forward.6} parent=0 // loop_pre_header
    _
  $region3: #{net_forward.6} parent=0 // loop_header
    %s9 = sphi 0, %s13
    %p10 = scmp.ge.s32.totalorder %s9, 4
    %s16 = sphi 0, %s28
    %s17 = sphi 0, %s24
    %s18 = sphi 0, %s16
    %s19 = sphi 0, %s17
    %s20 = sphi 0, %s18
    %s21 = sphi 0, %s19
    %s33 = sphi 0, %s35
    %s36 = sphi 0, %s33
    %s37 = sphi 0, %s36
    %s53 = sphi 0, %s37
    %s57 = sphi 0, %s57
    %s59 = sphi 0, %s57
    %s60 = sphi 0, %s59
    %s74 = sphi 0, %s60
    %s78 = sphi 0, %s78
    %s80 = sphi 0, %s78
    %s81 = sphi 0, %s80
    %s95 = sphi 0, %s81
    %s103 = sphi 0, %s105
    %s106 = sphi 0, %s103
    %s107 = sphi 0, %s106
    %s123 = sphi 0, %s107
  $region4: #{net_forward.6} parent=0 // loop_header_branch
    %12 = sbr.rel (%p10) target = $region8
  $region5: #{net_forward.6} parent=0 // loop_body
    %s14 = ssub.s32 %s9, 1
    %s15 = ssub.s32 %s9, 2
    %s22 = sadd.s32 1, %s17
    %p23 = scmp.ge.s32.totalorder %s22, 1
    %s24 = scalar_select %p23, 0, %s22
    %s25 = sadd.s32 1, %s16
    %s26 = scalar_select %p23, %s25, %s16
    %p27 = scmp.ge.s32.totalorder %s26, 2
    %s28 = scalar_select %p27, 0, %s26
    %s29 = ssub.s32 %s16, %s28
    %s30 = ssub.s32 %s17, %s24
    %s31 = sor.u32 %s29, %s30
    %p32 = scmp.eq.s32.totalorder %s31, 0
    %s34 = sadd.s32 %s33, 1
    %s35 = scalar_select %p32, %s33, %s34
    %p38 = pneg %p32
    %p39 = scmp.eq.s32.totalorder %s9, 1
    %p40 = por %p38, %p39
    %p41 = scmp.ne.s32.totalorder %s33, %s36
    %p42 = scmp.eq.s32.totalorder %s9, 0
    %p43 = por %p41, %p42
    %p44 = scmp.ne.s32.totalorder %s33, %s36
    %p45 = scmp.eq.s32.totalorder %s14, 1
    %p46 = por %p44, %p45
    %p47 = scmp.ne.s32.totalorder %s36, %s37
    %p48 = scmp.eq.s32.totalorder %s14, 0
    %p49 = por %p47, %p48
    %p50 = scmp.ne.s32.totalorder %s36, %s37
    %p51 = scmp.eq.s32.totalorder %s15, 1
    %p52 = por %p50, %p51
    %p54 = scmp.ne.s32.totalorder %s37, %s53
    %p55 = scmp.eq.s32.totalorder %s15, 0
    %p56 = por %p54, %p55
    %s58 = sadd.s32 %s57, 1
    %p61 = scmp.eq.s32.totalorder %s9, 1
    %p62 = scmp.ne.s32.totalorder %s57, %s59
    %p63 = scmp.eq.s32.totalorder %s9, 0
    %p64 = por %p62, %p63
    %p65 = scmp.ne.s32.totalorder %s57, %s59
    %p66 = scmp.eq.s32.totalorder %s14, 1
    %p67 = por %p65, %p66
    %p68 = scmp.ne.s32.totalorder %s59, %s60
    %p69 = scmp.eq.s32.totalorder %s14, 0
    %p70 = por %p68, %p69
    %p71 = scmp.ne.s32.totalorder %s59, %s60
    %p72 = scmp.eq.s32.totalorder %s15, 1
    %p73 = por %p71, %p72
    %p75 = scmp.ne.s32.totalorder %s60, %s74
    %p76 = scmp.eq.s32.totalorder %s15, 0
    %p77 = por %p75, %p76
    %s79 = sadd.s32 %s78, 1
    %p82 = scmp.eq.s32.totalorder %s9, 1
    %p83 = scmp.ne.s32.totalorder %s78, %s80
    %p84 = scmp.eq.s32.totalorder %s9, 0
    %p85 = por %p83, %p84
    %p86 = scmp.ne.s32.totalorder %s78, %s80
    %p87 = scmp.eq.s32.totalorder %s14, 1
    %p88 = por %p86, %p87
    %p89 = scmp.ne.s32.totalorder %s80, %s81
    %p90 = scmp.eq.s32.totalorder %s14, 0
    %p91 = por %p89, %p90
    %p92 = scmp.ne.s32.totalorder %s80, %s81
    %p93 = scmp.eq.s32.totalorder %s15, 1
    %p94 = por %p92, %p93
    %p96 = scmp.ne.s32.totalorder %s81, %s95
    %p97 = scmp.eq.s32.totalorder %s15, 0
    %p98 = por %p96, %p97
    %s99 = ssub.s32 %s16, %s28
    %s100 = ssub.s32 %s17, %s24
    %s101 = sor.u32 %s99, %s100
    %p102 = scmp.eq.s32.totalorder %s101, 0
    %s104 = sadd.s32 %s103, 1
    %s105 = scalar_select %p102, %s103, %s104
    %p108 = pneg %p102
    %p109 = scmp.eq.s32.totalorder %s9, 1
    %p110 = por %p108, %p109
    %p111 = scmp.ne.s32.totalorder %s103, %s106
    %p112 = scmp.eq.s32.totalorder %s9, 0
    %p113 = por %p111, %p112
    %p114 = scmp.ne.s32.totalorder %s103, %s106
    %p115 = scmp.eq.s32.totalorder %s14, 1
    %p116 = por %p114, %p115
    %p117 = scmp.ne.s32.totalorder %s106, %s107
    %p118 = scmp.eq.s32.totalorder %s14, 0
    %p119 = por %p117, %p118
    %p120 = scmp.ne.s32.totalorder %s106, %s107
    %p121 = scmp.eq.s32.totalorder %s15, 1
    %p122 = por %p120, %p121
    %p124 = scmp.ne.s32.totalorder %s107, %s123
    %p125 = scmp.eq.s32.totalorder %s15, 0
    %p126 = por %p124, %p125
    %p127 = scmp.le.s32.totalorder 1, %s9
    %p128 = scmp.lt.s32.totalorder %s9, 3
    %p129 = pnand %p127, %p128
    %p130 = pneg %p129
    // Predicated region
    $region9: #{net_forward.6} parent=5 // pred_check
      _
    $region10: #{net_forward.6} parent=5 // pred_check_branch
      %132 = sbr.rel (%p129) target = $region12
    $region11: #{net_forward.6} parent=5 // pred_region
      %s133 = ssub.s32 %s9, 1
      // Predicated region
      $region13: #{net_forward.6} parent=11 // pred_check
        %p134 = pneg %p70
      $region14: #{net_forward.6} parent=11 // pred_check_branch
        %136 = sbr.rel (%p134) target = $region16
      $region15: #{net_forward.6} parent=11 // pred_region
        _
      $region16: #{net_forward.6} parent=11 // pred_fallthru
        _
      // Predicated region
      $region17: #{net_forward.6} parent=11 // pred_check
        %p137 = pneg %p91
      $region18: #{net_forward.6} parent=11 // pred_check_branch
        %139 = sbr.rel (%p137) target = $region20
      $region19: #{net_forward.6} parent=11 // pred_region
        _
      $region20: #{net_forward.6} parent=11 // pred_fallthru
        _
    $region12: #{net_forward.6} parent=5 // pred_fallthru
      _
    %p140 = scmp.lt.s32.totalorder %s9, 2
    // Predicated region
    $region21: #{net_forward.6} parent=5 // pred_check
      %p141 = pneg %p140
    $region22: #{net_forward.6} parent=5 // pred_check_branch
      %143 = sbr.rel (%p141) target = $region24
    $region23: #{net_forward.6} parent=5 // pred_region
      // Predicated region
      $region25: #{net_forward.6} parent=23 // pred_check
        %p144 = pneg %p43
      $region26: #{net_forward.6} parent=23 // pred_check_branch
        %146 = sbr.rel (%p144) target = $region28
      $region27: #{net_forward.6} parent=23 // pred_region
        %s147 = smul.u32 32, %s17
        %p148 = scmp.lt.s32.totalorder %s16, 1
        %s149 = scalar_select %p148, %s16, 1
        %p150 = scmp.lt.s32.totalorder %s147, 31
        %s151 = scalar_select %p150, %s147, 31
        %s152 = smul.addr %s151, 5
        %s153 = smul.addr %s149, 160
        %s154 = sadd.s32 %s152, %s153
        %s155 = smul.addr %s154, 4
        %s156 = scalar_lea.vmem %s0, %s155
        %s157 = smul.u32 32, %s17
      $region28: #{net_forward.6} parent=23 // pred_fallthru
        _
    $region24: #{net_forward.6} parent=5 // pred_fallthru
      _
    %p158 = scmp.le.s32.totalorder 1, %s9
    %p159 = scmp.lt.s32.totalorder %s9, 3
    %p160 = pnand %p158, %p159
    %p161 = pneg %p160
    // Predicated region
    $region29: #{net_forward.6} parent=5 // pred_check
      _
    $region30: #{net_forward.6} parent=5 // pred_check_branch
      %163 = sbr.rel (%p160) target = $region32
    $region31: #{net_forward.6} parent=5 // pred_region
      %s164 = ssub.s32 %s9, 1
      %s165 = smul.u32 32, %s19
      %p166 = scmp.lt.s32.totalorder %s18, 1
      %s167 = scalar_select %p166, %s18, 1
      %p168 = scmp.lt.s32.totalorder %s165, 31
      %s169 = scalar_select %p168, %s165, 31
      %s170 = smul.addr %s169, 5
      %s171 = smul.addr %s167, 160
      %s172 = sadd.s32 %s170, %s171
      %s173 = smul.addr %s172, 4
      %s174 = scalar_lea.vmem %s0, %s173
      %p175 = pneg %p49
      %p176 = pneg %p46
      %p177 = pneg %p70
      %p178 = pneg %p67
      %p179 = pneg %p91
      %p180 = pneg %p88
      %p181 = pneg %p119
      %p182 = pneg %p116
      %s183 = smul.u32 8, %s19
      %p184 = scmp.lt.s32.totalorder %s18, 1
      %s185 = scalar_select %p184, %s18, 1
      %p186 = scmp.lt.s32.totalorder %s183, 7
      %s187 = scalar_select %p186, %s183, 7
      %s188 = smul.addr %s185, 8
      %s189 = sadd.s32 %s187, %s188
      %s190 = smul.addr %s189, 4
      %s191 = scalar_lea.vmem %s3, %s190
      %s192 = smul.u32 32, %s19
      %p193 = scmp.lt.s32.totalorder %s18, 1
      %s194 = scalar_select %p193, %s18, 1
      %p195 = scmp.lt.s32.totalorder %s192, 31
      %s196 = scalar_select %p195, %s192, 31
      %s197 = smul.addr %s196, 5
      %s198 = smul.addr %s194, 160
      %s199 = sadd.s32 %s197, %s198
      %s200 = smul.addr %s199, 4
      %s201 = scalar_lea.vmem %s0, %s200
      %s202 = smul.u32 32, %s19
      %s203 = smul.u32 8, %s19
      %p204 = scmp.lt.s32.totalorder %s18, 1
      %s205 = scalar_select %p204, %s18, 1
      %p206 = scmp.lt.s32.totalorder %s203, 7
      %s207 = scalar_select %p206, %s203, 7
      %s208 = smul.addr %s205, 8
      %s209 = sadd.s32 %s207, %s208
      %s210 = smul.addr %s209, 4
      %s211 = scalar_lea.vmem %s3, %s210
      %s212 = smul.u32 8, %s19
      %v214 = vld [vmem:[%s201] sm:$0xff]
      %v215 = vld [vmem:[%s201 + $0x8] sm:$0xff]
      %v216 = vld [vmem:[%s201 + $0x10] sm:$0xf]
      %v217 = vld [vmem:[%s201 + $0x14] sm:$0xff]
      %v218 = vld [vmem:[%s201 + $0x1c] sm:$0xff]
      %v219 = vld [vmem:[%s201 + $0x24] sm:$0xf]
      %v220 = vld [vmem:[%s201 + $0x28] sm:$0xff]
      %v221 = vld [vmem:[%s201 + $0x30] sm:$0xff]
      %v222 = vld [vmem:[%s201 + $0x38] sm:$0xf]
      %v223 = vld [vmem:[%s201 + $0x3c] sm:$0xff]
      %v224 = vld [vmem:[%s201 + $0x44] sm:$0xff]
      %v225 = vld [vmem:[%s201 + $0x4c] sm:$0xf]
      %v226 = vld [vmem:[%s201 + $0x50] sm:$0xff]
      %v227 = vld [vmem:[%s201 + $0x58] sm:$0xff]
      %v228 = vld [vmem:[%s201 + $0x60] sm:$0xf]
      %v229 = vld [vmem:[%s201 + $0x64] sm:$0xff]
      %v230 = vld [vmem:[%s201 + $0x6c] sm:$0xff]
      %v231 = vld [vmem:[%s201 + $0x74] sm:$0xf]
      %v232 = vld [vmem:[%s201 + $0x78] sm:$0xff]
      %v233 = vld [vmem:[%s201 + $0x80] sm:$0xff]
      %v234 = vld [vmem:[%s201 + $0x88] sm:$0xf]
      %v235 = vld [vmem:[%s201 + $0x8c] sm:$0xff]
      %v236 = vld [vmem:[%s201 + $0x94] sm:$0xff]
      %v237 = vld [vmem:[%s201 + $0x9c] sm:$0xf]
      %v238 = vld [vmem:[%s201 + $0xa0] sm:$0xff]
      %v239 = vld [vmem:[%s201 + $0xa8] sm:$0xff]
      %v240 = vld [vmem:[%s201 + $0xb0] sm:$0xf]
      %v241 = vld [vmem:[%s201 + $0xb4] sm:$0xff]
      %v242 = vld [vmem:[%s201 + $0xbc] sm:$0xff]
      %v243 = vld [vmem:[%s201 + $0xc4] sm:$0xf]
      %v244 = vld [vmem:[%s201 + $0xc8] sm:$0xff]
      %v245 = vld [vmem:[%s201 + $0xd0] sm:$0xff]
      %v246 = vld [vmem:[%s201 + $0xd8] sm:$0xf]
      %v247 = vld [vmem:[%s201 + $0xdc] sm:$0xff]
      %v248 = vld [vmem:[%s201 + $0xe4] sm:$0xff]
      %v249 = vld [vmem:[%s201 + $0xec] sm:$0xf]
      %v250 = vld [vmem:[%s201 + $0xf0] sm:$0xff]
      %v251 = vld [vmem:[%s201 + $0xf8] sm:$0xff]
      %v252 = vld [vmem:[%s201 + $0x100] sm:$0xf]
      %v253 = vld [vmem:[%s201 + $0x104] sm:$0xff]
      %v254 = vld [vmem:[%s201 + $0x10c] sm:$0xff]
      %v255 = vld [vmem:[%s201 + $0x114] sm:$0xf]
      %v256 = vld [vmem:[%s201 + $0x118] sm:$0xff]
      %v257 = vld [vmem:[%s201 + $0x120] sm:$0xff]
      %v258 = vld [vmem:[%s201 + $0x128] sm:$0xf]
      %v259 = vld [vmem:[%s201 + $0x12c] sm:$0xff]
      %v260 = vld [vmem:[%s201 + $0x134] sm:$0xff]
      %v261 = vld [vmem:[%s201 + $0x13c] sm:$0xf]
      %v262 = vld [vmem:[%s201 + $0x140] sm:$0xff]
      %v263 = vld [vmem:[%s201 + $0x148] sm:$0xff]
      %v264 = vld [vmem:[%s201 + $0x150] sm:$0xf]
      %v265 = vld [vmem:[%s201 + $0x154] sm:$0xff]
      %v266 = vld [vmem:[%s201 + $0x15c] sm:$0xff]
      %v267 = vld [vmem:[%s201 + $0x164] sm:$0xf]
      %v268 = vld [vmem:[%s201 + $0x168] sm:$0xff]
      %v269 = vld [vmem:[%s201 + $0x170] sm:$0xff]
      %v270 = vld [vmem:[%s201 + $0x178] sm:$0xf]
      %v271 = vld [vmem:[%s201 + $0x17c] sm:$0xff]
      %v272 = vld [vmem:[%s201 + $0x184] sm:$0xff]
      %v273 = vld [vmem:[%s201 + $0x18c] sm:$0xf]
      %v274 = vld [vmem:[%s201 + $0x190] sm:$0xff]
      %v275 = vld [vmem:[%s201 + $0x198] sm:$0xff]
      %v276 = vld [vmem:[%s201 + $0x1a0] sm:$0xf]
      %v277 = vld [vmem:[%s201 + $0x1a4] sm:$0xff]
      %v278 = vld [vmem:[%s201 + $0x1ac] sm:$0xff]
      %v279 = vld [vmem:[%s201 + $0x1b4] sm:$0xf]
      %v280 = vld [vmem:[%s201 + $0x1b8] sm:$0xff]
      %v281 = vld [vmem:[%s201 + $0x1c0] sm:$0xff]
      %v282 = vld [vmem:[%s201 + $0x1c8] sm:$0xf]
      %v283 = vld [vmem:[%s201 + $0x1cc] sm:$0xff]
      %v284 = vld [vmem:[%s201 + $0x1d4] sm:$0xff]
      %v285 = vld [vmem:[%s201 + $0x1dc] sm:$0xf]
      %v286 = vld [vmem:[%s201 + $0x1e0] sm:$0xff]
      %v287 = vld [vmem:[%s201 + $0x1e8] sm:$0xff]
      %v288 = vld [vmem:[%s201 + $0x1f0] sm:$0xf]
      %v289 = vld [vmem:[%s201 + $0x1f4] sm:$0xff]
      %v290 = vld [vmem:[%s201 + $0x1fc] sm:$0xff]
      %v291 = vld [vmem:[%s201 + $0x204] sm:$0xf]
      %v292 = vld [vmem:[%s201 + $0x208] sm:$0xff]
      %v293 = vld [vmem:[%s201 + $0x210] sm:$0xff]
      %v294 = vld [vmem:[%s201 + $0x218] sm:$0xf]
      %v295 = vld [vmem:[%s201 + $0x21c] sm:$0xff]
      %v296 = vld [vmem:[%s201 + $0x224] sm:$0xff]
      %v297 = vld [vmem:[%s201 + $0x22c] sm:$0xf]
      %v298 = vld [vmem:[%s201 + $0x230] sm:$0xff]
      %v299 = vld [vmem:[%s201 + $0x238] sm:$0xff]
      %v300 = vld [vmem:[%s201 + $0x240] sm:$0xf]
      %v301 = vld [vmem:[%s201 + $0x244] sm:$0xff]
      %v302 = vld [vmem:[%s201 + $0x24c] sm:$0xff]
      %v303 = vld [vmem:[%s201 + $0x254] sm:$0xf]
      %v304 = vld [vmem:[%s201 + $0x258] sm:$0xff]
      %v305 = vld [vmem:[%s201 + $0x260] sm:$0xff]
      %v306 = vld [vmem:[%s201 + $0x268] sm:$0xf]
      %v307 = vld [vmem:[%s201 + $0x26c] sm:$0xff]
      %v308 = vld [vmem:[%s201 + $0x274] sm:$0xff]
      %v309 = vld [vmem:[%s201 + $0x27c] sm:$0xf]
      %v310 = vld [vmem:[%s1] sm:$0xf]
      %v311 = vld [vmem:[%s1 + $0x4] sm:$0xf]
      %v312 = vld [vmem:[%s1 + $0x8] sm:$0xf]
      %v313 = vld [vmem:[%s1 + $0xc] sm:$0xf]
      %v314 = vld [vmem:[%s1 + $0x10] sm:$0xf]
      %v315 = vld [vmem:[%s1 + $0x14] sm:$0xf]
      %v316 = vld [vmem:[%s1 + $0x18] sm:$0xf]
      %v317 = vld [vmem:[%s1 + $0x1c] sm:$0xf]
      %v318 = vld [vmem:[%s1 + $0x20] sm:$0xf]
      %v319 = vld [vmem:[%s1 + $0x24] sm:$0xf]
      %v320 = vld [vmem:[%s1 + $0x28] sm:$0xf]
      %v321 = vld [vmem:[%s1 + $0x2c] sm:$0xf]
      %v322 = vld [vmem:[%s1 + $0x30] sm:$0xf]
      %v323 = vld [vmem:[%s1 + $0x34] sm:$0xf]
      %v324 = vld [vmem:[%s1 + $0x38] sm:$0xf]
      %v325 = vld [vmem:[%s1 + $0x3c] sm:$0xf]
      %v326 = vld [vmem:[%s1 + $0x40] sm:$0xf]
      %v327 = vld [vmem:[%s1 + $0x44] sm:$0xf]
      %v328 = vld [vmem:[%s1 + $0x48] sm:$0xf]
      %v329 = vld [vmem:[%s1 + $0x4c] sm:$0xf]
      %v330 = vld [vmem:[%s1 + $0x50] sm:$0xf]
      %v331 = vld [vmem:[%s1 + $0x54] sm:$0xf]
      %v332 = vld [vmem:[%s1 + $0x58] sm:$0xf]
      %v333 = vld [vmem:[%s1 + $0x5c] sm:$0xf]
      %v334 = vld [vmem:[%s1 + $0x60] sm:$0xf]
      %v335 = vld [vmem:[%s1 + $0x64] sm:$0xf]
      %v336 = vld [vmem:[%s1 + $0x68] sm:$0xf]
      %v337 = vld [vmem:[%s1 + $0x6c] sm:$0xf]
      %v338 = vld [vmem:[%s1 + $0x70] sm:$0xf]
      %v339 = vld [vmem:[%s1 + $0x74] sm:$0xf]
      %v340 = vld [vmem:[%s1 + $0x78] sm:$0xf]
      %v341 = vld [vmem:[%s1 + $0x7c] sm:$0xf]
      %v342 = vld [vmem:[%s1 + $0x80] sm:$0xf]
      %v343 = vld [vmem:[%s1 + $0x84] sm:$0xf]
      %v344 = vld [vmem:[%s1 + $0x88] sm:$0xf]
      %v345 = vld [vmem:[%s1 + $0x8c] sm:$0xf]
      %v346 = vld [vmem:[%s1 + $0x90] sm:$0xf]
      %v347 = vld [vmem:[%s1 + $0x94] sm:$0xf]
      %v348 = vld [vmem:[%s1 + $0x98] sm:$0xf]
      %v349 = vld [vmem:[%s1 + $0x9c] sm:$0xf]
      %v350 = vld [vmem:[%s1 + $0xa0] sm:$0xf]
      %v351 = vld [vmem:[%s1 + $0xa4] sm:$0xf]
      %v352 = vld [vmem:[%s1 + $0xa8] sm:$0xf]
      %v353 = vld [vmem:[%s1 + $0xac] sm:$0xf]
      %v354 = vld [vmem:[%s1 + $0xb0] sm:$0xf]
      %v355 = vld [vmem:[%s1 + $0xb4] sm:$0xf]
      %v356 = vld [vmem:[%s1 + $0xb8] sm:$0xf]
      %v357 = vld [vmem:[%s1 + $0xbc] sm:$0xf]
      %v358 = vld [vmem:[%s1 + $0xc0] sm:$0xf]
      %v359 = vld [vmem:[%s1 + $0xc4] sm:$0xf]
      %v360 = vld [vmem:[%s1 + $0xc8] sm:$0xf]
      %v361 = vld [vmem:[%s1 + $0xcc] sm:$0xf]
      %v362 = vld [vmem:[%s1 + $0xd0] sm:$0xf]
      %v363 = vld [vmem:[%s1 + $0xd4] sm:$0xf]
      %v364 = vld [vmem:[%s1 + $0xd8] sm:$0xf]
      %v365 = vld [vmem:[%s1 + $0xdc] sm:$0xf]
      %v366 = vld [vmem:[%s1 + $0xe0] sm:$0xf]
      %v367 = vld [vmem:[%s1 + $0xe4] sm:$0xf]
      %v368 = vld [vmem:[%s1 + $0xe8] sm:$0xf]
      %v369 = vld [vmem:[%s1 + $0xec] sm:$0xf]
      %v370 = vld [vmem:[%s1 + $0xf0] sm:$0xf]
      %v371 = vld [vmem:[%s1 + $0xf4] sm:$0xf]
      %v372 = vld [vmem:[%s1 + $0xf8] sm:$0xf]
      %v373 = vld [vmem:[%s1 + $0xfc] sm:$0xf]
      %v374 = vld [vmem:[%s1 + $0x100] sm:$0xf]
      %v375 = vld [vmem:[%s1 + $0x104] sm:$0xf]
      %v376 = vld [vmem:[%s1 + $0x108] sm:$0xf]
      %v377 = vld [vmem:[%s1 + $0x10c] sm:$0xf]
      %v378 = vld [vmem:[%s1 + $0x110] sm:$0xf]
      %v379 = vld [vmem:[%s1 + $0x114] sm:$0xf]
      %v380 = vld [vmem:[%s1 + $0x118] sm:$0xf]
      %v381 = vld [vmem:[%s1 + $0x11c] sm:$0xf]
      %v382 = vld [vmem:[%s2] sm:$0x1]
      %v384 = vperm.slane %v382, 0
      %v482 = vunpack.c.l.b16 %v214
      %v483 = vunpack.c.h.b16 %v214
      %v484 = vunpack.c.l.b16 %v215
      %v485 = vunpack.c.h.b16 %v215
      %v486 = vunpack.c.l.b16 %v216
      %v487 = vunpack.c.l.b16 %v217
      %v488 = vunpack.c.h.b16 %v217
      %v489 = vunpack.c.l.b16 %v218
      %v490 = vunpack.c.h.b16 %v218
      %v491 = vunpack.c.l.b16 %v219
      %v492 = vunpack.c.l.b16 %v220
      %v493 = vunpack.c.h.b16 %v220
      %v494 = vunpack.c.l.b16 %v221
      %v495 = vunpack.c.h.b16 %v221
      %v496 = vunpack.c.l.b16 %v222
      %v497 = vunpack.c.l.b16 %v223
      %v498 = vunpack.c.h.b16 %v223
      %v499 = vunpack.c.l.b16 %v224
      %v500 = vunpack.c.h.b16 %v224
      %v501 = vunpack.c.l.b16 %v225
      %v502 = vunpack.c.l.b16 %v226
      %v503 = vunpack.c.h.b16 %v226
      %v504 = vunpack.c.l.b16 %v227
      %v505 = vunpack.c.h.b16 %v227
      %v506 = vunpack.c.l.b16 %v228
      %v507 = vunpack.c.l.b16 %v229
      %v508 = vunpack.c.h.b16 %v229
      %v509 = vunpack.c.l.b16 %v230
      %v510 = vunpack.c.h.b16 %v230
      %v511 = vunpack.c.l.b16 %v231
      %v512 = vunpack.c.l.b16 %v232
      %v513 = vunpack.c.h.b16 %v232
      %v514 = vunpack.c.l.b16 %v233
      %v515 = vunpack.c.h.b16 %v233
      %v516 = vunpack.c.l.b16 %v234
      %v517 = vunpack.c.l.b16 %v235
      %v518 = vunpack.c.h.b16 %v235
      %v519 = vunpack.c.l.b16 %v236
      %v520 = vunpack.c.h.b16 %v236
      %v521 = vunpack.c.l.b16 %v237
      %v522 = vunpack.c.l.b16 %v238
      %v523 = vunpack.c.h.b16 %v238
      %v524 = vunpack.c.l.b16 %v239
      %v525 = vunpack.c.h.b16 %v239
      %v526 = vunpack.c.l.b16 %v240
      %v527 = vunpack.c.l.b16 %v241
      %v528 = vunpack.c.h.b16 %v241
      %v529 = vunpack.c.l.b16 %v242
      %v530 = vunpack.c.h.b16 %v242
      %v531 = vunpack.c.l.b16 %v243
      %v532 = vunpack.c.l.b16 %v244
      %v533 = vunpack.c.h.b16 %v244
      %v534 = vunpack.c.l.b16 %v245
      %v535 = vunpack.c.h.b16 %v245
      %v536 = vunpack.c.l.b16 %v246
      %v537 = vunpack.c.l.b16 %v247
      %v538 = vunpack.c.h.b16 %v247
      %v539 = vunpack.c.l.b16 %v248
      %v540 = vunpack.c.h.b16 %v248
      %v541 = vunpack.c.l.b16 %v249
      %v542 = vunpack.c.l.b16 %v250
      %v543 = vunpack.c.h.b16 %v250
      %v544 = vunpack.c.l.b16 %v251
      %v545 = vunpack.c.h.b16 %v251
      %v546 = vunpack.c.l.b16 %v252
      %v547 = vunpack.c.l.b16 %v253
      %v548 = vunpack.c.h.b16 %v253
      %v549 = vunpack.c.l.b16 %v254
      %v550 = vunpack.c.h.b16 %v254
      %v551 = vunpack.c.l.b16 %v255
      %v552 = vunpack.c.l.b16 %v256
      %v553 = vunpack.c.h.b16 %v256
      %v554 = vunpack.c.l.b16 %v257
      %v555 = vunpack.c.h.b16 %v257
      %v556 = vunpack.c.l.b16 %v258
      %v557 = vunpack.c.l.b16 %v259
      %v558 = vunpack.c.h.b16 %v259
      %v559 = vunpack.c.l.b16 %v260
      %v560 = vunpack.c.h.b16 %v260
      %v561 = vunpack.c.l.b16 %v261
      %v562 = vunpack.c.l.b16 %v262
      %v563 = vunpack.c.h.b16 %v262
      %v564 = vunpack.c.l.b16 %v263
      %v565 = vunpack.c.h.b16 %v263
      %v566 = vunpack.c.l.b16 %v264
      %v567 = vunpack.c.l.b16 %v265
      %v568 = vunpack.c.h.b16 %v265
      %v569 = vunpack.c.l.b16 %v266
      %v570 = vunpack.c.h.b16 %v266
      %v571 = vunpack.c.l.b16 %v267
      %v572 = vunpack.c.l.b16 %v268
      %v573 = vunpack.c.h.b16 %v268
      %v574 = vunpack.c.l.b16 %v269
      %v575 = vunpack.c.h.b16 %v269
      %v576 = vunpack.c.l.b16 %v270
      %v577 = vunpack.c.l.b16 %v271
      %v578 = vunpack.c.h.b16 %v271
      %v579 = vunpack.c.l.b16 %v272
      %v580 = vunpack.c.h.b16 %v272
      %v581 = vunpack.c.l.b16 %v273
      %v582 = vunpack.c.l.b16 %v274
      %v583 = vunpack.c.h.b16 %v274
      %v584 = vunpack.c.l.b16 %v275
      %v585 = vunpack.c.h.b16 %v275
      %v586 = vunpack.c.l.b16 %v276
      %v587 = vunpack.c.l.b16 %v277
      %v588 = vunpack.c.h.b16 %v277
      %v589 = vunpack.c.l.b16 %v278
      %v590 = vunpack.c.h.b16 %v278
      %v591 = vunpack.c.l.b16 %v279
      %v592 = vunpack.c.l.b16 %v280
      %v593 = vunpack.c.h.b16 %v280
      %v594 = vunpack.c.l.b16 %v281
      %v595 = vunpack.c.h.b16 %v281
      %v596 = vunpack.c.l.b16 %v282
      %v597 = vunpack.c.l.b16 %v283
      %v598 = vunpack.c.h.b16 %v283
      %v599 = vunpack.c.l.b16 %v284
      %v600 = vunpack.c.h.b16 %v284
      %v601 = vunpack.c.l.b16 %v285
      %v602 = vunpack.c.l.b16 %v286
      %v603 = vunpack.c.h.b16 %v286
      %v604 = vunpack.c.l.b16 %v287
      %v605 = vunpack.c.h.b16 %v287
      %v606 = vunpack.c.l.b16 %v288
      %v607 = vunpack.c.l.b16 %v289
      %v608 = vunpack.c.h.b16 %v289
      %v609 = vunpack.c.l.b16 %v290
      %v610 = vunpack.c.h.b16 %v290
      %v611 = vunpack.c.l.b16 %v291
      %v612 = vunpack.c.l.b16 %v292
      %v613 = vunpack.c.h.b16 %v292
      %v614 = vunpack.c.l.b16 %v293
      %v615 = vunpack.c.h.b16 %v293
      %v616 = vunpack.c.l.b16 %v294
      %v617 = vunpack.c.l.b16 %v295
      %v618 = vunpack.c.h.b16 %v295
      %v619 = vunpack.c.l.b16 %v296
      %v620 = vunpack.c.h.b16 %v296
      %v621 = vunpack.c.l.b16 %v297
      %v622 = vunpack.c.l.b16 %v298
      %v623 = vunpack.c.h.b16 %v298
      %v624 = vunpack.c.l.b16 %v299
      %v625 = vunpack.c.h.b16 %v299
      %v626 = vunpack.c.l.b16 %v300
      %v627 = vunpack.c.l.b16 %v301
      %v628 = vunpack.c.h.b16 %v301
      %v629 = vunpack.c.l.b16 %v302
      %v630 = vunpack.c.h.b16 %v302
      %v631 = vunpack.c.l.b16 %v303
      %v632 = vunpack.c.l.b16 %v304
      %v633 = vunpack.c.h.b16 %v304
      %v634 = vunpack.c.l.b16 %v305
      %v635 = vunpack.c.h.b16 %v305
      %v636 = vunpack.c.l.b16 %v306
      %v637 = vunpack.c.l.b16 %v307
      %v638 = vunpack.c.h.b16 %v307
      %v639 = vunpack.c.l.b16 %v308
      %v640 = vunpack.c.h.b16 %v308
      %v641 = vunpack.c.l.b16 %v309
      %v642 = vpack.c.b16 %v487, %v482
      %v643 = vpack.c.b16 %v488, %v483
      %v644 = vpack.c.b16 %v489, %v484
      %v645 = vpack.c.b16 %v490, %v485
      %v646 = vpack.c.b16 %v491, %v486
      %v647 = vpack.c.b16 %v497, %v492
      %v648 = vpack.c.b16 %v498, %v493
      %v649 = vpack.c.b16 %v499, %v494
      %v650 = vpack.c.b16 %v500, %v495
      %v651 = vpack.c.b16 %v501, %v496
      %v652 = vpack.c.b16 %v507, %v502
      %v653 = vpack.c.b16 %v508, %v503
      %v654 = vpack.c.b16 %v509, %v504
      %v655 = vpack.c.b16 %v510, %v505
      %v656 = vpack.c.b16 %v511, %v506
      %v657 = vpack.c.b16 %v517, %v512
      %v658 = vpack.c.b16 %v518, %v513
      %v659 = vpack.c.b16 %v519, %v514
      %v660 = vpack.c.b16 %v520, %v515
      %v661 = vpack.c.b16 %v521, %v516
      %v662 = vpack.c.b16 %v527, %v522
      %v663 = vpack.c.b16 %v528, %v523
      %v664 = vpack.c.b16 %v529, %v524
      %v665 = vpack.c.b16 %v530, %v525
      %v666 = vpack.c.b16 %v531, %v526
      %v667 = vpack.c.b16 %v537, %v532
      %v668 = vpack.c.b16 %v538, %v533
      %v669 = vpack.c.b16 %v539, %v534
      %v670 = vpack.c.b16 %v540, %v535
      %v671 = vpack.c.b16 %v541, %v536
      %v672 = vpack.c.b16 %v547, %v542
      %v673 = vpack.c.b16 %v548, %v543
      %v674 = vpack.c.b16 %v549, %v544
      %v675 = vpack.c.b16 %v550, %v545
      %v676 = vpack.c.b16 %v551, %v546
      %v677 = vpack.c.b16 %v557, %v552
      %v678 = vpack.c.b16 %v558, %v553
      %v679 = vpack.c.b16 %v559, %v554
      %v680 = vpack.c.b16 %v560, %v555
      %v681 = vpack.c.b16 %v561, %v556
      %v682 = vpack.c.b16 %v567, %v562
      %v683 = vpack.c.b16 %v568, %v563
      %v684 = vpack.c.b16 %v569, %v564
      %v685 = vpack.c.b16 %v570, %v565
      %v686 = vpack.c.b16 %v571, %v566
      %v687 = vpack.c.b16 %v577, %v572
      %v688 = vpack.c.b16 %v578, %v573
      %v689 = vpack.c.b16 %v579, %v574
      %v690 = vpack.c.b16 %v580, %v575
      %v691 = vpack.c.b16 %v581, %v576
      %v692 = vpack.c.b16 %v587, %v582
      %v693 = vpack.c.b16 %v588, %v583
      %v694 = vpack.c.b16 %v589, %v584
      %v695 = vpack.c.b16 %v590, %v585
      %v696 = vpack.c.b16 %v591, %v586
      %v697 = vpack.c.b16 %v597, %v592
      %v698 = vpack.c.b16 %v598, %v593
      %v699 = vpack.c.b16 %v599, %v594
      %v700 = vpack.c.b16 %v600, %v595
      %v701 = vpack.c.b16 %v601, %v596
      %v702 = vpack.c.b16 %v607, %v602
      %v703 = vpack.c.b16 %v608, %v603
      %v704 = vpack.c.b16 %v609, %v604
      %v705 = vpack.c.b16 %v610, %v605
      %v706 = vpack.c.b16 %v611, %v606
      %v707 = vpack.c.b16 %v617, %v612
      %v708 = vpack.c.b16 %v618, %v613
      %v709 = vpack.c.b16 %v619, %v614
      %v710 = vpack.c.b16 %v620, %v615
      %v711 = vpack.c.b16 %v621, %v616
      %v712 = vpack.c.b16 %v627, %v622
      %v713 = vpack.c.b16 %v628, %v623
      %v714 = vpack.c.b16 %v629, %v624
      %v715 = vpack.c.b16 %v630, %v625
      %v716 = vpack.c.b16 %v631, %v626
      %v717 = vpack.c.b16 %v637, %v632
      %v718 = vpack.c.b16 %v638, %v633
      %v719 = vpack.c.b16 %v639, %v634
      %v720 = vpack.c.b16 %v640, %v635
      %v721 = vpack.c.b16 %v641, %v636
      %v858 = vunpack.c.l.b16 %v310
      %v859 = vunpack.c.l.b16 %v311
      %v860 = vunpack.c.l.b16 %v312
      %v861 = vunpack.c.l.b16 %v313
      %v862 = vunpack.c.l.b16 %v314
      %v863 = vunpack.c.l.b16 %v315
      %v864 = vunpack.c.l.b16 %v316
      %v865 = vunpack.c.l.b16 %v317
      %v866 = vunpack.c.l.b16 %v318
      %v867 = vunpack.c.l.b16 %v319
      %v868 = vunpack.c.l.b16 %v320
      %v869 = vunpack.c.l.b16 %v321
      %v870 = vunpack.c.l.b16 %v322
      %v871 = vunpack.c.l.b16 %v323
      %v872 = vunpack.c.l.b16 %v324
      %v873 = vunpack.c.l.b16 %v325
      %v874 = vunpack.c.l.b16 %v326
      %v875 = vunpack.c.l.b16 %v327
      %v876 = vunpack.c.l.b16 %v328
      %v877 = vunpack.c.l.b16 %v329
      %v878 = vunpack.c.l.b16 %v330
      %v879 = vunpack.c.l.b16 %v331
      %v880 = vunpack.c.l.b16 %v332
      %v881 = vunpack.c.l.b16 %v333
      %v882 = vunpack.c.l.b16 %v334
      %v883 = vunpack.c.l.b16 %v335
      %v884 = vunpack.c.l.b16 %v336
      %v885 = vunpack.c.l.b16 %v337
      %v886 = vunpack.c.l.b16 %v338
      %v887 = vunpack.c.l.b16 %v339
      %v888 = vunpack.c.l.b16 %v340
      %v889 = vunpack.c.l.b16 %v341
      %v890 = vunpack.c.l.b16 %v342
      %v891 = vunpack.c.l.b16 %v343
      %v892 = vunpack.c.l.b16 %v344
      %v893 = vunpack.c.l.b16 %v345
      %v894 = vunpack.c.l.b16 %v346
      %v895 = vunpack.c.l.b16 %v347
      %v896 = vunpack.c.l.b16 %v348
      %v897 = vunpack.c.l.b16 %v349
      %v898 = vunpack.c.l.b16 %v350
      %v899 = vunpack.c.l.b16 %v351
      %v900 = vunpack.c.l.b16 %v352
      %v901 = vunpack.c.l.b16 %v353
      %v902 = vunpack.c.l.b16 %v354
      %v903 = vunpack.c.l.b16 %v355
      %v904 = vunpack.c.l.b16 %v356
      %v905 = vunpack.c.l.b16 %v357
      %v906 = vunpack.c.l.b16 %v358
      %v907 = vunpack.c.l.b16 %v359
      %v908 = vunpack.c.l.b16 %v360
      %v909 = vunpack.c.l.b16 %v361
      %v910 = vunpack.c.l.b16 %v362
      %v911 = vunpack.c.l.b16 %v363
      %v912 = vunpack.c.l.b16 %v364
      %v913 = vunpack.c.l.b16 %v365
      %v914 = vunpack.c.l.b16 %v366
      %v915 = vunpack.c.l.b16 %v367
      %v916 = vunpack.c.l.b16 %v368
      %v917 = vunpack.c.l.b16 %v369
      %v918 = vunpack.c.l.b16 %v370
      %v919 = vunpack.c.l.b16 %v371
      %v920 = vunpack.c.l.b16 %v372
      %v921 = vunpack.c.l.b16 %v373
      %v922 = vunpack.c.l.b16 %v374
      %v923 = vunpack.c.l.b16 %v375
      %v924 = vunpack.c.l.b16 %v376
      %v925 = vunpack.c.l.b16 %v377
      %v926 = vunpack.c.l.b16 %v378
      %v927 = vunpack.c.l.b16 %v379
      %v928 = vunpack.c.l.b16 %v380
      %v929 = vunpack.c.l.b16 %v381
      %v930 = vpack.c.b16 %v859, %v858
      %v931 = vpack.c.b16 %v861, %v860
      %v932 = vpack.c.b16 %v863, %v862
      %v933 = vpack.c.b16 %v865, %v864
      %v934 = vpack.c.b16 %v867, %v866
      %v935 = vpack.c.b16 %v869, %v868
      %v936 = vpack.c.b16 %v871, %v870
      %v937 = vpack.c.b16 %v873, %v872
      %v938 = vpack.c.b16 %v875, %v874
      %v939 = vpack.c.b16 %v877, %v876
      %v940 = vpack.c.b16 %v879, %v878
      %v941 = vpack.c.b16 %v881, %v880
      %v942 = vpack.c.b16 %v883, %v882
      %v943 = vpack.c.b16 %v885, %v884
      %v944 = vpack.c.b16 %v887, %v886
      %v945 = vpack.c.b16 %v889, %v888
      %v946 = vpack.c.b16 %v891, %v890
      %v947 = vpack.c.b16 %v893, %v892
      %v948 = vpack.c.b16 %v895, %v894
      %v949 = vpack.c.b16 %v897, %v896
      %v950 = vpack.c.b16 %v899, %v898
      %v951 = vpack.c.b16 %v901, %v900
      %v952 = vpack.c.b16 %v903, %v902
      %v953 = vpack.c.b16 %v905, %v904
      %v954 = vpack.c.b16 %v907, %v906
      %v955 = vpack.c.b16 %v909, %v908
      %v956 = vpack.c.b16 %v911, %v910
      %v957 = vpack.c.b16 %v913, %v912
      %v958 = vpack.c.b16 %v915, %v914
      %v959 = vpack.c.b16 %v917, %v916
      %v960 = vpack.c.b16 %v919, %v918
      %v961 = vpack.c.b16 %v921, %v920
      %v962 = vpack.c.b16 %v923, %v922
      %v963 = vpack.c.b16 %v925, %v924
      %v964 = vpack.c.b16 %v927, %v926
      %v965 = vpack.c.b16 %v929, %v928
      %vm1002 = vcmask 523264
      %v1004 = vsel %vm1002, %v646, 0
      %v1007 = vsel %vm1002, %v651, 0
      %v1010 = vsel %vm1002, %v656, 0
      %v1013 = vsel %vm1002, %v661, 0
      %v1016 = vsel %vm1002, %v666, 0
      %v1019 = vsel %vm1002, %v671, 0
      %v1022 = vsel %vm1002, %v676, 0
      %v1025 = vsel %vm1002, %v681, 0
      %v1028 = vsel %vm1002, %v686, 0
      %v1031 = vsel %vm1002, %v691, 0
      %v1034 = vsel %vm1002, %v696, 0
      %v1037 = vsel %vm1002, %v701, 0
      %v1040 = vsel %vm1002, %v706, 0
      %v1043 = vsel %vm1002, %v711, 0
      %v1046 = vsel %vm1002, %v716, 0
      %v1049 = vsel %vm1002, %v721, 0
      %1051 = vmatpush.bf16.msra.mxu0 %v937
      %1052 = vmatpush.bf16.msra.mxu0 %v936
      %1053 = vmatpush.bf16.msra.mxu0 %v935
      %1054 = vmatpush.bf16.msra.mxu0 %v934
      %1055 = vmatpush.bf16.msra.mxu0 %v933
      %1056 = vmatpush.bf16.msra.mxu0 %v932
      %1057 = vmatpush.bf16.msra.mxu0 %v931
      %1058 = vmatpush.bf16.msra.mxu0 %v930
      %1059 = vmatmul.bf16.gmra.mxu0 %v642
      %v1060 = vpop.f32.mrf.mxu0
      %v1061 = vadd.f32 %v384, %v1060
      %v1062 = vpop.f32.mrf.mxu0
      %v1063 = vadd.f32 %v384, %v1062
      %1064 = vmatmul.bf16.gmra.mxu0 %v647
      %v1065 = vpop.f32.mrf.mxu0
      %v1066 = vadd.f32 %v384, %v1065
      %v1067 = vpop.f32.mrf.mxu0
      %v1068 = vadd.f32 %v384, %v1067
      %1069 = vmatmul.bf16.gmra.mxu0 %v652
      %v1070 = vpop.f32.mrf.mxu0
      %v1071 = vadd.f32 %v384, %v1070
      %v1072 = vpop.f32.mrf.mxu0
      %v1073 = vadd.f32 %v384, %v1072
      %1074 = vmatmul.bf16.gmra.mxu0 %v657
      %v1075 = vpop.f32.mrf.mxu0
      %v1076 = vadd.f32 %v384, %v1075
      %v1077 = vpop.f32.mrf.mxu0
      %v1078 = vadd.f32 %v384, %v1077
      %1079 = vmatmul.bf16.gmra.mxu0 %v662
      %v1080 = vpop.f32.mrf.mxu0
      %v1081 = vadd.f32 %v384, %v1080
      %v1082 = vpop.f32.mrf.mxu0
      %v1083 = vadd.f32 %v384, %v1082
      %1084 = vmatmul.bf16.gmra.mxu0 %v667
      %v1085 = vpop.f32.mrf.mxu0
      %v1086 = vadd.f32 %v384, %v1085
      %v1087 = vpop.f32.mrf.mxu0
      %v1088 = vadd.f32 %v384, %v1087
      %1089 = vmatmul.bf16.gmra.mxu0 %v672
      %v1090 = vpop.f32.mrf.mxu0
      %v1091 = vadd.f32 %v384, %v1090
      %v1092 = vpop.f32.mrf.mxu0
      %v1093 = vadd.f32 %v384, %v1092
      %1094 = vmatmul.bf16.gmra.mxu0 %v677
      %v1095 = vpop.f32.mrf.mxu0
      %v1096 = vadd.f32 %v384, %v1095
      %v1097 = vpop.f32.mrf.mxu0
      %v1098 = vadd.f32 %v384, %v1097
      %1099 = vmatmul.bf16.gmra.mxu0 %v682
      %v1100 = vpop.f32.mrf.mxu0
      %v1101 = vadd.f32 %v384, %v1100
      %v1102 = vpop.f32.mrf.mxu0
      %v1103 = vadd.f32 %v384, %v1102
      %1104 = vmatmul.bf16.gmra.mxu0 %v687
      %v1105 = vpop.f32.mrf.mxu0
      %v1106 = vadd.f32 %v384, %v1105
      %v1107 = vpop.f32.mrf.mxu0
      %v1108 = vadd.f32 %v384, %v1107
      %1109 = vmatmul.bf16.gmra.mxu0 %v692
      %v1110 = vpop.f32.mrf.mxu0
      %v1111 = vadd.f32 %v384, %v1110
      %v1112 = vpop.f32.mrf.mxu0
      %v1113 = vadd.f32 %v384, %v1112
      %1114 = vmatmul.bf16.gmra.mxu0 %v697
      %v1115 = vpop.f32.mrf.mxu0
      %v1116 = vadd.f32 %v384, %v1115
      %v1117 = vpop.f32.mrf.mxu0
      %v1118 = vadd.f32 %v384, %v1117
      %1119 = vmatmul.bf16.gmra.mxu0 %v702
      %v1120 = vpop.f32.mrf.mxu0
      %v1121 = vadd.f32 %v384, %v1120
      %v1122 = vpop.f32.mrf.mxu0
      %v1123 = vadd.f32 %v384, %v1122
      %1124 = vmatmul.bf16.gmra.mxu0 %v707
      %v1125 = vpop.f32.mrf.mxu0
      %v1126 = vadd.f32 %v384, %v1125
      %v1127 = vpop.f32.mrf.mxu0
      %v1128 = vadd.f32 %v384, %v1127
      %1129 = vmatmul.bf16.gmra.mxu0 %v712
      %v1130 = vpop.f32.mrf.mxu0
      %v1131 = vadd.f32 %v384, %v1130
      %v1132 = vpop.f32.mrf.mxu0
      %v1133 = vadd.f32 %v384, %v1132
      %1134 = vmatmul.bf16.gmra.mxu0 %v717
      %v1135 = vpop.f32.mrf.mxu0
      %v1136 = vadd.f32 %v384, %v1135
      %v1137 = vpop.f32.mrf.mxu0
      %v1138 = vadd.f32 %v384, %v1137
      %1139 = vdwg.mxu0
      %1140 = vmatpush.bf16.msra.mxu0 %v945
      %1141 = vmatpush.bf16.msra.mxu0 %v944
      %1142 = vmatpush.bf16.msra.mxu0 %v943
      %1143 = vmatpush.bf16.msra.mxu0 %v942
      %1144 = vmatpush.bf16.msra.mxu0 %v941
      %1145 = vmatpush.bf16.msra.mxu0 %v940
      %1146 = vmatpush.bf16.msra.mxu0 %v939
      %1147 = vmatpush.bf16.msra.mxu0 %v938
      %1148 = vmatmul.bf16.gmra.mxu0 %v643
      %v1149 = vpop.f32.mrf.mxu0
      %v1150 = vadd.f32 %v1061, %v1149
      %v1151 = vpop.f32.mrf.mxu0
      %v1152 = vadd.f32 %v1063, %v1151
      %1153 = vmatmul.bf16.gmra.mxu0 %v648
      %v1154 = vpop.f32.mrf.mxu0
      %v1155 = vadd.f32 %v1066, %v1154
      %v1156 = vpop.f32.mrf.mxu0
      %v1157 = vadd.f32 %v1068, %v1156
      %1158 = vmatmul.bf16.gmra.mxu0 %v653
      %v1159 = vpop.f32.mrf.mxu0
      %v1160 = vadd.f32 %v1071, %v1159
      %v1161 = vpop.f32.mrf.mxu0
      %v1162 = vadd.f32 %v1073, %v1161
      %1163 = vmatmul.bf16.gmra.mxu0 %v658
      %v1164 = vpop.f32.mrf.mxu0
      %v1165 = vadd.f32 %v1076, %v1164
      %v1166 = vpop.f32.mrf.mxu0
      %v1167 = vadd.f32 %v1078, %v1166
      %1168 = vmatmul.bf16.gmra.mxu0 %v663
      %v1169 = vpop.f32.mrf.mxu0
      %v1170 = vadd.f32 %v1081, %v1169
      %v1171 = vpop.f32.mrf.mxu0
      %v1172 = vadd.f32 %v1083, %v1171
      %1173 = vmatmul.bf16.gmra.mxu0 %v668
      %v1174 = vpop.f32.mrf.mxu0
      %v1175 = vadd.f32 %v1086, %v1174
      %v1176 = vpop.f32.mrf.mxu0
      %v1177 = vadd.f32 %v1088, %v1176
      %1178 = vmatmul.bf16.gmra.mxu0 %v673
      %v1179 = vpop.f32.mrf.mxu0
      %v1180 = vadd.f32 %v1091, %v1179
      %v1181 = vpop.f32.mrf.mxu0
      %v1182 = vadd.f32 %v1093, %v1181
      %1183 = vmatmul.bf16.gmra.mxu0 %v678
      %v1184 = vpop.f32.mrf.mxu0
      %v1185 = vadd.f32 %v1096, %v1184
      %v1186 = vpop.f32.mrf.mxu0
      %v1187 = vadd.f32 %v1098, %v1186
      %1188 = vmatmul.bf16.gmra.mxu0 %v683
      %v1189 = vpop.f32.mrf.mxu0
      %v1190 = vadd.f32 %v1101, %v1189
      %v1191 = vpop.f32.mrf.mxu0
      %v1192 = vadd.f32 %v1103, %v1191
      %1193 = vmatmul.bf16.gmra.mxu0 %v688
      %v1194 = vpop.f32.mrf.mxu0
      %v1195 = vadd.f32 %v1106, %v1194
      %v1196 = vpop.f32.mrf.mxu0
      %v1197 = vadd.f32 %v1108, %v1196
      %1198 = vmatmul.bf16.gmra.mxu0 %v693
      %v1199 = vpop.f32.mrf.mxu0
      %v1200 = vadd.f32 %v1111, %v1199
      %v1201 = vpop.f32.mrf.mxu0
      %v1202 = vadd.f32 %v1113, %v1201
      %1203 = vmatmul.bf16.gmra.mxu0 %v698
      %v1204 = vpop.f32.mrf.mxu0
      %v1205 = vadd.f32 %v1116, %v1204
      %v1206 = vpop.f32.mrf.mxu0
      %v1207 = vadd.f32 %v1118, %v1206
      %1208 = vmatmul.bf16.gmra.mxu0 %v703
      %v1209 = vpop.f32.mrf.mxu0
      %v1210 = vadd.f32 %v1121, %v1209
      %v1211 = vpop.f32.mrf.mxu0
      %v1212 = vadd.f32 %v1123, %v1211
      %1213 = vmatmul.bf16.gmra.mxu0 %v708
      %v1214 = vpop.f32.mrf.mxu0
      %v1215 = vadd.f32 %v1126, %v1214
      %v1216 = vpop.f32.mrf.mxu0
      %v1217 = vadd.f32 %v1128, %v1216
      %1218 = vmatmul.bf16.gmra.mxu0 %v713
      %v1219 = vpop.f32.mrf.mxu0
      %v1220 = vadd.f32 %v1131, %v1219
      %v1221 = vpop.f32.mrf.mxu0
      %v1222 = vadd.f32 %v1133, %v1221
      %1223 = vmatmul.bf16.gmra.mxu0 %v718
      %v1224 = vpop.f32.mrf.mxu0
      %v1225 = vadd.f32 %v1136, %v1224
      %v1226 = vpop.f32.mrf.mxu0
      %v1227 = vadd.f32 %v1138, %v1226
      %1228 = vdwg.mxu0
      %1229 = vmatpush.bf16.msra.mxu0 %v953
      %1230 = vmatpush.bf16.msra.mxu0 %v952
      %1231 = vmatpush.bf16.msra.mxu0 %v951
      %1232 = vmatpush.bf16.msra.mxu0 %v950
      %1233 = vmatpush.bf16.msra.mxu0 %v949
      %1234 = vmatpush.bf16.msra.mxu0 %v948
      %1235 = vmatpush.bf16.msra.mxu0 %v947
      %1236 = vmatpush.bf16.msra.mxu0 %v946
      %1237 = vmatmul.bf16.gmra.mxu0 %v644
      %v1238 = vpop.f32.mrf.mxu0
      %v1239 = vadd.f32 %v1150, %v1238
      %v1240 = vpop.f32.mrf.mxu0
      %v1241 = vadd.f32 %v1152, %v1240
      %1242 = vmatmul.bf16.gmra.mxu0 %v649
      %v1243 = vpop.f32.mrf.mxu0
      %v1244 = vadd.f32 %v1155, %v1243
      %v1245 = vpop.f32.mrf.mxu0
      %v1246 = vadd.f32 %v1157, %v1245
      %1247 = vmatmul.bf16.gmra.mxu0 %v654
      %v1248 = vpop.f32.mrf.mxu0
      %v1249 = vadd.f32 %v1160, %v1248
      %v1250 = vpop.f32.mrf.mxu0
      %v1251 = vadd.f32 %v1162, %v1250
      %1252 = vmatmul.bf16.gmra.mxu0 %v659
      %v1253 = vpop.f32.mrf.mxu0
      %v1254 = vadd.f32 %v1165, %v1253
      %v1255 = vpop.f32.mrf.mxu0
      %v1256 = vadd.f32 %v1167, %v1255
      %1257 = vmatmul.bf16.gmra.mxu0 %v664
      %v1258 = vpop.f32.mrf.mxu0
      %v1259 = vadd.f32 %v1170, %v1258
      %v1260 = vpop.f32.mrf.mxu0
      %v1261 = vadd.f32 %v1172, %v1260
      %1262 = vmatmul.bf16.gmra.mxu0 %v669
      %v1263 = vpop.f32.mrf.mxu0
      %v1264 = vadd.f32 %v1175, %v1263
      %v1265 = vpop.f32.mrf.mxu0
      %v1266 = vadd.f32 %v1177, %v1265
      %1267 = vmatmul.bf16.gmra.mxu0 %v674
      %v1268 = vpop.f32.mrf.mxu0
      %v1269 = vadd.f32 %v1180, %v1268
      %v1270 = vpop.f32.mrf.mxu0
      %v1271 = vadd.f32 %v1182, %v1270
      %1272 = vmatmul.bf16.gmra.mxu0 %v679
      %v1273 = vpop.f32.mrf.mxu0
      %v1274 = vadd.f32 %v1185, %v1273
      %v1275 = vpop.f32.mrf.mxu0
      %v1276 = vadd.f32 %v1187, %v1275
      %1277 = vmatmul.bf16.gmra.mxu0 %v684
      %v1278 = vpop.f32.mrf.mxu0
      %v1279 = vadd.f32 %v1190, %v1278
      %v1280 = vpop.f32.mrf.mxu0
      %v1281 = vadd.f32 %v1192, %v1280
      %1282 = vmatmul.bf16.gmra.mxu0 %v689
      %v1283 = vpop.f32.mrf.mxu0
      %v1284 = vadd.f32 %v1195, %v1283
      %v1285 = vpop.f32.mrf.mxu0
      %v1286 = vadd.f32 %v1197, %v1285
      %1287 = vmatmul.bf16.gmra.mxu0 %v694
      %v1288 = vpop.f32.mrf.mxu0
      %v1289 = vadd.f32 %v1200, %v1288
      %v1290 = vpop.f32.mrf.mxu0
      %v1291 = vadd.f32 %v1202, %v1290
      %1292 = vmatmul.bf16.gmra.mxu0 %v699
      %v1293 = vpop.f32.mrf.mxu0
      %v1294 = vadd.f32 %v1205, %v1293
      %v1295 = vpop.f32.mrf.mxu0
      %v1296 = vadd.f32 %v1207, %v1295
      %1297 = vmatmul.bf16.gmra.mxu0 %v704
      %v1298 = vpop.f32.mrf.mxu0
      %v1299 = vadd.f32 %v1210, %v1298
      %v1300 = vpop.f32.mrf.mxu0
      %v1301 = vadd.f32 %v1212, %v1300
      %1302 = vmatmul.bf16.gmra.mxu0 %v709
      %v1303 = vpop.f32.mrf.mxu0
      %v1304 = vadd.f32 %v1215, %v1303
      %v1305 = vpop.f32.mrf.mxu0
      %v1306 = vadd.f32 %v1217, %v1305
      %1307 = vmatmul.bf16.gmra.mxu0 %v714
      %v1308 = vpop.f32.mrf.mxu0
      %v1309 = vadd.f32 %v1220, %v1308
      %v1310 = vpop.f32.mrf.mxu0
      %v1311 = vadd.f32 %v1222, %v1310
      %1312 = vmatmul.bf16.gmra.mxu0 %v719
      %v1313 = vpop.f32.mrf.mxu0
      %v1314 = vadd.f32 %v1225, %v1313
      %v1315 = vpop.f32.mrf.mxu0
      %v1316 = vadd.f32 %v1227, %v1315
      %1317 = vdwg.mxu0
      %1318 = vmatpush.bf16.msra.mxu0 %v961
      %1319 = vmatpush.bf16.msra.mxu0 %v960
      %1320 = vmatpush.bf16.msra.mxu0 %v959
      %1321 = vmatpush.bf16.msra.mxu0 %v958
      %1322 = vmatpush.bf16.msra.mxu0 %v957
      %1323 = vmatpush.bf16.msra.mxu0 %v956
      %1324 = vmatpush.bf16.msra.mxu0 %v955
      %1325 = vmatpush.bf16.msra.mxu0 %v954
      %1326 = vmatmul.bf16.gmra.mxu0 %v645
      %v1327 = vpop.f32.mrf.mxu0
      %v1328 = vadd.f32 %v1239, %v1327
      %v1329 = vpop.f32.mrf.mxu0
      %v1330 = vadd.f32 %v1241, %v1329
      %1331 = vmatmul.bf16.gmra.mxu0 %v650
      %v1332 = vpop.f32.mrf.mxu0
      %v1333 = vadd.f32 %v1244, %v1332
      %v1334 = vpop.f32.mrf.mxu0
      %v1335 = vadd.f32 %v1246, %v1334
      %1336 = vmatmul.bf16.gmra.mxu0 %v655
      %v1337 = vpop.f32.mrf.mxu0
      %v1338 = vadd.f32 %v1249, %v1337
      %v1339 = vpop.f32.mrf.mxu0
      %v1340 = vadd.f32 %v1251, %v1339
      %1341 = vmatmul.bf16.gmra.mxu0 %v660
      %v1342 = vpop.f32.mrf.mxu0
      %v1343 = vadd.f32 %v1254, %v1342
      %v1344 = vpop.f32.mrf.mxu0
      %v1345 = vadd.f32 %v1256, %v1344
      %1346 = vmatmul.bf16.gmra.mxu0 %v665
      %v1347 = vpop.f32.mrf.mxu0
      %v1348 = vadd.f32 %v1259, %v1347
      %v1349 = vpop.f32.mrf.mxu0
      %v1350 = vadd.f32 %v1261, %v1349
      %1351 = vmatmul.bf16.gmra.mxu0 %v670
      %v1352 = vpop.f32.mrf.mxu0
      %v1353 = vadd.f32 %v1264, %v1352
      %v1354 = vpop.f32.mrf.mxu0
      %v1355 = vadd.f32 %v1266, %v1354
      %1356 = vmatmul.bf16.gmra.mxu0 %v675
      %v1357 = vpop.f32.mrf.mxu0
      %v1358 = vadd.f32 %v1269, %v1357
      %v1359 = vpop.f32.mrf.mxu0
      %v1360 = vadd.f32 %v1271, %v1359
      %1361 = vmatmul.bf16.gmra.mxu0 %v680
      %v1362 = vpop.f32.mrf.mxu0
      %v1363 = vadd.f32 %v1274, %v1362
      %v1364 = vpop.f32.mrf.mxu0
      %v1365 = vadd.f32 %v1276, %v1364
      %1366 = vmatmul.bf16.gmra.mxu0 %v685
      %v1367 = vpop.f32.mrf.mxu0
      %v1368 = vadd.f32 %v1279, %v1367
      %v1369 = vpop.f32.mrf.mxu0
      %v1370 = vadd.f32 %v1281, %v1369
      %1371 = vmatmul.bf16.gmra.mxu0 %v690
      %v1372 = vpop.f32.mrf.mxu0
      %v1373 = vadd.f32 %v1284, %v1372
      %v1374 = vpop.f32.mrf.mxu0
      %v1375 = vadd.f32 %v1286, %v1374
      %1376 = vmatmul.bf16.gmra.mxu0 %v695
      %v1377 = vpop.f32.mrf.mxu0
      %v1378 = vadd.f32 %v1289, %v1377
      %v1379 = vpop.f32.mrf.mxu0
      %v1380 = vadd.f32 %v1291, %v1379
      %1381 = vmatmul.bf16.gmra.mxu0 %v700
      %v1382 = vpop.f32.mrf.mxu0
      %v1383 = vadd.f32 %v1294, %v1382
      %v1384 = vpop.f32.mrf.mxu0
      %v1385 = vadd.f32 %v1296, %v1384
      %1386 = vmatmul.bf16.gmra.mxu0 %v705
      %v1387 = vpop.f32.mrf.mxu0
      %v1388 = vadd.f32 %v1299, %v1387
      %v1389 = vpop.f32.mrf.mxu0
      %v1390 = vadd.f32 %v1301, %v1389
      %1391 = vmatmul.bf16.gmra.mxu0 %v710
      %v1392 = vpop.f32.mrf.mxu0
      %v1393 = vadd.f32 %v1304, %v1392
      %v1394 = vpop.f32.mrf.mxu0
      %v1395 = vadd.f32 %v1306, %v1394
      %1396 = vmatmul.bf16.gmra.mxu0 %v715
      %v1397 = vpop.f32.mrf.mxu0
      %v1398 = vadd.f32 %v1309, %v1397
      %v1399 = vpop.f32.mrf.mxu0
      %v1400 = vadd.f32 %v1311, %v1399
      %1401 = vmatmul.bf16.gmra.mxu0 %v720
      %v1402 = vpop.f32.mrf.mxu0
      %v1403 = vadd.f32 %v1314, %v1402
      %v1404 = vpop.f32.mrf.mxu0
      %v1405 = vadd.f32 %v1316, %v1404
      %1406 = vdwg.mxu0
      %1407 = vmatpush.bf16.msra.mxu0 0
      %1408 = vmatpush.bf16.msra.mxu0 0
      %1409 = vmatpush.bf16.msra.mxu0 0
      %1410 = vmatpush.bf16.msra.mxu0 0
      %1411 = vmatpush.bf16.msra.mxu0 %v965
      %1412 = vmatpush.bf16.msra.mxu0 %v964
      %1413 = vmatpush.bf16.msra.mxu0 %v963
      %1414 = vmatpush.bf16.msra.mxu0 %v962
      %1415 = vmatmul.bf16.gmra.mxu0 %v1004
      %v1416 = vpop.f32.mrf.mxu0
      %v1417 = vadd.f32 %v1328, %v1416
      %v1418 = vpop.f32.mrf.mxu0
      %v1419 = vadd.f32 %v1330, %v1418
      %1420 = vmatmul.bf16.gmra.mxu0 %v1007
      %v1421 = vpop.f32.mrf.mxu0
      %v1422 = vadd.f32 %v1333, %v1421
      %v1423 = vpop.f32.mrf.mxu0
      %v1424 = vadd.f32 %v1335, %v1423
      %1425 = vmatmul.bf16.gmra.mxu0 %v1010
      %v1426 = vpop.f32.mrf.mxu0
      %v1427 = vadd.f32 %v1338, %v1426
      %v1428 = vpop.f32.mrf.mxu0
      %v1429 = vadd.f32 %v1340, %v1428
      %1430 = vmatmul.bf16.gmra.mxu0 %v1013
      %v1431 = vpop.f32.mrf.mxu0
      %v1432 = vadd.f32 %v1343, %v1431
      %v1433 = vpop.f32.mrf.mxu0
      %v1434 = vadd.f32 %v1345, %v1433
      %1435 = vmatmul.bf16.gmra.mxu0 %v1016
      %v1436 = vpop.f32.mrf.mxu0
      %v1437 = vadd.f32 %v1348, %v1436
      %v1438 = vpop.f32.mrf.mxu0
      %v1439 = vadd.f32 %v1350, %v1438
      %1440 = vmatmul.bf16.gmra.mxu0 %v1019
      %v1441 = vpop.f32.mrf.mxu0
      %v1442 = vadd.f32 %v1353, %v1441
      %v1443 = vpop.f32.mrf.mxu0
      %v1444 = vadd.f32 %v1355, %v1443
      %1445 = vmatmul.bf16.gmra.mxu0 %v1022
      %v1446 = vpop.f32.mrf.mxu0
      %v1447 = vadd.f32 %v1358, %v1446
      %v1448 = vpop.f32.mrf.mxu0
      %v1449 = vadd.f32 %v1360, %v1448
      %1450 = vmatmul.bf16.gmra.mxu0 %v1025
      %v1451 = vpop.f32.mrf.mxu0
      %v1452 = vadd.f32 %v1363, %v1451
      %v1453 = vpop.f32.mrf.mxu0
      %v1454 = vadd.f32 %v1365, %v1453
      %1455 = vmatmul.bf16.gmra.mxu0 %v1028
      %v1456 = vpop.f32.mrf.mxu0
      %v1457 = vadd.f32 %v1368, %v1456
      %v1458 = vpop.f32.mrf.mxu0
      %v1459 = vadd.f32 %v1370, %v1458
      %1460 = vmatmul.bf16.gmra.mxu0 %v1031
      %v1461 = vpop.f32.mrf.mxu0
      %v1462 = vadd.f32 %v1373, %v1461
      %v1463 = vpop.f32.mrf.mxu0
      %v1464 = vadd.f32 %v1375, %v1463
      %1465 = vmatmul.bf16.gmra.mxu0 %v1034
      %v1466 = vpop.f32.mrf.mxu0
      %v1467 = vadd.f32 %v1378, %v1466
      %v1468 = vpop.f32.mrf.mxu0
      %v1469 = vadd.f32 %v1380, %v1468
      %1470 = vmatmul.bf16.gmra.mxu0 %v1037
      %v1471 = vpop.f32.mrf.mxu0
      %v1472 = vadd.f32 %v1383, %v1471
      %v1473 = vpop.f32.mrf.mxu0
      %v1474 = vadd.f32 %v1385, %v1473
      %1475 = vmatmul.bf16.gmra.mxu0 %v1040
      %v1476 = vpop.f32.mrf.mxu0
      %v1477 = vadd.f32 %v1388, %v1476
      %v1478 = vpop.f32.mrf.mxu0
      %v1479 = vadd.f32 %v1390, %v1478
      %1480 = vmatmul.bf16.gmra.mxu0 %v1043
      %v1481 = vpop.f32.mrf.mxu0
      %v1482 = vadd.f32 %v1393, %v1481
      %v1483 = vpop.f32.mrf.mxu0
      %v1484 = vadd.f32 %v1395, %v1483
      %1485 = vmatmul.bf16.gmra.mxu0 %v1046
      %v1486 = vpop.f32.mrf.mxu0
      %v1487 = vadd.f32 %v1398, %v1486
      %v1488 = vpop.f32.mrf.mxu0
      %v1489 = vadd.f32 %v1400, %v1488
      %1490 = vmatmul.bf16.gmra.mxu0 %v1049
      %v1491 = vpop.f32.mrf.mxu0
      %v1492 = vadd.f32 %v1403, %v1491
      %v1493 = vpop.f32.mrf.mxu0
      %v1494 = vadd.f32 %v1405, %v1493
      %1495 = vdwg.mxu0
      %v1496 = vmax.f32 %v1417, 0.0
      %v1497 = vmax.f32 %v1419, 0.0
      %v1498 = vmax.f32 %v1422, 0.0
      %v1499 = vmax.f32 %v1424, 0.0
      %v1500 = vmax.f32 %v1427, 0.0
      %v1501 = vmax.f32 %v1429, 0.0
      %v1502 = vmax.f32 %v1432, 0.0
      %v1503 = vmax.f32 %v1434, 0.0
      %v1504 = vmax.f32 %v1437, 0.0
      %v1505 = vmax.f32 %v1439, 0.0
      %v1506 = vmax.f32 %v1442, 0.0
      %v1507 = vmax.f32 %v1444, 0.0
      %v1508 = vmax.f32 %v1447, 0.0
      %v1509 = vmax.f32 %v1449, 0.0
      %v1510 = vmax.f32 %v1452, 0.0
      %v1511 = vmax.f32 %v1454, 0.0
      %v1512 = vmax.f32 %v1457, 0.0
      %v1513 = vmax.f32 %v1459, 0.0
      %v1514 = vmax.f32 %v1462, 0.0
      %v1515 = vmax.f32 %v1464, 0.0
      %v1516 = vmax.f32 %v1467, 0.0
      %v1517 = vmax.f32 %v1469, 0.0
      %v1518 = vmax.f32 %v1472, 0.0
      %v1519 = vmax.f32 %v1474, 0.0
      %v1520 = vmax.f32 %v1477, 0.0
      %v1521 = vmax.f32 %v1479, 0.0
      %v1522 = vmax.f32 %v1482, 0.0
      %v1523 = vmax.f32 %v1484, 0.0
      %v1524 = vmax.f32 %v1487, 0.0
      %v1525 = vmax.f32 %v1489, 0.0
      %v1526 = vmax.f32 %v1492, 0.0
      %v1527 = vmax.f32 %v1494, 0.0
      %v1528 = vmax.f32 %v1496, %v1497
      %v1529 = vmax.f32 %v1500, %v1501
      %v1530 = vmax.f32 %v1504, %v1505
      %v1531 = vmax.f32 %v1508, %v1509
      %v1532 = vmax.f32 %v1512, %v1513
      %v1533 = vmax.f32 %v1516, %v1517
      %v1534 = vmax.f32 %v1520, %v1521
      %v1535 = vmax.f32 %v1524, %v1525
      %v1536 = vmax.f32 %v1498, %v1499
      %v1537 = vmax.f32 %v1502, %v1503
      %v1538 = vmax.f32 %v1506, %v1507
      %v1539 = vmax.f32 %v1510, %v1511
      %v1540 = vmax.f32 %v1514, %v1515
      %v1541 = vmax.f32 %v1518, %v1519
      %v1542 = vmax.f32 %v1522, %v1523
      %v1543 = vmax.f32 %v1526, %v1527
      %v1544 = vmax.f32 %v1528, %v1536
      %v1545 = vmax.f32 %v1529, %v1537
      %v1546 = vmax.f32 %v1530, %v1538
      %v1547 = vmax.f32 %v1531, %v1539
      %v1548 = vmax.f32 %v1532, %v1540
      %v1549 = vmax.f32 %v1533, %v1541
      %v1550 = vmax.f32 %v1534, %v1542
      %v1551 = vmax.f32 %v1535, %v1543
      %v1552 = vpack.c.bf16 %v1544, %v1544
      %v1553 = vpack.c.bf16 %v1545, %v1545
      %v1554 = vpack.c.bf16 %v1546, %v1546
      %v1555 = vpack.c.bf16 %v1547, %v1547
      %v1556 = vpack.c.bf16 %v1548, %v1548
      %v1557 = vpack.c.bf16 %v1549, %v1549
      %v1558 = vpack.c.bf16 %v1550, %v1550
      %v1559 = vpack.c.bf16 %v1551, %v1551
      %1560 = vst [vmem:[%s211] sm:$0xf] %v1552
      %1561 = vst [vmem:[%s211 + $0x4] sm:$0xf] %v1553
      %1562 = vst [vmem:[%s211 + $0x8] sm:$0xf] %v1554
      %1563 = vst [vmem:[%s211 + $0xc] sm:$0xf] %v1555
      %1564 = vst [vmem:[%s211 + $0x10] sm:$0xf] %v1556
      %1565 = vst [vmem:[%s211 + $0x14] sm:$0xf] %v1557
      %1566 = vst [vmem:[%s211 + $0x18] sm:$0xf] %v1558
      %1567 = vst [vmem:[%s211 + $0x1c] sm:$0xf] %v1559
      %s1568 = smul.u32 8, %s19
      %p1569 = scmp.lt.s32.totalorder %s18, 1
      %s1570 = scalar_select %p1569, %s18, 1
      %p1571 = scmp.lt.s32.totalorder %s1568, 7
      %s1572 = scalar_select %p1571, %s1568, 7
      %s1573 = smul.addr %s1570, 8
      %s1574 = sadd.s32 %s1572, %s1573
      %s1575 = smul.addr %s1574, 4
      %s1576 = scalar_lea.vmem %s3, %s1575
      // Predicated region
      $region33: #{net_forward.6} parent=31 // pred_check
        %p1577 = pneg %p116
      $region34: #{net_forward.6} parent=31 // pred_check_branch
        %1579 = sbr.rel (%p1577) target = $region36
      $region35: #{net_forward.6} parent=31 // pred_region
        %s1580 = smul.u32 8, %s19
      $region36: #{net_forward.6} parent=31 // pred_fallthru
        _
    $region32: #{net_forward.6} parent=5 // pred_fallthru
      _
    %p1581 = scmp.le.s32.totalorder 2, %s9
    // Predicated region
    $region37: #{net_forward.6} parent=5 // pred_check
      %p1582 = pneg %p1581
    $region38: #{net_forward.6} parent=5 // pred_check_branch
      %1584 = sbr.rel (%p1582) target = $region40
    $region39: #{net_forward.6} parent=5 // pred_region
      %s1585 = ssub.s32 %s9, 2
      // Predicated region
      $region41: #{net_forward.6} parent=39 // pred_check
        %p1586 = pneg %p122
      $region42: #{net_forward.6} parent=39 // pred_check_branch
        %1588 = sbr.rel (%p1586) target = $region44
      $region43: #{net_forward.6} parent=39 // pred_region
        %s1589 = smul.u32 8, %s21
        %p1590 = scmp.lt.s32.totalorder %s20, 1
        %s1591 = scalar_select %p1590, %s20, 1
        %p1592 = scmp.lt.s32.totalorder %s1589, 7
        %s1593 = scalar_select %p1592, %s1589, 7
        %s1594 = smul.addr %s1591, 8
        %s1595 = sadd.s32 %s1593, %s1594
        %s1596 = smul.addr %s1595, 4
        %s1597 = scalar_lea.vmem %s3, %s1596
      $region44: #{net_forward.6} parent=39 // pred_fallthru
        _
    $region40: #{net_forward.6} parent=5 // pred_fallthru
      _
  $region6: #{net_forward.6} parent=0 // loop_footer
    %s13 = sadd.s32 1, %s9
  $region7: #{net_forward.6} parent=0 // loop_footer_branch
    %8 = sbr.rel target = $region3
  $region8: #{net_forward.6} parent=0 // loop_exit
    _

// kernel: net_forward.7
$region0: #{net_forward.7}
  #allocation0 [shape = 'u32[]', space=smem, size = 0x4, offset = 0x4, fixed_abs, tag = 'smem constant byte address 0x4 - core index']
  #allocation1 [shape = 'u32[72,128]{1,0:T(1,128)}', space=vmem, size = 0x9000, scoped, tag = 'internal scratch']
  #allocation2 [shape = 'f32[2,512]{1,0:T(2,128)}', space=vmem, size = 0x1000, scoped, tag = 'scratch operand']
  %s0 = inlined_call_operand.vmem [shape: bf16[2,8192], index: 0, kind: input, shape index: {}]
  %s1 = inlined_call_operand.vmem [shape: bf16[8192,512], index: 1, kind: input, shape index: {}]
  %s2 = inlined_call_operand.vmem [shape: f32[1,512], index: 2, kind: input, shape index: {}]
  %s3 = inlined_call_operand.vmem [shape: bf16[512,2], index: 3, kind: input, shape index: {}]
  %s4 = inlined_call_operand.vmem [shape: f32[1,2,2], index: 4, kind: output, shape index: {}]
  %s5 = sld [smem:[#allocation0]]
  $region57: #{net_forward.7} parent=0
    _
  %s7 = ssub.s32 1, %s5
  %s8 = scalar_select 0, %s7, %s5
  loop: start=0, step=1, limit=6
  $region2: #{net_forward.7} parent=0 // loop_pre_header
    _
  $region3: #{net_forward.7} parent=0 // loop_header
    %s10 = sphi 0, %s14
    %p11 = scmp.ge.s32.totalorder %s10, 6
    %s17 = sphi 0, %s29
    %s18 = sphi 0, %s25
    %s19 = sphi 0, %s17
    %s20 = sphi 0, %s18
    %s21 = sphi 0, %s19
    %s22 = sphi 0, %s20
    %s32 = sphi 0, %s34
    %s35 = sphi 0, %s32
    %s36 = sphi 0, %s35
    %s52 = sphi 0, %s36
    %s60 = sphi 0, %s62
    %s63 = sphi 0, %s60
    %s64 = sphi 0, %s63
    %s80 = sphi 0, %s64
    %s86 = sphi 0, %s88
    %s89 = sphi 0, %s86
    %s90 = sphi 0, %s89
    %s106 = sphi 0, %s90
    %s112 = sphi 0, %s114
    %s115 = sphi 0, %s112
    %s116 = sphi 0, %s115
    %s132 = sphi 0, %s116
    %s138 = sphi 0, %s140
    %s141 = sphi 0, %s138
    %s142 = sphi 0, %s141
    %s158 = sphi 0, %s142
  $region4: #{net_forward.7} parent=0 // loop_header_branch
    %13 = sbr.rel (%p11) target = $region8
  $region5: #{net_forward.7} parent=0 // loop_body
    %s15 = ssub.s32 %s10, 1
    %s16 = ssub.s32 %s10, 2
    %s23 = sadd.s32 1, %s18
    %p24 = scmp.ge.s32.totalorder %s23, 4
    %s25 = scalar_select %p24, 0, %s23
    %s26 = sadd.s32 1, %s17
    %s27 = scalar_select %p24, %s26, %s17
    %p28 = scmp.ge.s32.totalorder %s27, 1
    %s29 = scalar_select %p28, 0, %s27
    %s30 = ssub.s32 %s18, %s25
    %p31 = scmp.eq.s32.totalorder %s30, 0
    %s33 = sadd.s32 %s32, 1
    %s34 = scalar_select %p31, %s32, %s33
    %p37 = pneg %p31
    %p38 = scmp.eq.s32.totalorder %s10, 3
    %p39 = por %p37, %p38
    %p40 = scmp.ne.s32.totalorder %s32, %s35
    %p41 = scmp.eq.s32.totalorder %s10, 0
    %p42 = por %p40, %p41
    %p43 = scmp.ne.s32.totalorder %s32, %s35
    %p44 = scmp.eq.s32.totalorder %s15, 3
    %p45 = por %p43, %p44
    %p46 = scmp.ne.s32.totalorder %s35, %s36
    %p47 = scmp.eq.s32.totalorder %s15, 0
    %p48 = por %p46, %p47
    %p49 = scmp.ne.s32.totalorder %s35, %s36
    %p50 = scmp.eq.s32.totalorder %s16, 3
    %p51 = por %p49, %p50
    %p53 = scmp.ne.s32.totalorder %s36, %s52
    %p54 = scmp.eq.s32.totalorder %s16, 0
    %p55 = por %p53, %p54
    %s56 = ssub.s32 %s18, %s25
    %s57 = ssub.s32 %s17, %s29
    %s58 = sor.u32 %s56, %s57
    %p59 = scmp.eq.s32.totalorder %s58, 0
    %s61 = sadd.s32 %s60, 1
    %s62 = scalar_select %p59, %s60, %s61
    %p65 = pneg %p59
    %p66 = scmp.eq.s32.totalorder %s10, 3
    %p67 = por %p65, %p66
    %p68 = scmp.ne.s32.totalorder %s60, %s63
    %p69 = scmp.eq.s32.totalorder %s10, 0
    %p70 = por %p68, %p69
    %p71 = scmp.ne.s32.totalorder %s60, %s63
    %p72 = scmp.eq.s32.totalorder %s15, 3
    %p73 = por %p71, %p72
    %p74 = scmp.ne.s32.totalorder %s63, %s64
    %p75 = scmp.eq.s32.totalorder %s15, 0
    %p76 = por %p74, %p75
    %p77 = scmp.ne.s32.totalorder %s63, %s64
    %p78 = scmp.eq.s32.totalorder %s16, 3
    %p79 = por %p77, %p78
    %p81 = scmp.ne.s32.totalorder %s64, %s80
    %p82 = scmp.eq.s32.totalorder %s16, 0
    %p83 = por %p81, %p82
    %s84 = ssub.s32 %s17, %s29
    %p85 = scmp.eq.s32.totalorder %s84, 0
    %s87 = sadd.s32 %s86, 1
    %s88 = scalar_select %p85, %s86, %s87
    %p91 = pneg %p85
    %p92 = scmp.eq.s32.totalorder %s10, 3
    %p93 = por %p91, %p92
    %p94 = scmp.ne.s32.totalorder %s86, %s89
    %p95 = scmp.eq.s32.totalorder %s10, 0
    %p96 = por %p94, %p95
    %p97 = scmp.ne.s32.totalorder %s86, %s89
    %p98 = scmp.eq.s32.totalorder %s15, 3
    %p99 = por %p97, %p98
    %p100 = scmp.ne.s32.totalorder %s89, %s90
    %p101 = scmp.eq.s32.totalorder %s15, 0
    %p102 = por %p100, %p101
    %p103 = scmp.ne.s32.totalorder %s89, %s90
    %p104 = scmp.eq.s32.totalorder %s16, 3
    %p105 = por %p103, %p104
    %p107 = scmp.ne.s32.totalorder %s90, %s106
    %p108 = scmp.eq.s32.totalorder %s16, 0
    %p109 = por %p107, %p108
    %s110 = ssub.s32 %s17, %s29
    %p111 = scmp.eq.s32.totalorder %s110, 0
    %s113 = sadd.s32 %s112, 1
    %s114 = scalar_select %p111, %s112, %s113
    %p117 = pneg %p111
    %p118 = scmp.eq.s32.totalorder %s10, 3
    %p119 = por %p117, %p118
    %p120 = scmp.ne.s32.totalorder %s112, %s115
    %p121 = scmp.eq.s32.totalorder %s10, 0
    %p122 = por %p120, %p121
    %p123 = scmp.ne.s32.totalorder %s112, %s115
    %p124 = scmp.eq.s32.totalorder %s15, 3
    %p125 = por %p123, %p124
    %p126 = scmp.ne.s32.totalorder %s115, %s116
    %p127 = scmp.eq.s32.totalorder %s15, 0
    %p128 = por %p126, %p127
    %p129 = scmp.ne.s32.totalorder %s115, %s116
    %p130 = scmp.eq.s32.totalorder %s16, 3
    %p131 = por %p129, %p130
    %p133 = scmp.ne.s32.totalorder %s116, %s132
    %p134 = scmp.eq.s32.totalorder %s16, 0
    %p135 = por %p133, %p134
    %s136 = ssub.s32 %s17, %s29
    %p137 = scmp.eq.s32.totalorder %s136, 0
    %s139 = sadd.s32 %s138, 1
    %s140 = scalar_select %p137, %s138, %s139
    %p143 = pneg %p137
    %p144 = scmp.eq.s32.totalorder %s10, 3
    %p145 = por %p143, %p144
    %p146 = scmp.ne.s32.totalorder %s138, %s141
    %p147 = scmp.eq.s32.totalorder %s10, 0
    %p148 = por %p146, %p147
    %p149 = scmp.ne.s32.totalorder %s138, %s141
    %p150 = scmp.eq.s32.totalorder %s15, 3
    %p151 = por %p149, %p150
    %p152 = scmp.ne.s32.totalorder %s141, %s142
    %p153 = scmp.eq.s32.totalorder %s15, 0
    %p154 = por %p152, %p153
    %p155 = scmp.ne.s32.totalorder %s141, %s142
    %p156 = scmp.eq.s32.totalorder %s16, 3
    %p157 = por %p155, %p156
    %p159 = scmp.ne.s32.totalorder %s142, %s158
    %p160 = scmp.eq.s32.totalorder %s16, 0
    %p161 = por %p159, %p160
    %p162 = scmp.le.s32.totalorder 1, %s10
    %p163 = scmp.lt.s32.totalorder %s10, 5
    %p164 = pnand %p162, %p163
    %p165 = pneg %p164
    // Predicated region
    $region9: #{net_forward.7} parent=5 // pred_check
      _
    $region10: #{net_forward.7} parent=5 // pred_check_branch
      %167 = sbr.rel (%p164) target = $region12
    $region11: #{net_forward.7} parent=5 // pred_region
      %s168 = ssub.s32 %s10, 1
      // Predicated region
      $region13: #{net_forward.7} parent=11 // pred_check
        %p169 = pneg %p102
      $region14: #{net_forward.7} parent=11 // pred_check_branch
        %171 = sbr.rel (%p169) target = $region16
      $region15: #{net_forward.7} parent=11 // pred_region
        %s172 = smul.u32 4, %s19
        %p173 = scmp.lt.s32.totalorder %s172, 3
        %s174 = scalar_select %p173, %s172, 3
        %s175 = scalar_lea.vmem %s2, %s174
        %s176 = smul.u32 4, %s19
      $region16: #{net_forward.7} parent=11 // pred_fallthru
        _
      // Predicated region
      $region17: #{net_forward.7} parent=11 // pred_check
        %p177 = pneg %p128
      $region18: #{net_forward.7} parent=11 // pred_check_branch
        %179 = sbr.rel (%p177) target = $region20
      $region19: #{net_forward.7} parent=11 // pred_region
        %s180 = smul.u32 64, %s19
        %p181 = scmp.lt.s32.totalorder %s180, 63
        %s182 = scalar_select %p181, %s180, 63
        %s183 = smul.addr %s182, 4
        %s184 = scalar_lea.vmem %s3, %s183
        %s185 = smul.u32 64, %s19
      $region20: #{net_forward.7} parent=11 // pred_fallthru
        _
    $region12: #{net_forward.7} parent=5 // pred_fallthru
      _
    %p186 = scmp.lt.s32.totalorder %s10, 4
    // Predicated region
    $region21: #{net_forward.7} parent=5 // pred_check
      %p187 = pneg %p186
    $region22: #{net_forward.7} parent=5 // pred_check_branch
      %189 = sbr.rel (%p187) target = $region24
    $region23: #{net_forward.7} parent=5 // pred_region
      // Predicated region
      $region25: #{net_forward.7} parent=23 // pred_check
        %p190 = pneg %p42
      $region26: #{net_forward.7} parent=23 // pred_check_branch
        %192 = sbr.rel (%p190) target = $region28
      $region27: #{net_forward.7} parent=23 // pred_region
        %s193 = smul.u32 16, %s18
        %p194 = scmp.lt.s32.totalorder %s193, 63
        %s195 = scalar_select %p194, %s193, 63
        %s196 = scalar_lea.vmem %s0, %s195
        %s197 = smul.u32 16, %s18
      $region28: #{net_forward.7} parent=23 // pred_fallthru
        _
      // Predicated region
      $region29: #{net_forward.7} parent=23 // pred_check
        %p198 = pneg %p70
      $region30: #{net_forward.7} parent=23 // pred_check_branch
        %200 = sbr.rel (%p198) target = $region32
      $region31: #{net_forward.7} parent=23 // pred_region
        %s201 = smul.u32 256, %s18
        %s202 = smul.u32 4, %s17
        %p203 = scmp.lt.s32.totalorder %s201, 1023
        %s204 = scalar_select %p203, %s201, 1023
        %p205 = scmp.lt.s32.totalorder %s202, 3
        %s206 = scalar_select %p205, %s202, 3
        %s207 = smul.addr %s204, 4
        %s208 = sadd.s32 %s206, %s207
        %s209 = smul.addr %s208, 4
        %s210 = scalar_lea.vmem %s1, %s209
        %s211 = smul.u32 256, %s18
        %s212 = smul.u32 4, %s17
      $region32: #{net_forward.7} parent=23 // pred_fallthru
        _
    $region24: #{net_forward.7} parent=5 // pred_fallthru
      _
    %p213 = scmp.le.s32.totalorder 1, %s10
    %p214 = scmp.lt.s32.totalorder %s10, 5
    %p215 = pnand %p213, %p214
    %p216 = pneg %p215
    // Predicated region
    $region33: #{net_forward.7} parent=5 // pred_check
      _
    $region34: #{net_forward.7} parent=5 // pred_check_branch
      %218 = sbr.rel (%p215) target = $region36
    $region35: #{net_forward.7} parent=5 // pred_region
      %s219 = ssub.s32 %s10, 1
      %s220 = smul.u32 16, %s20
      %p221 = scmp.lt.s32.totalorder %s220, 63
      %s222 = scalar_select %p221, %s220, 63
      %s223 = scalar_lea.vmem %s0, %s222
      %p224 = pneg %p48
      %p225 = pneg %p45
      %s226 = smul.u32 256, %s20
      %s227 = smul.u32 4, %s19
      %p228 = scmp.lt.s32.totalorder %s226, 1023
      %s229 = scalar_select %p228, %s226, 1023
      %p230 = scmp.lt.s32.totalorder %s227, 3
      %s231 = scalar_select %p230, %s227, 3
      %s232 = smul.addr %s229, 4
      %s233 = sadd.s32 %s231, %s232
      %s234 = smul.addr %s233, 4
      %s235 = scalar_lea.vmem %s1, %s234
      %p236 = pneg %p76
      %p237 = pneg %p73
      %s238 = smul.u32 4, %s19
      %p239 = scmp.lt.s32.totalorder %s238, 3
      %s240 = scalar_select %p239, %s238, 3
      %s241 = scalar_lea.vmem %s2, %s240
      %p242 = pneg %p102
      %p243 = pneg %p99
      %s244 = smul.u32 64, %s19
      %p245 = scmp.lt.s32.totalorder %s244, 63
      %s246 = scalar_select %p245, %s244, 63
      %s247 = smul.addr %s246, 4
      %s248 = scalar_lea.vmem %s3, %s247
      %p249 = pneg %p128
      %p250 = pneg %p125
      %p251 = pneg %p154
      %p252 = pneg %p151
      %p253 = scmp.lt.s32.totalorder %s19, 0
      %s254 = scalar_select %p253, %s19, 0
      %s255 = smul.addr %s254, 2
      %s256 = scalar_lea.vmem %s4, %s255
      %s257 = smul.u32 16, %s20
      %p258 = scmp.lt.s32.totalorder %s257, 63
      %s259 = scalar_select %p258, %s257, 63
      %s260 = scalar_lea.vmem %s0, %s259
      %s261 = smul.u32 16, %s20
      %s262 = smul.u32 256, %s20
      %s263 = smul.u32 4, %s19
      %p264 = scmp.lt.s32.totalorder %s262, 1023
      %s265 = scalar_select %p264, %s262, 1023
      %p266 = scmp.lt.s32.totalorder %s263, 3
      %s267 = scalar_select %p266, %s263, 3
      %s268 = smul.addr %s265, 4
      %s269 = sadd.s32 %s267, %s268
      %s270 = smul.addr %s269, 4
      %s271 = scalar_lea.vmem %s1, %s270
      %s272 = smul.u32 256, %s20
      %s273 = smul.u32 4, %s19
      %s274 = smul.u32 4, %s19
      %p275 = scmp.lt.s32.totalorder %s274, 3
      %s276 = scalar_select %p275, %s274, 3
      %s277 = scalar_lea.vmem %s2, %s276
      %s278 = smul.u32 4, %s19
      %s279 = smul.u32 64, %s19
      %p280 = scmp.lt.s32.totalorder %s279, 63
      %s281 = scalar_select %p280, %s279, 63
      %s282 = smul.addr %s281, 4
      %s283 = scalar_lea.vmem %s3, %s282
      %s284 = smul.u32 64, %s19
      %p285 = scmp.lt.s32.totalorder %s19, 0
      %s286 = scalar_select %p285, %s19, 0
      %s287 = smul.addr %s286, 2
      %s288 = scalar_lea.vmem %s4, %s287
      %p289 = scmp.eq.s32.totalorder %s20, 0
      // Predicated region
      $region37: #{net_forward.7} parent=35 // pred_check
        %p290 = pneg %p289
      $region38: #{net_forward.7} parent=35 // pred_check_branch
        %292 = sbr.rel (%p290) target = $region40
      $region39: #{net_forward.7} parent=35 // pred_region
        %293 = vst [vmem:[#allocation2] sm:$0xff] 0.0
      $region40: #{net_forward.7} parent=35 // pred_fallthru
        _
      %v294 = vld [vmem:[#allocation2] sm:$0xff]
      %v295 = vld [vmem:[%s260] sm:$0xff]
      %v296 = vld [vmem:[%s260 + $0x8] sm:$0xff]
      %v297 = vld [vmem:[%s271] sm:$0xff]
      %v298 = vld [vmem:[%s271 + $0x8] sm:$0xff]
      %v299 = vld [vmem:[%s271 + $0x10] sm:$0xff]
      %v300 = vld [vmem:[%s271 + $0x18] sm:$0xff]
      %v301 = vld [vmem:[%s271 + $0x20] sm:$0xff]
      %v302 = vld [vmem:[%s271 + $0x28] sm:$0xff]
      %v303 = vld [vmem:[%s271 + $0x30] sm:$0xff]
      %v304 = vld [vmem:[%s271 + $0x38] sm:$0xff]
      %v305 = vld [vmem:[%s271 + $0x40] sm:$0xff]
      %v306 = vld [vmem:[%s271 + $0x48] sm:$0xff]
      %v307 = vld [vmem:[%s271 + $0x50] sm:$0xff]
      %v308 = vld [vmem:[%s271 + $0x58] sm:$0xff]
      %v309 = vld [vmem:[%s271 + $0x60] sm:$0xff]
      %v310 = vld [vmem:[%s271 + $0x68] sm:$0xff]
      %v311 = vld [vmem:[%s271 + $0x70] sm:$0xff]
      %v312 = vld [vmem:[%s271 + $0x78] sm:$0xff]
      %v313 = vld [vmem:[%s271 + $0x80] sm:$0xff]
      %v314 = vld [vmem:[%s271 + $0x88] sm:$0xff]
      %v315 = vld [vmem:[%s271 + $0x90] sm:$0xff]
      %v316 = vld [vmem:[%s271 + $0x98] sm:$0xff]
      %v317 = vld [vmem:[%s271 + $0xa0] sm:$0xff]
      %v318 = vld [vmem:[%s271 + $0xa8] sm:$0xff]
      %v319 = vld [vmem:[%s271 + $0xb0] sm:$0xff]
      %v320 = vld [vmem:[%s271 + $0xb8] sm:$0xff]
      %v321 = vld [vmem:[%s271 + $0xc0] sm:$0xff]
      %v322 = vld [vmem:[%s271 + $0xc8] sm:$0xff]
      %v323 = vld [vmem:[%s271 + $0xd0] sm:$0xff]
      %v324 = vld [vmem:[%s271 + $0xd8] sm:$0xff]
      %v325 = vld [vmem:[%s271 + $0xe0] sm:$0xff]
      %v326 = vld [vmem:[%s271 + $0xe8] sm:$0xff]
      %v327 = vld [vmem:[%s271 + $0xf0] sm:$0xff]
      %v328 = vld [vmem:[%s271 + $0xf8] sm:$0xff]
      %v329 = vld [vmem:[%s271 + $0x100] sm:$0xff]
      %v330 = vld [vmem:[%s271 + $0x108] sm:$0xff]
      %v331 = vld [vmem:[%s271 + $0x110] sm:$0xff]
      %v332 = vld [vmem:[%s271 + $0x118] sm:$0xff]
      %v333 = vld [vmem:[%s271 + $0x120] sm:$0xff]
      %v334 = vld [vmem:[%s271 + $0x128] sm:$0xff]
      %v335 = vld [vmem:[%s271 + $0x130] sm:$0xff]
      %v336 = vld [vmem:[%s271 + $0x138] sm:$0xff]
      %v337 = vld [vmem:[%s271 + $0x140] sm:$0xff]
      %v338 = vld [vmem:[%s271 + $0x148] sm:$0xff]
      %v339 = vld [vmem:[%s271 + $0x150] sm:$0xff]
      %v340 = vld [vmem:[%s271 + $0x158] sm:$0xff]
      %v341 = vld [vmem:[%s271 + $0x160] sm:$0xff]
      %v342 = vld [vmem:[%s271 + $0x168] sm:$0xff]
      %v343 = vld [vmem:[%s271 + $0x170] sm:$0xff]
      %v344 = vld [vmem:[%s271 + $0x178] sm:$0xff]
      %v345 = vld [vmem:[%s271 + $0x180] sm:$0xff]
      %v346 = vld [vmem:[%s271 + $0x188] sm:$0xff]
      %v347 = vld [vmem:[%s271 + $0x190] sm:$0xff]
      %v348 = vld [vmem:[%s271 + $0x198] sm:$0xff]
      %v349 = vld [vmem:[%s271 + $0x1a0] sm:$0xff]
      %v350 = vld [vmem:[%s271 + $0x1a8] sm:$0xff]
      %v351 = vld [vmem:[%s271 + $0x1b0] sm:$0xff]
      %v352 = vld [vmem:[%s271 + $0x1b8] sm:$0xff]
      %v353 = vld [vmem:[%s271 + $0x1c0] sm:$0xff]
      %v354 = vld [vmem:[%s271 + $0x1c8] sm:$0xff]
      %v355 = vld [vmem:[%s271 + $0x1d0] sm:$0xff]
      %v356 = vld [vmem:[%s271 + $0x1d8] sm:$0xff]
      %v357 = vld [vmem:[%s271 + $0x1e0] sm:$0xff]
      %v358 = vld [vmem:[%s271 + $0x1e8] sm:$0xff]
      %v359 = vld [vmem:[%s271 + $0x1f0] sm:$0xff]
      %v360 = vld [vmem:[%s271 + $0x1f8] sm:$0xff]
      %v361 = vld [vmem:[%s271 + $0x200] sm:$0xff]
      %v362 = vld [vmem:[%s271 + $0x208] sm:$0xff]
      %v363 = vld [vmem:[%s271 + $0x210] sm:$0xff]
      %v364 = vld [vmem:[%s271 + $0x218] sm:$0xff]
      %v365 = vld [vmem:[%s271 + $0x220] sm:$0xff]
      %v366 = vld [vmem:[%s271 + $0x228] sm:$0xff]
      %v367 = vld [vmem:[%s271 + $0x230] sm:$0xff]
      %v368 = vld [vmem:[%s271 + $0x238] sm:$0xff]
      %v369 = vld [vmem:[%s271 + $0x240] sm:$0xff]
      %v370 = vld [vmem:[%s271 + $0x248] sm:$0xff]
      %v371 = vld [vmem:[%s271 + $0x250] sm:$0xff]
      %v372 = vld [vmem:[%s271 + $0x258] sm:$0xff]
      %v373 = vld [vmem:[%s271 + $0x260] sm:$0xff]
      %v374 = vld [vmem:[%s271 + $0x268] sm:$0xff]
      %v375 = vld [vmem:[%s271 + $0x270] sm:$0xff]
      %v376 = vld [vmem:[%s271 + $0x278] sm:$0xff]
      %v377 = vld [vmem:[%s271 + $0x280] sm:$0xff]
      %v378 = vld [vmem:[%s271 + $0x288] sm:$0xff]
      %v379 = vld [vmem:[%s271 + $0x290] sm:$0xff]
      %v380 = vld [vmem:[%s271 + $0x298] sm:$0xff]
      %v381 = vld [vmem:[%s271 + $0x2a0] sm:$0xff]
      %v382 = vld [vmem:[%s271 + $0x2a8] sm:$0xff]
      %v383 = vld [vmem:[%s271 + $0x2b0] sm:$0xff]
      %v384 = vld [vmem:[%s271 + $0x2b8] sm:$0xff]
      %v385 = vld [vmem:[%s271 + $0x2c0] sm:$0xff]
      %v386 = vld [vmem:[%s271 + $0x2c8] sm:$0xff]
      %v387 = vld [vmem:[%s271 + $0x2d0] sm:$0xff]
      %v388 = vld [vmem:[%s271 + $0x2d8] sm:$0xff]
      %v389 = vld [vmem:[%s271 + $0x2e0] sm:$0xff]
      %v390 = vld [vmem:[%s271 + $0x2e8] sm:$0xff]
      %v391 = vld [vmem:[%s271 + $0x2f0] sm:$0xff]
      %v392 = vld [vmem:[%s271 + $0x2f8] sm:$0xff]
      %v393 = vld [vmem:[%s271 + $0x300] sm:$0xff]
      %v394 = vld [vmem:[%s271 + $0x308] sm:$0xff]
      %v395 = vld [vmem:[%s271 + $0x310] sm:$0xff]
      %v396 = vld [vmem:[%s271 + $0x318] sm:$0xff]
      %v397 = vld [vmem:[%s271 + $0x320] sm:$0xff]
      %v398 = vld [vmem:[%s271 + $0x328] sm:$0xff]
      %v399 = vld [vmem:[%s271 + $0x330] sm:$0xff]
      %v400 = vld [vmem:[%s271 + $0x338] sm:$0xff]
      %v401 = vld [vmem:[%s271 + $0x340] sm:$0xff]
      %v402 = vld [vmem:[%s271 + $0x348] sm:$0xff]
      %v403 = vld [vmem:[%s271 + $0x350] sm:$0xff]
      %v404 = vld [vmem:[%s271 + $0x358] sm:$0xff]
      %v405 = vld [vmem:[%s271 + $0x360] sm:$0xff]
      %v406 = vld [vmem:[%s271 + $0x368] sm:$0xff]
      %v407 = vld [vmem:[%s271 + $0x370] sm:$0xff]
      %v408 = vld [vmem:[%s271 + $0x378] sm:$0xff]
      %v409 = vld [vmem:[%s271 + $0x380] sm:$0xff]
      %v410 = vld [vmem:[%s271 + $0x388] sm:$0xff]
      %v411 = vld [vmem:[%s271 + $0x390] sm:$0xff]
      %v412 = vld [vmem:[%s271 + $0x398] sm:$0xff]
      %v413 = vld [vmem:[%s271 + $0x3a0] sm:$0xff]
      %v414 = vld [vmem:[%s271 + $0x3a8] sm:$0xff]
      %v415 = vld [vmem:[%s271 + $0x3b0] sm:$0xff]
      %v416 = vld [vmem:[%s271 + $0x3b8] sm:$0xff]
      %v417 = vld [vmem:[%s271 + $0x3c0] sm:$0xff]
      %v418 = vld [vmem:[%s271 + $0x3c8] sm:$0xff]
      %v419 = vld [vmem:[%s271 + $0x3d0] sm:$0xff]
      %v420 = vld [vmem:[%s271 + $0x3d8] sm:$0xff]
      %v421 = vld [vmem:[%s271 + $0x3e0] sm:$0xff]
      %v422 = vld [vmem:[%s271 + $0x3e8] sm:$0xff]
      %v423 = vld [vmem:[%s271 + $0x3f0] sm:$0xff]
      %v424 = vld [vmem:[%s271 + $0x3f8] sm:$0xff]
      %v425 = vld [vmem:[%s271 + $0x400] sm:$0xff]
      %v426 = vld [vmem:[%s271 + $0x408] sm:$0xff]
      %v427 = vld [vmem:[%s271 + $0x410] sm:$0xff]
      %v428 = vld [vmem:[%s271 + $0x418] sm:$0xff]
      %v429 = vld [vmem:[%s271 + $0x420] sm:$0xff]
      %v430 = vld [vmem:[%s271 + $0x428] sm:$0xff]
      %v431 = vld [vmem:[%s271 + $0x430] sm:$0xff]
      %v432 = vld [vmem:[%s271 + $0x438] sm:$0xff]
      %v433 = vld [vmem:[%s271 + $0x440] sm:$0xff]
      %v434 = vld [vmem:[%s271 + $0x448] sm:$0xff]
      %v435 = vld [vmem:[%s271 + $0x450] sm:$0xff]
      %v436 = vld [vmem:[%s271 + $0x458] sm:$0xff]
      %v437 = vld [vmem:[%s271 + $0x460] sm:$0xff]
      %v438 = vld [vmem:[%s271 + $0x468] sm:$0xff]
      %v439 = vld [vmem:[%s271 + $0x470] sm:$0xff]
      %v440 = vld [vmem:[%s271 + $0x478] sm:$0xff]
      %v441 = vld [vmem:[%s271 + $0x480] sm:$0xff]
      %v442 = vld [vmem:[%s271 + $0x488] sm:$0xff]
      %v443 = vld [vmem:[%s271 + $0x490] sm:$0xff]
      %v444 = vld [vmem:[%s271 + $0x498] sm:$0xff]
      %v445 = vld [vmem:[%s271 + $0x4a0] sm:$0xff]
      %v446 = vld [vmem:[%s271 + $0x4a8] sm:$0xff]
      %v447 = vld [vmem:[%s271 + $0x4b0] sm:$0xff]
      %v448 = vld [vmem:[%s271 + $0x4b8] sm:$0xff]
      %v449 = vld [vmem:[%s271 + $0x4c0] sm:$0xff]
      %v450 = vld [vmem:[%s271 + $0x4c8] sm:$0xff]
      %v451 = vld [vmem:[%s271 + $0x4d0] sm:$0xff]
      %v452 = vld [vmem:[%s271 + $0x4d8] sm:$0xff]
      %v453 = vld [vmem:[%s271 + $0x4e0] sm:$0xff]
      %v454 = vld [vmem:[%s271 + $0x4e8] sm:$0xff]
      %v455 = vld [vmem:[%s271 + $0x4f0] sm:$0xff]
      %v456 = vld [vmem:[%s271 + $0x4f8] sm:$0xff]
      %v457 = vld [vmem:[%s271 + $0x500] sm:$0xff]
      %v458 = vld [vmem:[%s271 + $0x508] sm:$0xff]
      %v459 = vld [vmem:[%s271 + $0x510] sm:$0xff]
      %v460 = vld [vmem:[%s271 + $0x518] sm:$0xff]
      %v461 = vld [vmem:[%s271 + $0x520] sm:$0xff]
      %v462 = vld [vmem:[%s271 + $0x528] sm:$0xff]
      %v463 = vld [vmem:[%s271 + $0x530] sm:$0xff]
      %v464 = vld [vmem:[%s271 + $0x538] sm:$0xff]
      %v465 = vld [vmem:[%s271 + $0x540] sm:$0xff]
      %v466 = vld [vmem:[%s271 + $0x548] sm:$0xff]
      %v467 = vld [vmem:[%s271 + $0x550] sm:$0xff]
      %v468 = vld [vmem:[%s271 + $0x558] sm:$0xff]
      %v469 = vld [vmem:[%s271 + $0x560] sm:$0xff]
      %v470 = vld [vmem:[%s271 + $0x568] sm:$0xff]
      %v471 = vld [vmem:[%s271 + $0x570] sm:$0xff]
      %v472 = vld [vmem:[%s271 + $0x578] sm:$0xff]
      %v473 = vld [vmem:[%s271 + $0x580] sm:$0xff]
      %v474 = vld [vmem:[%s271 + $0x588] sm:$0xff]
      %v475 = vld [vmem:[%s271 + $0x590] sm:$0xff]
      %v476 = vld [vmem:[%s271 + $0x598] sm:$0xff]
      %v477 = vld [vmem:[%s271 + $0x5a0] sm:$0xff]
      %v478 = vld [vmem:[%s271 + $0x5a8] sm:$0xff]
      %v479 = vld [vmem:[%s271 + $0x5b0] sm:$0xff]
      %v480 = vld [vmem:[%s271 + $0x5b8] sm:$0xff]
      %v481 = vld [vmem:[%s271 + $0x5c0] sm:$0xff]
      %v482 = vld [vmem:[%s271 + $0x5c8] sm:$0xff]
      %v483 = vld [vmem:[%s271 + $0x5d0] sm:$0xff]
      %v484 = vld [vmem:[%s271 + $0x5d8] sm:$0xff]
      %v485 = vld [vmem:[%s271 + $0x5e0] sm:$0xff]
      %v486 = vld [vmem:[%s271 + $0x5e8] sm:$0xff]
      %v487 = vld [vmem:[%s271 + $0x5f0] sm:$0xff]
      %v488 = vld [vmem:[%s271 + $0x5f8] sm:$0xff]
      %v489 = vld [vmem:[%s271 + $0x600] sm:$0xff]
      %v490 = vld [vmem:[%s271 + $0x608] sm:$0xff]
      %v491 = vld [vmem:[%s271 + $0x610] sm:$0xff]
      %v492 = vld [vmem:[%s271 + $0x618] sm:$0xff]
      %v493 = vld [vmem:[%s271 + $0x620] sm:$0xff]
      %v494 = vld [vmem:[%s271 + $0x628] sm:$0xff]
      %v495 = vld [vmem:[%s271 + $0x630] sm:$0xff]
      %v496 = vld [vmem:[%s271 + $0x638] sm:$0xff]
      %v497 = vld [vmem:[%s271 + $0x640] sm:$0xff]
      %v498 = vld [vmem:[%s271 + $0x648] sm:$0xff]
      %v499 = vld [vmem:[%s271 + $0x650] sm:$0xff]
      %v500 = vld [vmem:[%s271 + $0x658] sm:$0xff]
      %v501 = vld [vmem:[%s271 + $0x660] sm:$0xff]
      %v502 = vld [vmem:[%s271 + $0x668] sm:$0xff]
      %v503 = vld [vmem:[%s271 + $0x670] sm:$0xff]
      %v504 = vld [vmem:[%s271 + $0x678] sm:$0xff]
      %v505 = vld [vmem:[%s271 + $0x680] sm:$0xff]
      %v506 = vld [vmem:[%s271 + $0x688] sm:$0xff]
      %v507 = vld [vmem:[%s271 + $0x690] sm:$0xff]
      %v508 = vld [vmem:[%s271 + $0x698] sm:$0xff]
      %v509 = vld [vmem:[%s271 + $0x6a0] sm:$0xff]
      %v510 = vld [vmem:[%s271 + $0x6a8] sm:$0xff]
      %v511 = vld [vmem:[%s271 + $0x6b0] sm:$0xff]
      %v512 = vld [vmem:[%s271 + $0x6b8] sm:$0xff]
      %v513 = vld [vmem:[%s271 + $0x6c0] sm:$0xff]
      %v514 = vld [vmem:[%s271 + $0x6c8] sm:$0xff]
      %v515 = vld [vmem:[%s271 + $0x6d0] sm:$0xff]
      %v516 = vld [vmem:[%s271 + $0x6d8] sm:$0xff]
      %v517 = vld [vmem:[%s271 + $0x6e0] sm:$0xff]
      %v518 = vld [vmem:[%s271 + $0x6e8] sm:$0xff]
      %v519 = vld [vmem:[%s271 + $0x6f0] sm:$0xff]
      %v520 = vld [vmem:[%s271 + $0x6f8] sm:$0xff]
      %v521 = vld [vmem:[%s271 + $0x700] sm:$0xff]
      %v522 = vld [vmem:[%s271 + $0x708] sm:$0xff]
      %v523 = vld [vmem:[%s271 + $0x710] sm:$0xff]
      %v524 = vld [vmem:[%s271 + $0x718] sm:$0xff]
      %v525 = vld [vmem:[%s271 + $0x720] sm:$0xff]
      %v526 = vld [vmem:[%s271 + $0x728] sm:$0xff]
      %v527 = vld [vmem:[%s271 + $0x730] sm:$0xff]
      %v528 = vld [vmem:[%s271 + $0x738] sm:$0xff]
      %v529 = vld [vmem:[%s271 + $0x740] sm:$0xff]
      %v530 = vld [vmem:[%s271 + $0x748] sm:$0xff]
      %v531 = vld [vmem:[%s271 + $0x750] sm:$0xff]
      %v532 = vld [vmem:[%s271 + $0x758] sm:$0xff]
      %v533 = vld [vmem:[%s271 + $0x760] sm:$0xff]
      %v534 = vld [vmem:[%s271 + $0x768] sm:$0xff]
      %v535 = vld [vmem:[%s271 + $0x770] sm:$0xff]
      %v536 = vld [vmem:[%s271 + $0x778] sm:$0xff]
      %v537 = vld [vmem:[%s271 + $0x780] sm:$0xff]
      %v538 = vld [vmem:[%s271 + $0x788] sm:$0xff]
      %v539 = vld [vmem:[%s271 + $0x790] sm:$0xff]
      %v540 = vld [vmem:[%s271 + $0x798] sm:$0xff]
      %v541 = vld [vmem:[%s271 + $0x7a0] sm:$0xff]
      %v542 = vld [vmem:[%s271 + $0x7a8] sm:$0xff]
      %v543 = vld [vmem:[%s271 + $0x7b0] sm:$0xff]
      %v544 = vld [vmem:[%s271 + $0x7b8] sm:$0xff]
      %v545 = vld [vmem:[%s271 + $0x7c0] sm:$0xff]
      %v546 = vld [vmem:[%s271 + $0x7c8] sm:$0xff]
      %v547 = vld [vmem:[%s271 + $0x7d0] sm:$0xff]
      %v548 = vld [vmem:[%s271 + $0x7d8] sm:$0xff]
      %v549 = vld [vmem:[%s271 + $0x7e0] sm:$0xff]
      %v550 = vld [vmem:[%s271 + $0x7e8] sm:$0xff]
      %v551 = vld [vmem:[%s271 + $0x7f0] sm:$0xff]
      %v552 = vld [vmem:[%s271 + $0x7f8] sm:$0xff]
      %v553 = vld [vmem:[%s271 + $0x800] sm:$0xff]
      %v554 = vld [vmem:[%s271 + $0x808] sm:$0xff]
      %v555 = vld [vmem:[%s271 + $0x810] sm:$0xff]
      %v556 = vld [vmem:[%s271 + $0x818] sm:$0xff]
      %v557 = vld [vmem:[%s271 + $0x820] sm:$0xff]
      %v558 = vld [vmem:[%s271 + $0x828] sm:$0xff]
      %v559 = vld [vmem:[%s271 + $0x830] sm:$0xff]
      %v560 = vld [vmem:[%s271 + $0x838] sm:$0xff]
      %v561 = vld [vmem:[%s271 + $0x840] sm:$0xff]
      %v562 = vld [vmem:[%s271 + $0x848] sm:$0xff]
      %v563 = vld [vmem:[%s271 + $0x850] sm:$0xff]
      %v564 = vld [vmem:[%s271 + $0x858] sm:$0xff]
      %v565 = vld [vmem:[%s271 + $0x860] sm:$0xff]
      %v566 = vld [vmem:[%s271 + $0x868] sm:$0xff]
      %v567 = vld [vmem:[%s271 + $0x870] sm:$0xff]
      %v568 = vld [vmem:[%s271 + $0x878] sm:$0xff]
      %v569 = vld [vmem:[%s271 + $0x880] sm:$0xff]
      %v570 = vld [vmem:[%s271 + $0x888] sm:$0xff]
      %v571 = vld [vmem:[%s271 + $0x890] sm:$0xff]
      %v572 = vld [vmem:[%s271 + $0x898] sm:$0xff]
      %v573 = vld [vmem:[%s271 + $0x8a0] sm:$0xff]
      %v574 = vld [vmem:[%s271 + $0x8a8] sm:$0xff]
      %v575 = vld [vmem:[%s271 + $0x8b0] sm:$0xff]
      %v576 = vld [vmem:[%s271 + $0x8b8] sm:$0xff]
      %v577 = vld [vmem:[%s271 + $0x8c0] sm:$0xff]
      %v578 = vld [vmem:[%s271 + $0x8c8] sm:$0xff]
      %v579 = vld [vmem:[%s271 + $0x8d0] sm:$0xff]
      %v580 = vld [vmem:[%s271 + $0x8d8] sm:$0xff]
      %v581 = vld [vmem:[%s271 + $0x8e0] sm:$0xff]
      %v582 = vld [vmem:[%s271 + $0x8e8] sm:$0xff]
      %v583 = vld [vmem:[%s271 + $0x8f0] sm:$0xff]
      %v584 = vld [vmem:[%s271 + $0x8f8] sm:$0xff]
      %v585 = vld [vmem:[%s271 + $0x900] sm:$0xff]
      %v586 = vld [vmem:[%s271 + $0x908] sm:$0xff]
      %v587 = vld [vmem:[%s271 + $0x910] sm:$0xff]
      %v588 = vld [vmem:[%s271 + $0x918] sm:$0xff]
      %v589 = vld [vmem:[%s271 + $0x920] sm:$0xff]
      %v590 = vld [vmem:[%s271 + $0x928] sm:$0xff]
      %v591 = vld [vmem:[%s271 + $0x930] sm:$0xff]
      %v592 = vld [vmem:[%s271 + $0x938] sm:$0xff]
      %v593 = vld [vmem:[%s271 + $0x940] sm:$0xff]
      %v594 = vld [vmem:[%s271 + $0x948] sm:$0xff]
      %v595 = vld [vmem:[%s271 + $0x950] sm:$0xff]
      %v596 = vld [vmem:[%s271 + $0x958] sm:$0xff]
      %v597 = vld [vmem:[%s271 + $0x960] sm:$0xff]
      %v598 = vld [vmem:[%s271 + $0x968] sm:$0xff]
      %v599 = vld [vmem:[%s271 + $0x970] sm:$0xff]
      %v600 = vld [vmem:[%s271 + $0x978] sm:$0xff]
      %v601 = vld [vmem:[%s271 + $0x980] sm:$0xff]
      %v602 = vld [vmem:[%s271 + $0x988] sm:$0xff]
      %v603 = vld [vmem:[%s271 + $0x990] sm:$0xff]
      %v604 = vld [vmem:[%s271 + $0x998] sm:$0xff]
      %v605 = vld [vmem:[%s271 + $0x9a0] sm:$0xff]
      %v606 = vld [vmem:[%s271 + $0x9a8] sm:$0xff]
      %v607 = vld [vmem:[%s271 + $0x9b0] sm:$0xff]
      %v608 = vld [vmem:[%s271 + $0x9b8] sm:$0xff]
      %v609 = vld [vmem:[%s271 + $0x9c0] sm:$0xff]
      %v610 = vld [vmem:[%s271 + $0x9c8] sm:$0xff]
      %v611 = vld [vmem:[%s271 + $0x9d0] sm:$0xff]
      %v612 = vld [vmem:[%s271 + $0x9d8] sm:$0xff]
      %v613 = vld [vmem:[%s271 + $0x9e0] sm:$0xff]
      %v614 = vld [vmem:[%s271 + $0x9e8] sm:$0xff]
      %v615 = vld [vmem:[%s271 + $0x9f0] sm:$0xff]
      %v616 = vld [vmem:[%s271 + $0x9f8] sm:$0xff]
      %v617 = vld [vmem:[%s271 + $0xa00] sm:$0xff]
      %v618 = vld [vmem:[%s271 + $0xa08] sm:$0xff]
      %v619 = vld [vmem:[%s271 + $0xa10] sm:$0xff]
      %v620 = vld [vmem:[%s271 + $0xa18] sm:$0xff]
      %v621 = vld [vmem:[%s271 + $0xa20] sm:$0xff]
      %v622 = vld [vmem:[%s271 + $0xa28] sm:$0xff]
      %v623 = vld [vmem:[%s271 + $0xa30] sm:$0xff]
      %v624 = vld [vmem:[%s271 + $0xa38] sm:$0xff]
      %v625 = vld [vmem:[%s271 + $0xa40] sm:$0xff]
      %v626 = vld [vmem:[%s271 + $0xa48] sm:$0xff]
      %v627 = vld [vmem:[%s271 + $0xa50] sm:$0xff]
      %v628 = vld [vmem:[%s271 + $0xa58] sm:$0xff]
      %v629 = vld [vmem:[%s271 + $0xa60] sm:$0xff]
      %v630 = vld [vmem:[%s271 + $0xa68] sm:$0xff]
      %v631 = vld [vmem:[%s271 + $0xa70] sm:$0xff]
      %v632 = vld [vmem:[%s271 + $0xa78] sm:$0xff]
      %v633 = vld [vmem:[%s271 + $0xa80] sm:$0xff]
      %v634 = vld [vmem:[%s271 + $0xa88] sm:$0xff]
      %v635 = vld [vmem:[%s271 + $0xa90] sm:$0xff]
      %v636 = vld [vmem:[%s271 + $0xa98] sm:$0xff]
      %v637 = vld [vmem:[%s271 + $0xaa0] sm:$0xff]
      %v638 = vld [vmem:[%s271 + $0xaa8] sm:$0xff]
      %v639 = vld [vmem:[%s271 + $0xab0] sm:$0xff]
      %v640 = vld [vmem:[%s271 + $0xab8] sm:$0xff]
      %v641 = vld [vmem:[%s271 + $0xac0] sm:$0xff]
      %v642 = vld [vmem:[%s271 + $0xac8] sm:$0xff]
      %v643 = vld [vmem:[%s271 + $0xad0] sm:$0xff]
      %v644 = vld [vmem:[%s271 + $0xad8] sm:$0xff]
      %v645 = vld [vmem:[%s271 + $0xae0] sm:$0xff]
      %v646 = vld [vmem:[%s271 + $0xae8] sm:$0xff]
      %v647 = vld [vmem:[%s271 + $0xaf0] sm:$0xff]
      %v648 = vld [vmem:[%s271 + $0xaf8] sm:$0xff]
      %v649 = vld [vmem:[%s271 + $0xb00] sm:$0xff]
      %v650 = vld [vmem:[%s271 + $0xb08] sm:$0xff]
      %v651 = vld [vmem:[%s271 + $0xb10] sm:$0xff]
      %v652 = vld [vmem:[%s271 + $0xb18] sm:$0xff]
      %v653 = vld [vmem:[%s271 + $0xb20] sm:$0xff]
      %v654 = vld [vmem:[%s271 + $0xb28] sm:$0xff]
      %v655 = vld [vmem:[%s271 + $0xb30] sm:$0xff]
      %v656 = vld [vmem:[%s271 + $0xb38] sm:$0xff]
      %v657 = vld [vmem:[%s271 + $0xb40] sm:$0xff]
      %v658 = vld [vmem:[%s271 + $0xb48] sm:$0xff]
      %v659 = vld [vmem:[%s271 + $0xb50] sm:$0xff]
      %v660 = vld [vmem:[%s271 + $0xb58] sm:$0xff]
      %v661 = vld [vmem:[%s271 + $0xb60] sm:$0xff]
      %v662 = vld [vmem:[%s271 + $0xb68] sm:$0xff]
      %v663 = vld [vmem:[%s271 + $0xb70] sm:$0xff]
      %v664 = vld [vmem:[%s271 + $0xb78] sm:$0xff]
      %v665 = vld [vmem:[%s271 + $0xb80] sm:$0xff]
      %v666 = vld [vmem:[%s271 + $0xb88] sm:$0xff]
      %v667 = vld [vmem:[%s271 + $0xb90] sm:$0xff]
      %v668 = vld [vmem:[%s271 + $0xb98] sm:$0xff]
      %v669 = vld [vmem:[%s271 + $0xba0] sm:$0xff]
      %v670 = vld [vmem:[%s271 + $0xba8] sm:$0xff]
      %v671 = vld [vmem:[%s271 + $0xbb0] sm:$0xff]
      %v672 = vld [vmem:[%s271 + $0xbb8] sm:$0xff]
      %v673 = vld [vmem:[%s271 + $0xbc0] sm:$0xff]
      %v674 = vld [vmem:[%s271 + $0xbc8] sm:$0xff]
      %v675 = vld [vmem:[%s271 + $0xbd0] sm:$0xff]
      %v676 = vld [vmem:[%s271 + $0xbd8] sm:$0xff]
      %v677 = vld [vmem:[%s271 + $0xbe0] sm:$0xff]
      %v678 = vld [vmem:[%s271 + $0xbe8] sm:$0xff]
      %v679 = vld [vmem:[%s271 + $0xbf0] sm:$0xff]
      %v680 = vld [vmem:[%s271 + $0xbf8] sm:$0xff]
      %v681 = vld [vmem:[%s271 + $0xc00] sm:$0xff]
      %v682 = vld [vmem:[%s271 + $0xc08] sm:$0xff]
      %v683 = vld [vmem:[%s271 + $0xc10] sm:$0xff]
      %v684 = vld [vmem:[%s271 + $0xc18] sm:$0xff]
      %v685 = vld [vmem:[%s271 + $0xc20] sm:$0xff]
      %v686 = vld [vmem:[%s271 + $0xc28] sm:$0xff]
      %v687 = vld [vmem:[%s271 + $0xc30] sm:$0xff]
      %v688 = vld [vmem:[%s271 + $0xc38] sm:$0xff]
      %v689 = vld [vmem:[%s271 + $0xc40] sm:$0xff]
      %v690 = vld [vmem:[%s271 + $0xc48] sm:$0xff]
      %v691 = vld [vmem:[%s271 + $0xc50] sm:$0xff]
      %v692 = vld [vmem:[%s271 + $0xc58] sm:$0xff]
      %v693 = vld [vmem:[%s271 + $0xc60] sm:$0xff]
      %v694 = vld [vmem:[%s271 + $0xc68] sm:$0xff]
      %v695 = vld [vmem:[%s271 + $0xc70] sm:$0xff]
      %v696 = vld [vmem:[%s271 + $0xc78] sm:$0xff]
      %v697 = vld [vmem:[%s271 + $0xc80] sm:$0xff]
      %v698 = vld [vmem:[%s271 + $0xc88] sm:$0xff]
      %v699 = vld [vmem:[%s271 + $0xc90] sm:$0xff]
      %v700 = vld [vmem:[%s271 + $0xc98] sm:$0xff]
      %v701 = vld [vmem:[%s271 + $0xca0] sm:$0xff]
      %v702 = vld [vmem:[%s271 + $0xca8] sm:$0xff]
      %v703 = vld [vmem:[%s271 + $0xcb0] sm:$0xff]
      %v704 = vld [vmem:[%s271 + $0xcb8] sm:$0xff]
      %v705 = vld [vmem:[%s271 + $0xcc0] sm:$0xff]
      %v706 = vld [vmem:[%s271 + $0xcc8] sm:$0xff]
      %v707 = vld [vmem:[%s271 + $0xcd0] sm:$0xff]
      %v708 = vld [vmem:[%s271 + $0xcd8] sm:$0xff]
      %v709 = vld [vmem:[%s271 + $0xce0] sm:$0xff]
      %v710 = vld [vmem:[%s271 + $0xce8] sm:$0xff]
      %v711 = vld [vmem:[%s271 + $0xcf0] sm:$0xff]
      %v712 = vld [vmem:[%s271 + $0xcf8] sm:$0xff]
      %v713 = vld [vmem:[%s271 + $0xd00] sm:$0xff]
      %v714 = vld [vmem:[%s271 + $0xd08] sm:$0xff]
      %v715 = vld [vmem:[%s271 + $0xd10] sm:$0xff]
      %v716 = vld [vmem:[%s271 + $0xd18] sm:$0xff]
      %v717 = vld [vmem:[%s271 + $0xd20] sm:$0xff]
      %v718 = vld [vmem:[%s271 + $0xd28] sm:$0xff]
      %v719 = vld [vmem:[%s271 + $0xd30] sm:$0xff]
      %v720 = vld [vmem:[%s271 + $0xd38] sm:$0xff]
      %v721 = vld [vmem:[%s271 + $0xd40] sm:$0xff]
      %v722 = vld [vmem:[%s271 + $0xd48] sm:$0xff]
      %v723 = vld [vmem:[%s271 + $0xd50] sm:$0xff]
      %v724 = vld [vmem:[%s271 + $0xd58] sm:$0xff]
      %v725 = vld [vmem:[%s271 + $0xd60] sm:$0xff]
      %v726 = vld [vmem:[%s271 + $0xd68] sm:$0xff]
      %v727 = vld [vmem:[%s271 + $0xd70] sm:$0xff]
      %v728 = vld [vmem:[%s271 + $0xd78] sm:$0xff]
      %v729 = vld [vmem:[%s271 + $0xd80] sm:$0xff]
      %v730 = vld [vmem:[%s271 + $0xd88] sm:$0xff]
      %v731 = vld [vmem:[%s271 + $0xd90] sm:$0xff]
      %v732 = vld [vmem:[%s271 + $0xd98] sm:$0xff]
      %v733 = vld [vmem:[%s271 + $0xda0] sm:$0xff]
      %v734 = vld [vmem:[%s271 + $0xda8] sm:$0xff]
      %v735 = vld [vmem:[%s271 + $0xdb0] sm:$0xff]
      %v736 = vld [vmem:[%s271 + $0xdb8] sm:$0xff]
      %v737 = vld [vmem:[%s271 + $0xdc0] sm:$0xff]
      %v738 = vld [vmem:[%s271 + $0xdc8] sm:$0xff]
      %v739 = vld [vmem:[%s271 + $0xdd0] sm:$0xff]
      %v740 = vld [vmem:[%s271 + $0xdd8] sm:$0xff]
      %v741 = vld [vmem:[%s271 + $0xde0] sm:$0xff]
      %v742 = vld [vmem:[%s271 + $0xde8] sm:$0xff]
      %v743 = vld [vmem:[%s271 + $0xdf0] sm:$0xff]
      %v744 = vld [vmem:[%s271 + $0xdf8] sm:$0xff]
      %v745 = vld [vmem:[%s271 + $0xe00] sm:$0xff]
      %v746 = vld [vmem:[%s271 + $0xe08] sm:$0xff]
      %v747 = vld [vmem:[%s271 + $0xe10] sm:$0xff]
      %v748 = vld [vmem:[%s271 + $0xe18] sm:$0xff]
      %v749 = vld [vmem:[%s271 + $0xe20] sm:$0xff]
      %v750 = vld [vmem:[%s271 + $0xe28] sm:$0xff]
      %v751 = vld [vmem:[%s271 + $0xe30] sm:$0xff]
      %v752 = vld [vmem:[%s271 + $0xe38] sm:$0xff]
      %v753 = vld [vmem:[%s271 + $0xe40] sm:$0xff]
      %v754 = vld [vmem:[%s271 + $0xe48] sm:$0xff]
      %v755 = vld [vmem:[%s271 + $0xe50] sm:$0xff]
      %v756 = vld [vmem:[%s271 + $0xe58] sm:$0xff]
      %v757 = vld [vmem:[%s271 + $0xe60] sm:$0xff]
      %v758 = vld [vmem:[%s271 + $0xe68] sm:$0xff]
      %v759 = vld [vmem:[%s271 + $0xe70] sm:$0xff]
      %v760 = vld [vmem:[%s271 + $0xe78] sm:$0xff]
      %v761 = vld [vmem:[%s271 + $0xe80] sm:$0xff]
      %v762 = vld [vmem:[%s271 + $0xe88] sm:$0xff]
      %v763 = vld [vmem:[%s271 + $0xe90] sm:$0xff]
      %v764 = vld [vmem:[%s271 + $0xe98] sm:$0xff]
      %v765 = vld [vmem:[%s271 + $0xea0] sm:$0xff]
      %v766 = vld [vmem:[%s271 + $0xea8] sm:$0xff]
      %v767 = vld [vmem:[%s271 + $0xeb0] sm:$0xff]
      %v768 = vld [vmem:[%s271 + $0xeb8] sm:$0xff]
      %v769 = vld [vmem:[%s271 + $0xec0] sm:$0xff]
      %v770 = vld [vmem:[%s271 + $0xec8] sm:$0xff]
      %v771 = vld [vmem:[%s271 + $0xed0] sm:$0xff]
      %v772 = vld [vmem:[%s271 + $0xed8] sm:$0xff]
      %v773 = vld [vmem:[%s271 + $0xee0] sm:$0xff]
      %v774 = vld [vmem:[%s271 + $0xee8] sm:$0xff]
      %v775 = vld [vmem:[%s271 + $0xef0] sm:$0xff]
      %v776 = vld [vmem:[%s271 + $0xef8] sm:$0xff]
      %v777 = vld [vmem:[%s271 + $0xf00] sm:$0xff]
      %v778 = vld [vmem:[%s271 + $0xf08] sm:$0xff]
      %v779 = vld [vmem:[%s271 + $0xf10] sm:$0xff]
      %v780 = vld [vmem:[%s271 + $0xf18] sm:$0xff]
      %v781 = vld [vmem:[%s271 + $0xf20] sm:$0xff]
      %v782 = vld [vmem:[%s271 + $0xf28] sm:$0xff]
      %v783 = vld [vmem:[%s271 + $0xf30] sm:$0xff]
      %v784 = vld [vmem:[%s271 + $0xf38] sm:$0xff]
      %v785 = vld [vmem:[%s271 + $0xf40] sm:$0xff]
      %v786 = vld [vmem:[%s271 + $0xf48] sm:$0xff]
      %v787 = vld [vmem:[%s271 + $0xf50] sm:$0xff]
      %v788 = vld [vmem:[%s271 + $0xf58] sm:$0xff]
      %v789 = vld [vmem:[%s271 + $0xf60] sm:$0xff]
      %v790 = vld [vmem:[%s271 + $0xf68] sm:$0xff]
      %v791 = vld [vmem:[%s271 + $0xf70] sm:$0xff]
      %v792 = vld [vmem:[%s271 + $0xf78] sm:$0xff]
      %v793 = vld [vmem:[%s271 + $0xf80] sm:$0xff]
      %v794 = vld [vmem:[%s271 + $0xf88] sm:$0xff]
      %v795 = vld [vmem:[%s271 + $0xf90] sm:$0xff]
      %v796 = vld [vmem:[%s271 + $0xf98] sm:$0xff]
      %v797 = vld [vmem:[%s271 + $0xfa0] sm:$0xff]
      %v798 = vld [vmem:[%s271 + $0xfa8] sm:$0xff]
      %v799 = vld [vmem:[%s271 + $0xfb0] sm:$0xff]
      %v800 = vld [vmem:[%s271 + $0xfb8] sm:$0xff]
      %v801 = vld [vmem:[%s271 + $0xfc0] sm:$0xff]
      %v802 = vld [vmem:[%s271 + $0xfc8] sm:$0xff]
      %v803 = vld [vmem:[%s271 + $0xfd0] sm:$0xff]
      %v804 = vld [vmem:[%s271 + $0xfd8] sm:$0xff]
      %v805 = vld [vmem:[%s271 + $0xfe0] sm:$0xff]
      %v806 = vld [vmem:[%s271 + $0xfe8] sm:$0xff]
      %v807 = vld [vmem:[%s271 + $0xff0] sm:$0xff]
      %v808 = vld [vmem:[%s271 + $0xff8] sm:$0xff]
      %810 = vst [vmem:[#allocation1] ss:$9 sm:$0xff] %v295
      %v811 = vld [vmem:[#allocation1] sm:$0xff]
      %v812 = vld [vmem:[#allocation1 + $0x9] sm:$0xff]
      %v813 = vld [vmem:[#allocation1 + $0x12] sm:$0xff]
      %v814 = vld [vmem:[#allocation1 + $0x1b] sm:$0xff]
      %v815 = vld [vmem:[#allocation1 + $0x24] sm:$0xff]
      %v816 = vld [vmem:[#allocation1 + $0x2d] sm:$0xff]
      %v817 = vld [vmem:[#allocation1 + $0x36] sm:$0xff]
      %v818 = vld [vmem:[#allocation1 + $0x3f] sm:$0xff]
      %820 = vst [vmem:[#allocation1] ss:$9 sm:$0xff] %v296
      %v821 = vld [vmem:[#allocation1] sm:$0xff]
      %v822 = vld [vmem:[#allocation1 + $0x9] sm:$0xff]
      %v823 = vld [vmem:[#allocation1 + $0x12] sm:$0xff]
      %v824 = vld [vmem:[#allocation1 + $0x1b] sm:$0xff]
      %v825 = vld [vmem:[#allocation1 + $0x24] sm:$0xff]
      %v826 = vld [vmem:[#allocation1 + $0x2d] sm:$0xff]
      %v827 = vld [vmem:[#allocation1 + $0x36] sm:$0xff]
      %v828 = vld [vmem:[#allocation1 + $0x3f] sm:$0xff]
      %v1357 = vunpack.c.l.b16 %v297
      %v1358 = vunpack.c.h.b16 %v297
      %v1359 = vunpack.c.l.b16 %v298
      %v1360 = vunpack.c.h.b16 %v298
      %v1361 = vunpack.c.l.b16 %v299
      %v1362 = vunpack.c.h.b16 %v299
      %v1363 = vunpack.c.l.b16 %v300
      %v1364 = vunpack.c.h.b16 %v300
      %v1365 = vunpack.c.l.b16 %v301
      %v1366 = vunpack.c.h.b16 %v301
      %v1367 = vunpack.c.l.b16 %v302
      %v1368 = vunpack.c.h.b16 %v302
      %v1369 = vunpack.c.l.b16 %v303
      %v1370 = vunpack.c.h.b16 %v303
      %v1371 = vunpack.c.l.b16 %v304
      %v1372 = vunpack.c.h.b16 %v304
      %v1373 = vunpack.c.l.b16 %v305
      %v1374 = vunpack.c.h.b16 %v305
      %v1375 = vunpack.c.l.b16 %v306
      %v1376 = vunpack.c.h.b16 %v306
      %v1377 = vunpack.c.l.b16 %v307
      %v1378 = vunpack.c.h.b16 %v307
      %v1379 = vunpack.c.l.b16 %v308
      %v1380 = vunpack.c.h.b16 %v308
      %v1381 = vunpack.c.l.b16 %v309
      %v1382 = vunpack.c.h.b16 %v309
      %v1383 = vunpack.c.l.b16 %v310
      %v1384 = vunpack.c.h.b16 %v310
      %v1385 = vunpack.c.l.b16 %v311
      %v1386 = vunpack.c.h.b16 %v311
      %v1387 = vunpack.c.l.b16 %v312
      %v1388 = vunpack.c.h.b16 %v312
      %v1389 = vunpack.c.l.b16 %v313
      %v1390 = vunpack.c.h.b16 %v313
      %v1391 = vunpack.c.l.b16 %v314
      %v1392 = vunpack.c.h.b16 %v314
      %v1393 = vunpack.c.l.b16 %v315
      %v1394 = vunpack.c.h.b16 %v315
      %v1395 = vunpack.c.l.b16 %v316
      %v1396 = vunpack.c.h.b16 %v316
      %v1397 = vunpack.c.l.b16 %v317
      %v1398 = vunpack.c.h.b16 %v317
      %v1399 = vunpack.c.l.b16 %v318
      %v1400 = vunpack.c.h.b16 %v318
      %v1401 = vunpack.c.l.b16 %v319
      %v1402 = vunpack.c.h.b16 %v319
      %v1403 = vunpack.c.l.b16 %v320
      %v1404 = vunpack.c.h.b16 %v320
      %v1405 = vunpack.c.l.b16 %v321
      %v1406 = vunpack.c.h.b16 %v321
      %v1407 = vunpack.c.l.b16 %v322
      %v1408 = vunpack.c.h.b16 %v322
      %v1409 = vunpack.c.l.b16 %v323
      %v1410 = vunpack.c.h.b16 %v323
      %v1411 = vunpack.c.l.b16 %v324
      %v1412 = vunpack.c.h.b16 %v324
      %v1413 = vunpack.c.l.b16 %v325
      %v1414 = vunpack.c.h.b16 %v325
      %v1415 = vunpack.c.l.b16 %v326
      %v1416 = vunpack.c.h.b16 %v326
      %v1417 = vunpack.c.l.b16 %v327
      %v1418 = vunpack.c.h.b16 %v327
      %v1419 = vunpack.c.l.b16 %v328
      %v1420 = vunpack.c.h.b16 %v328
      %v1421 = vunpack.c.l.b16 %v329
      %v1422 = vunpack.c.h.b16 %v329
      %v1423 = vunpack.c.l.b16 %v330
      %v1424 = vunpack.c.h.b16 %v330
      %v1425 = vunpack.c.l.b16 %v331
      %v1426 = vunpack.c.h.b16 %v331
      %v1427 = vunpack.c.l.b16 %v332
      %v1428 = vunpack.c.h.b16 %v332
      %v1429 = vunpack.c.l.b16 %v333
      %v1430 = vunpack.c.h.b16 %v333
      %v1431 = vunpack.c.l.b16 %v334
      %v1432 = vunpack.c.h.b16 %v334
      %v1433 = vunpack.c.l.b16 %v335
      %v1434 = vunpack.c.h.b16 %v335
      %v1435 = vunpack.c.l.b16 %v336
      %v1436 = vunpack.c.h.b16 %v336
      %v1437 = vunpack.c.l.b16 %v337
      %v1438 = vunpack.c.h.b16 %v337
      %v1439 = vunpack.c.l.b16 %v338
      %v1440 = vunpack.c.h.b16 %v338
      %v1441 = vunpack.c.l.b16 %v339
      %v1442 = vunpack.c.h.b16 %v339
      %v1443 = vunpack.c.l.b16 %v340
      %v1444 = vunpack.c.h.b16 %v340
      %v1445 = vunpack.c.l.b16 %v341
      %v1446 = vunpack.c.h.b16 %v341
      %v1447 = vunpack.c.l.b16 %v342
      %v1448 = vunpack.c.h.b16 %v342
      %v1449 = vunpack.c.l.b16 %v343
      %v1450 = vunpack.c.h.b16 %v343
      %v1451 = vunpack.c.l.b16 %v344
      %v1452 = vunpack.c.h.b16 %v344
      %v1453 = vunpack.c.l.b16 %v345
      %v1454 = vunpack.c.h.b16 %v345
      %v1455 = vunpack.c.l.b16 %v346
      %v1456 = vunpack.c.h.b16 %v346
      %v1457 = vunpack.c.l.b16 %v347
      %v1458 = vunpack.c.h.b16 %v347
      %v1459 = vunpack.c.l.b16 %v348
      %v1460 = vunpack.c.h.b16 %v348
      %v1461 = vunpack.c.l.b16 %v349
      %v1462 = vunpack.c.h.b16 %v349
      %v1463 = vunpack.c.l.b16 %v350
      %v1464 = vunpack.c.h.b16 %v350
      %v1465 = vunpack.c.l.b16 %v351
      %v1466 = vunpack.c.h.b16 %v351
      %v1467 = vunpack.c.l.b16 %v352
      %v1468 = vunpack.c.h.b16 %v352
      %v1469 = vunpack.c.l.b16 %v353
      %v1470 = vunpack.c.h.b16 %v353
      %v1471 = vunpack.c.l.b16 %v354
      %v1472 = vunpack.c.h.b16 %v354
      %v1473 = vunpack.c.l.b16 %v355
      %v1474 = vunpack.c.h.b16 %v355
      %v1475 = vunpack.c.l.b16 %v356
      %v1476 = vunpack.c.h.b16 %v356
      %v1477 = vunpack.c.l.b16 %v357
      %v1478 = vunpack.c.h.b16 %v357
      %v1479 = vunpack.c.l.b16 %v358
      %v1480 = vunpack.c.h.b16 %v358
      %v1481 = vunpack.c.l.b16 %v359
      %v1482 = vunpack.c.h.b16 %v359
      %v1483 = vunpack.c.l.b16 %v360
      %v1484 = vunpack.c.h.b16 %v360
      %v1485 = vunpack.c.l.b16 %v361
      %v1486 = vunpack.c.h.b16 %v361
      %v1487 = vunpack.c.l.b16 %v362
      %v1488 = vunpack.c.h.b16 %v362
      %v1489 = vunpack.c.l.b16 %v363
      %v1490 = vunpack.c.h.b16 %v363
      %v1491 = vunpack.c.l.b16 %v364
      %v1492 = vunpack.c.h.b16 %v364
      %v1493 = vunpack.c.l.b16 %v365
      %v1494 = vunpack.c.h.b16 %v365
      %v1495 = vunpack.c.l.b16 %v366
      %v1496 = vunpack.c.h.b16 %v366
      %v1497 = vunpack.c.l.b16 %v367
      %v1498 = vunpack.c.h.b16 %v367
      %v1499 = vunpack.c.l.b16 %v368
      %v1500 = vunpack.c.h.b16 %v368
      %v1501 = vunpack.c.l.b16 %v369
      %v1502 = vunpack.c.h.b16 %v369
      %v1503 = vunpack.c.l.b16 %v370
      %v1504 = vunpack.c.h.b16 %v370
      %v1505 = vunpack.c.l.b16 %v371
      %v1506 = vunpack.c.h.b16 %v371
      %v1507 = vunpack.c.l.b16 %v372
      %v1508 = vunpack.c.h.b16 %v372
      %v1509 = vunpack.c.l.b16 %v373
      %v1510 = vunpack.c.h.b16 %v373
      %v1511 = vunpack.c.l.b16 %v374
      %v1512 = vunpack.c.h.b16 %v374
      %v1513 = vunpack.c.l.b16 %v375
      %v1514 = vunpack.c.h.b16 %v375
      %v1515 = vunpack.c.l.b16 %v376
      %v1516 = vunpack.c.h.b16 %v376
      %v1517 = vunpack.c.l.b16 %v377
      %v1518 = vunpack.c.h.b16 %v377
      %v1519 = vunpack.c.l.b16 %v378
      %v1520 = vunpack.c.h.b16 %v378
      %v1521 = vunpack.c.l.b16 %v379
      %v1522 = vunpack.c.h.b16 %v379
      %v1523 = vunpack.c.l.b16 %v380
      %v1524 = vunpack.c.h.b16 %v380
      %v1525 = vunpack.c.l.b16 %v381
      %v1526 = vunpack.c.h.b16 %v381
      %v1527 = vunpack.c.l.b16 %v382
      %v1528 = vunpack.c.h.b16 %v382
      %v1529 = vunpack.c.l.b16 %v383
      %v1530 = vunpack.c.h.b16 %v383
      %v1531 = vunpack.c.l.b16 %v384
      %v1532 = vunpack.c.h.b16 %v384
      %v1533 = vunpack.c.l.b16 %v385
      %v1534 = vunpack.c.h.b16 %v385
      %v1535 = vunpack.c.l.b16 %v386
      %v1536 = vunpack.c.h.b16 %v386
      %v1537 = vunpack.c.l.b16 %v387
      %v1538 = vunpack.c.h.b16 %v387
      %v1539 = vunpack.c.l.b16 %v388
      %v1540 = vunpack.c.h.b16 %v388
      %v1541 = vunpack.c.l.b16 %v389
      %v1542 = vunpack.c.h.b16 %v389
      %v1543 = vunpack.c.l.b16 %v390
      %v1544 = vunpack.c.h.b16 %v390
      %v1545 = vunpack.c.l.b16 %v391
      %v1546 = vunpack.c.h.b16 %v391
      %v1547 = vunpack.c.l.b16 %v392
      %v1548 = vunpack.c.h.b16 %v392
      %v1549 = vunpack.c.l.b16 %v393
      %v1550 = vunpack.c.h.b16 %v393
      %v1551 = vunpack.c.l.b16 %v394
      %v1552 = vunpack.c.h.b16 %v394
      %v1553 = vunpack.c.l.b16 %v395
      %v1554 = vunpack.c.h.b16 %v395
      %v1555 = vunpack.c.l.b16 %v396
      %v1556 = vunpack.c.h.b16 %v396
      %v1557 = vunpack.c.l.b16 %v397
      %v1558 = vunpack.c.h.b16 %v397
      %v1559 = vunpack.c.l.b16 %v398
      %v1560 = vunpack.c.h.b16 %v398
      %v1561 = vunpack.c.l.b16 %v399
      %v1562 = vunpack.c.h.b16 %v399
      %v1563 = vunpack.c.l.b16 %v400
      %v1564 = vunpack.c.h.b16 %v400
      %v1565 = vunpack.c.l.b16 %v401
      %v1566 = vunpack.c.h.b16 %v401
      %v1567 = vunpack.c.l.b16 %v402
      %v1568 = vunpack.c.h.b16 %v402
      %v1569 = vunpack.c.l.b16 %v403
      %v1570 = vunpack.c.h.b16 %v403
      %v1571 = vunpack.c.l.b16 %v404
      %v1572 = vunpack.c.h.b16 %v404
      %v1573 = vunpack.c.l.b16 %v405
      %v1574 = vunpack.c.h.b16 %v405
      %v1575 = vunpack.c.l.b16 %v406
      %v1576 = vunpack.c.h.b16 %v406
      %v1577 = vunpack.c.l.b16 %v407
      %v1578 = vunpack.c.h.b16 %v407
      %v1579 = vunpack.c.l.b16 %v408
      %v1580 = vunpack.c.h.b16 %v408
      %v1581 = vunpack.c.l.b16 %v409
      %v1582 = vunpack.c.h.b16 %v409
      %v1583 = vunpack.c.l.b16 %v410
      %v1584 = vunpack.c.h.b16 %v410
      %v1585 = vunpack.c.l.b16 %v411
      %v1586 = vunpack.c.h.b16 %v411
      %v1587 = vunpack.c.l.b16 %v412
      %v1588 = vunpack.c.h.b16 %v412
      %v1589 = vunpack.c.l.b16 %v413
      %v1590 = vunpack.c.h.b16 %v413
      %v1591 = vunpack.c.l.b16 %v414
      %v1592 = vunpack.c.h.b16 %v414
      %v1593 = vunpack.c.l.b16 %v415
      %v1594 = vunpack.c.h.b16 %v415
      %v1595 = vunpack.c.l.b16 %v416
      %v1596 = vunpack.c.h.b16 %v416
      %v1597 = vunpack.c.l.b16 %v417
      %v1598 = vunpack.c.h.b16 %v417
      %v1599 = vunpack.c.l.b16 %v418
      %v1600 = vunpack.c.h.b16 %v418
      %v1601 = vunpack.c.l.b16 %v419
      %v1602 = vunpack.c.h.b16 %v419
      %v1603 = vunpack.c.l.b16 %v420
      %v1604 = vunpack.c.h.b16 %v420
      %v1605 = vunpack.c.l.b16 %v421
      %v1606 = vunpack.c.h.b16 %v421
      %v1607 = vunpack.c.l.b16 %v422
      %v1608 = vunpack.c.h.b16 %v422
      %v1609 = vunpack.c.l.b16 %v423
      %v1610 = vunpack.c.h.b16 %v423
      %v1611 = vunpack.c.l.b16 %v424
      %v1612 = vunpack.c.h.b16 %v424
      %v1613 = vunpack.c.l.b16 %v425
      %v1614 = vunpack.c.h.b16 %v425
      %v1615 = vunpack.c.l.b16 %v426
      %v1616 = vunpack.c.h.b16 %v426
      %v1617 = vunpack.c.l.b16 %v427
      %v1618 = vunpack.c.h.b16 %v427
      %v1619 = vunpack.c.l.b16 %v428
      %v1620 = vunpack.c.h.b16 %v428
      %v1621 = vunpack.c.l.b16 %v429
      %v1622 = vunpack.c.h.b16 %v429
      %v1623 = vunpack.c.l.b16 %v430
      %v1624 = vunpack.c.h.b16 %v430
      %v1625 = vunpack.c.l.b16 %v431
      %v1626 = vunpack.c.h.b16 %v431
      %v1627 = vunpack.c.l.b16 %v432
      %v1628 = vunpack.c.h.b16 %v432
      %v1629 = vunpack.c.l.b16 %v433
      %v1630 = vunpack.c.h.b16 %v433
      %v1631 = vunpack.c.l.b16 %v434
      %v1632 = vunpack.c.h.b16 %v434
      %v1633 = vunpack.c.l.b16 %v435
      %v1634 = vunpack.c.h.b16 %v435
      %v1635 = vunpack.c.l.b16 %v436
      %v1636 = vunpack.c.h.b16 %v436
      %v1637 = vunpack.c.l.b16 %v437
      %v1638 = vunpack.c.h.b16 %v437
      %v1639 = vunpack.c.l.b16 %v438
      %v1640 = vunpack.c.h.b16 %v438
      %v1641 = vunpack.c.l.b16 %v439
      %v1642 = vunpack.c.h.b16 %v439
      %v1643 = vunpack.c.l.b16 %v440
      %v1644 = vunpack.c.h.b16 %v440
      %v1645 = vunpack.c.l.b16 %v441
      %v1646 = vunpack.c.h.b16 %v441
      %v1647 = vunpack.c.l.b16 %v442
      %v1648 = vunpack.c.h.b16 %v442
      %v1649 = vunpack.c.l.b16 %v443
      %v1650 = vunpack.c.h.b16 %v443
      %v1651 = vunpack.c.l.b16 %v444
      %v1652 = vunpack.c.h.b16 %v444
      %v1653 = vunpack.c.l.b16 %v445
      %v1654 = vunpack.c.h.b16 %v445
      %v1655 = vunpack.c.l.b16 %v446
      %v1656 = vunpack.c.h.b16 %v446
      %v1657 = vunpack.c.l.b16 %v447
      %v1658 = vunpack.c.h.b16 %v447
      %v1659 = vunpack.c.l.b16 %v448
      %v1660 = vunpack.c.h.b16 %v448
      %v1661 = vunpack.c.l.b16 %v449
      %v1662 = vunpack.c.h.b16 %v449
      %v1663 = vunpack.c.l.b16 %v450
      %v1664 = vunpack.c.h.b16 %v450
      %v1665 = vunpack.c.l.b16 %v451
      %v1666 = vunpack.c.h.b16 %v451
      %v1667 = vunpack.c.l.b16 %v452
      %v1668 = vunpack.c.h.b16 %v452
      %v1669 = vunpack.c.l.b16 %v453
      %v1670 = vunpack.c.h.b16 %v453
      %v1671 = vunpack.c.l.b16 %v454
      %v1672 = vunpack.c.h.b16 %v454
      %v1673 = vunpack.c.l.b16 %v455
      %v1674 = vunpack.c.h.b16 %v455
      %v1675 = vunpack.c.l.b16 %v456
      %v1676 = vunpack.c.h.b16 %v456
      %v1677 = vunpack.c.l.b16 %v457
      %v1678 = vunpack.c.h.b16 %v457
      %v1679 = vunpack.c.l.b16 %v458
      %v1680 = vunpack.c.h.b16 %v458
      %v1681 = vunpack.c.l.b16 %v459
      %v1682 = vunpack.c.h.b16 %v459
      %v1683 = vunpack.c.l.b16 %v460
      %v1684 = vunpack.c.h.b16 %v460
      %v1685 = vunpack.c.l.b16 %v461
      %v1686 = vunpack.c.h.b16 %v461
      %v1687 = vunpack.c.l.b16 %v462
      %v1688 = vunpack.c.h.b16 %v462
      %v1689 = vunpack.c.l.b16 %v463
      %v1690 = vunpack.c.h.b16 %v463
      %v1691 = vunpack.c.l.b16 %v464
      %v1692 = vunpack.c.h.b16 %v464
      %v1693 = vunpack.c.l.b16 %v465
      %v1694 = vunpack.c.h.b16 %v465
      %v1695 = vunpack.c.l.b16 %v466
      %v1696 = vunpack.c.h.b16 %v466
      %v1697 = vunpack.c.l.b16 %v467
      %v1698 = vunpack.c.h.b16 %v467
      %v1699 = vunpack.c.l.b16 %v468
      %v1700 = vunpack.c.h.b16 %v468
      %v1701 = vunpack.c.l.b16 %v469
      %v1702 = vunpack.c.h.b16 %v469
      %v1703 = vunpack.c.l.b16 %v470
      %v1704 = vunpack.c.h.b16 %v470
      %v1705 = vunpack.c.l.b16 %v471
      %v1706 = vunpack.c.h.b16 %v471
      %v1707 = vunpack.c.l.b16 %v472
      %v1708 = vunpack.c.h.b16 %v472
      %v1709 = vunpack.c.l.b16 %v473
      %v1710 = vunpack.c.h.b16 %v473
      %v1711 = vunpack.c.l.b16 %v474
      %v1712 = vunpack.c.h.b16 %v474
      %v1713 = vunpack.c.l.b16 %v475
      %v1714 = vunpack.c.h.b16 %v475
      %v1715 = vunpack.c.l.b16 %v476
      %v1716 = vunpack.c.h.b16 %v476
      %v1717 = vunpack.c.l.b16 %v477
      %v1718 = vunpack.c.h.b16 %v477
      %v1719 = vunpack.c.l.b16 %v478
      %v1720 = vunpack.c.h.b16 %v478
      %v1721 = vunpack.c.l.b16 %v479
      %v1722 = vunpack.c.h.b16 %v479
      %v1723 = vunpack.c.l.b16 %v480
      %v1724 = vunpack.c.h.b16 %v480
      %v1725 = vunpack.c.l.b16 %v481
      %v1726 = vunpack.c.h.b16 %v481
      %v1727 = vunpack.c.l.b16 %v482
      %v1728 = vunpack.c.h.b16 %v482
      %v1729 = vunpack.c.l.b16 %v483
      %v1730 = vunpack.c.h.b16 %v483
      %v1731 = vunpack.c.l.b16 %v484
      %v1732 = vunpack.c.h.b16 %v484
      %v1733 = vunpack.c.l.b16 %v485
      %v1734 = vunpack.c.h.b16 %v485
      %v1735 = vunpack.c.l.b16 %v486
      %v1736 = vunpack.c.h.b16 %v486
      %v1737 = vunpack.c.l.b16 %v487
      %v1738 = vunpack.c.h.b16 %v487
      %v1739 = vunpack.c.l.b16 %v488
      %v1740 = vunpack.c.h.b16 %v488
      %v1741 = vunpack.c.l.b16 %v489
      %v1742 = vunpack.c.h.b16 %v489
      %v1743 = vunpack.c.l.b16 %v490
      %v1744 = vunpack.c.h.b16 %v490
      %v1745 = vunpack.c.l.b16 %v491
      %v1746 = vunpack.c.h.b16 %v491
      %v1747 = vunpack.c.l.b16 %v492
      %v1748 = vunpack.c.h.b16 %v492
      %v1749 = vunpack.c.l.b16 %v493
      %v1750 = vunpack.c.h.b16 %v493
      %v1751 = vunpack.c.l.b16 %v494
      %v1752 = vunpack.c.h.b16 %v494
      %v1753 = vunpack.c.l.b16 %v495
      %v1754 = vunpack.c.h.b16 %v495
      %v1755 = vunpack.c.l.b16 %v496
      %v1756 = vunpack.c.h.b16 %v496
      %v1757 = vunpack.c.l.b16 %v497
      %v1758 = vunpack.c.h.b16 %v497
      %v1759 = vunpack.c.l.b16 %v498
      %v1760 = vunpack.c.h.b16 %v498
      %v1761 = vunpack.c.l.b16 %v499
      %v1762 = vunpack.c.h.b16 %v499
      %v1763 = vunpack.c.l.b16 %v500
      %v1764 = vunpack.c.h.b16 %v500
      %v1765 = vunpack.c.l.b16 %v501
      %v1766 = vunpack.c.h.b16 %v501
      %v1767 = vunpack.c.l.b16 %v502
      %v1768 = vunpack.c.h.b16 %v502
      %v1769 = vunpack.c.l.b16 %v503
      %v1770 = vunpack.c.h.b16 %v503
      %v1771 = vunpack.c.l.b16 %v504
      %v1772 = vunpack.c.h.b16 %v504
      %v1773 = vunpack.c.l.b16 %v505
      %v1774 = vunpack.c.h.b16 %v505
      %v1775 = vunpack.c.l.b16 %v506
      %v1776 = vunpack.c.h.b16 %v506
      %v1777 = vunpack.c.l.b16 %v507
      %v1778 = vunpack.c.h.b16 %v507
      %v1779 = vunpack.c.l.b16 %v508
      %v1780 = vunpack.c.h.b16 %v508
      %v1781 = vunpack.c.l.b16 %v509
      %v1782 = vunpack.c.h.b16 %v509
      %v1783 = vunpack.c.l.b16 %v510
      %v1784 = vunpack.c.h.b16 %v510
      %v1785 = vunpack.c.l.b16 %v511
      %v1786 = vunpack.c.h.b16 %v511
      %v1787 = vunpack.c.l.b16 %v512
      %v1788 = vunpack.c.h.b16 %v512
      %v1789 = vunpack.c.l.b16 %v513
      %v1790 = vunpack.c.h.b16 %v513
      %v1791 = vunpack.c.l.b16 %v514
      %v1792 = vunpack.c.h.b16 %v514
      %v1793 = vunpack.c.l.b16 %v515
      %v1794 = vunpack.c.h.b16 %v515
      %v1795 = vunpack.c.l.b16 %v516
      %v1796 = vunpack.c.h.b16 %v516
      %v1797 = vunpack.c.l.b16 %v517
      %v1798 = vunpack.c.h.b16 %v517
      %v1799 = vunpack.c.l.b16 %v518
      %v1800 = vunpack.c.h.b16 %v518
      %v1801 = vunpack.c.l.b16 %v519
      %v1802 = vunpack.c.h.b16 %v519
      %v1803 = vunpack.c.l.b16 %v520
      %v1804 = vunpack.c.h.b16 %v520
      %v1805 = vunpack.c.l.b16 %v521
      %v1806 = vunpack.c.h.b16 %v521
      %v1807 = vunpack.c.l.b16 %v522
      %v1808 = vunpack.c.h.b16 %v522
      %v1809 = vunpack.c.l.b16 %v523
      %v1810 = vunpack.c.h.b16 %v523
      %v1811 = vunpack.c.l.b16 %v524
      %v1812 = vunpack.c.h.b16 %v524
      %v1813 = vunpack.c.l.b16 %v525
      %v1814 = vunpack.c.h.b16 %v525
      %v1815 = vunpack.c.l.b16 %v526
      %v1816 = vunpack.c.h.b16 %v526
      %v1817 = vunpack.c.l.b16 %v527
      %v1818 = vunpack.c.h.b16 %v527
      %v1819 = vunpack.c.l.b16 %v528
      %v1820 = vunpack.c.h.b16 %v528
      %v1821 = vunpack.c.l.b16 %v529
      %v1822 = vunpack.c.h.b16 %v529
      %v1823 = vunpack.c.l.b16 %v530
      %v1824 = vunpack.c.h.b16 %v530
      %v1825 = vunpack.c.l.b16 %v531
      %v1826 = vunpack.c.h.b16 %v531
      %v1827 = vunpack.c.l.b16 %v532
      %v1828 = vunpack.c.h.b16 %v532
      %v1829 = vunpack.c.l.b16 %v533
      %v1830 = vunpack.c.h.b16 %v533
      %v1831 = vunpack.c.l.b16 %v534
      %v1832 = vunpack.c.h.b16 %v534
      %v1833 = vunpack.c.l.b16 %v535
      %v1834 = vunpack.c.h.b16 %v535
      %v1835 = vunpack.c.l.b16 %v536
      %v1836 = vunpack.c.h.b16 %v536
      %v1837 = vunpack.c.l.b16 %v537
      %v1838 = vunpack.c.h.b16 %v537
      %v1839 = vunpack.c.l.b16 %v538
      %v1840 = vunpack.c.h.b16 %v538
      %v1841 = vunpack.c.l.b16 %v539
      %v1842 = vunpack.c.h.b16 %v539
      %v1843 = vunpack.c.l.b16 %v540
      %v1844 = vunpack.c.h.b16 %v540
      %v1845 = vunpack.c.l.b16 %v541
      %v1846 = vunpack.c.h.b16 %v541
      %v1847 = vunpack.c.l.b16 %v542
      %v1848 = vunpack.c.h.b16 %v542
      %v1849 = vunpack.c.l.b16 %v543
      %v1850 = vunpack.c.h.b16 %v543
      %v1851 = vunpack.c.l.b16 %v544
      %v1852 = vunpack.c.h.b16 %v544
      %v1853 = vunpack.c.l.b16 %v545
      %v1854 = vunpack.c.h.b16 %v545
      %v1855 = vunpack.c.l.b16 %v546
      %v1856 = vunpack.c.h.b16 %v546
      %v1857 = vunpack.c.l.b16 %v547
      %v1858 = vunpack.c.h.b16 %v547
      %v1859 = vunpack.c.l.b16 %v548
      %v1860 = vunpack.c.h.b16 %v548
      %v1861 = vunpack.c.l.b16 %v549
      %v1862 = vunpack.c.h.b16 %v549
      %v1863 = vunpack.c.l.b16 %v550
      %v1864 = vunpack.c.h.b16 %v550
      %v1865 = vunpack.c.l.b16 %v551
      %v1866 = vunpack.c.h.b16 %v551
      %v1867 = vunpack.c.l.b16 %v552
      %v1868 = vunpack.c.h.b16 %v552
      %v1869 = vunpack.c.l.b16 %v553
      %v1870 = vunpack.c.h.b16 %v553
      %v1871 = vunpack.c.l.b16 %v554
      %v1872 = vunpack.c.h.b16 %v554
      %v1873 = vunpack.c.l.b16 %v555
      %v1874 = vunpack.c.h.b16 %v555
      %v1875 = vunpack.c.l.b16 %v556
      %v1876 = vunpack.c.h.b16 %v556
      %v1877 = vunpack.c.l.b16 %v557
      %v1878 = vunpack.c.h.b16 %v557
      %v1879 = vunpack.c.l.b16 %v558
      %v1880 = vunpack.c.h.b16 %v558
      %v1881 = vunpack.c.l.b16 %v559
      %v1882 = vunpack.c.h.b16 %v559
      %v1883 = vunpack.c.l.b16 %v560
      %v1884 = vunpack.c.h.b16 %v560
      %v1885 = vunpack.c.l.b16 %v561
      %v1886 = vunpack.c.h.b16 %v561
      %v1887 = vunpack.c.l.b16 %v562
      %v1888 = vunpack.c.h.b16 %v562
      %v1889 = vunpack.c.l.b16 %v563
      %v1890 = vunpack.c.h.b16 %v563
      %v1891 = vunpack.c.l.b16 %v564
      %v1892 = vunpack.c.h.b16 %v564
      %v1893 = vunpack.c.l.b16 %v565
      %v1894 = vunpack.c.h.b16 %v565
      %v1895 = vunpack.c.l.b16 %v566
      %v1896 = vunpack.c.h.b16 %v566
      %v1897 = vunpack.c.l.b16 %v567
      %v1898 = vunpack.c.h.b16 %v567
      %v1899 = vunpack.c.l.b16 %v568
      %v1900 = vunpack.c.h.b16 %v568
      %v1901 = vunpack.c.l.b16 %v569
      %v1902 = vunpack.c.h.b16 %v569
      %v1903 = vunpack.c.l.b16 %v570
      %v1904 = vunpack.c.h.b16 %v570
      %v1905 = vunpack.c.l.b16 %v571
      %v1906 = vunpack.c.h.b16 %v571
      %v1907 = vunpack.c.l.b16 %v572
      %v1908 = vunpack.c.h.b16 %v572
      %v1909 = vunpack.c.l.b16 %v573
      %v1910 = vunpack.c.h.b16 %v573
      %v1911 = vunpack.c.l.b16 %v574
      %v1912 = vunpack.c.h.b16 %v574
      %v1913 = vunpack.c.l.b16 %v575
      %v1914 = vunpack.c.h.b16 %v575
      %v1915 = vunpack.c.l.b16 %v576
      %v1916 = vunpack.c.h.b16 %v576
      %v1917 = vunpack.c.l.b16 %v577
      %v1918 = vunpack.c.h.b16 %v577
      %v1919 = vunpack.c.l.b16 %v578
      %v1920 = vunpack.c.h.b16 %v578
      %v1921 = vunpack.c.l.b16 %v579
      %v1922 = vunpack.c.h.b16 %v579
      %v1923 = vunpack.c.l.b16 %v580
      %v1924 = vunpack.c.h.b16 %v580
      %v1925 = vunpack.c.l.b16 %v581
      %v1926 = vunpack.c.h.b16 %v581
      %v1927 = vunpack.c.l.b16 %v582
      %v1928 = vunpack.c.h.b16 %v582
      %v1929 = vunpack.c.l.b16 %v583
      %v1930 = vunpack.c.h.b16 %v583
      %v1931 = vunpack.c.l.b16 %v584
      %v1932 = vunpack.c.h.b16 %v584
      %v1933 = vunpack.c.l.b16 %v585
      %v1934 = vunpack.c.h.b16 %v585
      %v1935 = vunpack.c.l.b16 %v586
      %v1936 = vunpack.c.h.b16 %v586
      %v1937 = vunpack.c.l.b16 %v587
      %v1938 = vunpack.c.h.b16 %v587
      %v1939 = vunpack.c.l.b16 %v588
      %v1940 = vunpack.c.h.b16 %v588
      %v1941 = vunpack.c.l.b16 %v589
      %v1942 = vunpack.c.h.b16 %v589
      %v1943 = vunpack.c.l.b16 %v590
      %v1944 = vunpack.c.h.b16 %v590
      %v1945 = vunpack.c.l.b16 %v591
      %v1946 = vunpack.c.h.b16 %v591
      %v1947 = vunpack.c.l.b16 %v592
      %v1948 = vunpack.c.h.b16 %v592
      %v1949 = vunpack.c.l.b16 %v593
      %v1950 = vunpack.c.h.b16 %v593
      %v1951 = vunpack.c.l.b16 %v594
      %v1952 = vunpack.c.h.b16 %v594
      %v1953 = vunpack.c.l.b16 %v595
      %v1954 = vunpack.c.h.b16 %v595
      %v1955 = vunpack.c.l.b16 %v596
      %v1956 = vunpack.c.h.b16 %v596
      %v1957 = vunpack.c.l.b16 %v597
      %v1958 = vunpack.c.h.b16 %v597
      %v1959 = vunpack.c.l.b16 %v598
      %v1960 = vunpack.c.h.b16 %v598
      %v1961 = vunpack.c.l.b16 %v599
      %v1962 = vunpack.c.h.b16 %v599
      %v1963 = vunpack.c.l.b16 %v600
      %v1964 = vunpack.c.h.b16 %v600
      %v1965 = vunpack.c.l.b16 %v601
      %v1966 = vunpack.c.h.b16 %v601
      %v1967 = vunpack.c.l.b16 %v602
      %v1968 = vunpack.c.h.b16 %v602
      %v1969 = vunpack.c.l.b16 %v603
      %v1970 = vunpack.c.h.b16 %v603
      %v1971 = vunpack.c.l.b16 %v604
      %v1972 = vunpack.c.h.b16 %v604
      %v1973 = vunpack.c.l.b16 %v605
      %v1974 = vunpack.c.h.b16 %v605
      %v1975 = vunpack.c.l.b16 %v606
      %v1976 = vunpack.c.h.b16 %v606
      %v1977 = vunpack.c.l.b16 %v607
      %v1978 = vunpack.c.h.b16 %v607
      %v1979 = vunpack.c.l.b16 %v608
      %v1980 = vunpack.c.h.b16 %v608
      %v1981 = vunpack.c.l.b16 %v609
      %v1982 = vunpack.c.h.b16 %v609
      %v1983 = vunpack.c.l.b16 %v610
      %v1984 = vunpack.c.h.b16 %v610
      %v1985 = vunpack.c.l.b16 %v611
      %v1986 = vunpack.c.h.b16 %v611
      %v1987 = vunpack.c.l.b16 %v612
      %v1988 = vunpack.c.h.b16 %v612
      %v1989 = vunpack.c.l.b16 %v613
      %v1990 = vunpack.c.h.b16 %v613
      %v1991 = vunpack.c.l.b16 %v614
      %v1992 = vunpack.c.h.b16 %v614
      %v1993 = vunpack.c.l.b16 %v615
      %v1994 = vunpack.c.h.b16 %v615
      %v1995 = vunpack.c.l.b16 %v616
      %v1996 = vunpack.c.h.b16 %v616
      %v1997 = vunpack.c.l.b16 %v617
      %v1998 = vunpack.c.h.b16 %v617
      %v1999 = vunpack.c.l.b16 %v618
      %v2000 = vunpack.c.h.b16 %v618
      %v2001 = vunpack.c.l.b16 %v619
      %v2002 = vunpack.c.h.b16 %v619
      %v2003 = vunpack.c.l.b16 %v620
      %v2004 = vunpack.c.h.b16 %v620
      %v2005 = vunpack.c.l.b16 %v621
      %v2006 = vunpack.c.h.b16 %v621
      %v2007 = vunpack.c.l.b16 %v622
      %v2008 = vunpack.c.h.b16 %v622
      %v2009 = vunpack.c.l.b16 %v623
      %v2010 = vunpack.c.h.b16 %v623
      %v2011 = vunpack.c.l.b16 %v624
      %v2012 = vunpack.c.h.b16 %v624
      %v2013 = vunpack.c.l.b16 %v625
      %v2014 = vunpack.c.h.b16 %v625
      %v2015 = vunpack.c.l.b16 %v626
      %v2016 = vunpack.c.h.b16 %v626
      %v2017 = vunpack.c.l.b16 %v627
      %v2018 = vunpack.c.h.b16 %v627
      %v2019 = vunpack.c.l.b16 %v628
      %v2020 = vunpack.c.h.b16 %v628
      %v2021 = vunpack.c.l.b16 %v629
      %v2022 = vunpack.c.h.b16 %v629
      %v2023 = vunpack.c.l.b16 %v630
      %v2024 = vunpack.c.h.b16 %v630
      %v2025 = vunpack.c.l.b16 %v631
      %v2026 = vunpack.c.h.b16 %v631
      %v2027 = vunpack.c.l.b16 %v632
      %v2028 = vunpack.c.h.b16 %v632
      %v2029 = vunpack.c.l.b16 %v633
      %v2030 = vunpack.c.h.b16 %v633
      %v2031 = vunpack.c.l.b16 %v634
      %v2032 = vunpack.c.h.b16 %v634
      %v2033 = vunpack.c.l.b16 %v635
      %v2034 = vunpack.c.h.b16 %v635
      %v2035 = vunpack.c.l.b16 %v636
      %v2036 = vunpack.c.h.b16 %v636
      %v2037 = vunpack.c.l.b16 %v637
      %v2038 = vunpack.c.h.b16 %v637
      %v2039 = vunpack.c.l.b16 %v638
      %v2040 = vunpack.c.h.b16 %v638
      %v2041 = vunpack.c.l.b16 %v639
      %v2042 = vunpack.c.h.b16 %v639
      %v2043 = vunpack.c.l.b16 %v640
      %v2044 = vunpack.c.h.b16 %v640
      %v2045 = vunpack.c.l.b16 %v641
      %v2046 = vunpack.c.h.b16 %v641
      %v2047 = vunpack.c.l.b16 %v642
      %v2048 = vunpack.c.h.b16 %v642
      %v2049 = vunpack.c.l.b16 %v643
      %v2050 = vunpack.c.h.b16 %v643
      %v2051 = vunpack.c.l.b16 %v644
      %v2052 = vunpack.c.h.b16 %v644
      %v2053 = vunpack.c.l.b16 %v645
      %v2054 = vunpack.c.h.b16 %v645
      %v2055 = vunpack.c.l.b16 %v646
      %v2056 = vunpack.c.h.b16 %v646
      %v2057 = vunpack.c.l.b16 %v647
      %v2058 = vunpack.c.h.b16 %v647
      %v2059 = vunpack.c.l.b16 %v648
      %v2060 = vunpack.c.h.b16 %v648
      %v2061 = vunpack.c.l.b16 %v649
      %v2062 = vunpack.c.h.b16 %v649
      %v2063 = vunpack.c.l.b16 %v650
      %v2064 = vunpack.c.h.b16 %v650
      %v2065 = vunpack.c.l.b16 %v651
      %v2066 = vunpack.c.h.b16 %v651
      %v2067 = vunpack.c.l.b16 %v652
      %v2068 = vunpack.c.h.b16 %v652
      %v2069 = vunpack.c.l.b16 %v653
      %v2070 = vunpack.c.h.b16 %v653
      %v2071 = vunpack.c.l.b16 %v654
      %v2072 = vunpack.c.h.b16 %v654
      %v2073 = vunpack.c.l.b16 %v655
      %v2074 = vunpack.c.h.b16 %v655
      %v2075 = vunpack.c.l.b16 %v656
      %v2076 = vunpack.c.h.b16 %v656
      %v2077 = vunpack.c.l.b16 %v657
      %v2078 = vunpack.c.h.b16 %v657
      %v2079 = vunpack.c.l.b16 %v658
      %v2080 = vunpack.c.h.b16 %v658
      %v2081 = vunpack.c.l.b16 %v659
      %v2082 = vunpack.c.h.b16 %v659
      %v2083 = vunpack.c.l.b16 %v660
      %v2084 = vunpack.c.h.b16 %v660
      %v2085 = vunpack.c.l.b16 %v661
      %v2086 = vunpack.c.h.b16 %v661
      %v2087 = vunpack.c.l.b16 %v662
      %v2088 = vunpack.c.h.b16 %v662
      %v2089 = vunpack.c.l.b16 %v663
      %v2090 = vunpack.c.h.b16 %v663
      %v2091 = vunpack.c.l.b16 %v664
      %v2092 = vunpack.c.h.b16 %v664
      %v2093 = vunpack.c.l.b16 %v665
      %v2094 = vunpack.c.h.b16 %v665
      %v2095 = vunpack.c.l.b16 %v666
      %v2096 = vunpack.c.h.b16 %v666
      %v2097 = vunpack.c.l.b16 %v667
      %v2098 = vunpack.c.h.b16 %v667
      %v2099 = vunpack.c.l.b16 %v668
      %v2100 = vunpack.c.h.b16 %v668
      %v2101 = vunpack.c.l.b16 %v669
      %v2102 = vunpack.c.h.b16 %v669
      %v2103 = vunpack.c.l.b16 %v670
      %v2104 = vunpack.c.h.b16 %v670
      %v2105 = vunpack.c.l.b16 %v671
      %v2106 = vunpack.c.h.b16 %v671
      %v2107 = vunpack.c.l.b16 %v672
      %v2108 = vunpack.c.h.b16 %v672
      %v2109 = vunpack.c.l.b16 %v673
      %v2110 = vunpack.c.h.b16 %v673
      %v2111 = vunpack.c.l.b16 %v674
      %v2112 = vunpack.c.h.b16 %v674
      %v2113 = vunpack.c.l.b16 %v675
      %v2114 = vunpack.c.h.b16 %v675
      %v2115 = vunpack.c.l.b16 %v676
      %v2116 = vunpack.c.h.b16 %v676
      %v2117 = vunpack.c.l.b16 %v677
      %v2118 = vunpack.c.h.b16 %v677
      %v2119 = vunpack.c.l.b16 %v678
      %v2120 = vunpack.c.h.b16 %v678
      %v2121 = vunpack.c.l.b16 %v679
      %v2122 = vunpack.c.h.b16 %v679
      %v2123 = vunpack.c.l.b16 %v680
      %v2124 = vunpack.c.h.b16 %v680
      %v2125 = vunpack.c.l.b16 %v681
      %v2126 = vunpack.c.h.b16 %v681
      %v2127 = vunpack.c.l.b16 %v682
      %v2128 = vunpack.c.h.b16 %v682
      %v2129 = vunpack.c.l.b16 %v683
      %v2130 = vunpack.c.h.b16 %v683
      %v2131 = vunpack.c.l.b16 %v684
      %v2132 = vunpack.c.h.b16 %v684
      %v2133 = vunpack.c.l.b16 %v685
      %v2134 = vunpack.c.h.b16 %v685
      %v2135 = vunpack.c.l.b16 %v686
      %v2136 = vunpack.c.h.b16 %v686
      %v2137 = vunpack.c.l.b16 %v687
      %v2138 = vunpack.c.h.b16 %v687
      %v2139 = vunpack.c.l.b16 %v688
      %v2140 = vunpack.c.h.b16 %v688
      %v2141 = vunpack.c.l.b16 %v689
      %v2142 = vunpack.c.h.b16 %v689
      %v2143 = vunpack.c.l.b16 %v690
      %v2144 = vunpack.c.h.b16 %v690
      %v2145 = vunpack.c.l.b16 %v691
      %v2146 = vunpack.c.h.b16 %v691
      %v2147 = vunpack.c.l.b16 %v692
      %v2148 = vunpack.c.h.b16 %v692
      %v2149 = vunpack.c.l.b16 %v693
      %v2150 = vunpack.c.h.b16 %v693
      %v2151 = vunpack.c.l.b16 %v694
      %v2152 = vunpack.c.h.b16 %v694
      %v2153 = vunpack.c.l.b16 %v695
      %v2154 = vunpack.c.h.b16 %v695
      %v2155 = vunpack.c.l.b16 %v696
      %v2156 = vunpack.c.h.b16 %v696
      %v2157 = vunpack.c.l.b16 %v697
      %v2158 = vunpack.c.h.b16 %v697
      %v2159 = vunpack.c.l.b16 %v698
      %v2160 = vunpack.c.h.b16 %v698
      %v2161 = vunpack.c.l.b16 %v699
      %v2162 = vunpack.c.h.b16 %v699
      %v2163 = vunpack.c.l.b16 %v700
      %v2164 = vunpack.c.h.b16 %v700
      %v2165 = vunpack.c.l.b16 %v701
      %v2166 = vunpack.c.h.b16 %v701
      %v2167 = vunpack.c.l.b16 %v702
      %v2168 = vunpack.c.h.b16 %v702
      %v2169 = vunpack.c.l.b16 %v703
      %v2170 = vunpack.c.h.b16 %v703
      %v2171 = vunpack.c.l.b16 %v704
      %v2172 = vunpack.c.h.b16 %v704
      %v2173 = vunpack.c.l.b16 %v705
      %v2174 = vunpack.c.h.b16 %v705
      %v2175 = vunpack.c.l.b16 %v706
      %v2176 = vunpack.c.h.b16 %v706
      %v2177 = vunpack.c.l.b16 %v707
      %v2178 = vunpack.c.h.b16 %v707
      %v2179 = vunpack.c.l.b16 %v708
      %v2180 = vunpack.c.h.b16 %v708
      %v2181 = vunpack.c.l.b16 %v709
      %v2182 = vunpack.c.h.b16 %v709
      %v2183 = vunpack.c.l.b16 %v710
      %v2184 = vunpack.c.h.b16 %v710
      %v2185 = vunpack.c.l.b16 %v711
      %v2186 = vunpack.c.h.b16 %v711
      %v2187 = vunpack.c.l.b16 %v712
      %v2188 = vunpack.c.h.b16 %v712
      %v2189 = vunpack.c.l.b16 %v713
      %v2190 = vunpack.c.h.b16 %v713
      %v2191 = vunpack.c.l.b16 %v714
      %v2192 = vunpack.c.h.b16 %v714
      %v2193 = vunpack.c.l.b16 %v715
      %v2194 = vunpack.c.h.b16 %v715
      %v2195 = vunpack.c.l.b16 %v716
      %v2196 = vunpack.c.h.b16 %v716
      %v2197 = vunpack.c.l.b16 %v717
      %v2198 = vunpack.c.h.b16 %v717
      %v2199 = vunpack.c.l.b16 %v718
      %v2200 = vunpack.c.h.b16 %v718
      %v2201 = vunpack.c.l.b16 %v719
      %v2202 = vunpack.c.h.b16 %v719
      %v2203 = vunpack.c.l.b16 %v720
      %v2204 = vunpack.c.h.b16 %v720
      %v2205 = vunpack.c.l.b16 %v721
      %v2206 = vunpack.c.h.b16 %v721
      %v2207 = vunpack.c.l.b16 %v722
      %v2208 = vunpack.c.h.b16 %v722
      %v2209 = vunpack.c.l.b16 %v723
      %v2210 = vunpack.c.h.b16 %v723
      %v2211 = vunpack.c.l.b16 %v724
      %v2212 = vunpack.c.h.b16 %v724
      %v2213 = vunpack.c.l.b16 %v725
      %v2214 = vunpack.c.h.b16 %v725
      %v2215 = vunpack.c.l.b16 %v726
      %v2216 = vunpack.c.h.b16 %v726
      %v2217 = vunpack.c.l.b16 %v727
      %v2218 = vunpack.c.h.b16 %v727
      %v2219 = vunpack.c.l.b16 %v728
      %v2220 = vunpack.c.h.b16 %v728
      %v2221 = vunpack.c.l.b16 %v729
      %v2222 = vunpack.c.h.b16 %v729
      %v2223 = vunpack.c.l.b16 %v730
      %v2224 = vunpack.c.h.b16 %v730
      %v2225 = vunpack.c.l.b16 %v731
      %v2226 = vunpack.c.h.b16 %v731
      %v2227 = vunpack.c.l.b16 %v732
      %v2228 = vunpack.c.h.b16 %v732
      %v2229 = vunpack.c.l.b16 %v733
      %v2230 = vunpack.c.h.b16 %v733
      %v2231 = vunpack.c.l.b16 %v734
      %v2232 = vunpack.c.h.b16 %v734
      %v2233 = vunpack.c.l.b16 %v735
      %v2234 = vunpack.c.h.b16 %v735
      %v2235 = vunpack.c.l.b16 %v736
      %v2236 = vunpack.c.h.b16 %v736
      %v2237 = vunpack.c.l.b16 %v737
      %v2238 = vunpack.c.h.b16 %v737
      %v2239 = vunpack.c.l.b16 %v738
      %v2240 = vunpack.c.h.b16 %v738
      %v2241 = vunpack.c.l.b16 %v739
      %v2242 = vunpack.c.h.b16 %v739
      %v2243 = vunpack.c.l.b16 %v740
      %v2244 = vunpack.c.h.b16 %v740
      %v2245 = vunpack.c.l.b16 %v741
      %v2246 = vunpack.c.h.b16 %v741
      %v2247 = vunpack.c.l.b16 %v742
      %v2248 = vunpack.c.h.b16 %v742
      %v2249 = vunpack.c.l.b16 %v743
      %v2250 = vunpack.c.h.b16 %v743
      %v2251 = vunpack.c.l.b16 %v744
      %v2252 = vunpack.c.h.b16 %v744
      %v2253 = vunpack.c.l.b16 %v745
      %v2254 = vunpack.c.h.b16 %v745
      %v2255 = vunpack.c.l.b16 %v746
      %v2256 = vunpack.c.h.b16 %v746
      %v2257 = vunpack.c.l.b16 %v747
      %v2258 = vunpack.c.h.b16 %v747
      %v2259 = vunpack.c.l.b16 %v748
      %v2260 = vunpack.c.h.b16 %v748
      %v2261 = vunpack.c.l.b16 %v749
      %v2262 = vunpack.c.h.b16 %v749
      %v2263 = vunpack.c.l.b16 %v750
      %v2264 = vunpack.c.h.b16 %v750
      %v2265 = vunpack.c.l.b16 %v751
      %v2266 = vunpack.c.h.b16 %v751
      %v2267 = vunpack.c.l.b16 %v752
      %v2268 = vunpack.c.h.b16 %v752
      %v2269 = vunpack.c.l.b16 %v753
      %v2270 = vunpack.c.h.b16 %v753
      %v2271 = vunpack.c.l.b16 %v754
      %v2272 = vunpack.c.h.b16 %v754
      %v2273 = vunpack.c.l.b16 %v755
      %v2274 = vunpack.c.h.b16 %v755
      %v2275 = vunpack.c.l.b16 %v756
      %v2276 = vunpack.c.h.b16 %v756
      %v2277 = vunpack.c.l.b16 %v757
      %v2278 = vunpack.c.h.b16 %v757
      %v2279 = vunpack.c.l.b16 %v758
      %v2280 = vunpack.c.h.b16 %v758
      %v2281 = vunpack.c.l.b16 %v759
      %v2282 = vunpack.c.h.b16 %v759
      %v2283 = vunpack.c.l.b16 %v760
      %v2284 = vunpack.c.h.b16 %v760
      %v2285 = vunpack.c.l.b16 %v761
      %v2286 = vunpack.c.h.b16 %v761
      %v2287 = vunpack.c.l.b16 %v762
      %v2288 = vunpack.c.h.b16 %v762
      %v2289 = vunpack.c.l.b16 %v763
      %v2290 = vunpack.c.h.b16 %v763
      %v2291 = vunpack.c.l.b16 %v764
      %v2292 = vunpack.c.h.b16 %v764
      %v2293 = vunpack.c.l.b16 %v765
      %v2294 = vunpack.c.h.b16 %v765
      %v2295 = vunpack.c.l.b16 %v766
      %v2296 = vunpack.c.h.b16 %v766
      %v2297 = vunpack.c.l.b16 %v767
      %v2298 = vunpack.c.h.b16 %v767
      %v2299 = vunpack.c.l.b16 %v768
      %v2300 = vunpack.c.h.b16 %v768
      %v2301 = vunpack.c.l.b16 %v769
      %v2302 = vunpack.c.h.b16 %v769
      %v2303 = vunpack.c.l.b16 %v770
      %v2304 = vunpack.c.h.b16 %v770
      %v2305 = vunpack.c.l.b16 %v771
      %v2306 = vunpack.c.h.b16 %v771
      %v2307 = vunpack.c.l.b16 %v772
      %v2308 = vunpack.c.h.b16 %v772
      %v2309 = vunpack.c.l.b16 %v773
      %v2310 = vunpack.c.h.b16 %v773
      %v2311 = vunpack.c.l.b16 %v774
      %v2312 = vunpack.c.h.b16 %v774
      %v2313 = vunpack.c.l.b16 %v775
      %v2314 = vunpack.c.h.b16 %v775
      %v2315 = vunpack.c.l.b16 %v776
      %v2316 = vunpack.c.h.b16 %v776
      %v2317 = vunpack.c.l.b16 %v777
      %v2318 = vunpack.c.h.b16 %v777
      %v2319 = vunpack.c.l.b16 %v778
      %v2320 = vunpack.c.h.b16 %v778
      %v2321 = vunpack.c.l.b16 %v779
      %v2322 = vunpack.c.h.b16 %v779
      %v2323 = vunpack.c.l.b16 %v780
      %v2324 = vunpack.c.h.b16 %v780
      %v2325 = vunpack.c.l.b16 %v781
      %v2326 = vunpack.c.h.b16 %v781
      %v2327 = vunpack.c.l.b16 %v782
      %v2328 = vunpack.c.h.b16 %v782
      %v2329 = vunpack.c.l.b16 %v783
      %v2330 = vunpack.c.h.b16 %v783
      %v2331 = vunpack.c.l.b16 %v784
      %v2332 = vunpack.c.h.b16 %v784
      %v2333 = vunpack.c.l.b16 %v785
      %v2334 = vunpack.c.h.b16 %v785
      %v2335 = vunpack.c.l.b16 %v786
      %v2336 = vunpack.c.h.b16 %v786
      %v2337 = vunpack.c.l.b16 %v787
      %v2338 = vunpack.c.h.b16 %v787
      %v2339 = vunpack.c.l.b16 %v788
      %v2340 = vunpack.c.h.b16 %v788
      %v2341 = vunpack.c.l.b16 %v789
      %v2342 = vunpack.c.h.b16 %v789
      %v2343 = vunpack.c.l.b16 %v790
      %v2344 = vunpack.c.h.b16 %v790
      %v2345 = vunpack.c.l.b16 %v791
      %v2346 = vunpack.c.h.b16 %v791
      %v2347 = vunpack.c.l.b16 %v792
      %v2348 = vunpack.c.h.b16 %v792
      %v2349 = vunpack.c.l.b16 %v793
      %v2350 = vunpack.c.h.b16 %v793
      %v2351 = vunpack.c.l.b16 %v794
      %v2352 = vunpack.c.h.b16 %v794
      %v2353 = vunpack.c.l.b16 %v795
      %v2354 = vunpack.c.h.b16 %v795
      %v2355 = vunpack.c.l.b16 %v796
      %v2356 = vunpack.c.h.b16 %v796
      %v2357 = vunpack.c.l.b16 %v797
      %v2358 = vunpack.c.h.b16 %v797
      %v2359 = vunpack.c.l.b16 %v798
      %v2360 = vunpack.c.h.b16 %v798
      %v2361 = vunpack.c.l.b16 %v799
      %v2362 = vunpack.c.h.b16 %v799
      %v2363 = vunpack.c.l.b16 %v800
      %v2364 = vunpack.c.h.b16 %v800
      %v2365 = vunpack.c.l.b16 %v801
      %v2366 = vunpack.c.h.b16 %v801
      %v2367 = vunpack.c.l.b16 %v802
      %v2368 = vunpack.c.h.b16 %v802
      %v2369 = vunpack.c.l.b16 %v803
      %v2370 = vunpack.c.h.b16 %v803
      %v2371 = vunpack.c.l.b16 %v804
      %v2372 = vunpack.c.h.b16 %v804
      %v2373 = vunpack.c.l.b16 %v805
      %v2374 = vunpack.c.h.b16 %v805
      %v2375 = vunpack.c.l.b16 %v806
      %v2376 = vunpack.c.h.b16 %v806
      %v2377 = vunpack.c.l.b16 %v807
      %v2378 = vunpack.c.h.b16 %v807
      %v2379 = vunpack.c.l.b16 %v808
      %v2380 = vunpack.c.h.b16 %v808
      %v2381 = vpack.c.b16 %v1361, %v1357
      %v2382 = vpack.c.b16 %v1362, %v1358
      %v2383 = vpack.c.b16 %v1363, %v1359
      %v2384 = vpack.c.b16 %v1364, %v1360
      %v2385 = vpack.c.b16 %v1369, %v1365
      %v2386 = vpack.c.b16 %v1370, %v1366
      %v2387 = vpack.c.b16 %v1371, %v1367
      %v2388 = vpack.c.b16 %v1372, %v1368
      %v2389 = vpack.c.b16 %v1377, %v1373
      %v2390 = vpack.c.b16 %v1378, %v1374
      %v2391 = vpack.c.b16 %v1379, %v1375
      %v2392 = vpack.c.b16 %v1380, %v1376
      %v2393 = vpack.c.b16 %v1385, %v1381
      %v2394 = vpack.c.b16 %v1386, %v1382
      %v2395 = vpack.c.b16 %v1387, %v1383
      %v2396 = vpack.c.b16 %v1388, %v1384
      %v2397 = vpack.c.b16 %v1393, %v1389
      %v2398 = vpack.c.b16 %v1394, %v1390
      %v2399 = vpack.c.b16 %v1395, %v1391
      %v2400 = vpack.c.b16 %v1396, %v1392
      %v2401 = vpack.c.b16 %v1401, %v1397
      %v2402 = vpack.c.b16 %v1402, %v1398
      %v2403 = vpack.c.b16 %v1403, %v1399
      %v2404 = vpack.c.b16 %v1404, %v1400
      %v2405 = vpack.c.b16 %v1409, %v1405
      %v2406 = vpack.c.b16 %v1410, %v1406
      %v2407 = vpack.c.b16 %v1411, %v1407
      %v2408 = vpack.c.b16 %v1412, %v1408
      %v2409 = vpack.c.b16 %v1417, %v1413
      %v2410 = vpack.c.b16 %v1418, %v1414
      %v2411 = vpack.c.b16 %v1419, %v1415
      %v2412 = vpack.c.b16 %v1420, %v1416
      %v2413 = vpack.c.b16 %v1425, %v1421
      %v2414 = vpack.c.b16 %v1426, %v1422
      %v2415 = vpack.c.b16 %v1427, %v1423
      %v2416 = vpack.c.b16 %v1428, %v1424
      %v2417 = vpack.c.b16 %v1433, %v1429
      %v2418 = vpack.c.b16 %v1434, %v1430
      %v2419 = vpack.c.b16 %v1435, %v1431
      %v2420 = vpack.c.b16 %v1436, %v1432
      %v2421 = vpack.c.b16 %v1441, %v1437
      %v2422 = vpack.c.b16 %v1442, %v1438
      %v2423 = vpack.c.b16 %v1443, %v1439
      %v2424 = vpack.c.b16 %v1444, %v1440
      %v2425 = vpack.c.b16 %v1449, %v1445
      %v2426 = vpack.c.b16 %v1450, %v1446
      %v2427 = vpack.c.b16 %v1451, %v1447
      %v2428 = vpack.c.b16 %v1452, %v1448
      %v2429 = vpack.c.b16 %v1457, %v1453
      %v2430 = vpack.c.b16 %v1458, %v1454
      %v2431 = vpack.c.b16 %v1459, %v1455
      %v2432 = vpack.c.b16 %v1460, %v1456
      %v2433 = vpack.c.b16 %v1465, %v1461
      %v2434 = vpack.c.b16 %v1466, %v1462
      %v2435 = vpack.c.b16 %v1467, %v1463
      %v2436 = vpack.c.b16 %v1468, %v1464
      %v2437 = vpack.c.b16 %v1473, %v1469
      %v2438 = vpack.c.b16 %v1474, %v1470
      %v2439 = vpack.c.b16 %v1475, %v1471
      %v2440 = vpack.c.b16 %v1476, %v1472
      %v2441 = vpack.c.b16 %v1481, %v1477
      %v2442 = vpack.c.b16 %v1482, %v1478
      %v2443 = vpack.c.b16 %v1483, %v1479
      %v2444 = vpack.c.b16 %v1484, %v1480
      %v2445 = vpack.c.b16 %v1489, %v1485
      %v2446 = vpack.c.b16 %v1490, %v1486
      %v2447 = vpack.c.b16 %v1491, %v1487
      %v2448 = vpack.c.b16 %v1492, %v1488
      %v2449 = vpack.c.b16 %v1497, %v1493
      %v2450 = vpack.c.b16 %v1498, %v1494
      %v2451 = vpack.c.b16 %v1499, %v1495
      %v2452 = vpack.c.b16 %v1500, %v1496
      %v2453 = vpack.c.b16 %v1505, %v1501
      %v2454 = vpack.c.b16 %v1506, %v1502
      %v2455 = vpack.c.b16 %v1507, %v1503
      %v2456 = vpack.c.b16 %v1508, %v1504
      %v2457 = vpack.c.b16 %v1513, %v1509
      %v2458 = vpack.c.b16 %v1514, %v1510
      %v2459 = vpack.c.b16 %v1515, %v1511
      %v2460 = vpack.c.b16 %v1516, %v1512
      %v2461 = vpack.c.b16 %v1521, %v1517
      %v2462 = vpack.c.b16 %v1522, %v1518
      %v2463 = vpack.c.b16 %v1523, %v1519
      %v2464 = vpack.c.b16 %v1524, %v1520
      %v2465 = vpack.c.b16 %v1529, %v1525
      %v2466 = vpack.c.b16 %v1530, %v1526
      %v2467 = vpack.c.b16 %v1531, %v1527
      %v2468 = vpack.c.b16 %v1532, %v1528
      %v2469 = vpack.c.b16 %v1537, %v1533
      %v2470 = vpack.c.b16 %v1538, %v1534
      %v2471 = vpack.c.b16 %v1539, %v1535
      %v2472 = vpack.c.b16 %v1540, %v1536
      %v2473 = vpack.c.b16 %v1545, %v1541
      %v2474 = vpack.c.b16 %v1546, %v1542
      %v2475 = vpack.c.b16 %v1547, %v1543
      %v2476 = vpack.c.b16 %v1548, %v1544
      %v2477 = vpack.c.b16 %v1553, %v1549
      %v2478 = vpack.c.b16 %v1554, %v1550
      %v2479 = vpack.c.b16 %v1555, %v1551
      %v2480 = vpack.c.b16 %v1556, %v1552
      %v2481 = vpack.c.b16 %v1561, %v1557
      %v2482 = vpack.c.b16 %v1562, %v1558
      %v2483 = vpack.c.b16 %v1563, %v1559
      %v2484 = vpack.c.b16 %v1564, %v1560
      %v2485 = vpack.c.b16 %v1569, %v1565
      %v2486 = vpack.c.b16 %v1570, %v1566
      %v2487 = vpack.c.b16 %v1571, %v1567
      %v2488 = vpack.c.b16 %v1572, %v1568
      %v2489 = vpack.c.b16 %v1577, %v1573
      %v2490 = vpack.c.b16 %v1578, %v1574
      %v2491 = vpack.c.b16 %v1579, %v1575
      %v2492 = vpack.c.b16 %v1580, %v1576
      %v2493 = vpack.c.b16 %v1585, %v1581
      %v2494 = vpack.c.b16 %v1586, %v1582
      %v2495 = vpack.c.b16 %v1587, %v1583
      %v2496 = vpack.c.b16 %v1588, %v1584
      %v2497 = vpack.c.b16 %v1593, %v1589
      %v2498 = vpack.c.b16 %v1594, %v1590
      %v2499 = vpack.c.b16 %v1595, %v1591
      %v2500 = vpack.c.b16 %v1596, %v1592
      %v2501 = vpack.c.b16 %v1601, %v1597
      %v2502 = vpack.c.b16 %v1602, %v1598
      %v2503 = vpack.c.b16 %v1603, %v1599
      %v2504 = vpack.c.b16 %v1604, %v1600
      %v2505 = vpack.c.b16 %v1609, %v1605
      %v2506 = vpack.c.b16 %v1610, %v1606
      %v2507 = vpack.c.b16 %v1611, %v1607
      %v2508 = vpack.c.b16 %v1612, %v1608
      %v2509 = vpack.c.b16 %v1617, %v1613
      %v2510 = vpack.c.b16 %v1618, %v1614
      %v2511 = vpack.c.b16 %v1619, %v1615
      %v2512 = vpack.c.b16 %v1620, %v1616
      %v2513 = vpack.c.b16 %v1625, %v1621
      %v2514 = vpack.c.b16 %v1626, %v1622
      %v2515 = vpack.c.b16 %v1627, %v1623
      %v2516 = vpack.c.b16 %v1628, %v1624
      %v2517 = vpack.c.b16 %v1633, %v1629
      %v2518 = vpack.c.b16 %v1634, %v1630
      %v2519 = vpack.c.b16 %v1635, %v1631
      %v2520 = vpack.c.b16 %v1636, %v1632
      %v2521 = vpack.c.b16 %v1641, %v1637
      %v2522 = vpack.c.b16 %v1642, %v1638
      %v2523 = vpack.c.b16 %v1643, %v1639
      %v2524 = vpack.c.b16 %v1644, %v1640
      %v2525 = vpack.c.b16 %v1649, %v1645
      %v2526 = vpack.c.b16 %v1650, %v1646
      %v2527 = vpack.c.b16 %v1651, %v1647
      %v2528 = vpack.c.b16 %v1652, %v1648
      %v2529 = vpack.c.b16 %v1657, %v1653
      %v2530 = vpack.c.b16 %v1658, %v1654
      %v2531 = vpack.c.b16 %v1659, %v1655
      %v2532 = vpack.c.b16 %v1660, %v1656
      %v2533 = vpack.c.b16 %v1665, %v1661
      %v2534 = vpack.c.b16 %v1666, %v1662
      %v2535 = vpack.c.b16 %v1667, %v1663
      %v2536 = vpack.c.b16 %v1668, %v1664
      %v2537 = vpack.c.b16 %v1673, %v1669
      %v2538 = vpack.c.b16 %v1674, %v1670
      %v2539 = vpack.c.b16 %v1675, %v1671
      %v2540 = vpack.c.b16 %v1676, %v1672
      %v2541 = vpack.c.b16 %v1681, %v1677
      %v2542 = vpack.c.b16 %v1682, %v1678
      %v2543 = vpack.c.b16 %v1683, %v1679
      %v2544 = vpack.c.b16 %v1684, %v1680
      %v2545 = vpack.c.b16 %v1689, %v1685
      %v2546 = vpack.c.b16 %v1690, %v1686
      %v2547 = vpack.c.b16 %v1691, %v1687
      %v2548 = vpack.c.b16 %v1692, %v1688
      %v2549 = vpack.c.b16 %v1697, %v1693
      %v2550 = vpack.c.b16 %v1698, %v1694
      %v2551 = vpack.c.b16 %v1699, %v1695
      %v2552 = vpack.c.b16 %v1700, %v1696
      %v2553 = vpack.c.b16 %v1705, %v1701
      %v2554 = vpack.c.b16 %v1706, %v1702
      %v2555 = vpack.c.b16 %v1707, %v1703
      %v2556 = vpack.c.b16 %v1708, %v1704
      %v2557 = vpack.c.b16 %v1713, %v1709
      %v2558 = vpack.c.b16 %v1714, %v1710
      %v2559 = vpack.c.b16 %v1715, %v1711
      %v2560 = vpack.c.b16 %v1716, %v1712
      %v2561 = vpack.c.b16 %v1721, %v1717
      %v2562 = vpack.c.b16 %v1722, %v1718
      %v2563 = vpack.c.b16 %v1723, %v1719
      %v2564 = vpack.c.b16 %v1724, %v1720
      %v2565 = vpack.c.b16 %v1729, %v1725
      %v2566 = vpack.c.b16 %v1730, %v1726
      %v2567 = vpack.c.b16 %v1731, %v1727
      %v2568 = vpack.c.b16 %v1732, %v1728
      %v2569 = vpack.c.b16 %v1737, %v1733
      %v2570 = vpack.c.b16 %v1738, %v1734
      %v2571 = vpack.c.b16 %v1739, %v1735
      %v2572 = vpack.c.b16 %v1740, %v1736
      %v2573 = vpack.c.b16 %v1745, %v1741
      %v2574 = vpack.c.b16 %v1746, %v1742
      %v2575 = vpack.c.b16 %v1747, %v1743
      %v2576 = vpack.c.b16 %v1748, %v1744
      %v2577 = vpack.c.b16 %v1753, %v1749
      %v2578 = vpack.c.b16 %v1754, %v1750
      %v2579 = vpack.c.b16 %v1755, %v1751
      %v2580 = vpack.c.b16 %v1756, %v1752
      %v2581 = vpack.c.b16 %v1761, %v1757
      %v2582 = vpack.c.b16 %v1762, %v1758
      %v2583 = vpack.c.b16 %v1763, %v1759
      %v2584 = vpack.c.b16 %v1764, %v1760
      %v2585 = vpack.c.b16 %v1769, %v1765
      %v2586 = vpack.c.b16 %v1770, %v1766
      %v2587 = vpack.c.b16 %v1771, %v1767
      %v2588 = vpack.c.b16 %v1772, %v1768
      %v2589 = vpack.c.b16 %v1777, %v1773
      %v2590 = vpack.c.b16 %v1778, %v1774
      %v2591 = vpack.c.b16 %v1779, %v1775
      %v2592 = vpack.c.b16 %v1780, %v1776
      %v2593 = vpack.c.b16 %v1785, %v1781
      %v2594 = vpack.c.b16 %v1786, %v1782
      %v2595 = vpack.c.b16 %v1787, %v1783
      %v2596 = vpack.c.b16 %v1788, %v1784
      %v2597 = vpack.c.b16 %v1793, %v1789
      %v2598 = vpack.c.b16 %v1794, %v1790
      %v2599 = vpack.c.b16 %v1795, %v1791
      %v2600 = vpack.c.b16 %v1796, %v1792
      %v2601 = vpack.c.b16 %v1801, %v1797
      %v2602 = vpack.c.b16 %v1802, %v1798
      %v2603 = vpack.c.b16 %v1803, %v1799
      %v2604 = vpack.c.b16 %v1804, %v1800
      %v2605 = vpack.c.b16 %v1809, %v1805
      %v2606 = vpack.c.b16 %v1810, %v1806
      %v2607 = vpack.c.b16 %v1811, %v1807
      %v2608 = vpack.c.b16 %v1812, %v1808
      %v2609 = vpack.c.b16 %v1817, %v1813
      %v2610 = vpack.c.b16 %v1818, %v1814
      %v2611 = vpack.c.b16 %v1819, %v1815
      %v2612 = vpack.c.b16 %v1820, %v1816
      %v2613 = vpack.c.b16 %v1825, %v1821
      %v2614 = vpack.c.b16 %v1826, %v1822
      %v2615 = vpack.c.b16 %v1827, %v1823
      %v2616 = vpack.c.b16 %v1828, %v1824
      %v2617 = vpack.c.b16 %v1833, %v1829
      %v2618 = vpack.c.b16 %v1834, %v1830
      %v2619 = vpack.c.b16 %v1835, %v1831
      %v2620 = vpack.c.b16 %v1836, %v1832
      %v2621 = vpack.c.b16 %v1841, %v1837
      %v2622 = vpack.c.b16 %v1842, %v1838
      %v2623 = vpack.c.b16 %v1843, %v1839
      %v2624 = vpack.c.b16 %v1844, %v1840
      %v2625 = vpack.c.b16 %v1849, %v1845
      %v2626 = vpack.c.b16 %v1850, %v1846
      %v2627 = vpack.c.b16 %v1851, %v1847
      %v2628 = vpack.c.b16 %v1852, %v1848
      %v2629 = vpack.c.b16 %v1857, %v1853
      %v2630 = vpack.c.b16 %v1858, %v1854
      %v2631 = vpack.c.b16 %v1859, %v1855
      %v2632 = vpack.c.b16 %v1860, %v1856
      %v2633 = vpack.c.b16 %v1865, %v1861
      %v2634 = vpack.c.b16 %v1866, %v1862
      %v2635 = vpack.c.b16 %v1867, %v1863
      %v2636 = vpack.c.b16 %v1868, %v1864
      %v2637 = vpack.c.b16 %v1873, %v1869
      %v2638 = vpack.c.b16 %v1874, %v1870
      %v2639 = vpack.c.b16 %v1875, %v1871
      %v2640 = vpack.c.b16 %v1876, %v1872
      %v2641 = vpack.c.b16 %v1881, %v1877
      %v2642 = vpack.c.b16 %v1882, %v1878
      %v2643 = vpack.c.b16 %v1883, %v1879
      %v2644 = vpack.c.b16 %v1884, %v1880
      %v2645 = vpack.c.b16 %v1889, %v1885
      %v2646 = vpack.c.b16 %v1890, %v1886
      %v2647 = vpack.c.b16 %v1891, %v1887
      %v2648 = vpack.c.b16 %v1892, %v1888
      %v2649 = vpack.c.b16 %v1897, %v1893
      %v2650 = vpack.c.b16 %v1898, %v1894
      %v2651 = vpack.c.b16 %v1899, %v1895
      %v2652 = vpack.c.b16 %v1900, %v1896
      %v2653 = vpack.c.b16 %v1905, %v1901
      %v2654 = vpack.c.b16 %v1906, %v1902
      %v2655 = vpack.c.b16 %v1907, %v1903
      %v2656 = vpack.c.b16 %v1908, %v1904
      %v2657 = vpack.c.b16 %v1913, %v1909
      %v2658 = vpack.c.b16 %v1914, %v1910
      %v2659 = vpack.c.b16 %v1915, %v1911
      %v2660 = vpack.c.b16 %v1916, %v1912
      %v2661 = vpack.c.b16 %v1921, %v1917
      %v2662 = vpack.c.b16 %v1922, %v1918
      %v2663 = vpack.c.b16 %v1923, %v1919
      %v2664 = vpack.c.b16 %v1924, %v1920
      %v2665 = vpack.c.b16 %v1929, %v1925
      %v2666 = vpack.c.b16 %v1930, %v1926
      %v2667 = vpack.c.b16 %v1931, %v1927
      %v2668 = vpack.c.b16 %v1932, %v1928
      %v2669 = vpack.c.b16 %v1937, %v1933
      %v2670 = vpack.c.b16 %v1938, %v1934
      %v2671 = vpack.c.b16 %v1939, %v1935
      %v2672 = vpack.c.b16 %v1940, %v1936
      %v2673 = vpack.c.b16 %v1945, %v1941
      %v2674 = vpack.c.b16 %v1946, %v1942
      %v2675 = vpack.c.b16 %v1947, %v1943
      %v2676 = vpack.c.b16 %v1948, %v1944
      %v2677 = vpack.c.b16 %v1953, %v1949
      %v2678 = vpack.c.b16 %v1954, %v1950
      %v2679 = vpack.c.b16 %v1955, %v1951
      %v2680 = vpack.c.b16 %v1956, %v1952
      %v2681 = vpack.c.b16 %v1961, %v1957
      %v2682 = vpack.c.b16 %v1962, %v1958
      %v2683 = vpack.c.b16 %v1963, %v1959
      %v2684 = vpack.c.b16 %v1964, %v1960
      %v2685 = vpack.c.b16 %v1969, %v1965
      %v2686 = vpack.c.b16 %v1970, %v1966
      %v2687 = vpack.c.b16 %v1971, %v1967
      %v2688 = vpack.c.b16 %v1972, %v1968
      %v2689 = vpack.c.b16 %v1977, %v1973
      %v2690 = vpack.c.b16 %v1978, %v1974
      %v2691 = vpack.c.b16 %v1979, %v1975
      %v2692 = vpack.c.b16 %v1980, %v1976
      %v2693 = vpack.c.b16 %v1985, %v1981
      %v2694 = vpack.c.b16 %v1986, %v1982
      %v2695 = vpack.c.b16 %v1987, %v1983
      %v2696 = vpack.c.b16 %v1988, %v1984
      %v2697 = vpack.c.b16 %v1993, %v1989
      %v2698 = vpack.c.b16 %v1994, %v1990
      %v2699 = vpack.c.b16 %v1995, %v1991
      %v2700 = vpack.c.b16 %v1996, %v1992
      %v2701 = vpack.c.b16 %v2001, %v1997
      %v2702 = vpack.c.b16 %v2002, %v1998
      %v2703 = vpack.c.b16 %v2003, %v1999
      %v2704 = vpack.c.b16 %v2004, %v2000
      %v2705 = vpack.c.b16 %v2009, %v2005
      %v2706 = vpack.c.b16 %v2010, %v2006
      %v2707 = vpack.c.b16 %v2011, %v2007
      %v2708 = vpack.c.b16 %v2012, %v2008
      %v2709 = vpack.c.b16 %v2017, %v2013
      %v2710 = vpack.c.b16 %v2018, %v2014
      %v2711 = vpack.c.b16 %v2019, %v2015
      %v2712 = vpack.c.b16 %v2020, %v2016
      %v2713 = vpack.c.b16 %v2025, %v2021
      %v2714 = vpack.c.b16 %v2026, %v2022
      %v2715 = vpack.c.b16 %v2027, %v2023
      %v2716 = vpack.c.b16 %v2028, %v2024
      %v2717 = vpack.c.b16 %v2033, %v2029
      %v2718 = vpack.c.b16 %v2034, %v2030
      %v2719 = vpack.c.b16 %v2035, %v2031
      %v2720 = vpack.c.b16 %v2036, %v2032
      %v2721 = vpack.c.b16 %v2041, %v2037
      %v2722 = vpack.c.b16 %v2042, %v2038
      %v2723 = vpack.c.b16 %v2043, %v2039
      %v2724 = vpack.c.b16 %v2044, %v2040
      %v2725 = vpack.c.b16 %v2049, %v2045
      %v2726 = vpack.c.b16 %v2050, %v2046
      %v2727 = vpack.c.b16 %v2051, %v2047
      %v2728 = vpack.c.b16 %v2052, %v2048
      %v2729 = vpack.c.b16 %v2057, %v2053
      %v2730 = vpack.c.b16 %v2058, %v2054
      %v2731 = vpack.c.b16 %v2059, %v2055
      %v2732 = vpack.c.b16 %v2060, %v2056
      %v2733 = vpack.c.b16 %v2065, %v2061
      %v2734 = vpack.c.b16 %v2066, %v2062
      %v2735 = vpack.c.b16 %v2067, %v2063
      %v2736 = vpack.c.b16 %v2068, %v2064
      %v2737 = vpack.c.b16 %v2073, %v2069
      %v2738 = vpack.c.b16 %v2074, %v2070
      %v2739 = vpack.c.b16 %v2075, %v2071
      %v2740 = vpack.c.b16 %v2076, %v2072
      %v2741 = vpack.c.b16 %v2081, %v2077
      %v2742 = vpack.c.b16 %v2082, %v2078
      %v2743 = vpack.c.b16 %v2083, %v2079
      %v2744 = vpack.c.b16 %v2084, %v2080
      %v2745 = vpack.c.b16 %v2089, %v2085
      %v2746 = vpack.c.b16 %v2090, %v2086
      %v2747 = vpack.c.b16 %v2091, %v2087
      %v2748 = vpack.c.b16 %v2092, %v2088
      %v2749 = vpack.c.b16 %v2097, %v2093
      %v2750 = vpack.c.b16 %v2098, %v2094
      %v2751 = vpack.c.b16 %v2099, %v2095
      %v2752 = vpack.c.b16 %v2100, %v2096
      %v2753 = vpack.c.b16 %v2105, %v2101
      %v2754 = vpack.c.b16 %v2106, %v2102
      %v2755 = vpack.c.b16 %v2107, %v2103
      %v2756 = vpack.c.b16 %v2108, %v2104
      %v2757 = vpack.c.b16 %v2113, %v2109
      %v2758 = vpack.c.b16 %v2114, %v2110
      %v2759 = vpack.c.b16 %v2115, %v2111
      %v2760 = vpack.c.b16 %v2116, %v2112
      %v2761 = vpack.c.b16 %v2121, %v2117
      %v2762 = vpack.c.b16 %v2122, %v2118
      %v2763 = vpack.c.b16 %v2123, %v2119
      %v2764 = vpack.c.b16 %v2124, %v2120
      %v2765 = vpack.c.b16 %v2129, %v2125
      %v2766 = vpack.c.b16 %v2130, %v2126
      %v2767 = vpack.c.b16 %v2131, %v2127
      %v2768 = vpack.c.b16 %v2132, %v2128
      %v2769 = vpack.c.b16 %v2137, %v2133
      %v2770 = vpack.c.b16 %v2138, %v2134
      %v2771 = vpack.c.b16 %v2139, %v2135
      %v2772 = vpack.c.b16 %v2140, %v2136
      %v2773 = vpack.c.b16 %v2145, %v2141
      %v2774 = vpack.c.b16 %v2146, %v2142
      %v2775 = vpack.c.b16 %v2147, %v2143
      %v2776 = vpack.c.b16 %v2148, %v2144
      %v2777 = vpack.c.b16 %v2153, %v2149
      %v2778 = vpack.c.b16 %v2154, %v2150
      %v2779 = vpack.c.b16 %v2155, %v2151
      %v2780 = vpack.c.b16 %v2156, %v2152
      %v2781 = vpack.c.b16 %v2161, %v2157
      %v2782 = vpack.c.b16 %v2162, %v2158
      %v2783 = vpack.c.b16 %v2163, %v2159
      %v2784 = vpack.c.b16 %v2164, %v2160
      %v2785 = vpack.c.b16 %v2169, %v2165
      %v2786 = vpack.c.b16 %v2170, %v2166
      %v2787 = vpack.c.b16 %v2171, %v2167
      %v2788 = vpack.c.b16 %v2172, %v2168
      %v2789 = vpack.c.b16 %v2177, %v2173
      %v2790 = vpack.c.b16 %v2178, %v2174
      %v2791 = vpack.c.b16 %v2179, %v2175
      %v2792 = vpack.c.b16 %v2180, %v2176
      %v2793 = vpack.c.b16 %v2185, %v2181
      %v2794 = vpack.c.b16 %v2186, %v2182
      %v2795 = vpack.c.b16 %v2187, %v2183
      %v2796 = vpack.c.b16 %v2188, %v2184
      %v2797 = vpack.c.b16 %v2193, %v2189
      %v2798 = vpack.c.b16 %v2194, %v2190
      %v2799 = vpack.c.b16 %v2195, %v2191
      %v2800 = vpack.c.b16 %v2196, %v2192
      %v2801 = vpack.c.b16 %v2201, %v2197
      %v2802 = vpack.c.b16 %v2202, %v2198
      %v2803 = vpack.c.b16 %v2203, %v2199
      %v2804 = vpack.c.b16 %v2204, %v2200
      %v2805 = vpack.c.b16 %v2209, %v2205
      %v2806 = vpack.c.b16 %v2210, %v2206
      %v2807 = vpack.c.b16 %v2211, %v2207
      %v2808 = vpack.c.b16 %v2212, %v2208
      %v2809 = vpack.c.b16 %v2217, %v2213
      %v2810 = vpack.c.b16 %v2218, %v2214
      %v2811 = vpack.c.b16 %v2219, %v2215
      %v2812 = vpack.c.b16 %v2220, %v2216
      %v2813 = vpack.c.b16 %v2225, %v2221
      %v2814 = vpack.c.b16 %v2226, %v2222
      %v2815 = vpack.c.b16 %v2227, %v2223
      %v2816 = vpack.c.b16 %v2228, %v2224
      %v2817 = vpack.c.b16 %v2233, %v2229
      %v2818 = vpack.c.b16 %v2234, %v2230
      %v2819 = vpack.c.b16 %v2235, %v2231
      %v2820 = vpack.c.b16 %v2236, %v2232
      %v2821 = vpack.c.b16 %v2241, %v2237
      %v2822 = vpack.c.b16 %v2242, %v2238
      %v2823 = vpack.c.b16 %v2243, %v2239
      %v2824 = vpack.c.b16 %v2244, %v2240
      %v2825 = vpack.c.b16 %v2249, %v2245
      %v2826 = vpack.c.b16 %v2250, %v2246
      %v2827 = vpack.c.b16 %v2251, %v2247
      %v2828 = vpack.c.b16 %v2252, %v2248
      %v2829 = vpack.c.b16 %v2257, %v2253
      %v2830 = vpack.c.b16 %v2258, %v2254
      %v2831 = vpack.c.b16 %v2259, %v2255
      %v2832 = vpack.c.b16 %v2260, %v2256
      %v2833 = vpack.c.b16 %v2265, %v2261
      %v2834 = vpack.c.b16 %v2266, %v2262
      %v2835 = vpack.c.b16 %v2267, %v2263
      %v2836 = vpack.c.b16 %v2268, %v2264
      %v2837 = vpack.c.b16 %v2273, %v2269
      %v2838 = vpack.c.b16 %v2274, %v2270
      %v2839 = vpack.c.b16 %v2275, %v2271
      %v2840 = vpack.c.b16 %v2276, %v2272
      %v2841 = vpack.c.b16 %v2281, %v2277
      %v2842 = vpack.c.b16 %v2282, %v2278
      %v2843 = vpack.c.b16 %v2283, %v2279
      %v2844 = vpack.c.b16 %v2284, %v2280
      %v2845 = vpack.c.b16 %v2289, %v2285
      %v2846 = vpack.c.b16 %v2290, %v2286
      %v2847 = vpack.c.b16 %v2291, %v2287
      %v2848 = vpack.c.b16 %v2292, %v2288
      %v2849 = vpack.c.b16 %v2297, %v2293
      %v2850 = vpack.c.b16 %v2298, %v2294
      %v2851 = vpack.c.b16 %v2299, %v2295
      %v2852 = vpack.c.b16 %v2300, %v2296
      %v2853 = vpack.c.b16 %v2305, %v2301
      %v2854 = vpack.c.b16 %v2306, %v2302
      %v2855 = vpack.c.b16 %v2307, %v2303
      %v2856 = vpack.c.b16 %v2308, %v2304
      %v2857 = vpack.c.b16 %v2313, %v2309
      %v2858 = vpack.c.b16 %v2314, %v2310
      %v2859 = vpack.c.b16 %v2315, %v2311
      %v2860 = vpack.c.b16 %v2316, %v2312
      %v2861 = vpack.c.b16 %v2321, %v2317
      %v2862 = vpack.c.b16 %v2322, %v2318
      %v2863 = vpack.c.b16 %v2323, %v2319
      %v2864 = vpack.c.b16 %v2324, %v2320
      %v2865 = vpack.c.b16 %v2329, %v2325
      %v2866 = vpack.c.b16 %v2330, %v2326
      %v2867 = vpack.c.b16 %v2331, %v2327
      %v2868 = vpack.c.b16 %v2332, %v2328
      %v2869 = vpack.c.b16 %v2337, %v2333
      %v2870 = vpack.c.b16 %v2338, %v2334
      %v2871 = vpack.c.b16 %v2339, %v2335
      %v2872 = vpack.c.b16 %v2340, %v2336
      %v2873 = vpack.c.b16 %v2345, %v2341
      %v2874 = vpack.c.b16 %v2346, %v2342
      %v2875 = vpack.c.b16 %v2347, %v2343
      %v2876 = vpack.c.b16 %v2348, %v2344
      %v2877 = vpack.c.b16 %v2353, %v2349
      %v2878 = vpack.c.b16 %v2354, %v2350
      %v2879 = vpack.c.b16 %v2355, %v2351
      %v2880 = vpack.c.b16 %v2356, %v2352
      %v2881 = vpack.c.b16 %v2361, %v2357
      %v2882 = vpack.c.b16 %v2362, %v2358
      %v2883 = vpack.c.b16 %v2363, %v2359
      %v2884 = vpack.c.b16 %v2364, %v2360
      %v2885 = vpack.c.b16 %v2369, %v2365
      %v2886 = vpack.c.b16 %v2370, %v2366
      %v2887 = vpack.c.b16 %v2371, %v2367
      %v2888 = vpack.c.b16 %v2372, %v2368
      %v2889 = vpack.c.b16 %v2377, %v2373
      %v2890 = vpack.c.b16 %v2378, %v2374
      %v2891 = vpack.c.b16 %v2379, %v2375
      %v2892 = vpack.c.b16 %v2380, %v2376
      %3405 = vmatpush.bf16.msra.mxu0 %v2409
      %3406 = vmatpush.bf16.msra.mxu0 %v2405
      %3407 = vmatpush.bf16.msra.mxu0 %v2401
      %3408 = vmatpush.bf16.msra.mxu0 %v2397
      %3409 = vmatpush.bf16.msra.mxu0 %v2393
      %3410 = vmatpush.bf16.msra.mxu0 %v2389
      %3411 = vmatpush.bf16.msra.mxu0 %v2385
      %3412 = vmatpush.bf16.msra.mxu0 %v2381
      %3413 = vmatmul.bf16.gmra.mxu0 %v811
      %v3414 = vpop.f32.mrf.mxu0
      %v3415 = vadd.f32 0.0, %v3414
      %v3416 = vpop.f32.mrf.mxu0
      %3417 = vdwg.mxu0
      %3418 = vmatpush.bf16.msra.mxu0 %v2441
      %3419 = vmatpush.bf16.msra.mxu0 %v2437
      %3420 = vmatpush.bf16.msra.mxu0 %v2433
      %3421 = vmatpush.bf16.msra.mxu0 %v2429
      %3422 = vmatpush.bf16.msra.mxu0 %v2425
      %3423 = vmatpush.bf16.msra.mxu0 %v2421
      %3424 = vmatpush.bf16.msra.mxu0 %v2417
      %3425 = vmatpush.bf16.msra.mxu0 %v2413
      %3426 = vmatmul.bf16.gmra.mxu0 %v812
      %v3427 = vpop.f32.mrf.mxu0
      %v3428 = vadd.f32 %v3415, %v3427
      %v3429 = vpop.f32.mrf.mxu0
      %3430 = vdwg.mxu0
      %3431 = vmatpush.bf16.msra.mxu0 %v2473
      %3432 = vmatpush.bf16.msra.mxu0 %v2469
      %3433 = vmatpush.bf16.msra.mxu0 %v2465
      %3434 = vmatpush.bf16.msra.mxu0 %v2461
      %3435 = vmatpush.bf16.msra.mxu0 %v2457
      %3436 = vmatpush.bf16.msra.mxu0 %v2453
      %3437 = vmatpush.bf16.msra.mxu0 %v2449
      %3438 = vmatpush.bf16.msra.mxu0 %v2445
      %3439 = vmatmul.bf16.gmra.mxu0 %v813
      %v3440 = vpop.f32.mrf.mxu0
      %v3441 = vadd.f32 %v3428, %v3440
      %v3442 = vpop.f32.mrf.mxu0
      %3443 = vdwg.mxu0
      %3444 = vmatpush.bf16.msra.mxu0 %v2505
      %3445 = vmatpush.bf16.msra.mxu0 %v2501
      %3446 = vmatpush.bf16.msra.mxu0 %v2497
      %3447 = vmatpush.bf16.msra.mxu0 %v2493
      %3448 = vmatpush.bf16.msra.mxu0 %v2489
      %3449 = vmatpush.bf16.msra.mxu0 %v2485
      %3450 = vmatpush.bf16.msra.mxu0 %v2481
      %3451 = vmatpush.bf16.msra.mxu0 %v2477
      %3452 = vmatmul.bf16.gmra.mxu0 %v814
      %v3453 = vpop.f32.mrf.mxu0
      %v3454 = vadd.f32 %v3441, %v3453
      %v3455 = vpop.f32.mrf.mxu0
      %3456 = vdwg.mxu0
      %3457 = vmatpush.bf16.msra.mxu0 %v2537
      %3458 = vmatpush.bf16.msra.mxu0 %v2533
      %3459 = vmatpush.bf16.msra.mxu0 %v2529
      %3460 = vmatpush.bf16.msra.mxu0 %v2525
      %3461 = vmatpush.bf16.msra.mxu0 %v2521
      %3462 = vmatpush.bf16.msra.mxu0 %v2517
      %3463 = vmatpush.bf16.msra.mxu0 %v2513
      %3464 = vmatpush.bf16.msra.mxu0 %v2509
      %3465 = vmatmul.bf16.gmra.mxu0 %v815
      %v3466 = vpop.f32.mrf.mxu0
      %v3467 = vadd.f32 %v3454, %v3466
      %v3468 = vpop.f32.mrf.mxu0
      %3469 = vdwg.mxu0
      %3470 = vmatpush.bf16.msra.mxu0 %v2569
      %3471 = vmatpush.bf16.msra.mxu0 %v2565
      %3472 = vmatpush.bf16.msra.mxu0 %v2561
      %3473 = vmatpush.bf16.msra.mxu0 %v2557
      %3474 = vmatpush.bf16.msra.mxu0 %v2553
      %3475 = vmatpush.bf16.msra.mxu0 %v2549
      %3476 = vmatpush.bf16.msra.mxu0 %v2545
      %3477 = vmatpush.bf16.msra.mxu0 %v2541
      %3478 = vmatmul.bf16.gmra.mxu0 %v816
      %v3479 = vpop.f32.mrf.mxu0
      %v3480 = vadd.f32 %v3467, %v3479
      %v3481 = vpop.f32.mrf.mxu0
      %3482 = vdwg.mxu0
      %3483 = vmatpush.bf16.msra.mxu0 %v2601
      %3484 = vmatpush.bf16.msra.mxu0 %v2597
      %3485 = vmatpush.bf16.msra.mxu0 %v2593
      %3486 = vmatpush.bf16.msra.mxu0 %v2589
      %3487 = vmatpush.bf16.msra.mxu0 %v2585
      %3488 = vmatpush.bf16.msra.mxu0 %v2581
      %3489 = vmatpush.bf16.msra.mxu0 %v2577
      %3490 = vmatpush.bf16.msra.mxu0 %v2573
      %3491 = vmatmul.bf16.gmra.mxu0 %v817
      %v3492 = vpop.f32.mrf.mxu0
      %v3493 = vadd.f32 %v3480, %v3492
      %v3494 = vpop.f32.mrf.mxu0
      %3495 = vdwg.mxu0
      %3496 = vmatpush.bf16.msra.mxu0 %v2633
      %3497 = vmatpush.bf16.msra.mxu0 %v2629
      %3498 = vmatpush.bf16.msra.mxu0 %v2625
      %3499 = vmatpush.bf16.msra.mxu0 %v2621
      %3500 = vmatpush.bf16.msra.mxu0 %v2617
      %3501 = vmatpush.bf16.msra.mxu0 %v2613
      %3502 = vmatpush.bf16.msra.mxu0 %v2609
      %3503 = vmatpush.bf16.msra.mxu0 %v2605
      %3504 = vmatmul.bf16.gmra.mxu0 %v818
      %v3505 = vpop.f32.mrf.mxu0
      %v3506 = vadd.f32 %v3493, %v3505
      %v3507 = vpop.f32.mrf.mxu0
      %3508 = vdwg.mxu0
      %3509 = vmatpush.bf16.msra.mxu0 %v2665
      %3510 = vmatpush.bf16.msra.mxu0 %v2661
      %3511 = vmatpush.bf16.msra.mxu0 %v2657
      %3512 = vmatpush.bf16.msra.mxu0 %v2653
      %3513 = vmatpush.bf16.msra.mxu0 %v2649
      %3514 = vmatpush.bf16.msra.mxu0 %v2645
      %3515 = vmatpush.bf16.msra.mxu0 %v2641
      %3516 = vmatpush.bf16.msra.mxu0 %v2637
      %3517 = vmatmul.bf16.gmra.mxu0 %v821
      %v3518 = vpop.f32.mrf.mxu0
      %v3519 = vadd.f32 %v3506, %v3518
      %v3520 = vpop.f32.mrf.mxu0
      %3521 = vdwg.mxu0
      %3522 = vmatpush.bf16.msra.mxu0 %v2697
      %3523 = vmatpush.bf16.msra.mxu0 %v2693
      %3524 = vmatpush.bf16.msra.mxu0 %v2689
      %3525 = vmatpush.bf16.msra.mxu0 %v2685
      %3526 = vmatpush.bf16.msra.mxu0 %v2681
      %3527 = vmatpush.bf16.msra.mxu0 %v2677
      %3528 = vmatpush.bf16.msra.mxu0 %v2673
      %3529 = vmatpush.bf16.msra.mxu0 %v2669
      %3530 = vmatmul.bf16.gmra.mxu0 %v822
      %v3531 = vpop.f32.mrf.mxu0
      %v3532 = vadd.f32 %v3519, %v3531
      %v3533 = vpop.f32.mrf.mxu0
      %3534 = vdwg.mxu0
      %3535 = vmatpush.bf16.msra.mxu0 %v2729
      %3536 = vmatpush.bf16.msra.mxu0 %v2725
      %3537 = vmatpush.bf16.msra.mxu0 %v2721
      %3538 = vmatpush.bf16.msra.mxu0 %v2717
      %3539 = vmatpush.bf16.msra.mxu0 %v2713
      %3540 = vmatpush.bf16.msra.mxu0 %v2709
      %3541 = vmatpush.bf16.msra.mxu0 %v2705
      %3542 = vmatpush.bf16.msra.mxu0 %v2701
      %3543 = vmatmul.bf16.gmra.mxu0 %v823
      %v3544 = vpop.f32.mrf.mxu0
      %v3545 = vadd.f32 %v3532, %v3544
      %v3546 = vpop.f32.mrf.mxu0
      %3547 = vdwg.mxu0
      %3548 = vmatpush.bf16.msra.mxu0 %v2761
      %3549 = vmatpush.bf16.msra.mxu0 %v2757
      %3550 = vmatpush.bf16.msra.mxu0 %v2753
      %3551 = vmatpush.bf16.msra.mxu0 %v2749
      %3552 = vmatpush.bf16.msra.mxu0 %v2745
      %3553 = vmatpush.bf16.msra.mxu0 %v2741
      %3554 = vmatpush.bf16.msra.mxu0 %v2737
      %3555 = vmatpush.bf16.msra.mxu0 %v2733
      %3556 = vmatmul.bf16.gmra.mxu0 %v824
      %v3557 = vpop.f32.mrf.mxu0
      %v3558 = vadd.f32 %v3545, %v3557
      %v3559 = vpop.f32.mrf.mxu0
      %3560 = vdwg.mxu0
      %3561 = vmatpush.bf16.msra.mxu0 %v2793
      %3562 = vmatpush.bf16.msra.mxu0 %v2789
      %3563 = vmatpush.bf16.msra.mxu0 %v2785
      %3564 = vmatpush.bf16.msra.mxu0 %v2781
      %3565 = vmatpush.bf16.msra.mxu0 %v2777
      %3566 = vmatpush.bf16.msra.mxu0 %v2773
      %3567 = vmatpush.bf16.msra.mxu0 %v2769
      %3568 = vmatpush.bf16.msra.mxu0 %v2765
      %3569 = vmatmul.bf16.gmra.mxu0 %v825
      %v3570 = vpop.f32.mrf.mxu0
      %v3571 = vadd.f32 %v3558, %v3570
      %v3572 = vpop.f32.mrf.mxu0
      %3573 = vdwg.mxu0
      %3574 = vmatpush.bf16.msra.mxu0 %v2825
      %3575 = vmatpush.bf16.msra.mxu0 %v2821
      %3576 = vmatpush.bf16.msra.mxu0 %v2817
      %3577 = vmatpush.bf16.msra.mxu0 %v2813
      %3578 = vmatpush.bf16.msra.mxu0 %v2809
      %3579 = vmatpush.bf16.msra.mxu0 %v2805
      %3580 = vmatpush.bf16.msra.mxu0 %v2801
      %3581 = vmatpush.bf16.msra.mxu0 %v2797
      %3582 = vmatmul.bf16.gmra.mxu0 %v826
      %v3583 = vpop.f32.mrf.mxu0
      %v3584 = vadd.f32 %v3571, %v3583
      %v3585 = vpop.f32.mrf.mxu0
      %3586 = vdwg.mxu0
      %3587 = vmatpush.bf16.msra.mxu0 %v2857
      %3588 = vmatpush.bf16.msra.mxu0 %v2853
      %3589 = vmatpush.bf16.msra.mxu0 %v2849
      %3590 = vmatpush.bf16.msra.mxu0 %v2845
      %3591 = vmatpush.bf16.msra.mxu0 %v2841
      %3592 = vmatpush.bf16.msra.mxu0 %v2837
      %3593 = vmatpush.bf16.msra.mxu0 %v2833
      %3594 = vmatpush.bf16.msra.mxu0 %v2829
      %3595 = vmatmul.bf16.gmra.mxu0 %v827
      %v3596 = vpop.f32.mrf.mxu0
      %v3597 = vadd.f32 %v3584, %v3596
      %v3598 = vpop.f32.mrf.mxu0
      %3599 = vdwg.mxu0
      %3600 = vmatpush.bf16.msra.mxu0 %v2889
      %3601 = vmatpush.bf16.msra.mxu0 %v2885
      %3602 = vmatpush.bf16.msra.mxu0 %v2881
      %3603 = vmatpush.bf16.msra.mxu0 %v2877
      %3604 = vmatpush.bf16.msra.mxu0 %v2873
      %3605 = vmatpush.bf16.msra.mxu0 %v2869
      %3606 = vmatpush.bf16.msra.mxu0 %v2865
      %3607 = vmatpush.bf16.msra.mxu0 %v2861
      %3608 = vmatmul.bf16.gmra.mxu0 %v828
      %v3609 = vpop.f32.mrf.mxu0
      %v3610 = vadd.f32 %v3597, %v3609
      %v3611 = vpop.f32.mrf.mxu0
      %3612 = vdwg.mxu0
      %3613 = vmatpush.bf16.msra.mxu0 %v2410
      %3614 = vmatpush.bf16.msra.mxu0 %v2406
      %3615 = vmatpush.bf16.msra.mxu0 %v2402
      %3616 = vmatpush.bf16.msra.mxu0 %v2398
      %3617 = vmatpush.bf16.msra.mxu0 %v2394
      %3618 = vmatpush.bf16.msra.mxu0 %v2390
      %3619 = vmatpush.bf16.msra.mxu0 %v2386
      %3620 = vmatpush.bf16.msra.mxu0 %v2382
      %3621 = vmatmul.bf16.gmra.mxu0 %v811
      %v3622 = vpop.f32.mrf.mxu0
      %v3623 = vadd.f32 0.0, %v3622
      %v3624 = vpop.f32.mrf.mxu0
      %3625 = vdwg.mxu0
      %3626 = vmatpush.bf16.msra.mxu0 %v2442
      %3627 = vmatpush.bf16.msra.mxu0 %v2438
      %3628 = vmatpush.bf16.msra.mxu0 %v2434
      %3629 = vmatpush.bf16.msra.mxu0 %v2430
      %3630 = vmatpush.bf16.msra.mxu0 %v2426
      %3631 = vmatpush.bf16.msra.mxu0 %v2422
      %3632 = vmatpush.bf16.msra.mxu0 %v2418
      %3633 = vmatpush.bf16.msra.mxu0 %v2414
      %3634 = vmatmul.bf16.gmra.mxu0 %v812
      %v3635 = vpop.f32.mrf.mxu0
      %v3636 = vadd.f32 %v3623, %v3635
      %v3637 = vpop.f32.mrf.mxu0
      %3638 = vdwg.mxu0
      %3639 = vmatpush.bf16.msra.mxu0 %v2474
      %3640 = vmatpush.bf16.msra.mxu0 %v2470
      %3641 = vmatpush.bf16.msra.mxu0 %v2466
      %3642 = vmatpush.bf16.msra.mxu0 %v2462
      %3643 = vmatpush.bf16.msra.mxu0 %v2458
      %3644 = vmatpush.bf16.msra.mxu0 %v2454
      %3645 = vmatpush.bf16.msra.mxu0 %v2450
      %3646 = vmatpush.bf16.msra.mxu0 %v2446
      %3647 = vmatmul.bf16.gmra.mxu0 %v813
      %v3648 = vpop.f32.mrf.mxu0
      %v3649 = vadd.f32 %v3636, %v3648
      %v3650 = vpop.f32.mrf.mxu0
      %3651 = vdwg.mxu0
      %3652 = vmatpush.bf16.msra.mxu0 %v2506
      %3653 = vmatpush.bf16.msra.mxu0 %v2502
      %3654 = vmatpush.bf16.msra.mxu0 %v2498
      %3655 = vmatpush.bf16.msra.mxu0 %v2494
      %3656 = vmatpush.bf16.msra.mxu0 %v2490
      %3657 = vmatpush.bf16.msra.mxu0 %v2486
      %3658 = vmatpush.bf16.msra.mxu0 %v2482
      %3659 = vmatpush.bf16.msra.mxu0 %v2478
      %3660 = vmatmul.bf16.gmra.mxu0 %v814
      %v3661 = vpop.f32.mrf.mxu0
      %v3662 = vadd.f32 %v3649, %v3661
      %v3663 = vpop.f32.mrf.mxu0
      %3664 = vdwg.mxu0
      %3665 = vmatpush.bf16.msra.mxu0 %v2538
      %3666 = vmatpush.bf16.msra.mxu0 %v2534
      %3667 = vmatpush.bf16.msra.mxu0 %v2530
      %3668 = vmatpush.bf16.msra.mxu0 %v2526
      %3669 = vmatpush.bf16.msra.mxu0 %v2522
      %3670 = vmatpush.bf16.msra.mxu0 %v2518
      %3671 = vmatpush.bf16.msra.mxu0 %v2514
      %3672 = vmatpush.bf16.msra.mxu0 %v2510
      %3673 = vmatmul.bf16.gmra.mxu0 %v815
      %v3674 = vpop.f32.mrf.mxu0
      %v3675 = vadd.f32 %v3662, %v3674
      %v3676 = vpop.f32.mrf.mxu0
      %3677 = vdwg.mxu0
      %3678 = vmatpush.bf16.msra.mxu0 %v2570
      %3679 = vmatpush.bf16.msra.mxu0 %v2566
      %3680 = vmatpush.bf16.msra.mxu0 %v2562
      %3681 = vmatpush.bf16.msra.mxu0 %v2558
      %3682 = vmatpush.bf16.msra.mxu0 %v2554
      %3683 = vmatpush.bf16.msra.mxu0 %v2550
      %3684 = vmatpush.bf16.msra.mxu0 %v2546
      %3685 = vmatpush.bf16.msra.mxu0 %v2542
      %3686 = vmatmul.bf16.gmra.mxu0 %v816
      %v3687 = vpop.f32.mrf.mxu0
      %v3688 = vadd.f32 %v3675, %v3687
      %v3689 = vpop.f32.mrf.mxu0
      %3690 = vdwg.mxu0
      %3691 = vmatpush.bf16.msra.mxu0 %v2602
      %3692 = vmatpush.bf16.msra.mxu0 %v2598
      %3693 = vmatpush.bf16.msra.mxu0 %v2594
      %3694 = vmatpush.bf16.msra.mxu0 %v2590
      %3695 = vmatpush.bf16.msra.mxu0 %v2586
      %3696 = vmatpush.bf16.msra.mxu0 %v2582
      %3697 = vmatpush.bf16.msra.mxu0 %v2578
      %3698 = vmatpush.bf16.msra.mxu0 %v2574
      %3699 = vmatmul.bf16.gmra.mxu0 %v817
      %v3700 = vpop.f32.mrf.mxu0
      %v3701 = vadd.f32 %v3688, %v3700
      %v3702 = vpop.f32.mrf.mxu0
      %3703 = vdwg.mxu0
      %3704 = vmatpush.bf16.msra.mxu0 %v2634
      %3705 = vmatpush.bf16.msra.mxu0 %v2630
      %3706 = vmatpush.bf16.msra.mxu0 %v2626
      %3707 = vmatpush.bf16.msra.mxu0 %v2622
      %3708 = vmatpush.bf16.msra.mxu0 %v2618
      %3709 = vmatpush.bf16.msra.mxu0 %v2614
      %3710 = vmatpush.bf16.msra.mxu0 %v2610
      %3711 = vmatpush.bf16.msra.mxu0 %v2606
      %3712 = vmatmul.bf16.gmra.mxu0 %v818
      %v3713 = vpop.f32.mrf.mxu0
      %v3714 = vadd.f32 %v3701, %v3713
      %v3715 = vpop.f32.mrf.mxu0
      %3716 = vdwg.mxu0
      %3717 = vmatpush.bf16.msra.mxu0 %v2666
      %3718 = vmatpush.bf16.msra.mxu0 %v2662
      %3719 = vmatpush.bf16.msra.mxu0 %v2658
      %3720 = vmatpush.bf16.msra.mxu0 %v2654
      %3721 = vmatpush.bf16.msra.mxu0 %v2650
      %3722 = vmatpush.bf16.msra.mxu0 %v2646
      %3723 = vmatpush.bf16.msra.mxu0 %v2642
      %3724 = vmatpush.bf16.msra.mxu0 %v2638
      %3725 = vmatmul.bf16.gmra.mxu0 %v821
      %v3726 = vpop.f32.mrf.mxu0
      %v3727 = vadd.f32 %v3714, %v3726
      %v3728 = vpop.f32.mrf.mxu0
      %3729 = vdwg.mxu0
      %3730 = vmatpush.bf16.msra.mxu0 %v2698
      %3731 = vmatpush.bf16.msra.mxu0 %v2694
      %3732 = vmatpush.bf16.msra.mxu0 %v2690
      %3733 = vmatpush.bf16.msra.mxu0 %v2686
      %3734 = vmatpush.bf16.msra.mxu0 %v2682
      %3735 = vmatpush.bf16.msra.mxu0 %v2678
      %3736 = vmatpush.bf16.msra.mxu0 %v2674
      %3737 = vmatpush.bf16.msra.mxu0 %v2670
      %3738 = vmatmul.bf16.gmra.mxu0 %v822
      %v3739 = vpop.f32.mrf.mxu0
      %v3740 = vadd.f32 %v3727, %v3739
      %v3741 = vpop.f32.mrf.mxu0
      %3742 = vdwg.mxu0
      %3743 = vmatpush.bf16.msra.mxu0 %v2730
      %3744 = vmatpush.bf16.msra.mxu0 %v2726
      %3745 = vmatpush.bf16.msra.mxu0 %v2722
      %3746 = vmatpush.bf16.msra.mxu0 %v2718
      %3747 = vmatpush.bf16.msra.mxu0 %v2714
      %3748 = vmatpush.bf16.msra.mxu0 %v2710
      %3749 = vmatpush.bf16.msra.mxu0 %v2706
      %3750 = vmatpush.bf16.msra.mxu0 %v2702
      %3751 = vmatmul.bf16.gmra.mxu0 %v823
      %v3752 = vpop.f32.mrf.mxu0
      %v3753 = vadd.f32 %v3740, %v3752
      %v3754 = vpop.f32.mrf.mxu0
      %3755 = vdwg.mxu0
      %3756 = vmatpush.bf16.msra.mxu0 %v2762
      %3757 = vmatpush.bf16.msra.mxu0 %v2758
      %3758 = vmatpush.bf16.msra.mxu0 %v2754
      %3759 = vmatpush.bf16.msra.mxu0 %v2750
      %3760 = vmatpush.bf16.msra.mxu0 %v2746
      %3761 = vmatpush.bf16.msra.mxu0 %v2742
      %3762 = vmatpush.bf16.msra.mxu0 %v2738
      %3763 = vmatpush.bf16.msra.mxu0 %v2734
      %3764 = vmatmul.bf16.gmra.mxu0 %v824
      %v3765 = vpop.f32.mrf.mxu0
      %v3766 = vadd.f32 %v3753, %v3765
      %v3767 = vpop.f32.mrf.mxu0
      %3768 = vdwg.mxu0
      %3769 = vmatpush.bf16.msra.mxu0 %v2794
      %3770 = vmatpush.bf16.msra.mxu0 %v2790
      %3771 = vmatpush.bf16.msra.mxu0 %v2786
      %3772 = vmatpush.bf16.msra.mxu0 %v2782
      %3773 = vmatpush.bf16.msra.mxu0 %v2778
      %3774 = vmatpush.bf16.msra.mxu0 %v2774
      %3775 = vmatpush.bf16.msra.mxu0 %v2770
      %3776 = vmatpush.bf16.msra.mxu0 %v2766
      %3777 = vmatmul.bf16.gmra.mxu0 %v825
      %v3778 = vpop.f32.mrf.mxu0
      %v3779 = vadd.f32 %v3766, %v3778
      %v3780 = vpop.f32.mrf.mxu0
      %3781 = vdwg.mxu0
      %3782 = vmatpush.bf16.msra.mxu0 %v2826
      %3783 = vmatpush.bf16.msra.mxu0 %v2822
      %3784 = vmatpush.bf16.msra.mxu0 %v2818
      %3785 = vmatpush.bf16.msra.mxu0 %v2814
      %3786 = vmatpush.bf16.msra.mxu0 %v2810
      %3787 = vmatpush.bf16.msra.mxu0 %v2806
      %3788 = vmatpush.bf16.msra.mxu0 %v2802
      %3789 = vmatpush.bf16.msra.mxu0 %v2798
      %3790 = vmatmul.bf16.gmra.mxu0 %v826
      %v3791 = vpop.f32.mrf.mxu0
      %v3792 = vadd.f32 %v3779, %v3791
      %v3793 = vpop.f32.mrf.mxu0
      %3794 = vdwg.mxu0
      %3795 = vmatpush.bf16.msra.mxu0 %v2858
      %3796 = vmatpush.bf16.msra.mxu0 %v2854
      %3797 = vmatpush.bf16.msra.mxu0 %v2850
      %3798 = vmatpush.bf16.msra.mxu0 %v2846
      %3799 = vmatpush.bf16.msra.mxu0 %v2842
      %3800 = vmatpush.bf16.msra.mxu0 %v2838
      %3801 = vmatpush.bf16.msra.mxu0 %v2834
      %3802 = vmatpush.bf16.msra.mxu0 %v2830
      %3803 = vmatmul.bf16.gmra.mxu0 %v827
      %v3804 = vpop.f32.mrf.mxu0
      %v3805 = vadd.f32 %v3792, %v3804
      %v3806 = vpop.f32.mrf.mxu0
      %3807 = vdwg.mxu0
      %3808 = vmatpush.bf16.msra.mxu0 %v2890
      %3809 = vmatpush.bf16.msra.mxu0 %v2886
      %3810 = vmatpush.bf16.msra.mxu0 %v2882
      %3811 = vmatpush.bf16.msra.mxu0 %v2878
      %3812 = vmatpush.bf16.msra.mxu0 %v2874
      %3813 = vmatpush.bf16.msra.mxu0 %v2870
      %3814 = vmatpush.bf16.msra.mxu0 %v2866
      %3815 = vmatpush.bf16.msra.mxu0 %v2862
      %3816 = vmatmul.bf16.gmra.mxu0 %v828
      %v3817 = vpop.f32.mrf.mxu0
      %v3818 = vadd.f32 %v3805, %v3817
      %v3819 = vpop.f32.mrf.mxu0
      %3820 = vdwg.mxu0
      %3821 = vmatpush.bf16.msra.mxu0 %v2411
      %3822 = vmatpush.bf16.msra.mxu0 %v2407
      %3823 = vmatpush.bf16.msra.mxu0 %v2403
      %3824 = vmatpush.bf16.msra.mxu0 %v2399
      %3825 = vmatpush.bf16.msra.mxu0 %v2395
      %3826 = vmatpush.bf16.msra.mxu0 %v2391
      %3827 = vmatpush.bf16.msra.mxu0 %v2387
      %3828 = vmatpush.bf16.msra.mxu0 %v2383
      %3829 = vmatmul.bf16.gmra.mxu0 %v811
      %v3830 = vpop.f32.mrf.mxu0
      %v3831 = vadd.f32 0.0, %v3830
      %v3832 = vpop.f32.mrf.mxu0
      %3833 = vdwg.mxu0
      %3834 = vmatpush.bf16.msra.mxu0 %v2443
      %3835 = vmatpush.bf16.msra.mxu0 %v2439
      %3836 = vmatpush.bf16.msra.mxu0 %v2435
      %3837 = vmatpush.bf16.msra.mxu0 %v2431
      %3838 = vmatpush.bf16.msra.mxu0 %v2427
      %3839 = vmatpush.bf16.msra.mxu0 %v2423
      %3840 = vmatpush.bf16.msra.mxu0 %v2419
      %3841 = vmatpush.bf16.msra.mxu0 %v2415
      %3842 = vmatmul.bf16.gmra.mxu0 %v812
      %v3843 = vpop.f32.mrf.mxu0
      %v3844 = vadd.f32 %v3831, %v3843
      %v3845 = vpop.f32.mrf.mxu0
      %3846 = vdwg.mxu0
      %3847 = vmatpush.bf16.msra.mxu0 %v2475
      %3848 = vmatpush.bf16.msra.mxu0 %v2471
      %3849 = vmatpush.bf16.msra.mxu0 %v2467
      %3850 = vmatpush.bf16.msra.mxu0 %v2463
      %3851 = vmatpush.bf16.msra.mxu0 %v2459
      %3852 = vmatpush.bf16.msra.mxu0 %v2455
      %3853 = vmatpush.bf16.msra.mxu0 %v2451
      %3854 = vmatpush.bf16.msra.mxu0 %v2447
      %3855 = vmatmul.bf16.gmra.mxu0 %v813
      %v3856 = vpop.f32.mrf.mxu0
      %v3857 = vadd.f32 %v3844, %v3856
      %v3858 = vpop.f32.mrf.mxu0
      %3859 = vdwg.mxu0
      %3860 = vmatpush.bf16.msra.mxu0 %v2507
      %3861 = vmatpush.bf16.msra.mxu0 %v2503
      %3862 = vmatpush.bf16.msra.mxu0 %v2499
      %3863 = vmatpush.bf16.msra.mxu0 %v2495
      %3864 = vmatpush.bf16.msra.mxu0 %v2491
      %3865 = vmatpush.bf16.msra.mxu0 %v2487
      %3866 = vmatpush.bf16.msra.mxu0 %v2483
      %3867 = vmatpush.bf16.msra.mxu0 %v2479
      %3868 = vmatmul.bf16.gmra.mxu0 %v814
      %v3869 = vpop.f32.mrf.mxu0
      %v3870 = vadd.f32 %v3857, %v3869
      %v3871 = vpop.f32.mrf.mxu0
      %3872 = vdwg.mxu0
      %3873 = vmatpush.bf16.msra.mxu0 %v2539
      %3874 = vmatpush.bf16.msra.mxu0 %v2535
      %3875 = vmatpush.bf16.msra.mxu0 %v2531
      %3876 = vmatpush.bf16.msra.mxu0 %v2527
      %3877 = vmatpush.bf16.msra.mxu0 %v2523
      %3878 = vmatpush.bf16.msra.mxu0 %v2519
      %3879 = vmatpush.bf16.msra.mxu0 %v2515
      %3880 = vmatpush.bf16.msra.mxu0 %v2511
      %3881 = vmatmul.bf16.gmra.mxu0 %v815
      %v3882 = vpop.f32.mrf.mxu0
      %v3883 = vadd.f32 %v3870, %v3882
      %v3884 = vpop.f32.mrf.mxu0
      %3885 = vdwg.mxu0
      %3886 = vmatpush.bf16.msra.mxu0 %v2571
      %3887 = vmatpush.bf16.msra.mxu0 %v2567
      %3888 = vmatpush.bf16.msra.mxu0 %v2563
      %3889 = vmatpush.bf16.msra.mxu0 %v2559
      %3890 = vmatpush.bf16.msra.mxu0 %v2555
      %3891 = vmatpush.bf16.msra.mxu0 %v2551
      %3892 = vmatpush.bf16.msra.mxu0 %v2547
      %3893 = vmatpush.bf16.msra.mxu0 %v2543
      %3894 = vmatmul.bf16.gmra.mxu0 %v816
      %v3895 = vpop.f32.mrf.mxu0
      %v3896 = vadd.f32 %v3883, %v3895
      %v3897 = vpop.f32.mrf.mxu0
      %3898 = vdwg.mxu0
      %3899 = vmatpush.bf16.msra.mxu0 %v2603
      %3900 = vmatpush.bf16.msra.mxu0 %v2599
      %3901 = vmatpush.bf16.msra.mxu0 %v2595
      %3902 = vmatpush.bf16.msra.mxu0 %v2591
      %3903 = vmatpush.bf16.msra.mxu0 %v2587
      %3904 = vmatpush.bf16.msra.mxu0 %v2583
      %3905 = vmatpush.bf16.msra.mxu0 %v2579
      %3906 = vmatpush.bf16.msra.mxu0 %v2575
      %3907 = vmatmul.bf16.gmra.mxu0 %v817
      %v3908 = vpop.f32.mrf.mxu0
      %v3909 = vadd.f32 %v3896, %v3908
      %v3910 = vpop.f32.mrf.mxu0
      %3911 = vdwg.mxu0
      %3912 = vmatpush.bf16.msra.mxu0 %v2635
      %3913 = vmatpush.bf16.msra.mxu0 %v2631
      %3914 = vmatpush.bf16.msra.mxu0 %v2627
      %3915 = vmatpush.bf16.msra.mxu0 %v2623
      %3916 = vmatpush.bf16.msra.mxu0 %v2619
      %3917 = vmatpush.bf16.msra.mxu0 %v2615
      %3918 = vmatpush.bf16.msra.mxu0 %v2611
      %3919 = vmatpush.bf16.msra.mxu0 %v2607
      %3920 = vmatmul.bf16.gmra.mxu0 %v818
      %v3921 = vpop.f32.mrf.mxu0
      %v3922 = vadd.f32 %v3909, %v3921
      %v3923 = vpop.f32.mrf.mxu0
      %3924 = vdwg.mxu0
      %3925 = vmatpush.bf16.msra.mxu0 %v2667
      %3926 = vmatpush.bf16.msra.mxu0 %v2663
      %3927 = vmatpush.bf16.msra.mxu0 %v2659
      %3928 = vmatpush.bf16.msra.mxu0 %v2655
      %3929 = vmatpush.bf16.msra.mxu0 %v2651
      %3930 = vmatpush.bf16.msra.mxu0 %v2647
      %3931 = vmatpush.bf16.msra.mxu0 %v2643
      %3932 = vmatpush.bf16.msra.mxu0 %v2639
      %3933 = vmatmul.bf16.gmra.mxu0 %v821
      %v3934 = vpop.f32.mrf.mxu0
      %v3935 = vadd.f32 %v3922, %v3934
      %v3936 = vpop.f32.mrf.mxu0
      %3937 = vdwg.mxu0
      %3938 = vmatpush.bf16.msra.mxu0 %v2699
      %3939 = vmatpush.bf16.msra.mxu0 %v2695
      %3940 = vmatpush.bf16.msra.mxu0 %v2691
      %3941 = vmatpush.bf16.msra.mxu0 %v2687
      %3942 = vmatpush.bf16.msra.mxu0 %v2683
      %3943 = vmatpush.bf16.msra.mxu0 %v2679
      %3944 = vmatpush.bf16.msra.mxu0 %v2675
      %3945 = vmatpush.bf16.msra.mxu0 %v2671
      %3946 = vmatmul.bf16.gmra.mxu0 %v822
      %v3947 = vpop.f32.mrf.mxu0
      %v3948 = vadd.f32 %v3935, %v3947
      %v3949 = vpop.f32.mrf.mxu0
      %3950 = vdwg.mxu0
      %3951 = vmatpush.bf16.msra.mxu0 %v2731
      %3952 = vmatpush.bf16.msra.mxu0 %v2727
      %3953 = vmatpush.bf16.msra.mxu0 %v2723
      %3954 = vmatpush.bf16.msra.mxu0 %v2719
      %3955 = vmatpush.bf16.msra.mxu0 %v2715
      %3956 = vmatpush.bf16.msra.mxu0 %v2711
      %3957 = vmatpush.bf16.msra.mxu0 %v2707
      %3958 = vmatpush.bf16.msra.mxu0 %v2703
      %3959 = vmatmul.bf16.gmra.mxu0 %v823
      %v3960 = vpop.f32.mrf.mxu0
      %v3961 = vadd.f32 %v3948, %v3960
      %v3962 = vpop.f32.mrf.mxu0
      %3963 = vdwg.mxu0
      %3964 = vmatpush.bf16.msra.mxu0 %v2763
      %3965 = vmatpush.bf16.msra.mxu0 %v2759
      %3966 = vmatpush.bf16.msra.mxu0 %v2755
      %3967 = vmatpush.bf16.msra.mxu0 %v2751
      %3968 = vmatpush.bf16.msra.mxu0 %v2747
      %3969 = vmatpush.bf16.msra.mxu0 %v2743
      %3970 = vmatpush.bf16.msra.mxu0 %v2739
      %3971 = vmatpush.bf16.msra.mxu0 %v2735
      %3972 = vmatmul.bf16.gmra.mxu0 %v824
      %v3973 = vpop.f32.mrf.mxu0
      %v3974 = vadd.f32 %v3961, %v3973
      %v3975 = vpop.f32.mrf.mxu0
      %3976 = vdwg.mxu0
      %3977 = vmatpush.bf16.msra.mxu0 %v2795
      %3978 = vmatpush.bf16.msra.mxu0 %v2791
      %3979 = vmatpush.bf16.msra.mxu0 %v2787
      %3980 = vmatpush.bf16.msra.mxu0 %v2783
      %3981 = vmatpush.bf16.msra.mxu0 %v2779
      %3982 = vmatpush.bf16.msra.mxu0 %v2775
      %3983 = vmatpush.bf16.msra.mxu0 %v2771
      %3984 = vmatpush.bf16.msra.mxu0 %v2767
      %3985 = vmatmul.bf16.gmra.mxu0 %v825
      %v3986 = vpop.f32.mrf.mxu0
      %v3987 = vadd.f32 %v3974, %v3986
      %v3988 = vpop.f32.mrf.mxu0
      %3989 = vdwg.mxu0
      %3990 = vmatpush.bf16.msra.mxu0 %v2827
      %3991 = vmatpush.bf16.msra.mxu0 %v2823
      %3992 = vmatpush.bf16.msra.mxu0 %v2819
      %3993 = vmatpush.bf16.msra.mxu0 %v2815
      %3994 = vmatpush.bf16.msra.mxu0 %v2811
      %3995 = vmatpush.bf16.msra.mxu0 %v2807
      %3996 = vmatpush.bf16.msra.mxu0 %v2803
      %3997 = vmatpush.bf16.msra.mxu0 %v2799
      %3998 = vmatmul.bf16.gmra.mxu0 %v826
      %v3999 = vpop.f32.mrf.mxu0
      %v4000 = vadd.f32 %v3987, %v3999
      %v4001 = vpop.f32.mrf.mxu0
      %4002 = vdwg.mxu0
      %4003 = vmatpush.bf16.msra.mxu0 %v2859
      %4004 = vmatpush.bf16.msra.mxu0 %v2855
      %4005 = vmatpush.bf16.msra.mxu0 %v2851
      %4006 = vmatpush.bf16.msra.mxu0 %v2847
      %4007 = vmatpush.bf16.msra.mxu0 %v2843
      %4008 = vmatpush.bf16.msra.mxu0 %v2839
      %4009 = vmatpush.bf16.msra.mxu0 %v2835
      %4010 = vmatpush.bf16.msra.mxu0 %v2831
      %4011 = vmatmul.bf16.gmra.mxu0 %v827
      %v4012 = vpop.f32.mrf.mxu0
      %v4013 = vadd.f32 %v4000, %v4012
      %v4014 = vpop.f32.mrf.mxu0
      %4015 = vdwg.mxu0
      %4016 = vmatpush.bf16.msra.mxu0 %v2891
      %4017 = vmatpush.bf16.msra.mxu0 %v2887
      %4018 = vmatpush.bf16.msra.mxu0 %v2883
      %4019 = vmatpush.bf16.msra.mxu0 %v2879
      %4020 = vmatpush.bf16.msra.mxu0 %v2875
      %4021 = vmatpush.bf16.msra.mxu0 %v2871
      %4022 = vmatpush.bf16.msra.mxu0 %v2867
      %4023 = vmatpush.bf16.msra.mxu0 %v2863
      %4024 = vmatmul.bf16.gmra.mxu0 %v828
      %v4025 = vpop.f32.mrf.mxu0
      %v4026 = vadd.f32 %v4013, %v4025
      %v4027 = vpop.f32.mrf.mxu0
      %4028 = vdwg.mxu0
      %4029 = vmatpush.bf16.msra.mxu0 %v2412
      %4030 = vmatpush.bf16.msra.mxu0 %v2408
      %4031 = vmatpush.bf16.msra.mxu0 %v2404
      %4032 = vmatpush.bf16.msra.mxu0 %v2400
      %4033 = vmatpush.bf16.msra.mxu0 %v2396
      %4034 = vmatpush.bf16.msra.mxu0 %v2392
      %4035 = vmatpush.bf16.msra.mxu0 %v2388
      %4036 = vmatpush.bf16.msra.mxu0 %v2384
      %4037 = vmatmul.bf16.gmra.mxu0 %v811
      %v4038 = vpop.f32.mrf.mxu0
      %v4039 = vadd.f32 0.0, %v4038
      %v4040 = vpop.f32.mrf.mxu0
      %4041 = vdwg.mxu0
      %4042 = vmatpush.bf16.msra.mxu0 %v2444
      %4043 = vmatpush.bf16.msra.mxu0 %v2440
      %4044 = vmatpush.bf16.msra.mxu0 %v2436
      %4045 = vmatpush.bf16.msra.mxu0 %v2432
      %4046 = vmatpush.bf16.msra.mxu0 %v2428
      %4047 = vmatpush.bf16.msra.mxu0 %v2424
      %4048 = vmatpush.bf16.msra.mxu0 %v2420
      %4049 = vmatpush.bf16.msra.mxu0 %v2416
      %4050 = vmatmul.bf16.gmra.mxu0 %v812
      %v4051 = vpop.f32.mrf.mxu0
      %v4052 = vadd.f32 %v4039, %v4051
      %v4053 = vpop.f32.mrf.mxu0
      %4054 = vdwg.mxu0
      %4055 = vmatpush.bf16.msra.mxu0 %v2476
      %4056 = vmatpush.bf16.msra.mxu0 %v2472
      %4057 = vmatpush.bf16.msra.mxu0 %v2468
      %4058 = vmatpush.bf16.msra.mxu0 %v2464
      %4059 = vmatpush.bf16.msra.mxu0 %v2460
      %4060 = vmatpush.bf16.msra.mxu0 %v2456
      %4061 = vmatpush.bf16.msra.mxu0 %v2452
      %4062 = vmatpush.bf16.msra.mxu0 %v2448
      %4063 = vmatmul.bf16.gmra.mxu0 %v813
      %v4064 = vpop.f32.mrf.mxu0
      %v4065 = vadd.f32 %v4052, %v4064
      %v4066 = vpop.f32.mrf.mxu0
      %4067 = vdwg.mxu0
      %4068 = vmatpush.bf16.msra.mxu0 %v2508
      %4069 = vmatpush.bf16.msra.mxu0 %v2504
      %4070 = vmatpush.bf16.msra.mxu0 %v2500
      %4071 = vmatpush.bf16.msra.mxu0 %v2496
      %4072 = vmatpush.bf16.msra.mxu0 %v2492
      %4073 = vmatpush.bf16.msra.mxu0 %v2488
      %4074 = vmatpush.bf16.msra.mxu0 %v2484
      %4075 = vmatpush.bf16.msra.mxu0 %v2480
      %4076 = vmatmul.bf16.gmra.mxu0 %v814
      %v4077 = vpop.f32.mrf.mxu0
      %v4078 = vadd.f32 %v4065, %v4077
      %v4079 = vpop.f32.mrf.mxu0
      %4080 = vdwg.mxu0
      %4081 = vmatpush.bf16.msra.mxu0 %v2540
      %4082 = vmatpush.bf16.msra.mxu0 %v2536
      %4083 = vmatpush.bf16.msra.mxu0 %v2532
      %4084 = vmatpush.bf16.msra.mxu0 %v2528
      %4085 = vmatpush.bf16.msra.mxu0 %v2524
      %4086 = vmatpush.bf16.msra.mxu0 %v2520
      %4087 = vmatpush.bf16.msra.mxu0 %v2516
      %4088 = vmatpush.bf16.msra.mxu0 %v2512
      %4089 = vmatmul.bf16.gmra.mxu0 %v815
      %v4090 = vpop.f32.mrf.mxu0
      %v4091 = vadd.f32 %v4078, %v4090
      %v4092 = vpop.f32.mrf.mxu0
      %4093 = vdwg.mxu0
      %4094 = vmatpush.bf16.msra.mxu0 %v2572
      %4095 = vmatpush.bf16.msra.mxu0 %v2568
      %4096 = vmatpush.bf16.msra.mxu0 %v2564
      %4097 = vmatpush.bf16.msra.mxu0 %v2560
      %4098 = vmatpush.bf16.msra.mxu0 %v2556
      %4099 = vmatpush.bf16.msra.mxu0 %v2552
      %4100 = vmatpush.bf16.msra.mxu0 %v2548
      %4101 = vmatpush.bf16.msra.mxu0 %v2544
      %4102 = vmatmul.bf16.gmra.mxu0 %v816
      %v4103 = vpop.f32.mrf.mxu0
      %v4104 = vadd.f32 %v4091, %v4103
      %v4105 = vpop.f32.mrf.mxu0
      %4106 = vdwg.mxu0
      %4107 = vmatpush.bf16.msra.mxu0 %v2604
      %4108 = vmatpush.bf16.msra.mxu0 %v2600
      %4109 = vmatpush.bf16.msra.mxu0 %v2596
      %4110 = vmatpush.bf16.msra.mxu0 %v2592
      %4111 = vmatpush.bf16.msra.mxu0 %v2588
      %4112 = vmatpush.bf16.msra.mxu0 %v2584
      %4113 = vmatpush.bf16.msra.mxu0 %v2580
      %4114 = vmatpush.bf16.msra.mxu0 %v2576
      %4115 = vmatmul.bf16.gmra.mxu0 %v817
      %v4116 = vpop.f32.mrf.mxu0
      %v4117 = vadd.f32 %v4104, %v4116
      %v4118 = vpop.f32.mrf.mxu0
      %4119 = vdwg.mxu0
      %4120 = vmatpush.bf16.msra.mxu0 %v2636
      %4121 = vmatpush.bf16.msra.mxu0 %v2632
      %4122 = vmatpush.bf16.msra.mxu0 %v2628
      %4123 = vmatpush.bf16.msra.mxu0 %v2624
      %4124 = vmatpush.bf16.msra.mxu0 %v2620
      %4125 = vmatpush.bf16.msra.mxu0 %v2616
      %4126 = vmatpush.bf16.msra.mxu0 %v2612
      %4127 = vmatpush.bf16.msra.mxu0 %v2608
      %4128 = vmatmul.bf16.gmra.mxu0 %v818
      %v4129 = vpop.f32.mrf.mxu0
      %v4130 = vadd.f32 %v4117, %v4129
      %v4131 = vpop.f32.mrf.mxu0
      %4132 = vdwg.mxu0
      %4133 = vmatpush.bf16.msra.mxu0 %v2668
      %4134 = vmatpush.bf16.msra.mxu0 %v2664
      %4135 = vmatpush.bf16.msra.mxu0 %v2660
      %4136 = vmatpush.bf16.msra.mxu0 %v2656
      %4137 = vmatpush.bf16.msra.mxu0 %v2652
      %4138 = vmatpush.bf16.msra.mxu0 %v2648
      %4139 = vmatpush.bf16.msra.mxu0 %v2644
      %4140 = vmatpush.bf16.msra.mxu0 %v2640
      %4141 = vmatmul.bf16.gmra.mxu0 %v821
      %v4142 = vpop.f32.mrf.mxu0
      %v4143 = vadd.f32 %v4130, %v4142
      %v4144 = vpop.f32.mrf.mxu0
      %4145 = vdwg.mxu0
      %4146 = vmatpush.bf16.msra.mxu0 %v2700
      %4147 = vmatpush.bf16.msra.mxu0 %v2696
      %4148 = vmatpush.bf16.msra.mxu0 %v2692
      %4149 = vmatpush.bf16.msra.mxu0 %v2688
      %4150 = vmatpush.bf16.msra.mxu0 %v2684
      %4151 = vmatpush.bf16.msra.mxu0 %v2680
      %4152 = vmatpush.bf16.msra.mxu0 %v2676
      %4153 = vmatpush.bf16.msra.mxu0 %v2672
      %4154 = vmatmul.bf16.gmra.mxu0 %v822
      %v4155 = vpop.f32.mrf.mxu0
      %v4156 = vadd.f32 %v4143, %v4155
      %v4157 = vpop.f32.mrf.mxu0
      %4158 = vdwg.mxu0
      %4159 = vmatpush.bf16.msra.mxu0 %v2732
      %4160 = vmatpush.bf16.msra.mxu0 %v2728
      %4161 = vmatpush.bf16.msra.mxu0 %v2724
      %4162 = vmatpush.bf16.msra.mxu0 %v2720
      %4163 = vmatpush.bf16.msra.mxu0 %v2716
      %4164 = vmatpush.bf16.msra.mxu0 %v2712
      %4165 = vmatpush.bf16.msra.mxu0 %v2708
      %4166 = vmatpush.bf16.msra.mxu0 %v2704
      %4167 = vmatmul.bf16.gmra.mxu0 %v823
      %v4168 = vpop.f32.mrf.mxu0
      %v4169 = vadd.f32 %v4156, %v4168
      %v4170 = vpop.f32.mrf.mxu0
      %4171 = vdwg.mxu0
      %4172 = vmatpush.bf16.msra.mxu0 %v2764
      %4173 = vmatpush.bf16.msra.mxu0 %v2760
      %4174 = vmatpush.bf16.msra.mxu0 %v2756
      %4175 = vmatpush.bf16.msra.mxu0 %v2752
      %4176 = vmatpush.bf16.msra.mxu0 %v2748
      %4177 = vmatpush.bf16.msra.mxu0 %v2744
      %4178 = vmatpush.bf16.msra.mxu0 %v2740
      %4179 = vmatpush.bf16.msra.mxu0 %v2736
      %4180 = vmatmul.bf16.gmra.mxu0 %v824
      %v4181 = vpop.f32.mrf.mxu0
      %v4182 = vadd.f32 %v4169, %v4181
      %v4183 = vpop.f32.mrf.mxu0
      %4184 = vdwg.mxu0
      %4185 = vmatpush.bf16.msra.mxu0 %v2796
      %4186 = vmatpush.bf16.msra.mxu0 %v2792
      %4187 = vmatpush.bf16.msra.mxu0 %v2788
      %4188 = vmatpush.bf16.msra.mxu0 %v2784
      %4189 = vmatpush.bf16.msra.mxu0 %v2780
      %4190 = vmatpush.bf16.msra.mxu0 %v2776
      %4191 = vmatpush.bf16.msra.mxu0 %v2772
      %4192 = vmatpush.bf16.msra.mxu0 %v2768
      %4193 = vmatmul.bf16.gmra.mxu0 %v825
      %v4194 = vpop.f32.mrf.mxu0
      %v4195 = vadd.f32 %v4182, %v4194
      %v4196 = vpop.f32.mrf.mxu0
      %4197 = vdwg.mxu0
      %4198 = vmatpush.bf16.msra.mxu0 %v2828
      %4199 = vmatpush.bf16.msra.mxu0 %v2824
      %4200 = vmatpush.bf16.msra.mxu0 %v2820
      %4201 = vmatpush.bf16.msra.mxu0 %v2816
      %4202 = vmatpush.bf16.msra.mxu0 %v2812
      %4203 = vmatpush.bf16.msra.mxu0 %v2808
      %4204 = vmatpush.bf16.msra.mxu0 %v2804
      %4205 = vmatpush.bf16.msra.mxu0 %v2800
      %4206 = vmatmul.bf16.gmra.mxu0 %v826
      %v4207 = vpop.f32.mrf.mxu0
      %v4208 = vadd.f32 %v4195, %v4207
      %v4209 = vpop.f32.mrf.mxu0
      %4210 = vdwg.mxu0
      %4211 = vmatpush.bf16.msra.mxu0 %v2860
      %4212 = vmatpush.bf16.msra.mxu0 %v2856
      %4213 = vmatpush.bf16.msra.mxu0 %v2852
      %4214 = vmatpush.bf16.msra.mxu0 %v2848
      %4215 = vmatpush.bf16.msra.mxu0 %v2844
      %4216 = vmatpush.bf16.msra.mxu0 %v2840
      %4217 = vmatpush.bf16.msra.mxu0 %v2836
      %4218 = vmatpush.bf16.msra.mxu0 %v2832
      %4219 = vmatmul.bf16.gmra.mxu0 %v827
      %v4220 = vpop.f32.mrf.mxu0
      %v4221 = vadd.f32 %v4208, %v4220
      %v4222 = vpop.f32.mrf.mxu0
      %4223 = vdwg.mxu0
      %4224 = vmatpush.bf16.msra.mxu0 %v2892
      %4225 = vmatpush.bf16.msra.mxu0 %v2888
      %4226 = vmatpush.bf16.msra.mxu0 %v2884
      %4227 = vmatpush.bf16.msra.mxu0 %v2880
      %4228 = vmatpush.bf16.msra.mxu0 %v2876
      %4229 = vmatpush.bf16.msra.mxu0 %v2872
      %4230 = vmatpush.bf16.msra.mxu0 %v2868
      %4231 = vmatpush.bf16.msra.mxu0 %v2864
      %4232 = vmatmul.bf16.gmra.mxu0 %v828
      %v4233 = vpop.f32.mrf.mxu0
      %v4234 = vadd.f32 %v4221, %v4233
      %v4235 = vpop.f32.mrf.mxu0
      %4236 = vdwg.mxu0
      %v4241 = vrot.slane %v3818, 6
      %v4242 = vrot.slane %v4026, 4
      %v4243 = vrot.slane %v4234, 2
      %vm4244 = vcmask 1041408
      %v4245 = vsel %vm4244, %v3610, %v4241
      %vm4246 = vcmask 1045508
      %v4247 = vsel %vm4246, %v4242, %v4243
      %vm4248 = vcmask 1043456
      %v4249 = vsel %vm4248, %v4245, %v4247
      %v4251 = vadd.f32 %v294, %v4249
      %4252 = vst [vmem:[#allocation2] sm:$0xff] %v4251
      %p4253 = scmp.eq.s32.totalorder %s20, 3
      // Predicated region
      $region41: #{net_forward.7} parent=35 // pred_check
        %p4254 = pneg %p4253
      $region42: #{net_forward.7} parent=35 // pred_check_branch
        %4256 = sbr.rel (%p4254) target = $region44
      $region43: #{net_forward.7} parent=35 // pred_region
        %v4257 = vld [vmem:[#allocation2] sm:$0xff]
        %v4258 = vld [vmem:[%s277] sm:$0xf]
        %v4260 = vperm.slane %v4258, 0
        %v4261 = vperm.slane %v4258, 1
        %v4262 = vperm.slane %v4258, 2
        %v4263 = vperm.slane %v4258, 3
        %v4264 = vrot.slane %v4261, 6
        %v4265 = vrot.slane %v4262, 4
        %v4266 = vrot.slane %v4263, 2
        %v4267 = vsel %vm4244, %v4260, %v4264
        %v4268 = vsel %vm4246, %v4265, %v4266
        %v4269 = vsel %vm4248, %v4267, %v4268
        %v4271 = vadd.f32 %v4257, %v4269
        %v4272 = vmax.f32 %v4271, 0.0
        %4274 = vst [vmem:[#allocation1] ss:$4 sm:$0xff] %v4272
        %v4275 = vld.sshfl [vmem:[#allocation1] sm:$0xff pattern:$0x73625140]
        %v4276 = vld.sshfl [vmem:[#allocation1 + $0x8] sm:$0xff pattern:$0x73625140]
        %v4277 = vld.sshfl [vmem:[#allocation1 + $0x10] sm:$0xff pattern:$0x73625140]
        %v4278 = vld.sshfl [vmem:[#allocation1 + $0x18] sm:$0xff pattern:$0x73625140]
        %v4283 = vpack.c.bf16 %v4275, %v4275
        %v4284 = vpack.c.bf16 %v4276, %v4276
        %v4285 = vpack.c.bf16 %v4277, %v4277
        %v4286 = vpack.c.bf16 %v4278, %v4278
        %v4287 = vld [vmem:[%s283] sm:$0xf]
        %v4288 = vld [vmem:[%s283 + $0x4] sm:$0xf]
        %v4289 = vld [vmem:[%s283 + $0x8] sm:$0xf]
        %v4290 = vld [vmem:[%s283 + $0xc] sm:$0xf]
        %v4291 = vld [vmem:[%s283 + $0x10] sm:$0xf]
        %v4292 = vld [vmem:[%s283 + $0x14] sm:$0xf]
        %v4293 = vld [vmem:[%s283 + $0x18] sm:$0xf]
        %v4294 = vld [vmem:[%s283 + $0x1c] sm:$0xf]
        %v4295 = vld [vmem:[%s283 + $0x20] sm:$0xf]
        %v4296 = vld [vmem:[%s283 + $0x24] sm:$0xf]
        %v4297 = vld [vmem:[%s283 + $0x28] sm:$0xf]
        %v4298 = vld [vmem:[%s283 + $0x2c] sm:$0xf]
        %v4299 = vld [vmem:[%s283 + $0x30] sm:$0xf]
        %v4300 = vld [vmem:[%s283 + $0x34] sm:$0xf]
        %v4301 = vld [vmem:[%s283 + $0x38] sm:$0xf]
        %v4302 = vld [vmem:[%s283 + $0x3c] sm:$0xf]
        %v4303 = vld [vmem:[%s283 + $0x40] sm:$0xf]
        %v4304 = vld [vmem:[%s283 + $0x44] sm:$0xf]
        %v4305 = vld [vmem:[%s283 + $0x48] sm:$0xf]
        %v4306 = vld [vmem:[%s283 + $0x4c] sm:$0xf]
        %v4307 = vld [vmem:[%s283 + $0x50] sm:$0xf]
        %v4308 = vld [vmem:[%s283 + $0x54] sm:$0xf]
        %v4309 = vld [vmem:[%s283 + $0x58] sm:$0xf]
        %v4310 = vld [vmem:[%s283 + $0x5c] sm:$0xf]
        %v4311 = vld [vmem:[%s283 + $0x60] sm:$0xf]
        %v4312 = vld [vmem:[%s283 + $0x64] sm:$0xf]
        %v4313 = vld [vmem:[%s283 + $0x68] sm:$0xf]
        %v4314 = vld [vmem:[%s283 + $0x6c] sm:$0xf]
        %v4315 = vld [vmem:[%s283 + $0x70] sm:$0xf]
        %v4316 = vld [vmem:[%s283 + $0x74] sm:$0xf]
        %v4317 = vld [vmem:[%s283 + $0x78] sm:$0xf]
        %v4318 = vld [vmem:[%s283 + $0x7c] sm:$0xf]
        %v4319 = vld [vmem:[%s283 + $0x80] sm:$0xf]
        %v4320 = vld [vmem:[%s283 + $0x84] sm:$0xf]
        %v4321 = vld [vmem:[%s283 + $0x88] sm:$0xf]
        %v4322 = vld [vmem:[%s283 + $0x8c] sm:$0xf]
        %v4323 = vld [vmem:[%s283 + $0x90] sm:$0xf]
        %v4324 = vld [vmem:[%s283 + $0x94] sm:$0xf]
        %v4325 = vld [vmem:[%s283 + $0x98] sm:$0xf]
        %v4326 = vld [vmem:[%s283 + $0x9c] sm:$0xf]
        %v4327 = vld [vmem:[%s283 + $0xa0] sm:$0xf]
        %v4328 = vld [vmem:[%s283 + $0xa4] sm:$0xf]
        %v4329 = vld [vmem:[%s283 + $0xa8] sm:$0xf]
        %v4330 = vld [vmem:[%s283 + $0xac] sm:$0xf]
        %v4331 = vld [vmem:[%s283 + $0xb0] sm:$0xf]
        %v4332 = vld [vmem:[%s283 + $0xb4] sm:$0xf]
        %v4333 = vld [vmem:[%s283 + $0xb8] sm:$0xf]
        %v4334 = vld [vmem:[%s283 + $0xbc] sm:$0xf]
        %v4335 = vld [vmem:[%s283 + $0xc0] sm:$0xf]
        %v4336 = vld [vmem:[%s283 + $0xc4] sm:$0xf]
        %v4337 = vld [vmem:[%s283 + $0xc8] sm:$0xf]
        %v4338 = vld [vmem:[%s283 + $0xcc] sm:$0xf]
        %v4339 = vld [vmem:[%s283 + $0xd0] sm:$0xf]
        %v4340 = vld [vmem:[%s283 + $0xd4] sm:$0xf]
        %v4341 = vld [vmem:[%s283 + $0xd8] sm:$0xf]
        %v4342 = vld [vmem:[%s283 + $0xdc] sm:$0xf]
        %v4343 = vld [vmem:[%s283 + $0xe0] sm:$0xf]
        %v4344 = vld [vmem:[%s283 + $0xe4] sm:$0xf]
        %v4345 = vld [vmem:[%s283 + $0xe8] sm:$0xf]
        %v4346 = vld [vmem:[%s283 + $0xec] sm:$0xf]
        %v4347 = vld [vmem:[%s283 + $0xf0] sm:$0xf]
        %v4348 = vld [vmem:[%s283 + $0xf4] sm:$0xf]
        %v4349 = vld [vmem:[%s283 + $0xf8] sm:$0xf]
        %v4350 = vld [vmem:[%s283 + $0xfc] sm:$0xf]
        %v4415 = vunpack.c.l.b16 %v4287
        %v4416 = vunpack.c.l.b16 %v4288
        %v4417 = vunpack.c.l.b16 %v4289
        %v4418 = vunpack.c.l.b16 %v4290
        %v4419 = vunpack.c.l.b16 %v4291
        %v4420 = vunpack.c.l.b16 %v4292
        %v4421 = vunpack.c.l.b16 %v4293
        %v4422 = vunpack.c.l.b16 %v4294
        %v4423 = vunpack.c.l.b16 %v4295
        %v4424 = vunpack.c.l.b16 %v4296
        %v4425 = vunpack.c.l.b16 %v4297
        %v4426 = vunpack.c.l.b16 %v4298
        %v4427 = vunpack.c.l.b16 %v4299
        %v4428 = vunpack.c.l.b16 %v4300
        %v4429 = vunpack.c.l.b16 %v4301
        %v4430 = vunpack.c.l.b16 %v4302
        %v4431 = vunpack.c.l.b16 %v4303
        %v4432 = vunpack.c.l.b16 %v4304
        %v4433 = vunpack.c.l.b16 %v4305
        %v4434 = vunpack.c.l.b16 %v4306
        %v4435 = vunpack.c.l.b16 %v4307
        %v4436 = vunpack.c.l.b16 %v4308
        %v4437 = vunpack.c.l.b16 %v4309
        %v4438 = vunpack.c.l.b16 %v4310
        %v4439 = vunpack.c.l.b16 %v4311
        %v4440 = vunpack.c.l.b16 %v4312
        %v4441 = vunpack.c.l.b16 %v4313
        %v4442 = vunpack.c.l.b16 %v4314
        %v4443 = vunpack.c.l.b16 %v4315
        %v4444 = vunpack.c.l.b16 %v4316
        %v4445 = vunpack.c.l.b16 %v4317
        %v4446 = vunpack.c.l.b16 %v4318
        %v4447 = vunpack.c.l.b16 %v4319
        %v4448 = vunpack.c.l.b16 %v4320
        %v4449 = vunpack.c.l.b16 %v4321
        %v4450 = vunpack.c.l.b16 %v4322
        %v4451 = vunpack.c.l.b16 %v4323
        %v4452 = vunpack.c.l.b16 %v4324
        %v4453 = vunpack.c.l.b16 %v4325
        %v4454 = vunpack.c.l.b16 %v4326
        %v4455 = vunpack.c.l.b16 %v4327
        %v4456 = vunpack.c.l.b16 %v4328
        %v4457 = vunpack.c.l.b16 %v4329
        %v4458 = vunpack.c.l.b16 %v4330
        %v4459 = vunpack.c.l.b16 %v4331
        %v4460 = vunpack.c.l.b16 %v4332
        %v4461 = vunpack.c.l.b16 %v4333
        %v4462 = vunpack.c.l.b16 %v4334
        %v4463 = vunpack.c.l.b16 %v4335
        %v4464 = vunpack.c.l.b16 %v4336
        %v4465 = vunpack.c.l.b16 %v4337
        %v4466 = vunpack.c.l.b16 %v4338
        %v4467 = vunpack.c.l.b16 %v4339
        %v4468 = vunpack.c.l.b16 %v4340
        %v4469 = vunpack.c.l.b16 %v4341
        %v4470 = vunpack.c.l.b16 %v4342
        %v4471 = vunpack.c.l.b16 %v4343
        %v4472 = vunpack.c.l.b16 %v4344
        %v4473 = vunpack.c.l.b16 %v4345
        %v4474 = vunpack.c.l.b16 %v4346
        %v4475 = vunpack.c.l.b16 %v4347
        %v4476 = vunpack.c.l.b16 %v4348
        %v4477 = vunpack.c.l.b16 %v4349
        %v4478 = vunpack.c.l.b16 %v4350
        %v4479 = vpack.c.b16 %v4416, %v4415
        %v4480 = vpack.c.b16 %v4418, %v4417
        %v4481 = vpack.c.b16 %v4420, %v4419
        %v4482 = vpack.c.b16 %v4422, %v4421
        %v4483 = vpack.c.b16 %v4424, %v4423
        %v4484 = vpack.c.b16 %v4426, %v4425
        %v4485 = vpack.c.b16 %v4428, %v4427
        %v4486 = vpack.c.b16 %v4430, %v4429
        %v4487 = vpack.c.b16 %v4432, %v4431
        %v4488 = vpack.c.b16 %v4434, %v4433
        %v4489 = vpack.c.b16 %v4436, %v4435
        %v4490 = vpack.c.b16 %v4438, %v4437
        %v4491 = vpack.c.b16 %v4440, %v4439
        %v4492 = vpack.c.b16 %v4442, %v4441
        %v4493 = vpack.c.b16 %v4444, %v4443
        %v4494 = vpack.c.b16 %v4446, %v4445
        %v4495 = vpack.c.b16 %v4448, %v4447
        %v4496 = vpack.c.b16 %v4450, %v4449
        %v4497 = vpack.c.b16 %v4452, %v4451
        %v4498 = vpack.c.b16 %v4454, %v4453
        %v4499 = vpack.c.b16 %v4456, %v4455
        %v4500 = vpack.c.b16 %v4458, %v4457
        %v4501 = vpack.c.b16 %v4460, %v4459
        %v4502 = vpack.c.b16 %v4462, %v4461
        %v4503 = vpack.c.b16 %v4464, %v4463
        %v4504 = vpack.c.b16 %v4466, %v4465
        %v4505 = vpack.c.b16 %v4468, %v4467
        %v4506 = vpack.c.b16 %v4470, %v4469
        %v4507 = vpack.c.b16 %v4472, %v4471
        %v4508 = vpack.c.b16 %v4474, %v4473
        %v4509 = vpack.c.b16 %v4476, %v4475
        %v4510 = vpack.c.b16 %v4478, %v4477
        %4543 = vmatpush.bf16.msra.mxu0 %v4486
        %4544 = vmatpush.bf16.msra.mxu0 %v4485
        %4545 = vmatpush.bf16.msra.mxu0 %v4484
        %4546 = vmatpush.bf16.msra.mxu0 %v4483
        %4547 = vmatpush.bf16.msra.mxu0 %v4482
        %4548 = vmatpush.bf16.msra.mxu0 %v4481
        %4549 = vmatpush.bf16.msra.mxu0 %v4480
        %4550 = vmatpush.bf16.msra.mxu0 %v4479
        %4551 = vmatmul.bf16.gmra.mxu0 %v4283
        %v4552 = vpop.f32.mrf.mxu0
        %v4553 = vadd.f32 0.0, %v4552
        %v4554 = vpop.f32.mrf.mxu0
        %4555 = vdwg.mxu0
        %4556 = vmatpush.bf16.msra.mxu0 %v4494
        %4557 = vmatpush.bf16.msra.mxu0 %v4493
        %4558 = vmatpush.bf16.msra.mxu0 %v4492
        %4559 = vmatpush.bf16.msra.mxu0 %v4491
        %4560 = vmatpush.bf16.msra.mxu0 %v4490
        %4561 = vmatpush.bf16.msra.mxu0 %v4489
        %4562 = vmatpush.bf16.msra.mxu0 %v4488
        %4563 = vmatpush.bf16.msra.mxu0 %v4487
        %4564 = vmatmul.bf16.gmra.mxu0 %v4284
        %v4565 = vpop.f32.mrf.mxu0
        %v4566 = vadd.f32 %v4553, %v4565
        %v4567 = vpop.f32.mrf.mxu0
        %4568 = vdwg.mxu0
        %4569 = vmatpush.bf16.msra.mxu0 %v4502
        %4570 = vmatpush.bf16.msra.mxu0 %v4501
        %4571 = vmatpush.bf16.msra.mxu0 %v4500
        %4572 = vmatpush.bf16.msra.mxu0 %v4499
        %4573 = vmatpush.bf16.msra.mxu0 %v4498
        %4574 = vmatpush.bf16.msra.mxu0 %v4497
        %4575 = vmatpush.bf16.msra.mxu0 %v4496
        %4576 = vmatpush.bf16.msra.mxu0 %v4495
        %4577 = vmatmul.bf16.gmra.mxu0 %v4285
        %v4578 = vpop.f32.mrf.mxu0
        %v4579 = vadd.f32 %v4566, %v4578
        %v4580 = vpop.f32.mrf.mxu0
        %4581 = vdwg.mxu0
        %4582 = vmatpush.bf16.msra.mxu0 %v4510
        %4583 = vmatpush.bf16.msra.mxu0 %v4509
        %4584 = vmatpush.bf16.msra.mxu0 %v4508
        %4585 = vmatpush.bf16.msra.mxu0 %v4507
        %4586 = vmatpush.bf16.msra.mxu0 %v4506
        %4587 = vmatpush.bf16.msra.mxu0 %v4505
        %4588 = vmatpush.bf16.msra.mxu0 %v4504
        %4589 = vmatpush.bf16.msra.mxu0 %v4503
        %4590 = vmatmul.bf16.gmra.mxu0 %v4286
        %v4591 = vpop.f32.mrf.mxu0
        %v4592 = vadd.f32 %v4579, %v4591
        %v4593 = vpop.f32.mrf.mxu0
        %4594 = vdwg.mxu0
        %vm4595 = vcmask 9216
        %4596 = vst.msk [vmem:[%s288] sm:$0x3] %vm4595, %v4592
      $region44: #{net_forward.7} parent=35 // pred_fallthru
        _
      %p4597 = scmp.lt.s32.totalorder %s19, 0
      %s4598 = scalar_select %p4597, %s19, 0
      %s4599 = smul.addr %s4598, 2
      %s4600 = scalar_lea.vmem %s4, %s4599
      // Predicated region
      $region45: #{net_forward.7} parent=35 // pred_check
        %p4601 = pneg %p151
      $region46: #{net_forward.7} parent=35 // pred_check_branch
        %4603 = sbr.rel (%p4601) target = $region48
      $region47: #{net_forward.7} parent=35 // pred_region
        _
      $region48: #{net_forward.7} parent=35 // pred_fallthru
        _
      // Predicated region
      $region49: #{net_forward.7} parent=35 // pred_check
        %p4604 = pneg %p151
      $region50: #{net_forward.7} parent=35 // pred_check_branch
        %4606 = sbr.rel (%p4604) target = $region52
      $region51: #{net_forward.7} parent=35 // pred_region
        %p4607 = scmp.lt.s32.totalorder %s19, 0
        %s4608 = scalar_select %p4607, %s19, 0
        %s4609 = smul.addr %s4608, 2
        %s4610 = scalar_lea.vmem %s4, %s4609
      $region52: #{net_forward.7} parent=35 // pred_fallthru
        _
    $region36: #{net_forward.7} parent=5 // pred_fallthru
      _
    %p4611 = scmp.le.s32.totalorder 2, %s10
    // Predicated region
    $region53: #{net_forward.7} parent=5 // pred_check
      %p4612 = pneg %p4611
    $region54: #{net_forward.7} parent=5 // pred_check_branch
      %4614 = sbr.rel (%p4612) target = $region56
    $region55: #{net_forward.7} parent=5 // pred_region
      %s4615 = ssub.s32 %s10, 2
    $region56: #{net_forward.7} parent=5 // pred_fallthru
      _
  $region6: #{net_forward.7} parent=0 // loop_footer
    %s14 = sadd.s32 1, %s10
  $region7: #{net_forward.7} parent=0 // loop_footer_branch
    %9 = sbr.rel target = $region3
  $region8: #{net_forward.7} parent=0 // loop_exit
    _

</llo_original>
